<compile_context>
chip_gen: v5e
topology: v5e:2x2
jax: 0.10.0
libtpu: 0.0.40
codegen_flags: <defaults>
</compile_context>

<pallas_src>
import functools
import math

import jax
import jax.numpy as jnp
from jax.experimental import pallas as pl
from jax.experimental.pallas import tpu as pltpu


# ---------------------------------------------------------------------------
# Pallas kernels
# ---------------------------------------------------------------------------
def _gemm_bias_kernel(x_ref, w_ref, b_ref, o_ref, *, relu: bool):
    """o = relu?(x @ w + b); x/w are bf16, accumulate/bias/ReLU in f32."""
    acc = jnp.dot(x_ref[...], w_ref[...], preferred_element_type=jnp.float32)
    acc = acc + b_ref[...]                       # (1, N) broadcasts over rows
    if relu:
        acc = jnp.maximum(acc, 0.0)
    o_ref[...] = acc.astype(o_ref.dtype)


def _mlp_head_kernel(x_ref, w1_ref, b1_ref, w2_ref, b2_ref, o_ref):
    """Fused FC head: o = relu(x @ w1 + b1) @ w2 + b2 (weights VMEM-resident)."""
    x = x_ref[...].astype(jnp.bfloat16)
    h = jnp.dot(x, w1_ref[...], preferred_element_type=jnp.float32)
    h = jnp.maximum(h + b1_ref[...], 0.0)
    o = jnp.dot(h.astype(jnp.bfloat16), w2_ref[...],
                preferred_element_type=jnp.float32)
    o_ref[...] = o + b2_ref[...]


# ---------------------------------------------------------------------------
# Pallas wrappers
# ---------------------------------------------------------------------------
# Only tile the rows axis beyond this (v7x 2-TC megacore / training batches).
# At inference batch sizes every GEMM is a single grid step: no per-step
# overhead, no masked partial tile.
_M_TILE = 4096


def linear_pallas(x: jnp.ndarray, w: jnp.ndarray, b: jnp.ndarray,
                  relu: bool) -> jnp.ndarray:
    """x: (M, K) bf16, w: (K, N) bf16, b: (1, N) f32 -> (M, N) f32."""
    M, K = x.shape
    Kw, N = w.shape
    assert K == Kw and b.shape == (1, N)

    tm = M if M <= _M_TILE else _M_TILE
    grid = (pl.cdiv(M, tm),)

    flops = 2 * M * K * N
    bytes_accessed = (x.dtype.itemsize * M * K + w.dtype.itemsize * K * N
                      + 4 * (M * N + N))

    return pl.pallas_call(
        functools.partial(_gemm_bias_kernel, relu=relu),
        out_shape=jax.ShapeDtypeStruct((M, N), jnp.float32),
        grid=grid,
        in_specs=[
            pl.BlockSpec((tm, K), lambda i: (i, 0)),
            pl.BlockSpec((K, N), lambda i: (0, 0)),
            pl.BlockSpec((1, N), lambda i: (0, 0)),
        ],
        out_specs=pl.BlockSpec((tm, N), lambda i: (i, 0)),
        compiler_params=pltpu.CompilerParams(
            dimension_semantics=("parallel",)),
        cost_estimate=pl.CostEstimate(
            flops=flops, transcendentals=0, bytes_accessed=bytes_accessed),
    )(x, w, b)


def mlp_head_pallas(x, w1, b1, w2, b2):
    """Fused fc1(ReLU) + fc2.  x: (B, K1) f32 -> (B, N) f32."""
    M, K1 = x.shape
    _, H = w1.shape
    _, N = w2.shape
    flops = 2 * M * K1 * H + 2 * M * H * N
    bytes_accessed = (4 * M * K1 + 2 * K1 * H + 4 * H + 2 * H * N + 4 * N
                      + 4 * M * N)

    return pl.pallas_call(
        _mlp_head_kernel,
        out_shape=jax.ShapeDtypeStruct((M, N), jnp.float32),
        grid=(1,),
        in_specs=[
            pl.BlockSpec((M, K1), lambda i: (0, 0)),
            pl.BlockSpec((K1, H), lambda i: (0, 0)),
            pl.BlockSpec((1, H), lambda i: (0, 0)),
            pl.BlockSpec((H, N), lambda i: (0, 0)),
            pl.BlockSpec((1, N), lambda i: (0, 0)),
        ],
        out_specs=pl.BlockSpec((M, N), lambda i: (0, 0)),
        cost_estimate=pl.CostEstimate(
            flops=flops, transcendentals=0, bytes_accessed=bytes_accessed),
    )(x, w1, b1, w2, b2)


# ---------------------------------------------------------------------------
# Convolution via NHWC im2col (XLA glue) + Pallas GEMM kernel (hot path)
# ---------------------------------------------------------------------------
def _im2col_nhwc(x: jnp.ndarray, k: int, stride: int):
    """x: (B, H, W, C) -> patches (B*Ho*Wo, k*k*C), K ordered as (dy, dx, c)."""
    B, H, W, C = x.shape
    Ho = (H - k) // stride + 1
    Wo = (W - k) // stride + 1
    cols = []
    for dy in range(k):
        for dx in range(k):
            cols.append(
                x[:,
                  dy: dy + stride * (Ho - 1) + 1: stride,
                  dx: dx + stride * (Wo - 1) + 1: stride,
                  :])                              # (B, Ho, Wo, C)
    p = jnp.stack(cols, axis=3)                    # (B, Ho, Wo, k*k, C)
    p = p.reshape(B * Ho * Wo, k * k * C)          # (M, K)
    return p, Ho, Wo


def conv2d_relu_pallas(x_nhwc: jnp.ndarray, w2d: jnp.ndarray, b: jnp.ndarray,
                       *, k: int, stride: int) -> jnp.ndarray:
    """x_nhwc: (B, H, W, Cin); w2d: (k*k*Cin, Cout) bf16; b: (1, Cout) f32."""
    B = x_nhwc.shape[0]
    Cout = w2d.shape[1]
    patches, Ho, Wo = _im2col_nhwc(x_nhwc, k, stride)
    patches = patches.astype(jnp.bfloat16)         # halve patch HBM traffic
    y = linear_pallas(patches, w2d, b, relu=True)  # (B*Ho*Wo, Cout) NHWC-flat
    return y.reshape(B, Ho, Wo, Cout)              # free reshape, stays NHWC


# ---------------------------------------------------------------------------
# Parameters: torch-layout init + one-time GEMM-ready preparation
# ---------------------------------------------------------------------------
def _uniform(key, shape, bound):
    return jax.random.uniform(key, shape, jnp.float32, -bound, bound)


def init_dqn_params(key, input_channels: int, output_dim: int):
    """PyTorch-layout params (conv: (Cout, Cin, k, k); fc: (in, out)), f32."""
    ks = jax.random.split(key, 10)
    p = {}

    def conv_init(kw_, kb_, cout, cin, ksz):
        bound = 1.0 / math.sqrt(cin * ksz * ksz)
        return (_uniform(kw_, (cout, cin, ksz, ksz), bound),
                _uniform(kb_, (cout,), bound))

    def fc_init(kw_, kb_, cin, cout):
        bound = 1.0 / math.sqrt(cin)
        return _uniform(kw_, (cin, cout), bound), _uniform(kb_, (cout,), bound)

    p["conv1_w"], p["conv1_b"] = conv_init(ks[0], ks[1], 16, input_channels, 5)
    p["conv2_w"], p["conv2_b"] = conv_init(ks[2], ks[3], 32, 16, 5)
    p["conv3_w"], p["conv3_b"] = conv_init(ks[4], ks[5], 32, 32, 5)
    # conv feature size for (1, input_channels, 80, 80): 32 * 7 * 7 = 1568
    p["fc1_w"], p["fc1_b"] = fc_init(ks[6], ks[7], 32 * 7 * 7, 256)
    p["fc2_w"], p["fc2_b"] = fc_init(ks[8], ks[9], 256, output_dim)
    return p


def prepare_params(p):
    """One-time conversion into GEMM-ready operands.

    * conv weights -> (k*k*Cin, Cout) bf16, matching the (dy, dx, c) im2col order
    * fc1 weight rows re-permuted from NCHW-flatten order (c, h, w) to
      NHWC-flatten order (h, w, c), folding PyTorch's .view() semantics in; bf16
    * biases stored as (1, N) f32 (bias add / ReLU stay f32 for v5e)
    """
    q = {}
    for i in (1, 2, 3):
        w = p[f"conv{i}_w"]                                  # (Cout, Cin, k, k)
        cout, cin, k, _ = w.shape
        q[f"conv{i}_w"] = (w.transpose(2, 3, 1, 0)
                            .reshape(k * k * cin, cout)
                            .astype(jnp.bfloat16))
        q[f"conv{i}_b"] = p[f"conv{i}_b"].reshape(1, cout)
    w1 = p["fc1_w"]                                          # (1568, 256)
    q["fc1_w"] = (w1.reshape(32, 7, 7, w1.shape[1])          # rows = (c, h, w)
                    .transpose(1, 2, 0, 3)
                    .reshape(32 * 7 * 7, w1.shape[1])        # rows = (h, w, c)
                    .astype(jnp.bfloat16))
    q["fc1_b"] = p["fc1_b"].reshape(1, -1)
    q["fc2_w"] = p["fc2_w"].astype(jnp.bfloat16)
    q["fc2_b"] = p["fc2_b"].reshape(1, -1)
    return q


# ---------------------------------------------------------------------------
# Forward pass (matches PyTorch DQN.forward)
# ---------------------------------------------------------------------------
@jax.jit
def dqn_forward(params, x_nchw):
    B, C, H, W = x_nchw.shape
    if C == 1:
        x = x_nchw.reshape(B, H, W, 1)        # free: NCHW == NHWC when C == 1
    else:
        x = x_nchw.transpose(0, 2, 3, 1)      # one boundary transpose (C > 1)
    x = conv2d_relu_pallas(x, params["conv1_w"], params["conv1_b"], k=5, stride=2)
    x = conv2d_relu_pallas(x, params["conv2_w"], params["conv2_b"], k=5, stride=2)
    x = conv2d_relu_pallas(x, params["conv3_w"], params["conv3_b"], k=5, stride=2)
    x = x.reshape(B, -1)            # NHWC flatten; fc1_w already permuted for it
    return mlp_head_pallas(x, params["fc1_w"], params["fc1_b"],
                           params["fc2_w"], params["fc2_b"])


# ---------------------------------------------------------------------------
# Pure-JAX (XLA, f32) reference for in-script verification
# ---------------------------------------------------------------------------
@jax.jit
def dqn_forward_reference(p, x):
    def conv(x, w, b, stride):
        y = jax.lax.conv_general_dilated(
            x, w, (stride, stride), "VALID",
            dimension_numbers=("NCHW", "OIHW", "NCHW"))
        return jax.nn.relu(y + b[None, :, None, None])
    x = conv(x, p["conv1_w"], p["conv1_b"], 2)
    x = conv(x, p["conv2_w"], p["conv2_b"], 2)
    x = conv(x, p["conv3_w"], p["conv3_b"], 2)
    x = x.reshape(x.shape[0], -1)                 # NCHW flatten (torch .view)
    x = jax.nn.relu(x @ p["fc1_w"] + p["fc1_b"])
    return x @ p["fc2_w"] + p["fc2_b"]


if __name__ == "__main__":
    INPUT_CHANNELS = 1
    OUTPUT_DIM = 6          # Pong action space size
    BATCH = 2

    key = jax.random.PRNGKey(0)
    k_params, k_x = jax.random.split(key)

    torch_layout_params = init_dqn_params(k_params, INPUT_CHANNELS, OUTPUT_DIM)
    params = prepare_params(torch_layout_params)   # one-time, outside the jit
    x = jax.random.normal(k_x, (BATCH, INPUT_CHANNELS, 80, 80), jnp.float32)

    q_values = dqn_forward(params, x)
    jax.block_until_ready(q_values)

    assert q_values.shape == (BATCH, OUTPUT_DIM)
    assert q_values.dtype == jnp.float32

    # Verify against the XLA f32 reference (bf16 MXU inputs => small drift).
    q_ref = dqn_forward_reference(torch_layout_params, x)
    max_err = float(jnp.max(jnp.abs(q_values - q_ref)))
    assert max_err < 5e-2, f"mismatch vs reference: max abs err {max_err}"

    print("KERNEL_OK")
</pallas_src>

<mosaic_0001>
module attributes {stable_mosaic.version = 11 : i64} {
  func.func @_gemm_bias_kernel(%arg0: i32, %arg1: memref<2888x25xbf16, #tpu.memory_space<vmem>>, %arg2: memref<25x16xbf16, #tpu.memory_space<vmem>>, %arg3: memref<1x16xf32, #tpu.memory_space<vmem>>, %arg4: memref<2888x16xf32, #tpu.memory_space<vmem>>) attributes {dimension_semantics = [#tpu.dimension_semantics<parallel>], iteration_bounds = array<i64: 1>, scalar_prefetch = 0 : i64, scratch_operands = 0 : i64, tpu.core_type = #tpu.core_type<tc>, window_params = [{transform_indices = @transform_0, window_bounds = array<i64: 2888, 25>}, {pipeline_mode = #tpu.pipeline_mode<synchronous>, transform_indices = @transform_1, window_bounds = array<i64: 25, 16>}, {pipeline_mode = #tpu.pipeline_mode<synchronous>, transform_indices = @transform_2, window_bounds = array<i64: 1, 16>}, {transform_indices = @transform_3, window_bounds = array<i64: 2888, 16>}]} {
    %c0 = arith.constant 0 : index
    %c0_0 = arith.constant 0 : index
    %0 = vector.load %arg1[%c0, %c0_0] : memref<2888x25xbf16, #tpu.memory_space<vmem>>, vector<2888x25xbf16>
    %c0_1 = arith.constant 0 : index
    %c0_2 = arith.constant 0 : index
    %1 = vector.load %arg2[%c0_1, %c0_2] : memref<25x16xbf16, #tpu.memory_space<vmem>>, vector<25x16xbf16>
    %cst = arith.constant dense<0.000000e+00> : vector<2888x16xf32>
    %2 = tpu.matmul %0, %1, %cst {dimension_numbers = #tpu.dot_dimension_numbers<[1], [0], [0], [1], [0, 0, 1, 1], [], []>} : vector<2888x25xbf16>, vector<25x16xbf16>, vector<2888x16xf32> -> vector<2888x16xf32>
    %c0_3 = arith.constant 0 : index
    %c0_4 = arith.constant 0 : index
    %3 = vector.load %arg3[%c0_3, %c0_4] : memref<1x16xf32, #tpu.memory_space<vmem>>, vector<1x16xf32>
    %4 = vector.broadcast %3 : vector<1x16xf32> to vector<2888x16xf32>
    %5 = arith.addf %2, %4 : vector<2888x16xf32>
    %cst_5 = arith.constant 0.000000e+00 : f32
    %6 = vector.broadcast %cst_5 : f32 to vector<2888x16xf32>
    %7 = arith.maximumf %5, %6 : vector<2888x16xf32>
    %c0_6 = arith.constant 0 : index
    %c0_7 = arith.constant 0 : index
    %8 = vector.load %arg4[%c0_6, %c0_7] : memref<2888x16xf32, #tpu.memory_space<vmem>>, vector<2888x16xf32>
    tpu.vector_store %arg4[%c0_6, %c0_7], %7 {strides = array<i32>} : memref<2888x16xf32, #tpu.memory_space<vmem>>, vector<2888x16xf32>,
    return
  }
  func.func @transform_0(%arg0: i32) -> (i32, i32) {
    %c0_i32 = arith.constant 0 : i32
    %c0_i32_0 = arith.constant 0 : i32
    return %arg0, %c0_i32 : i32, i32
  }
  func.func @transform_1(%arg0: i32) -> (i32, i32) {
    %c0_i32 = arith.constant 0 : i32
    %c0_i32_0 = arith.constant 0 : i32
    %c0_i32_1 = arith.constant 0 : i32
    return %c0_i32, %c0_i32_0 : i32, i32
  }
  func.func @transform_2(%arg0: i32) -> (i32, i32) {
    %c0_i32 = arith.constant 0 : i32
    %c0_i32_0 = arith.constant 0 : i32
    %c0_i32_1 = arith.constant 0 : i32
    return %c0_i32, %c0_i32_0 : i32, i32
  }
  func.func @transform_3(%arg0: i32) -> (i32, i32) {
    %c0_i32 = arith.constant 0 : i32
    %c0_i32_0 = arith.constant 0 : i32
    return %arg0, %c0_i32 : i32, i32
  }
}

module attributes {stable_mosaic.version = 11 : i64} {
  func.func @_gemm_bias_kernel(%arg0: i32, %arg1: memref<578x400xbf16, #tpu.memory_space<vmem>>, %arg2: memref<400x32xbf16, #tpu.memory_space<vmem>>, %arg3: memref<1x32xf32, #tpu.memory_space<vmem>>, %arg4: memref<578x32xf32, #tpu.memory_space<vmem>>) attributes {dimension_semantics = [#tpu.dimension_semantics<parallel>], iteration_bounds = array<i64: 1>, scalar_prefetch = 0 : i64, scratch_operands = 0 : i64, tpu.core_type = #tpu.core_type<tc>, window_params = [{transform_indices = @transform_0, window_bounds = array<i64: 578, 400>}, {pipeline_mode = #tpu.pipeline_mode<synchronous>, transform_indices = @transform_1, window_bounds = array<i64: 400, 32>}, {pipeline_mode = #tpu.pipeline_mode<synchronous>, transform_indices = @transform_2, window_bounds = array<i64: 1, 32>}, {transform_indices = @transform_3, window_bounds = array<i64: 578, 32>}]} {
    %c0 = arith.constant 0 : index
    %c0_0 = arith.constant 0 : index
    %0 = vector.load %arg1[%c0, %c0_0] : memref<578x400xbf16, #tpu.memory_space<vmem>>, vector<578x400xbf16>
    %c0_1 = arith.constant 0 : index
    %c0_2 = arith.constant 0 : index
    %1 = vector.load %arg2[%c0_1, %c0_2] : memref<400x32xbf16, #tpu.memory_space<vmem>>, vector<400x32xbf16>
    %cst = arith.constant dense<0.000000e+00> : vector<578x32xf32>
    %2 = tpu.matmul %0, %1, %cst {dimension_numbers = #tpu.dot_dimension_numbers<[1], [0], [0], [1], [0, 0, 1, 1], [], []>} : vector<578x400xbf16>, vector<400x32xbf16>, vector<578x32xf32> -> vector<578x32xf32>
    %c0_3 = arith.constant 0 : index
    %c0_4 = arith.constant 0 : index
    %3 = vector.load %arg3[%c0_3, %c0_4] : memref<1x32xf32, #tpu.memory_space<vmem>>, vector<1x32xf32>
    %4 = vector.broadcast %3 : vector<1x32xf32> to vector<578x32xf32>
    %5 = arith.addf %2, %4 : vector<578x32xf32>
    %cst_5 = arith.constant 0.000000e+00 : f32
    %6 = vector.broadcast %cst_5 : f32 to vector<578x32xf32>
    %7 = arith.maximumf %5, %6 : vector<578x32xf32>
    %c0_6 = arith.constant 0 : index
    %c0_7 = arith.constant 0 : index
    %8 = vector.load %arg4[%c0_6, %c0_7] : memref<578x32xf32, #tpu.memory_space<vmem>>, vector<578x32xf32>
    tpu.vector_store %arg4[%c0_6, %c0_7], %7 {strides = array<i32>} : memref<578x32xf32, #tpu.memory_space<vmem>>, vector<578x32xf32>,
    return
  }
  func.func @transform_0(%arg0: i32) -> (i32, i32) {
    %c0_i32 = arith.constant 0 : i32
    %c0_i32_0 = arith.constant 0 : i32
    return %arg0, %c0_i32 : i32, i32
  }
  func.func @transform_1(%arg0: i32) -> (i32, i32) {
    %c0_i32 = arith.constant 0 : i32
    %c0_i32_0 = arith.constant 0 : i32
    %c0_i32_1 = arith.constant 0 : i32
    return %c0_i32, %c0_i32_0 : i32, i32
  }
  func.func @transform_2(%arg0: i32) -> (i32, i32) {
    %c0_i32 = arith.constant 0 : i32
    %c0_i32_0 = arith.constant 0 : i32
    %c0_i32_1 = arith.constant 0 : i32
    return %c0_i32, %c0_i32_0 : i32, i32
  }
  func.func @transform_3(%arg0: i32) -> (i32, i32) {
    %c0_i32 = arith.constant 0 : i32
    %c0_i32_0 = arith.constant 0 : i32
    return %arg0, %c0_i32 : i32, i32
  }
}

module attributes {stable_mosaic.version = 11 : i64} {
  func.func @_gemm_bias_kernel(%arg0: i32, %arg1: memref<98x800xbf16, #tpu.memory_space<vmem>>, %arg2: memref<800x32xbf16, #tpu.memory_space<vmem>>, %arg3: memref<1x32xf32, #tpu.memory_space<vmem>>, %arg4: memref<98x32xf32, #tpu.memory_space<vmem>>) attributes {dimension_semantics = [#tpu.dimension_semantics<parallel>], iteration_bounds = array<i64: 1>, scalar_prefetch = 0 : i64, scratch_operands = 0 : i64, tpu.core_type = #tpu.core_type<tc>, window_params = [{transform_indices = @transform_0, window_bounds = array<i64: 98, 800>}, {pipeline_mode = #tpu.pipeline_mode<synchronous>, transform_indices = @transform_1, window_bounds = array<i64: 800, 32>}, {pipeline_mode = #tpu.pipeline_mode<synchronous>, transform_indices = @transform_2, window_bounds = array<i64: 1, 32>}, {transform_indices = @transform_3, window_bounds = array<i64: 98, 32>}]} {
    %c0 = arith.constant 0 : index
    %c0_0 = arith.constant 0 : index
    %0 = vector.load %arg1[%c0, %c0_0] : memref<98x800xbf16, #tpu.memory_space<vmem>>, vector<98x800xbf16>
    %c0_1 = arith.constant 0 : index
    %c0_2 = arith.constant 0 : index
    %1 = vector.load %arg2[%c0_1, %c0_2] : memref<800x32xbf16, #tpu.memory_space<vmem>>, vector<800x32xbf16>
    %cst = arith.constant dense<0.000000e+00> : vector<98x32xf32>
    %2 = tpu.matmul %0, %1, %cst {dimension_numbers = #tpu.dot_dimension_numbers<[1], [0], [0], [1], [0, 0, 1, 1], [], []>} : vector<98x800xbf16>, vector<800x32xbf16>, vector<98x32xf32> -> vector<98x32xf32>
    %c0_3 = arith.constant 0 : index
    %c0_4 = arith.constant 0 : index
    %3 = vector.load %arg3[%c0_3, %c0_4] : memref<1x32xf32, #tpu.memory_space<vmem>>, vector<1x32xf32>
    %4 = vector.broadcast %3 : vector<1x32xf32> to vector<98x32xf32>
    %5 = arith.addf %2, %4 : vector<98x32xf32>
    %cst_5 = arith.constant 0.000000e+00 : f32
    %6 = vector.broadcast %cst_5 : f32 to vector<98x32xf32>
    %7 = arith.maximumf %5, %6 : vector<98x32xf32>
    %c0_6 = arith.constant 0 : index
    %c0_7 = arith.constant 0 : index
    %8 = vector.load %arg4[%c0_6, %c0_7] : memref<98x32xf32, #tpu.memory_space<vmem>>, vector<98x32xf32>
    tpu.vector_store %arg4[%c0_6, %c0_7], %7 {strides = array<i32>} : memref<98x32xf32, #tpu.memory_space<vmem>>, vector<98x32xf32>,
    return
  }
  func.func @transform_0(%arg0: i32) -> (i32, i32) {
    %c0_i32 = arith.constant 0 : i32
    %c0_i32_0 = arith.constant 0 : i32
    return %arg0, %c0_i32 : i32, i32
  }
  func.func @transform_1(%arg0: i32) -> (i32, i32) {
    %c0_i32 = arith.constant 0 : i32
    %c0_i32_0 = arith.constant 0 : i32
    %c0_i32_1 = arith.constant 0 : i32
    return %c0_i32, %c0_i32_0 : i32, i32
  }
  func.func @transform_2(%arg0: i32) -> (i32, i32) {
    %c0_i32 = arith.constant 0 : i32
    %c0_i32_0 = arith.constant 0 : i32
    %c0_i32_1 = arith.constant 0 : i32
    return %c0_i32, %c0_i32_0 : i32, i32
  }
  func.func @transform_3(%arg0: i32) -> (i32, i32) {
    %c0_i32 = arith.constant 0 : i32
    %c0_i32_0 = arith.constant 0 : i32
    return %arg0, %c0_i32 : i32, i32
  }
}

module attributes {stable_mosaic.version = 11 : i64} {
  func.func @_mlp_head_kernel(%arg0: i32, %arg1: memref<2x1568xf32, #tpu.memory_space<vmem>>, %arg2: memref<1568x256xbf16, #tpu.memory_space<vmem>>, %arg3: memref<1x256xf32, #tpu.memory_space<vmem>>, %arg4: memref<256x6xbf16, #tpu.memory_space<vmem>>, %arg5: memref<1x6xf32, #tpu.memory_space<vmem>>, %arg6: memref<2x6xf32, #tpu.memory_space<vmem>>) attributes {dimension_semantics = [#tpu.dimension_semantics<arbitrary>], iteration_bounds = array<i64: 1>, scalar_prefetch = 0 : i64, scratch_operands = 0 : i64, tpu.core_type = #tpu.core_type<tc>, window_params = [{pipeline_mode = #tpu.pipeline_mode<synchronous>, transform_indices = @transform_0, window_bounds = array<i64: 2, 1568>}, {pipeline_mode = #tpu.pipeline_mode<synchronous>, transform_indices = @transform_1, window_bounds = array<i64: 1568, 256>}, {pipeline_mode = #tpu.pipeline_mode<synchronous>, transform_indices = @transform_2, window_bounds = array<i64: 1, 256>}, {pipeline_mode = #tpu.pipeline_mode<synchronous>, transform_indices = @transform_3, window_bounds = array<i64: 256, 6>}, {pipeline_mode = #tpu.pipeline_mode<synchronous>, transform_indices = @transform_4, window_bounds = array<i64: 1, 6>}, {pipeline_mode = #tpu.pipeline_mode<synchronous>, transform_indices = @transform_5, window_bounds = array<i64: 2, 6>}]} {
    %c0 = arith.constant 0 : index
    %c0_0 = arith.constant 0 : index
    %0 = vector.load %arg1[%c0, %c0_0] : memref<2x1568xf32, #tpu.memory_space<vmem>>, vector<2x1568xf32>
    %1 = arith.truncf %0 : vector<2x1568xf32> to vector<2x1568xbf16>
    %c0_1 = arith.constant 0 : index
    %c0_2 = arith.constant 0 : index
    %2 = vector.load %arg2[%c0_1, %c0_2] : memref<1568x256xbf16, #tpu.memory_space<vmem>>, vector<1568x256xbf16>
    %cst = arith.constant dense<0.000000e+00> : vector<2x256xf32>
    %3 = tpu.matmul %1, %2, %cst {dimension_numbers = #tpu.dot_dimension_numbers<[1], [0], [0], [1], [0, 0, 1, 1], [], []>} : vector<2x1568xbf16>, vector<1568x256xbf16>, vector<2x256xf32> -> vector<2x256xf32>
    %c0_3 = arith.constant 0 : index
    %c0_4 = arith.constant 0 : index
    %4 = vector.load %arg3[%c0_3, %c0_4] : memref<1x256xf32, #tpu.memory_space<vmem>>, vector<1x256xf32>
    %5 = vector.broadcast %4 : vector<1x256xf32> to vector<2x256xf32>
    %6 = arith.addf %3, %5 : vector<2x256xf32>
    %cst_5 = arith.constant 0.000000e+00 : f32
    %7 = vector.broadcast %cst_5 : f32 to vector<2x256xf32>
    %8 = arith.maximumf %6, %7 : vector<2x256xf32>
    %9 = arith.truncf %8 : vector<2x256xf32> to vector<2x256xbf16>
    %c0_6 = arith.constant 0 : index
    %c0_7 = arith.constant 0 : index
    %10 = vector.load %arg4[%c0_6, %c0_7] : memref<256x6xbf16, #tpu.memory_space<vmem>>, vector<256x6xbf16>
    %cst_8 = arith.constant dense<0.000000e+00> : vector<2x6xf32>
    %11 = tpu.matmul %9, %10, %cst_8 {dimension_numbers = #tpu.dot_dimension_numbers<[1], [0], [0], [1], [0, 0, 1, 1], [], []>} : vector<2x256xbf16>, vector<256x6xbf16>, vector<2x6xf32> -> vector<2x6xf32>
    %c0_9 = arith.constant 0 : index
    %c0_10 = arith.constant 0 : index
    %12 = vector.load %arg5[%c0_9, %c0_10] : memref<1x6xf32, #tpu.memory_space<vmem>>, vector<1x6xf32>
    %13 = vector.broadcast %12 : vector<1x6xf32> to vector<2x6xf32>
    %14 = arith.addf %11, %13 : vector<2x6xf32>
    %c0_11 = arith.constant 0 : index
    %c0_12 = arith.constant 0 : index
    %15 = vector.load %arg6[%c0_11, %c0_12] : memref<2x6xf32, #tpu.memory_space<vmem>>, vector<2x6xf32>
    tpu.vector_store %arg6[%c0_11, %c0_12], %14 {strides = array<i32>} : memref<2x6xf32, #tpu.memory_space<vmem>>, vector<2x6xf32>,
    return
  }
  func.func @transform_0(%arg0: i32) -> (i32, i32) {
    %c0_i32 = arith.constant 0 : i32
    %c0_i32_0 = arith.constant 0 : i32
    %c0_i32_1 = arith.constant 0 : i32
    return %c0_i32, %c0_i32_0 : i32, i32
  }
  func.func @transform_1(%arg0: i32) -> (i32, i32) {
    %c0_i32 = arith.constant 0 : i32
    %c0_i32_0 = arith.constant 0 : i32
    %c0_i32_1 = arith.constant 0 : i32
    return %c0_i32, %c0_i32_0 : i32, i32
  }
  func.func @transform_2(%arg0: i32) -> (i32, i32) {
    %c0_i32 = arith.constant 0 : i32
    %c0_i32_0 = arith.constant 0 : i32
    %c0_i32_1 = arith.constant 0 : i32
    return %c0_i32, %c0_i32_0 : i32, i32
  }
  func.func @transform_3(%arg0: i32) -> (i32, i32) {
    %c0_i32 = arith.constant 0 : i32
    %c0_i32_0 = arith.constant 0 : i32
    %c0_i32_1 = arith.constant 0 : i32
    return %c0_i32, %c0_i32_0 : i32, i32
  }
  func.func @transform_4(%arg0: i32) -> (i32, i32) {
    %c0_i32 = arith.constant 0 : i32
    %c0_i32_0 = arith.constant 0 : i32
    %c0_i32_1 = arith.constant 0 : i32
    return %c0_i32, %c0_i32_0 : i32, i32
  }
  func.func @transform_5(%arg0: i32) -> (i32, i32) {
    %c0_i32 = arith.constant 0 : i32
    %c0_i32_0 = arith.constant 0 : i32
    %c0_i32_1 = arith.constant 0 : i32
    return %c0_i32, %c0_i32_0 : i32, i32
  }
}

</mosaic_0001>

<llo_original>
// kernel: dqn_forward.4
$region0: #{dqn_forward.4}
  #allocation0 [shape = 'u32[]', space=smem, size = 0x4, offset = 0x4, fixed_abs, tag = 'smem constant byte address 0x4 - core index']
  #allocation1 [shape = 'u32[72,128]{1,0:T(1,128)}', space=vmem, size = 0x9000, scoped, tag = 'internal scratch']
  %s0 = inlined_call_operand.vmem [shape: bf16[2888,25], index: 0, kind: input, shape index: {}]
  %s1 = inlined_call_operand.vmem [shape: bf16[25,16], index: 1, kind: input, shape index: {}]
  %s2 = inlined_call_operand.hbm [shape: f32[1,16], index: 2, kind: input, shape index: {}]
  %s3 = inlined_call_operand.vmem [shape: f32[2888,16], index: 3, kind: output, shape index: {}]
  %s4 = sld [smem:[#allocation0]]
  $region26: #{dqn_forward.4} parent=0
    _
  %s6 = ssub.s32 1, %s4
  %s7 = scalar_select 0, %s6, %s4
  $region1: #{dqn_forward.4} parent=0
    #allocation2 [shape = 'u8[512]{0}', space=vmem, size = 0x400, scoped, tag = 'input window, operand 2, single buffered']
    #allocation3 [shape = 's32[1]{0}', space=sflag, size = 0x4, scoped, tag = 'scoped memory for dqn_forward.4']
    %8 = vsyncpa [#allocation3], 0
    // Predicated region
    $region2: #{dqn_forward.4} parent=1 // pred_check
      _
    $region3: #{dqn_forward.4} parent=1 // pred_check_branch
      %10 = sbr.rel (0) target = $region5
    $region4: #{dqn_forward.4} parent=1 // pred_region
      _
    $region5: #{dqn_forward.4} parent=1 // pred_fallthru
      _
    // Predicated region
    $region6: #{dqn_forward.4} parent=1 // pred_check
      _
    $region7: #{dqn_forward.4} parent=1 // pred_check_branch
      %12 = sbr.rel (0) target = $region9
    $region8: #{dqn_forward.4} parent=1 // pred_region
      _
    $region9: #{dqn_forward.4} parent=1 // pred_fallthru
      _
    // Predicated region
    $region10: #{dqn_forward.4} parent=1 // pred_check
      _
    $region11: #{dqn_forward.4} parent=1 // pred_check_branch
      %14 = sbr.rel (0) target = $region13
    $region12: #{dqn_forward.4} parent=1 // pred_region
      %16 = vsyncadd [#allocation3], 0
      %s18 = sshll.u32 %s2, 4
      %s19 = int_to_ptr.hbm [resolvable:$true] %s18
      %s20 = sshll.u32 [#allocation2], 4
      %s21 = int_to_ptr.vmem [resolvable:$true] %s20
      %23 = dma.hbm_to_vmem [thread:$0]  %s19, 16, %s21, [#allocation3]
    $region13: #{dqn_forward.4} parent=1 // pred_fallthru
      _
    // Predicated region
    $region14: #{dqn_forward.4} parent=1 // pred_check
      _
    $region15: #{dqn_forward.4} parent=1 // pred_check_branch
      %25 = sbr.rel (0) target = $region17
    $region16: #{dqn_forward.4} parent=1 // pred_region
      %27 = dma.done [#allocation3], 16
    $region17: #{dqn_forward.4} parent=1 // pred_fallthru
      _
    %v29 = vld [vmem:[%s0] sm:$0xf]
    %v30 = vld [vmem:[%s0 + $0x4] sm:$0xf]
    %v31 = vld [vmem:[%s0 + $0x8] sm:$0xf]
    %v32 = vld [vmem:[%s0 + $0xc] sm:$0xf]
    %v33 = vld [vmem:[%s0 + $0x10] sm:$0xf]
    %v34 = vld [vmem:[%s0 + $0x14] sm:$0xf]
    %v35 = vld [vmem:[%s0 + $0x18] sm:$0xf]
    %v36 = vld [vmem:[%s0 + $0x1c] sm:$0xf]
    %v37 = vld [vmem:[%s0 + $0x20] sm:$0xf]
    %v38 = vld [vmem:[%s0 + $0x24] sm:$0xf]
    %v39 = vld [vmem:[%s0 + $0x28] sm:$0xf]
    %v40 = vld [vmem:[%s0 + $0x2c] sm:$0xf]
    %v41 = vld [vmem:[%s0 + $0x30] sm:$0xf]
    %v42 = vld [vmem:[%s0 + $0x34] sm:$0xf]
    %v43 = vld [vmem:[%s0 + $0x38] sm:$0xf]
    %v44 = vld [vmem:[%s0 + $0x3c] sm:$0xf]
    %v45 = vld [vmem:[%s0 + $0x40] sm:$0xf]
    %v46 = vld [vmem:[%s0 + $0x44] sm:$0xf]
    %v47 = vld [vmem:[%s0 + $0x48] sm:$0xf]
    %v48 = vld [vmem:[%s0 + $0x4c] sm:$0xf]
    %v49 = vld [vmem:[%s0 + $0x50] sm:$0xf]
    %v50 = vld [vmem:[%s0 + $0x54] sm:$0xf]
    %v51 = vld [vmem:[%s0 + $0x58] sm:$0xf]
    %v52 = vld [vmem:[%s0 + $0x5c] sm:$0xf]
    %v53 = vld [vmem:[%s0 + $0x60] sm:$0xf]
    %v54 = vld [vmem:[%s0 + $0x64] sm:$0xf]
    %v55 = vld [vmem:[%s0 + $0x68] sm:$0xf]
    %v56 = vld [vmem:[%s0 + $0x6c] sm:$0xf]
    %v57 = vld [vmem:[%s0 + $0x70] sm:$0xf]
    %v58 = vld [vmem:[%s0 + $0x74] sm:$0xf]
    %v59 = vld [vmem:[%s0 + $0x78] sm:$0xf]
    %v60 = vld [vmem:[%s0 + $0x7c] sm:$0xf]
    %v61 = vld [vmem:[%s0 + $0x80] sm:$0xf]
    %v62 = vld [vmem:[%s0 + $0x84] sm:$0xf]
    %v63 = vld [vmem:[%s0 + $0x88] sm:$0xf]
    %v64 = vld [vmem:[%s0 + $0x8c] sm:$0xf]
    %v65 = vld [vmem:[%s0 + $0x90] sm:$0xf]
    %v66 = vld [vmem:[%s0 + $0x94] sm:$0xf]
    %v67 = vld [vmem:[%s0 + $0x98] sm:$0xf]
    %v68 = vld [vmem:[%s0 + $0x9c] sm:$0xf]
    %v69 = vld [vmem:[%s0 + $0xa0] sm:$0xf]
    %v70 = vld [vmem:[%s0 + $0xa4] sm:$0xf]
    %v71 = vld [vmem:[%s0 + $0xa8] sm:$0xf]
    %v72 = vld [vmem:[%s0 + $0xac] sm:$0xf]
    %v73 = vld [vmem:[%s0 + $0xb0] sm:$0xf]
    %v74 = vld [vmem:[%s0 + $0xb4] sm:$0xf]
    %v75 = vld [vmem:[%s0 + $0xb8] sm:$0xf]
    %v76 = vld [vmem:[%s0 + $0xbc] sm:$0xf]
    %v77 = vld [vmem:[%s0 + $0xc0] sm:$0xf]
    %v78 = vld [vmem:[%s0 + $0xc4] sm:$0xf]
    %v79 = vld [vmem:[%s0 + $0xc8] sm:$0xf]
    %v80 = vld [vmem:[%s0 + $0xcc] sm:$0xf]
    %v81 = vld [vmem:[%s0 + $0xd0] sm:$0xf]
    %v82 = vld [vmem:[%s0 + $0xd4] sm:$0xf]
    %v83 = vld [vmem:[%s0 + $0xd8] sm:$0xf]
    %v84 = vld [vmem:[%s0 + $0xdc] sm:$0xf]
    %v85 = vld [vmem:[%s0 + $0xe0] sm:$0xf]
    %v86 = vld [vmem:[%s0 + $0xe4] sm:$0xf]
    %v87 = vld [vmem:[%s0 + $0xe8] sm:$0xf]
    %v88 = vld [vmem:[%s0 + $0xec] sm:$0xf]
    %v89 = vld [vmem:[%s0 + $0xf0] sm:$0xf]
    %v90 = vld [vmem:[%s0 + $0xf4] sm:$0xf]
    %v91 = vld [vmem:[%s0 + $0xf8] sm:$0xf]
    %v92 = vld [vmem:[%s0 + $0xfc] sm:$0xf]
    %v93 = vld [vmem:[%s0 + $0x100] sm:$0xf]
    %v94 = vld [vmem:[%s0 + $0x104] sm:$0xf]
    %v95 = vld [vmem:[%s0 + $0x108] sm:$0xf]
    %v96 = vld [vmem:[%s0 + $0x10c] sm:$0xf]
    %v97 = vld [vmem:[%s0 + $0x110] sm:$0xf]
    %v98 = vld [vmem:[%s0 + $0x114] sm:$0xf]
    %v99 = vld [vmem:[%s0 + $0x118] sm:$0xf]
    %v100 = vld [vmem:[%s0 + $0x11c] sm:$0xf]
    %v101 = vld [vmem:[%s0 + $0x120] sm:$0xf]
    %v102 = vld [vmem:[%s0 + $0x124] sm:$0xf]
    %v103 = vld [vmem:[%s0 + $0x128] sm:$0xf]
    %v104 = vld [vmem:[%s0 + $0x12c] sm:$0xf]
    %v105 = vld [vmem:[%s0 + $0x130] sm:$0xf]
    %v106 = vld [vmem:[%s0 + $0x134] sm:$0xf]
    %v107 = vld [vmem:[%s0 + $0x138] sm:$0xf]
    %v108 = vld [vmem:[%s0 + $0x13c] sm:$0xf]
    %v109 = vld [vmem:[%s0 + $0x140] sm:$0xf]
    %v110 = vld [vmem:[%s0 + $0x144] sm:$0xf]
    %v111 = vld [vmem:[%s0 + $0x148] sm:$0xf]
    %v112 = vld [vmem:[%s0 + $0x14c] sm:$0xf]
    %v113 = vld [vmem:[%s0 + $0x150] sm:$0xf]
    %v114 = vld [vmem:[%s0 + $0x154] sm:$0xf]
    %v115 = vld [vmem:[%s0 + $0x158] sm:$0xf]
    %v116 = vld [vmem:[%s0 + $0x15c] sm:$0xf]
    %v117 = vld [vmem:[%s0 + $0x160] sm:$0xf]
    %v118 = vld [vmem:[%s0 + $0x164] sm:$0xf]
    %v119 = vld [vmem:[%s0 + $0x168] sm:$0xf]
    %v120 = vld [vmem:[%s0 + $0x16c] sm:$0xf]
    %v121 = vld [vmem:[%s0 + $0x170] sm:$0xf]
    %v122 = vld [vmem:[%s0 + $0x174] sm:$0xf]
    %v123 = vld [vmem:[%s0 + $0x178] sm:$0xf]
    %v124 = vld [vmem:[%s0 + $0x17c] sm:$0xf]
    %v125 = vld [vmem:[%s0 + $0x180] sm:$0xf]
    %v126 = vld [vmem:[%s0 + $0x184] sm:$0xf]
    %v127 = vld [vmem:[%s0 + $0x188] sm:$0xf]
    %v128 = vld [vmem:[%s0 + $0x18c] sm:$0xf]
    %v129 = vld [vmem:[%s0 + $0x190] sm:$0xf]
    %v130 = vld [vmem:[%s0 + $0x194] sm:$0xf]
    %v131 = vld [vmem:[%s0 + $0x198] sm:$0xf]
    %v132 = vld [vmem:[%s0 + $0x19c] sm:$0xf]
    %v133 = vld [vmem:[%s0 + $0x1a0] sm:$0xf]
    %v134 = vld [vmem:[%s0 + $0x1a4] sm:$0xf]
    %v135 = vld [vmem:[%s0 + $0x1a8] sm:$0xf]
    %v136 = vld [vmem:[%s0 + $0x1ac] sm:$0xf]
    %v137 = vld [vmem:[%s0 + $0x1b0] sm:$0xf]
    %v138 = vld [vmem:[%s0 + $0x1b4] sm:$0xf]
    %v139 = vld [vmem:[%s0 + $0x1b8] sm:$0xf]
    %v140 = vld [vmem:[%s0 + $0x1bc] sm:$0xf]
    %v141 = vld [vmem:[%s0 + $0x1c0] sm:$0xf]
    %v142 = vld [vmem:[%s0 + $0x1c4] sm:$0xf]
    %v143 = vld [vmem:[%s0 + $0x1c8] sm:$0xf]
    %v144 = vld [vmem:[%s0 + $0x1cc] sm:$0xf]
    %v145 = vld [vmem:[%s0 + $0x1d0] sm:$0xf]
    %v146 = vld [vmem:[%s0 + $0x1d4] sm:$0xf]
    %v147 = vld [vmem:[%s0 + $0x1d8] sm:$0xf]
    %v148 = vld [vmem:[%s0 + $0x1dc] sm:$0xf]
    %v149 = vld [vmem:[%s0 + $0x1e0] sm:$0xf]
    %v150 = vld [vmem:[%s0 + $0x1e4] sm:$0xf]
    %v151 = vld [vmem:[%s0 + $0x1e8] sm:$0xf]
    %v152 = vld [vmem:[%s0 + $0x1ec] sm:$0xf]
    %v153 = vld [vmem:[%s0 + $0x1f0] sm:$0xf]
    %v154 = vld [vmem:[%s0 + $0x1f4] sm:$0xf]
    %v155 = vld [vmem:[%s0 + $0x1f8] sm:$0xf]
    %v156 = vld [vmem:[%s0 + $0x1fc] sm:$0xf]
    %v157 = vld [vmem:[%s0 + $0x200] sm:$0xf]
    %v158 = vld [vmem:[%s0 + $0x204] sm:$0xf]
    %v159 = vld [vmem:[%s0 + $0x208] sm:$0xf]
    %v160 = vld [vmem:[%s0 + $0x20c] sm:$0xf]
    %v161 = vld [vmem:[%s0 + $0x210] sm:$0xf]
    %v162 = vld [vmem:[%s0 + $0x214] sm:$0xf]
    %v163 = vld [vmem:[%s0 + $0x218] sm:$0xf]
    %v164 = vld [vmem:[%s0 + $0x21c] sm:$0xf]
    %v165 = vld [vmem:[%s0 + $0x220] sm:$0xf]
    %v166 = vld [vmem:[%s0 + $0x224] sm:$0xf]
    %v167 = vld [vmem:[%s0 + $0x228] sm:$0xf]
    %v168 = vld [vmem:[%s0 + $0x22c] sm:$0xf]
    %v169 = vld [vmem:[%s0 + $0x230] sm:$0xf]
    %v170 = vld [vmem:[%s0 + $0x234] sm:$0xf]
    %v171 = vld [vmem:[%s0 + $0x238] sm:$0xf]
    %v172 = vld [vmem:[%s0 + $0x23c] sm:$0xf]
    %v173 = vld [vmem:[%s0 + $0x240] sm:$0xf]
    %v174 = vld [vmem:[%s0 + $0x244] sm:$0xf]
    %v175 = vld [vmem:[%s0 + $0x248] sm:$0xf]
    %v176 = vld [vmem:[%s0 + $0x24c] sm:$0xf]
    %v177 = vld [vmem:[%s0 + $0x250] sm:$0xf]
    %v178 = vld [vmem:[%s0 + $0x254] sm:$0xf]
    %v179 = vld [vmem:[%s0 + $0x258] sm:$0xf]
    %v180 = vld [vmem:[%s0 + $0x25c] sm:$0xf]
    %v181 = vld [vmem:[%s0 + $0x260] sm:$0xf]
    %v182 = vld [vmem:[%s0 + $0x264] sm:$0xf]
    %v183 = vld [vmem:[%s0 + $0x268] sm:$0xf]
    %v184 = vld [vmem:[%s0 + $0x26c] sm:$0xf]
    %v185 = vld [vmem:[%s0 + $0x270] sm:$0xf]
    %v186 = vld [vmem:[%s0 + $0x274] sm:$0xf]
    %v187 = vld [vmem:[%s0 + $0x278] sm:$0xf]
    %v188 = vld [vmem:[%s0 + $0x27c] sm:$0xf]
    %v189 = vld [vmem:[%s0 + $0x280] sm:$0xf]
    %v190 = vld [vmem:[%s0 + $0x284] sm:$0xf]
    %v191 = vld [vmem:[%s0 + $0x288] sm:$0xf]
    %v192 = vld [vmem:[%s0 + $0x28c] sm:$0xf]
    %v193 = vld [vmem:[%s0 + $0x290] sm:$0xf]
    %v194 = vld [vmem:[%s0 + $0x294] sm:$0xf]
    %v195 = vld [vmem:[%s0 + $0x298] sm:$0xf]
    %v196 = vld [vmem:[%s0 + $0x29c] sm:$0xf]
    %v197 = vld [vmem:[%s0 + $0x2a0] sm:$0xf]
    %v198 = vld [vmem:[%s0 + $0x2a4] sm:$0xf]
    %v199 = vld [vmem:[%s0 + $0x2a8] sm:$0xf]
    %v200 = vld [vmem:[%s0 + $0x2ac] sm:$0xf]
    %v201 = vld [vmem:[%s0 + $0x2b0] sm:$0xf]
    %v202 = vld [vmem:[%s0 + $0x2b4] sm:$0xf]
    %v203 = vld [vmem:[%s0 + $0x2b8] sm:$0xf]
    %v204 = vld [vmem:[%s0 + $0x2bc] sm:$0xf]
    %v205 = vld [vmem:[%s0 + $0x2c0] sm:$0xf]
    %v206 = vld [vmem:[%s0 + $0x2c4] sm:$0xf]
    %v207 = vld [vmem:[%s0 + $0x2c8] sm:$0xf]
    %v208 = vld [vmem:[%s0 + $0x2cc] sm:$0xf]
    %v209 = vld [vmem:[%s0 + $0x2d0] sm:$0xf]
    %v210 = vld [vmem:[%s0 + $0x2d4] sm:$0xf]
    %v211 = vld [vmem:[%s0 + $0x2d8] sm:$0xf]
    %v212 = vld [vmem:[%s0 + $0x2dc] sm:$0xf]
    %v213 = vld [vmem:[%s0 + $0x2e0] sm:$0xf]
    %v214 = vld [vmem:[%s0 + $0x2e4] sm:$0xf]
    %v215 = vld [vmem:[%s0 + $0x2e8] sm:$0xf]
    %v216 = vld [vmem:[%s0 + $0x2ec] sm:$0xf]
    %v217 = vld [vmem:[%s0 + $0x2f0] sm:$0xf]
    %v218 = vld [vmem:[%s0 + $0x2f4] sm:$0xf]
    %v219 = vld [vmem:[%s0 + $0x2f8] sm:$0xf]
    %v220 = vld [vmem:[%s0 + $0x2fc] sm:$0xf]
    %v221 = vld [vmem:[%s0 + $0x300] sm:$0xf]
    %v222 = vld [vmem:[%s0 + $0x304] sm:$0xf]
    %v223 = vld [vmem:[%s0 + $0x308] sm:$0xf]
    %v224 = vld [vmem:[%s0 + $0x30c] sm:$0xf]
    %v225 = vld [vmem:[%s0 + $0x310] sm:$0xf]
    %v226 = vld [vmem:[%s0 + $0x314] sm:$0xf]
    %v227 = vld [vmem:[%s0 + $0x318] sm:$0xf]
    %v228 = vld [vmem:[%s0 + $0x31c] sm:$0xf]
    %v229 = vld [vmem:[%s0 + $0x320] sm:$0xf]
    %v230 = vld [vmem:[%s0 + $0x324] sm:$0xf]
    %v231 = vld [vmem:[%s0 + $0x328] sm:$0xf]
    %v232 = vld [vmem:[%s0 + $0x32c] sm:$0xf]
    %v233 = vld [vmem:[%s0 + $0x330] sm:$0xf]
    %v234 = vld [vmem:[%s0 + $0x334] sm:$0xf]
    %v235 = vld [vmem:[%s0 + $0x338] sm:$0xf]
    %v236 = vld [vmem:[%s0 + $0x33c] sm:$0xf]
    %v237 = vld [vmem:[%s0 + $0x340] sm:$0xf]
    %v238 = vld [vmem:[%s0 + $0x344] sm:$0xf]
    %v239 = vld [vmem:[%s0 + $0x348] sm:$0xf]
    %v240 = vld [vmem:[%s0 + $0x34c] sm:$0xf]
    %v241 = vld [vmem:[%s0 + $0x350] sm:$0xf]
    %v242 = vld [vmem:[%s0 + $0x354] sm:$0xf]
    %v243 = vld [vmem:[%s0 + $0x358] sm:$0xf]
    %v244 = vld [vmem:[%s0 + $0x35c] sm:$0xf]
    %v245 = vld [vmem:[%s0 + $0x360] sm:$0xf]
    %v246 = vld [vmem:[%s0 + $0x364] sm:$0xf]
    %v247 = vld [vmem:[%s0 + $0x368] sm:$0xf]
    %v248 = vld [vmem:[%s0 + $0x36c] sm:$0xf]
    %v249 = vld [vmem:[%s0 + $0x370] sm:$0xf]
    %v250 = vld [vmem:[%s0 + $0x374] sm:$0xf]
    %v251 = vld [vmem:[%s0 + $0x378] sm:$0xf]
    %v252 = vld [vmem:[%s0 + $0x37c] sm:$0xf]
    %v253 = vld [vmem:[%s0 + $0x380] sm:$0xf]
    %v254 = vld [vmem:[%s0 + $0x384] sm:$0xf]
    %v255 = vld [vmem:[%s0 + $0x388] sm:$0xf]
    %v256 = vld [vmem:[%s0 + $0x38c] sm:$0xf]
    %v257 = vld [vmem:[%s0 + $0x390] sm:$0xf]
    %v258 = vld [vmem:[%s0 + $0x394] sm:$0xf]
    %v259 = vld [vmem:[%s0 + $0x398] sm:$0xf]
    %v260 = vld [vmem:[%s0 + $0x39c] sm:$0xf]
    %v261 = vld [vmem:[%s0 + $0x3a0] sm:$0xf]
    %v262 = vld [vmem:[%s0 + $0x3a4] sm:$0xf]
    %v263 = vld [vmem:[%s0 + $0x3a8] sm:$0xf]
    %v264 = vld [vmem:[%s0 + $0x3ac] sm:$0xf]
    %v265 = vld [vmem:[%s0 + $0x3b0] sm:$0xf]
    %v266 = vld [vmem:[%s0 + $0x3b4] sm:$0xf]
    %v267 = vld [vmem:[%s0 + $0x3b8] sm:$0xf]
    %v268 = vld [vmem:[%s0 + $0x3bc] sm:$0xf]
    %v269 = vld [vmem:[%s0 + $0x3c0] sm:$0xf]
    %v270 = vld [vmem:[%s0 + $0x3c4] sm:$0xf]
    %v271 = vld [vmem:[%s0 + $0x3c8] sm:$0xf]
    %v272 = vld [vmem:[%s0 + $0x3cc] sm:$0xf]
    %v273 = vld [vmem:[%s0 + $0x3d0] sm:$0xf]
    %v274 = vld [vmem:[%s0 + $0x3d4] sm:$0xf]
    %v275 = vld [vmem:[%s0 + $0x3d8] sm:$0xf]
    %v276 = vld [vmem:[%s0 + $0x3dc] sm:$0xf]
    %v277 = vld [vmem:[%s0 + $0x3e0] sm:$0xf]
    %v278 = vld [vmem:[%s0 + $0x3e4] sm:$0xf]
    %v279 = vld [vmem:[%s0 + $0x3e8] sm:$0xf]
    %v280 = vld [vmem:[%s0 + $0x3ec] sm:$0xf]
    %v281 = vld [vmem:[%s0 + $0x3f0] sm:$0xf]
    %v282 = vld [vmem:[%s0 + $0x3f4] sm:$0xf]
    %v283 = vld [vmem:[%s0 + $0x3f8] sm:$0xf]
    %v284 = vld [vmem:[%s0 + $0x3fc] sm:$0xf]
    %v285 = vld [vmem:[%s0 + $0x400] sm:$0xf]
    %v286 = vld [vmem:[%s0 + $0x404] sm:$0xf]
    %v287 = vld [vmem:[%s0 + $0x408] sm:$0xf]
    %v288 = vld [vmem:[%s0 + $0x40c] sm:$0xf]
    %v289 = vld [vmem:[%s0 + $0x410] sm:$0xf]
    %v290 = vld [vmem:[%s0 + $0x414] sm:$0xf]
    %v291 = vld [vmem:[%s0 + $0x418] sm:$0xf]
    %v292 = vld [vmem:[%s0 + $0x41c] sm:$0xf]
    %v293 = vld [vmem:[%s0 + $0x420] sm:$0xf]
    %v294 = vld [vmem:[%s0 + $0x424] sm:$0xf]
    %v295 = vld [vmem:[%s0 + $0x428] sm:$0xf]
    %v296 = vld [vmem:[%s0 + $0x42c] sm:$0xf]
    %v297 = vld [vmem:[%s0 + $0x430] sm:$0xf]
    %v298 = vld [vmem:[%s0 + $0x434] sm:$0xf]
    %v299 = vld [vmem:[%s0 + $0x438] sm:$0xf]
    %v300 = vld [vmem:[%s0 + $0x43c] sm:$0xf]
    %v301 = vld [vmem:[%s0 + $0x440] sm:$0xf]
    %v302 = vld [vmem:[%s0 + $0x444] sm:$0xf]
    %v303 = vld [vmem:[%s0 + $0x448] sm:$0xf]
    %v304 = vld [vmem:[%s0 + $0x44c] sm:$0xf]
    %v305 = vld [vmem:[%s0 + $0x450] sm:$0xf]
    %v306 = vld [vmem:[%s0 + $0x454] sm:$0xf]
    %v307 = vld [vmem:[%s0 + $0x458] sm:$0xf]
    %v308 = vld [vmem:[%s0 + $0x45c] sm:$0xf]
    %v309 = vld [vmem:[%s0 + $0x460] sm:$0xf]
    %v310 = vld [vmem:[%s0 + $0x464] sm:$0xf]
    %v311 = vld [vmem:[%s0 + $0x468] sm:$0xf]
    %v312 = vld [vmem:[%s0 + $0x46c] sm:$0xf]
    %v313 = vld [vmem:[%s0 + $0x470] sm:$0xf]
    %v314 = vld [vmem:[%s0 + $0x474] sm:$0xf]
    %v315 = vld [vmem:[%s0 + $0x478] sm:$0xf]
    %v316 = vld [vmem:[%s0 + $0x47c] sm:$0xf]
    %v317 = vld [vmem:[%s0 + $0x480] sm:$0xf]
    %v318 = vld [vmem:[%s0 + $0x484] sm:$0xf]
    %v319 = vld [vmem:[%s0 + $0x488] sm:$0xf]
    %v320 = vld [vmem:[%s0 + $0x48c] sm:$0xf]
    %v321 = vld [vmem:[%s0 + $0x490] sm:$0xf]
    %v322 = vld [vmem:[%s0 + $0x494] sm:$0xf]
    %v323 = vld [vmem:[%s0 + $0x498] sm:$0xf]
    %v324 = vld [vmem:[%s0 + $0x49c] sm:$0xf]
    %v325 = vld [vmem:[%s0 + $0x4a0] sm:$0xf]
    %v326 = vld [vmem:[%s0 + $0x4a4] sm:$0xf]
    %v327 = vld [vmem:[%s0 + $0x4a8] sm:$0xf]
    %v328 = vld [vmem:[%s0 + $0x4ac] sm:$0xf]
    %v329 = vld [vmem:[%s0 + $0x4b0] sm:$0xf]
    %v330 = vld [vmem:[%s0 + $0x4b4] sm:$0xf]
    %v331 = vld [vmem:[%s0 + $0x4b8] sm:$0xf]
    %v332 = vld [vmem:[%s0 + $0x4bc] sm:$0xf]
    %v333 = vld [vmem:[%s0 + $0x4c0] sm:$0xf]
    %v334 = vld [vmem:[%s0 + $0x4c4] sm:$0xf]
    %v335 = vld [vmem:[%s0 + $0x4c8] sm:$0xf]
    %v336 = vld [vmem:[%s0 + $0x4cc] sm:$0xf]
    %v337 = vld [vmem:[%s0 + $0x4d0] sm:$0xf]
    %v338 = vld [vmem:[%s0 + $0x4d4] sm:$0xf]
    %v339 = vld [vmem:[%s0 + $0x4d8] sm:$0xf]
    %v340 = vld [vmem:[%s0 + $0x4dc] sm:$0xf]
    %v341 = vld [vmem:[%s0 + $0x4e0] sm:$0xf]
    %v342 = vld [vmem:[%s0 + $0x4e4] sm:$0xf]
    %v343 = vld [vmem:[%s0 + $0x4e8] sm:$0xf]
    %v344 = vld [vmem:[%s0 + $0x4ec] sm:$0xf]
    %v345 = vld [vmem:[%s0 + $0x4f0] sm:$0xf]
    %v346 = vld [vmem:[%s0 + $0x4f4] sm:$0xf]
    %v347 = vld [vmem:[%s0 + $0x4f8] sm:$0xf]
    %v348 = vld [vmem:[%s0 + $0x4fc] sm:$0xf]
    %v349 = vld [vmem:[%s0 + $0x500] sm:$0xf]
    %v350 = vld [vmem:[%s0 + $0x504] sm:$0xf]
    %v351 = vld [vmem:[%s0 + $0x508] sm:$0xf]
    %v352 = vld [vmem:[%s0 + $0x50c] sm:$0xf]
    %v353 = vld [vmem:[%s0 + $0x510] sm:$0xf]
    %v354 = vld [vmem:[%s0 + $0x514] sm:$0xf]
    %v355 = vld [vmem:[%s0 + $0x518] sm:$0xf]
    %v356 = vld [vmem:[%s0 + $0x51c] sm:$0xf]
    %v357 = vld [vmem:[%s0 + $0x520] sm:$0xf]
    %v358 = vld [vmem:[%s0 + $0x524] sm:$0xf]
    %v359 = vld [vmem:[%s0 + $0x528] sm:$0xf]
    %v360 = vld [vmem:[%s0 + $0x52c] sm:$0xf]
    %v361 = vld [vmem:[%s0 + $0x530] sm:$0xf]
    %v362 = vld [vmem:[%s0 + $0x534] sm:$0xf]
    %v363 = vld [vmem:[%s0 + $0x538] sm:$0xf]
    %v364 = vld [vmem:[%s0 + $0x53c] sm:$0xf]
    %v365 = vld [vmem:[%s0 + $0x540] sm:$0xf]
    %v366 = vld [vmem:[%s0 + $0x544] sm:$0xf]
    %v367 = vld [vmem:[%s0 + $0x548] sm:$0xf]
    %v368 = vld [vmem:[%s0 + $0x54c] sm:$0xf]
    %v369 = vld [vmem:[%s0 + $0x550] sm:$0xf]
    %v370 = vld [vmem:[%s0 + $0x554] sm:$0xf]
    %v371 = vld [vmem:[%s0 + $0x558] sm:$0xf]
    %v372 = vld [vmem:[%s0 + $0x55c] sm:$0xf]
    %v373 = vld [vmem:[%s0 + $0x560] sm:$0xf]
    %v374 = vld [vmem:[%s0 + $0x564] sm:$0xf]
    %v375 = vld [vmem:[%s0 + $0x568] sm:$0xf]
    %v376 = vld [vmem:[%s0 + $0x56c] sm:$0xf]
    %v377 = vld [vmem:[%s0 + $0x570] sm:$0xf]
    %v378 = vld [vmem:[%s0 + $0x574] sm:$0xf]
    %v379 = vld [vmem:[%s0 + $0x578] sm:$0xf]
    %v380 = vld [vmem:[%s0 + $0x57c] sm:$0xf]
    %v381 = vld [vmem:[%s0 + $0x580] sm:$0xf]
    %v382 = vld [vmem:[%s0 + $0x584] sm:$0xf]
    %v383 = vld [vmem:[%s0 + $0x588] sm:$0xf]
    %v384 = vld [vmem:[%s0 + $0x58c] sm:$0xf]
    %v385 = vld [vmem:[%s0 + $0x590] sm:$0xf]
    %v386 = vld [vmem:[%s0 + $0x594] sm:$0xf]
    %v387 = vld [vmem:[%s0 + $0x598] sm:$0xf]
    %v388 = vld [vmem:[%s0 + $0x59c] sm:$0xf]
    %v389 = vld [vmem:[%s0 + $0x5a0] sm:$0xf]
    %v390 = vld [vmem:[%s1] sm:$0xf]
    %v391 = vld [vmem:[%s1 + $0x4] sm:$0xf]
    %v392 = vld [vmem:[%s1 + $0x8] sm:$0xf]
    %v393 = vld [vmem:[%s1 + $0xc] sm:$0x1]
    %v394 = vld [vmem:[#allocation2] sm:$0x1]
    %v396 = vperm.slane %v394, 0
    %v759 = vunpack.c.l.b16 %v29
    %v760 = vunpack.c.l.b16 %v30
    %v761 = vunpack.c.l.b16 %v31
    %v762 = vunpack.c.l.b16 %v32
    %v763 = vunpack.c.l.b16 %v33
    %v764 = vunpack.c.l.b16 %v34
    %v765 = vunpack.c.l.b16 %v35
    %v766 = vunpack.c.l.b16 %v36
    %v767 = vunpack.c.l.b16 %v37
    %v768 = vunpack.c.l.b16 %v38
    %v769 = vunpack.c.l.b16 %v39
    %v770 = vunpack.c.l.b16 %v40
    %v771 = vunpack.c.l.b16 %v41
    %v772 = vunpack.c.l.b16 %v42
    %v773 = vunpack.c.l.b16 %v43
    %v774 = vunpack.c.l.b16 %v44
    %v775 = vunpack.c.l.b16 %v45
    %v776 = vunpack.c.l.b16 %v46
    %v777 = vunpack.c.l.b16 %v47
    %v778 = vunpack.c.l.b16 %v48
    %v779 = vunpack.c.l.b16 %v49
    %v780 = vunpack.c.l.b16 %v50
    %v781 = vunpack.c.l.b16 %v51
    %v782 = vunpack.c.l.b16 %v52
    %v783 = vunpack.c.l.b16 %v53
    %v784 = vunpack.c.l.b16 %v54
    %v785 = vunpack.c.l.b16 %v55
    %v786 = vunpack.c.l.b16 %v56
    %v787 = vunpack.c.l.b16 %v57
    %v788 = vunpack.c.l.b16 %v58
    %v789 = vunpack.c.l.b16 %v59
    %v790 = vunpack.c.l.b16 %v60
    %v791 = vunpack.c.l.b16 %v61
    %v792 = vunpack.c.l.b16 %v62
    %v793 = vunpack.c.l.b16 %v63
    %v794 = vunpack.c.l.b16 %v64
    %v795 = vunpack.c.l.b16 %v65
    %v796 = vunpack.c.l.b16 %v66
    %v797 = vunpack.c.l.b16 %v67
    %v798 = vunpack.c.l.b16 %v68
    %v799 = vunpack.c.l.b16 %v69
    %v800 = vunpack.c.l.b16 %v70
    %v801 = vunpack.c.l.b16 %v71
    %v802 = vunpack.c.l.b16 %v72
    %v803 = vunpack.c.l.b16 %v73
    %v804 = vunpack.c.l.b16 %v74
    %v805 = vunpack.c.l.b16 %v75
    %v806 = vunpack.c.l.b16 %v76
    %v807 = vunpack.c.l.b16 %v77
    %v808 = vunpack.c.l.b16 %v78
    %v809 = vunpack.c.l.b16 %v79
    %v810 = vunpack.c.l.b16 %v80
    %v811 = vunpack.c.l.b16 %v81
    %v812 = vunpack.c.l.b16 %v82
    %v813 = vunpack.c.l.b16 %v83
    %v814 = vunpack.c.l.b16 %v84
    %v815 = vunpack.c.l.b16 %v85
    %v816 = vunpack.c.l.b16 %v86
    %v817 = vunpack.c.l.b16 %v87
    %v818 = vunpack.c.l.b16 %v88
    %v819 = vunpack.c.l.b16 %v89
    %v820 = vunpack.c.l.b16 %v90
    %v821 = vunpack.c.l.b16 %v91
    %v822 = vunpack.c.l.b16 %v92
    %v823 = vunpack.c.l.b16 %v93
    %v824 = vunpack.c.l.b16 %v94
    %v825 = vunpack.c.l.b16 %v95
    %v826 = vunpack.c.l.b16 %v96
    %v827 = vunpack.c.l.b16 %v97
    %v828 = vunpack.c.l.b16 %v98
    %v829 = vunpack.c.l.b16 %v99
    %v830 = vunpack.c.l.b16 %v100
    %v831 = vunpack.c.l.b16 %v101
    %v832 = vunpack.c.l.b16 %v102
    %v833 = vunpack.c.l.b16 %v103
    %v834 = vunpack.c.l.b16 %v104
    %v835 = vunpack.c.l.b16 %v105
    %v836 = vunpack.c.l.b16 %v106
    %v837 = vunpack.c.l.b16 %v107
    %v838 = vunpack.c.l.b16 %v108
    %v839 = vunpack.c.l.b16 %v109
    %v840 = vunpack.c.l.b16 %v110
    %v841 = vunpack.c.l.b16 %v111
    %v842 = vunpack.c.l.b16 %v112
    %v843 = vunpack.c.l.b16 %v113
    %v844 = vunpack.c.l.b16 %v114
    %v845 = vunpack.c.l.b16 %v115
    %v846 = vunpack.c.l.b16 %v116
    %v847 = vunpack.c.l.b16 %v117
    %v848 = vunpack.c.l.b16 %v118
    %v849 = vunpack.c.l.b16 %v119
    %v850 = vunpack.c.l.b16 %v120
    %v851 = vunpack.c.l.b16 %v121
    %v852 = vunpack.c.l.b16 %v122
    %v853 = vunpack.c.l.b16 %v123
    %v854 = vunpack.c.l.b16 %v124
    %v855 = vunpack.c.l.b16 %v125
    %v856 = vunpack.c.l.b16 %v126
    %v857 = vunpack.c.l.b16 %v127
    %v858 = vunpack.c.l.b16 %v128
    %v859 = vunpack.c.l.b16 %v129
    %v860 = vunpack.c.l.b16 %v130
    %v861 = vunpack.c.l.b16 %v131
    %v862 = vunpack.c.l.b16 %v132
    %v863 = vunpack.c.l.b16 %v133
    %v864 = vunpack.c.l.b16 %v134
    %v865 = vunpack.c.l.b16 %v135
    %v866 = vunpack.c.l.b16 %v136
    %v867 = vunpack.c.l.b16 %v137
    %v868 = vunpack.c.l.b16 %v138
    %v869 = vunpack.c.l.b16 %v139
    %v870 = vunpack.c.l.b16 %v140
    %v871 = vunpack.c.l.b16 %v141
    %v872 = vunpack.c.l.b16 %v142
    %v873 = vunpack.c.l.b16 %v143
    %v874 = vunpack.c.l.b16 %v144
    %v875 = vunpack.c.l.b16 %v145
    %v876 = vunpack.c.l.b16 %v146
    %v877 = vunpack.c.l.b16 %v147
    %v878 = vunpack.c.l.b16 %v148
    %v879 = vunpack.c.l.b16 %v149
    %v880 = vunpack.c.l.b16 %v150
    %v881 = vunpack.c.l.b16 %v151
    %v882 = vunpack.c.l.b16 %v152
    %v883 = vunpack.c.l.b16 %v153
    %v884 = vunpack.c.l.b16 %v154
    %v885 = vunpack.c.l.b16 %v155
    %v886 = vunpack.c.l.b16 %v156
    %v887 = vunpack.c.l.b16 %v157
    %v888 = vunpack.c.l.b16 %v158
    %v889 = vunpack.c.l.b16 %v159
    %v890 = vunpack.c.l.b16 %v160
    %v891 = vunpack.c.l.b16 %v161
    %v892 = vunpack.c.l.b16 %v162
    %v893 = vunpack.c.l.b16 %v163
    %v894 = vunpack.c.l.b16 %v164
    %v895 = vunpack.c.l.b16 %v165
    %v896 = vunpack.c.l.b16 %v166
    %v897 = vunpack.c.l.b16 %v167
    %v898 = vunpack.c.l.b16 %v168
    %v899 = vunpack.c.l.b16 %v169
    %v900 = vunpack.c.l.b16 %v170
    %v901 = vunpack.c.l.b16 %v171
    %v902 = vunpack.c.l.b16 %v172
    %v903 = vunpack.c.l.b16 %v173
    %v904 = vunpack.c.l.b16 %v174
    %v905 = vunpack.c.l.b16 %v175
    %v906 = vunpack.c.l.b16 %v176
    %v907 = vunpack.c.l.b16 %v177
    %v908 = vunpack.c.l.b16 %v178
    %v909 = vunpack.c.l.b16 %v179
    %v910 = vunpack.c.l.b16 %v180
    %v911 = vunpack.c.l.b16 %v181
    %v912 = vunpack.c.l.b16 %v182
    %v913 = vunpack.c.l.b16 %v183
    %v914 = vunpack.c.l.b16 %v184
    %v915 = vunpack.c.l.b16 %v185
    %v916 = vunpack.c.l.b16 %v186
    %v917 = vunpack.c.l.b16 %v187
    %v918 = vunpack.c.l.b16 %v188
    %v919 = vunpack.c.l.b16 %v189
    %v920 = vunpack.c.l.b16 %v190
    %v921 = vunpack.c.l.b16 %v191
    %v922 = vunpack.c.l.b16 %v192
    %v923 = vunpack.c.l.b16 %v193
    %v924 = vunpack.c.l.b16 %v194
    %v925 = vunpack.c.l.b16 %v195
    %v926 = vunpack.c.l.b16 %v196
    %v927 = vunpack.c.l.b16 %v197
    %v928 = vunpack.c.l.b16 %v198
    %v929 = vunpack.c.l.b16 %v199
    %v930 = vunpack.c.l.b16 %v200
    %v931 = vunpack.c.l.b16 %v201
    %v932 = vunpack.c.l.b16 %v202
    %v933 = vunpack.c.l.b16 %v203
    %v934 = vunpack.c.l.b16 %v204
    %v935 = vunpack.c.l.b16 %v205
    %v936 = vunpack.c.l.b16 %v206
    %v937 = vunpack.c.l.b16 %v207
    %v938 = vunpack.c.l.b16 %v208
    %v939 = vunpack.c.l.b16 %v209
    %v940 = vunpack.c.l.b16 %v210
    %v941 = vunpack.c.l.b16 %v211
    %v942 = vunpack.c.l.b16 %v212
    %v943 = vunpack.c.l.b16 %v213
    %v944 = vunpack.c.l.b16 %v214
    %v945 = vunpack.c.l.b16 %v215
    %v946 = vunpack.c.l.b16 %v216
    %v947 = vunpack.c.l.b16 %v217
    %v948 = vunpack.c.l.b16 %v218
    %v949 = vunpack.c.l.b16 %v219
    %v950 = vunpack.c.l.b16 %v220
    %v951 = vunpack.c.l.b16 %v221
    %v952 = vunpack.c.l.b16 %v222
    %v953 = vunpack.c.l.b16 %v223
    %v954 = vunpack.c.l.b16 %v224
    %v955 = vunpack.c.l.b16 %v225
    %v956 = vunpack.c.l.b16 %v226
    %v957 = vunpack.c.l.b16 %v227
    %v958 = vunpack.c.l.b16 %v228
    %v959 = vunpack.c.l.b16 %v229
    %v960 = vunpack.c.l.b16 %v230
    %v961 = vunpack.c.l.b16 %v231
    %v962 = vunpack.c.l.b16 %v232
    %v963 = vunpack.c.l.b16 %v233
    %v964 = vunpack.c.l.b16 %v234
    %v965 = vunpack.c.l.b16 %v235
    %v966 = vunpack.c.l.b16 %v236
    %v967 = vunpack.c.l.b16 %v237
    %v968 = vunpack.c.l.b16 %v238
    %v969 = vunpack.c.l.b16 %v239
    %v970 = vunpack.c.l.b16 %v240
    %v971 = vunpack.c.l.b16 %v241
    %v972 = vunpack.c.l.b16 %v242
    %v973 = vunpack.c.l.b16 %v243
    %v974 = vunpack.c.l.b16 %v244
    %v975 = vunpack.c.l.b16 %v245
    %v976 = vunpack.c.l.b16 %v246
    %v977 = vunpack.c.l.b16 %v247
    %v978 = vunpack.c.l.b16 %v248
    %v979 = vunpack.c.l.b16 %v249
    %v980 = vunpack.c.l.b16 %v250
    %v981 = vunpack.c.l.b16 %v251
    %v982 = vunpack.c.l.b16 %v252
    %v983 = vunpack.c.l.b16 %v253
    %v984 = vunpack.c.l.b16 %v254
    %v985 = vunpack.c.l.b16 %v255
    %v986 = vunpack.c.l.b16 %v256
    %v987 = vunpack.c.l.b16 %v257
    %v988 = vunpack.c.l.b16 %v258
    %v989 = vunpack.c.l.b16 %v259
    %v990 = vunpack.c.l.b16 %v260
    %v991 = vunpack.c.l.b16 %v261
    %v992 = vunpack.c.l.b16 %v262
    %v993 = vunpack.c.l.b16 %v263
    %v994 = vunpack.c.l.b16 %v264
    %v995 = vunpack.c.l.b16 %v265
    %v996 = vunpack.c.l.b16 %v266
    %v997 = vunpack.c.l.b16 %v267
    %v998 = vunpack.c.l.b16 %v268
    %v999 = vunpack.c.l.b16 %v269
    %v1000 = vunpack.c.l.b16 %v270
    %v1001 = vunpack.c.l.b16 %v271
    %v1002 = vunpack.c.l.b16 %v272
    %v1003 = vunpack.c.l.b16 %v273
    %v1004 = vunpack.c.l.b16 %v274
    %v1005 = vunpack.c.l.b16 %v275
    %v1006 = vunpack.c.l.b16 %v276
    %v1007 = vunpack.c.l.b16 %v277
    %v1008 = vunpack.c.l.b16 %v278
    %v1009 = vunpack.c.l.b16 %v279
    %v1010 = vunpack.c.l.b16 %v280
    %v1011 = vunpack.c.l.b16 %v281
    %v1012 = vunpack.c.l.b16 %v282
    %v1013 = vunpack.c.l.b16 %v283
    %v1014 = vunpack.c.l.b16 %v284
    %v1015 = vunpack.c.l.b16 %v285
    %v1016 = vunpack.c.l.b16 %v286
    %v1017 = vunpack.c.l.b16 %v287
    %v1018 = vunpack.c.l.b16 %v288
    %v1019 = vunpack.c.l.b16 %v289
    %v1020 = vunpack.c.l.b16 %v290
    %v1021 = vunpack.c.l.b16 %v291
    %v1022 = vunpack.c.l.b16 %v292
    %v1023 = vunpack.c.l.b16 %v293
    %v1024 = vunpack.c.l.b16 %v294
    %v1025 = vunpack.c.l.b16 %v295
    %v1026 = vunpack.c.l.b16 %v296
    %v1027 = vunpack.c.l.b16 %v297
    %v1028 = vunpack.c.l.b16 %v298
    %v1029 = vunpack.c.l.b16 %v299
    %v1030 = vunpack.c.l.b16 %v300
    %v1031 = vunpack.c.l.b16 %v301
    %v1032 = vunpack.c.l.b16 %v302
    %v1033 = vunpack.c.l.b16 %v303
    %v1034 = vunpack.c.l.b16 %v304
    %v1035 = vunpack.c.l.b16 %v305
    %v1036 = vunpack.c.l.b16 %v306
    %v1037 = vunpack.c.l.b16 %v307
    %v1038 = vunpack.c.l.b16 %v308
    %v1039 = vunpack.c.l.b16 %v309
    %v1040 = vunpack.c.l.b16 %v310
    %v1041 = vunpack.c.l.b16 %v311
    %v1042 = vunpack.c.l.b16 %v312
    %v1043 = vunpack.c.l.b16 %v313
    %v1044 = vunpack.c.l.b16 %v314
    %v1045 = vunpack.c.l.b16 %v315
    %v1046 = vunpack.c.l.b16 %v316
    %v1047 = vunpack.c.l.b16 %v317
    %v1048 = vunpack.c.l.b16 %v318
    %v1049 = vunpack.c.l.b16 %v319
    %v1050 = vunpack.c.l.b16 %v320
    %v1051 = vunpack.c.l.b16 %v321
    %v1052 = vunpack.c.l.b16 %v322
    %v1053 = vunpack.c.l.b16 %v323
    %v1054 = vunpack.c.l.b16 %v324
    %v1055 = vunpack.c.l.b16 %v325
    %v1056 = vunpack.c.l.b16 %v326
    %v1057 = vunpack.c.l.b16 %v327
    %v1058 = vunpack.c.l.b16 %v328
    %v1059 = vunpack.c.l.b16 %v329
    %v1060 = vunpack.c.l.b16 %v330
    %v1061 = vunpack.c.l.b16 %v331
    %v1062 = vunpack.c.l.b16 %v332
    %v1063 = vunpack.c.l.b16 %v333
    %v1064 = vunpack.c.l.b16 %v334
    %v1065 = vunpack.c.l.b16 %v335
    %v1066 = vunpack.c.l.b16 %v336
    %v1067 = vunpack.c.l.b16 %v337
    %v1068 = vunpack.c.l.b16 %v338
    %v1069 = vunpack.c.l.b16 %v339
    %v1070 = vunpack.c.l.b16 %v340
    %v1071 = vunpack.c.l.b16 %v341
    %v1072 = vunpack.c.l.b16 %v342
    %v1073 = vunpack.c.l.b16 %v343
    %v1074 = vunpack.c.l.b16 %v344
    %v1075 = vunpack.c.l.b16 %v345
    %v1076 = vunpack.c.l.b16 %v346
    %v1077 = vunpack.c.l.b16 %v347
    %v1078 = vunpack.c.l.b16 %v348
    %v1079 = vunpack.c.l.b16 %v349
    %v1080 = vunpack.c.l.b16 %v350
    %v1081 = vunpack.c.l.b16 %v351
    %v1082 = vunpack.c.l.b16 %v352
    %v1083 = vunpack.c.l.b16 %v353
    %v1084 = vunpack.c.l.b16 %v354
    %v1085 = vunpack.c.l.b16 %v355
    %v1086 = vunpack.c.l.b16 %v356
    %v1087 = vunpack.c.l.b16 %v357
    %v1088 = vunpack.c.l.b16 %v358
    %v1089 = vunpack.c.l.b16 %v359
    %v1090 = vunpack.c.l.b16 %v360
    %v1091 = vunpack.c.l.b16 %v361
    %v1092 = vunpack.c.l.b16 %v362
    %v1093 = vunpack.c.l.b16 %v363
    %v1094 = vunpack.c.l.b16 %v364
    %v1095 = vunpack.c.l.b16 %v365
    %v1096 = vunpack.c.l.b16 %v366
    %v1097 = vunpack.c.l.b16 %v367
    %v1098 = vunpack.c.l.b16 %v368
    %v1099 = vunpack.c.l.b16 %v369
    %v1100 = vunpack.c.l.b16 %v370
    %v1101 = vunpack.c.l.b16 %v371
    %v1102 = vunpack.c.l.b16 %v372
    %v1103 = vunpack.c.l.b16 %v373
    %v1104 = vunpack.c.l.b16 %v374
    %v1105 = vunpack.c.l.b16 %v375
    %v1106 = vunpack.c.l.b16 %v376
    %v1107 = vunpack.c.l.b16 %v377
    %v1108 = vunpack.c.l.b16 %v378
    %v1109 = vunpack.c.l.b16 %v379
    %v1110 = vunpack.c.l.b16 %v380
    %v1111 = vunpack.c.l.b16 %v381
    %v1112 = vunpack.c.l.b16 %v382
    %v1113 = vunpack.c.l.b16 %v383
    %v1114 = vunpack.c.l.b16 %v384
    %v1115 = vunpack.c.l.b16 %v385
    %v1116 = vunpack.c.l.b16 %v386
    %v1117 = vunpack.c.l.b16 %v387
    %v1118 = vunpack.c.l.b16 %v388
    %v1119 = vunpack.c.l.b16 %v389
    %v1120 = vpack.c.b16 %v760, %v759
    %v1121 = vpack.c.b16 %v762, %v761
    %v1122 = vpack.c.b16 %v764, %v763
    %v1123 = vpack.c.b16 %v766, %v765
    %v1124 = vpack.c.b16 %v768, %v767
    %v1125 = vpack.c.b16 %v770, %v769
    %v1126 = vpack.c.b16 %v772, %v771
    %v1127 = vpack.c.b16 %v774, %v773
    %v1128 = vpack.c.b16 %v776, %v775
    %v1129 = vpack.c.b16 %v778, %v777
    %v1130 = vpack.c.b16 %v780, %v779
    %v1131 = vpack.c.b16 %v782, %v781
    %v1132 = vpack.c.b16 %v784, %v783
    %v1133 = vpack.c.b16 %v786, %v785
    %v1134 = vpack.c.b16 %v788, %v787
    %v1135 = vpack.c.b16 %v790, %v789
    %v1136 = vpack.c.b16 %v792, %v791
    %v1137 = vpack.c.b16 %v794, %v793
    %v1138 = vpack.c.b16 %v796, %v795
    %v1139 = vpack.c.b16 %v798, %v797
    %v1140 = vpack.c.b16 %v800, %v799
    %v1141 = vpack.c.b16 %v802, %v801
    %v1142 = vpack.c.b16 %v804, %v803
    %v1143 = vpack.c.b16 %v806, %v805
    %v1144 = vpack.c.b16 %v808, %v807
    %v1145 = vpack.c.b16 %v810, %v809
    %v1146 = vpack.c.b16 %v812, %v811
    %v1147 = vpack.c.b16 %v814, %v813
    %v1148 = vpack.c.b16 %v816, %v815
    %v1149 = vpack.c.b16 %v818, %v817
    %v1150 = vpack.c.b16 %v820, %v819
    %v1151 = vpack.c.b16 %v822, %v821
    %v1152 = vpack.c.b16 %v824, %v823
    %v1153 = vpack.c.b16 %v826, %v825
    %v1154 = vpack.c.b16 %v828, %v827
    %v1155 = vpack.c.b16 %v830, %v829
    %v1156 = vpack.c.b16 %v832, %v831
    %v1157 = vpack.c.b16 %v834, %v833
    %v1158 = vpack.c.b16 %v836, %v835
    %v1159 = vpack.c.b16 %v838, %v837
    %v1160 = vpack.c.b16 %v840, %v839
    %v1161 = vpack.c.b16 %v842, %v841
    %v1162 = vpack.c.b16 %v844, %v843
    %v1163 = vpack.c.b16 %v846, %v845
    %v1164 = vpack.c.b16 %v848, %v847
    %v1165 = vpack.c.b16 %v850, %v849
    %v1166 = vpack.c.b16 %v852, %v851
    %v1167 = vpack.c.b16 %v854, %v853
    %v1168 = vpack.c.b16 %v856, %v855
    %v1169 = vpack.c.b16 %v858, %v857
    %v1170 = vpack.c.b16 %v860, %v859
    %v1171 = vpack.c.b16 %v862, %v861
    %v1172 = vpack.c.b16 %v864, %v863
    %v1173 = vpack.c.b16 %v866, %v865
    %v1174 = vpack.c.b16 %v868, %v867
    %v1175 = vpack.c.b16 %v870, %v869
    %v1176 = vpack.c.b16 %v872, %v871
    %v1177 = vpack.c.b16 %v874, %v873
    %v1178 = vpack.c.b16 %v876, %v875
    %v1179 = vpack.c.b16 %v878, %v877
    %v1180 = vpack.c.b16 %v880, %v879
    %v1181 = vpack.c.b16 %v882, %v881
    %v1182 = vpack.c.b16 %v884, %v883
    %v1183 = vpack.c.b16 %v886, %v885
    %v1184 = vpack.c.b16 %v888, %v887
    %v1185 = vpack.c.b16 %v890, %v889
    %v1186 = vpack.c.b16 %v892, %v891
    %v1187 = vpack.c.b16 %v894, %v893
    %v1188 = vpack.c.b16 %v896, %v895
    %v1189 = vpack.c.b16 %v898, %v897
    %v1190 = vpack.c.b16 %v900, %v899
    %v1191 = vpack.c.b16 %v902, %v901
    %v1192 = vpack.c.b16 %v904, %v903
    %v1193 = vpack.c.b16 %v906, %v905
    %v1194 = vpack.c.b16 %v908, %v907
    %v1195 = vpack.c.b16 %v910, %v909
    %v1196 = vpack.c.b16 %v912, %v911
    %v1197 = vpack.c.b16 %v914, %v913
    %v1198 = vpack.c.b16 %v916, %v915
    %v1199 = vpack.c.b16 %v918, %v917
    %v1200 = vpack.c.b16 %v920, %v919
    %v1201 = vpack.c.b16 %v922, %v921
    %v1202 = vpack.c.b16 %v924, %v923
    %v1203 = vpack.c.b16 %v926, %v925
    %v1204 = vpack.c.b16 %v928, %v927
    %v1205 = vpack.c.b16 %v930, %v929
    %v1206 = vpack.c.b16 %v932, %v931
    %v1207 = vpack.c.b16 %v934, %v933
    %v1208 = vpack.c.b16 %v936, %v935
    %v1209 = vpack.c.b16 %v938, %v937
    %v1210 = vpack.c.b16 %v940, %v939
    %v1211 = vpack.c.b16 %v942, %v941
    %v1212 = vpack.c.b16 %v944, %v943
    %v1213 = vpack.c.b16 %v946, %v945
    %v1214 = vpack.c.b16 %v948, %v947
    %v1215 = vpack.c.b16 %v950, %v949
    %v1216 = vpack.c.b16 %v952, %v951
    %v1217 = vpack.c.b16 %v954, %v953
    %v1218 = vpack.c.b16 %v956, %v955
    %v1219 = vpack.c.b16 %v958, %v957
    %v1220 = vpack.c.b16 %v960, %v959
    %v1221 = vpack.c.b16 %v962, %v961
    %v1222 = vpack.c.b16 %v964, %v963
    %v1223 = vpack.c.b16 %v966, %v965
    %v1224 = vpack.c.b16 %v968, %v967
    %v1225 = vpack.c.b16 %v970, %v969
    %v1226 = vpack.c.b16 %v972, %v971
    %v1227 = vpack.c.b16 %v974, %v973
    %v1228 = vpack.c.b16 %v976, %v975
    %v1229 = vpack.c.b16 %v978, %v977
    %v1230 = vpack.c.b16 %v980, %v979
    %v1231 = vpack.c.b16 %v982, %v981
    %v1232 = vpack.c.b16 %v984, %v983
    %v1233 = vpack.c.b16 %v986, %v985
    %v1234 = vpack.c.b16 %v988, %v987
    %v1235 = vpack.c.b16 %v990, %v989
    %v1236 = vpack.c.b16 %v992, %v991
    %v1237 = vpack.c.b16 %v994, %v993
    %v1238 = vpack.c.b16 %v996, %v995
    %v1239 = vpack.c.b16 %v998, %v997
    %v1240 = vpack.c.b16 %v1000, %v999
    %v1241 = vpack.c.b16 %v1002, %v1001
    %v1242 = vpack.c.b16 %v1004, %v1003
    %v1243 = vpack.c.b16 %v1006, %v1005
    %v1244 = vpack.c.b16 %v1008, %v1007
    %v1245 = vpack.c.b16 %v1010, %v1009
    %v1246 = vpack.c.b16 %v1012, %v1011
    %v1247 = vpack.c.b16 %v1014, %v1013
    %v1248 = vpack.c.b16 %v1016, %v1015
    %v1249 = vpack.c.b16 %v1018, %v1017
    %v1250 = vpack.c.b16 %v1020, %v1019
    %v1251 = vpack.c.b16 %v1022, %v1021
    %v1252 = vpack.c.b16 %v1024, %v1023
    %v1253 = vpack.c.b16 %v1026, %v1025
    %v1254 = vpack.c.b16 %v1028, %v1027
    %v1255 = vpack.c.b16 %v1030, %v1029
    %v1256 = vpack.c.b16 %v1032, %v1031
    %v1257 = vpack.c.b16 %v1034, %v1033
    %v1258 = vpack.c.b16 %v1036, %v1035
    %v1259 = vpack.c.b16 %v1038, %v1037
    %v1260 = vpack.c.b16 %v1040, %v1039
    %v1261 = vpack.c.b16 %v1042, %v1041
    %v1262 = vpack.c.b16 %v1044, %v1043
    %v1263 = vpack.c.b16 %v1046, %v1045
    %v1264 = vpack.c.b16 %v1048, %v1047
    %v1265 = vpack.c.b16 %v1050, %v1049
    %v1266 = vpack.c.b16 %v1052, %v1051
    %v1267 = vpack.c.b16 %v1054, %v1053
    %v1268 = vpack.c.b16 %v1056, %v1055
    %v1269 = vpack.c.b16 %v1058, %v1057
    %v1270 = vpack.c.b16 %v1060, %v1059
    %v1271 = vpack.c.b16 %v1062, %v1061
    %v1272 = vpack.c.b16 %v1064, %v1063
    %v1273 = vpack.c.b16 %v1066, %v1065
    %v1274 = vpack.c.b16 %v1068, %v1067
    %v1275 = vpack.c.b16 %v1070, %v1069
    %v1276 = vpack.c.b16 %v1072, %v1071
    %v1277 = vpack.c.b16 %v1074, %v1073
    %v1278 = vpack.c.b16 %v1076, %v1075
    %v1279 = vpack.c.b16 %v1078, %v1077
    %v1280 = vpack.c.b16 %v1080, %v1079
    %v1281 = vpack.c.b16 %v1082, %v1081
    %v1282 = vpack.c.b16 %v1084, %v1083
    %v1283 = vpack.c.b16 %v1086, %v1085
    %v1284 = vpack.c.b16 %v1088, %v1087
    %v1285 = vpack.c.b16 %v1090, %v1089
    %v1286 = vpack.c.b16 %v1092, %v1091
    %v1287 = vpack.c.b16 %v1094, %v1093
    %v1288 = vpack.c.b16 %v1096, %v1095
    %v1289 = vpack.c.b16 %v1098, %v1097
    %v1290 = vpack.c.b16 %v1100, %v1099
    %v1291 = vpack.c.b16 %v1102, %v1101
    %v1292 = vpack.c.b16 %v1104, %v1103
    %v1293 = vpack.c.b16 %v1106, %v1105
    %v1294 = vpack.c.b16 %v1108, %v1107
    %v1295 = vpack.c.b16 %v1110, %v1109
    %v1296 = vpack.c.b16 %v1112, %v1111
    %v1297 = vpack.c.b16 %v1114, %v1113
    %v1298 = vpack.c.b16 %v1116, %v1115
    %v1299 = vpack.c.b16 %v1118, %v1117
    %v1300 = vpack.c.b16 %v1119, %v1119
    %v1305 = vunpack.c.l.b16 %v390
    %v1306 = vunpack.c.l.b16 %v391
    %v1307 = vunpack.c.l.b16 %v392
    %v1308 = vunpack.c.l.b16 %v393
    %v1309 = vpack.c.b16 %v1306, %v1305
    %v1310 = vpack.c.b16 %v1308, %v1307
    %vm1312 = vcmask 203776
    %v1314 = vsel %vm1312, %v1120, 0
    %v1317 = vsel %vm1312, %v1121, 0
    %v1320 = vsel %vm1312, %v1122, 0
    %v1323 = vsel %vm1312, %v1123, 0
    %v1326 = vsel %vm1312, %v1124, 0
    %v1329 = vsel %vm1312, %v1125, 0
    %v1332 = vsel %vm1312, %v1126, 0
    %v1335 = vsel %vm1312, %v1127, 0
    %v1338 = vsel %vm1312, %v1128, 0
    %v1341 = vsel %vm1312, %v1129, 0
    %v1344 = vsel %vm1312, %v1130, 0
    %v1347 = vsel %vm1312, %v1131, 0
    %v1350 = vsel %vm1312, %v1132, 0
    %v1353 = vsel %vm1312, %v1133, 0
    %v1356 = vsel %vm1312, %v1134, 0
    %v1359 = vsel %vm1312, %v1135, 0
    %v1362 = vsel %vm1312, %v1136, 0
    %v1365 = vsel %vm1312, %v1137, 0
    %v1368 = vsel %vm1312, %v1138, 0
    %v1371 = vsel %vm1312, %v1139, 0
    %v1374 = vsel %vm1312, %v1140, 0
    %v1377 = vsel %vm1312, %v1141, 0
    %v1380 = vsel %vm1312, %v1142, 0
    %v1383 = vsel %vm1312, %v1143, 0
    %v1386 = vsel %vm1312, %v1144, 0
    %v1389 = vsel %vm1312, %v1145, 0
    %v1392 = vsel %vm1312, %v1146, 0
    %v1395 = vsel %vm1312, %v1147, 0
    %v1398 = vsel %vm1312, %v1148, 0
    %v1401 = vsel %vm1312, %v1149, 0
    %v1404 = vsel %vm1312, %v1150, 0
    %v1407 = vsel %vm1312, %v1151, 0
    %v1410 = vsel %vm1312, %v1152, 0
    %v1413 = vsel %vm1312, %v1153, 0
    %v1416 = vsel %vm1312, %v1154, 0
    %v1419 = vsel %vm1312, %v1155, 0
    %v1422 = vsel %vm1312, %v1156, 0
    %v1425 = vsel %vm1312, %v1157, 0
    %v1428 = vsel %vm1312, %v1158, 0
    %v1431 = vsel %vm1312, %v1159, 0
    %v1434 = vsel %vm1312, %v1160, 0
    %v1437 = vsel %vm1312, %v1161, 0
    %v1440 = vsel %vm1312, %v1162, 0
    %v1443 = vsel %vm1312, %v1163, 0
    %v1446 = vsel %vm1312, %v1164, 0
    %v1449 = vsel %vm1312, %v1165, 0
    %v1452 = vsel %vm1312, %v1166, 0
    %v1455 = vsel %vm1312, %v1167, 0
    %v1458 = vsel %vm1312, %v1168, 0
    %v1461 = vsel %vm1312, %v1169, 0
    %v1464 = vsel %vm1312, %v1170, 0
    %v1467 = vsel %vm1312, %v1171, 0
    %v1470 = vsel %vm1312, %v1172, 0
    %v1473 = vsel %vm1312, %v1173, 0
    %v1476 = vsel %vm1312, %v1174, 0
    %v1479 = vsel %vm1312, %v1175, 0
    %v1482 = vsel %vm1312, %v1176, 0
    %v1485 = vsel %vm1312, %v1177, 0
    %v1488 = vsel %vm1312, %v1178, 0
    %v1491 = vsel %vm1312, %v1179, 0
    %v1494 = vsel %vm1312, %v1180, 0
    %v1497 = vsel %vm1312, %v1181, 0
    %v1500 = vsel %vm1312, %v1182, 0
    %v1503 = vsel %vm1312, %v1183, 0
    %v1506 = vsel %vm1312, %v1184, 0
    %v1509 = vsel %vm1312, %v1185, 0
    %v1512 = vsel %vm1312, %v1186, 0
    %v1515 = vsel %vm1312, %v1187, 0
    %v1518 = vsel %vm1312, %v1188, 0
    %v1521 = vsel %vm1312, %v1189, 0
    %v1524 = vsel %vm1312, %v1190, 0
    %v1527 = vsel %vm1312, %v1191, 0
    %v1530 = vsel %vm1312, %v1192, 0
    %v1533 = vsel %vm1312, %v1193, 0
    %v1536 = vsel %vm1312, %v1194, 0
    %v1539 = vsel %vm1312, %v1195, 0
    %v1542 = vsel %vm1312, %v1196, 0
    %v1545 = vsel %vm1312, %v1197, 0
    %v1548 = vsel %vm1312, %v1198, 0
    %v1551 = vsel %vm1312, %v1199, 0
    %v1554 = vsel %vm1312, %v1200, 0
    %v1557 = vsel %vm1312, %v1201, 0
    %v1560 = vsel %vm1312, %v1202, 0
    %v1563 = vsel %vm1312, %v1203, 0
    %v1566 = vsel %vm1312, %v1204, 0
    %v1569 = vsel %vm1312, %v1205, 0
    %v1572 = vsel %vm1312, %v1206, 0
    %v1575 = vsel %vm1312, %v1207, 0
    %v1578 = vsel %vm1312, %v1208, 0
    %v1581 = vsel %vm1312, %v1209, 0
    %v1584 = vsel %vm1312, %v1210, 0
    %v1587 = vsel %vm1312, %v1211, 0
    %v1590 = vsel %vm1312, %v1212, 0
    %v1593 = vsel %vm1312, %v1213, 0
    %v1596 = vsel %vm1312, %v1214, 0
    %v1599 = vsel %vm1312, %v1215, 0
    %v1602 = vsel %vm1312, %v1216, 0
    %v1605 = vsel %vm1312, %v1217, 0
    %v1608 = vsel %vm1312, %v1218, 0
    %v1611 = vsel %vm1312, %v1219, 0
    %v1614 = vsel %vm1312, %v1220, 0
    %v1617 = vsel %vm1312, %v1221, 0
    %v1620 = vsel %vm1312, %v1222, 0
    %v1623 = vsel %vm1312, %v1223, 0
    %v1626 = vsel %vm1312, %v1224, 0
    %v1629 = vsel %vm1312, %v1225, 0
    %v1632 = vsel %vm1312, %v1226, 0
    %v1635 = vsel %vm1312, %v1227, 0
    %v1638 = vsel %vm1312, %v1228, 0
    %v1641 = vsel %vm1312, %v1229, 0
    %v1644 = vsel %vm1312, %v1230, 0
    %v1647 = vsel %vm1312, %v1231, 0
    %v1650 = vsel %vm1312, %v1232, 0
    %v1653 = vsel %vm1312, %v1233, 0
    %v1656 = vsel %vm1312, %v1234, 0
    %v1659 = vsel %vm1312, %v1235, 0
    %v1662 = vsel %vm1312, %v1236, 0
    %v1665 = vsel %vm1312, %v1237, 0
    %v1668 = vsel %vm1312, %v1238, 0
    %v1671 = vsel %vm1312, %v1239, 0
    %v1674 = vsel %vm1312, %v1240, 0
    %v1677 = vsel %vm1312, %v1241, 0
    %v1680 = vsel %vm1312, %v1242, 0
    %v1683 = vsel %vm1312, %v1243, 0
    %v1686 = vsel %vm1312, %v1244, 0
    %v1689 = vsel %vm1312, %v1245, 0
    %v1692 = vsel %vm1312, %v1246, 0
    %v1695 = vsel %vm1312, %v1247, 0
    %v1698 = vsel %vm1312, %v1248, 0
    %v1701 = vsel %vm1312, %v1249, 0
    %v1704 = vsel %vm1312, %v1250, 0
    %v1707 = vsel %vm1312, %v1251, 0
    %v1710 = vsel %vm1312, %v1252, 0
    %v1713 = vsel %vm1312, %v1253, 0
    %v1716 = vsel %vm1312, %v1254, 0
    %v1719 = vsel %vm1312, %v1255, 0
    %v1722 = vsel %vm1312, %v1256, 0
    %v1725 = vsel %vm1312, %v1257, 0
    %v1728 = vsel %vm1312, %v1258, 0
    %v1731 = vsel %vm1312, %v1259, 0
    %v1734 = vsel %vm1312, %v1260, 0
    %v1737 = vsel %vm1312, %v1261, 0
    %v1740 = vsel %vm1312, %v1262, 0
    %v1743 = vsel %vm1312, %v1263, 0
    %v1746 = vsel %vm1312, %v1264, 0
    %v1749 = vsel %vm1312, %v1265, 0
    %v1752 = vsel %vm1312, %v1266, 0
    %v1755 = vsel %vm1312, %v1267, 0
    %v1758 = vsel %vm1312, %v1268, 0
    %v1761 = vsel %vm1312, %v1269, 0
    %v1764 = vsel %vm1312, %v1270, 0
    %v1767 = vsel %vm1312, %v1271, 0
    %v1770 = vsel %vm1312, %v1272, 0
    %v1773 = vsel %vm1312, %v1273, 0
    %v1776 = vsel %vm1312, %v1274, 0
    %v1779 = vsel %vm1312, %v1275, 0
    %v1782 = vsel %vm1312, %v1276, 0
    %v1785 = vsel %vm1312, %v1277, 0
    %v1788 = vsel %vm1312, %v1278, 0
    %v1791 = vsel %vm1312, %v1279, 0
    %v1794 = vsel %vm1312, %v1280, 0
    %v1797 = vsel %vm1312, %v1281, 0
    %v1800 = vsel %vm1312, %v1282, 0
    %v1803 = vsel %vm1312, %v1283, 0
    %v1806 = vsel %vm1312, %v1284, 0
    %v1809 = vsel %vm1312, %v1285, 0
    %v1812 = vsel %vm1312, %v1286, 0
    %v1815 = vsel %vm1312, %v1287, 0
    %v1818 = vsel %vm1312, %v1288, 0
    %v1821 = vsel %vm1312, %v1289, 0
    %v1824 = vsel %vm1312, %v1290, 0
    %v1827 = vsel %vm1312, %v1291, 0
    %v1830 = vsel %vm1312, %v1292, 0
    %v1833 = vsel %vm1312, %v1293, 0
    %v1836 = vsel %vm1312, %v1294, 0
    %v1839 = vsel %vm1312, %v1295, 0
    %v1842 = vsel %vm1312, %v1296, 0
    %v1845 = vsel %vm1312, %v1297, 0
    %v1848 = vsel %vm1312, %v1298, 0
    %v1851 = vsel %vm1312, %v1299, 0
    %v1854 = vsel %vm1312, %v1300, 0
    %vm1856 = vcmask 1043456
    %vm1857 = vcmask 1044480
    %v1858 = vsel %vm1856, 4294967295, 65535
    %v1859 = vsel %vm1857, %v1858, 0
    %v1861 = vand.u32 %v1310, %v1859
    %1863 = vmatpush.bf16.msra.mxu0 0
    %1864 = vmatpush.bf16.msra.mxu0 0
    %1865 = vmatpush.bf16.msra.mxu0 0
    %1866 = vmatpush.bf16.msra.mxu0 0
    %1867 = vmatpush.bf16.msra.mxu0 0
    %1868 = vmatpush.bf16.msra.mxu0 0
    %1869 = vmatpush.bf16.msra.mxu0 %v1861
    %1870 = vmatpush.bf16.msra.mxu0 %v1309
    %1871 = vmatmul.bf16.gmra.mxu0 %v1314
    %v1872 = vpop.f32.mrf.mxu0
    %v1873 = vadd.f32 %v396, %v1872
    %v1874 = vpop.f32.mrf.mxu0
    %v1875 = vadd.f32 %v396, %v1874
    %1876 = vmatmul.bf16.gmra.mxu0 %v1317
    %v1877 = vpop.f32.mrf.mxu0
    %v1878 = vadd.f32 %v396, %v1877
    %v1879 = vpop.f32.mrf.mxu0
    %v1880 = vadd.f32 %v396, %v1879
    %1881 = vmatmul.bf16.gmra.mxu0 %v1320
    %v1882 = vpop.f32.mrf.mxu0
    %v1883 = vadd.f32 %v396, %v1882
    %v1884 = vpop.f32.mrf.mxu0
    %v1885 = vadd.f32 %v396, %v1884
    %1886 = vmatmul.bf16.gmra.mxu0 %v1323
    %v1887 = vpop.f32.mrf.mxu0
    %v1888 = vadd.f32 %v396, %v1887
    %v1889 = vpop.f32.mrf.mxu0
    %v1890 = vadd.f32 %v396, %v1889
    %1891 = vmatmul.bf16.gmra.mxu0 %v1326
    %v1892 = vpop.f32.mrf.mxu0
    %v1893 = vadd.f32 %v396, %v1892
    %v1894 = vpop.f32.mrf.mxu0
    %v1895 = vadd.f32 %v396, %v1894
    %1896 = vmatmul.bf16.gmra.mxu0 %v1329
    %v1897 = vpop.f32.mrf.mxu0
    %v1898 = vadd.f32 %v396, %v1897
    %v1899 = vpop.f32.mrf.mxu0
    %v1900 = vadd.f32 %v396, %v1899
    %1901 = vmatmul.bf16.gmra.mxu0 %v1332
    %v1902 = vpop.f32.mrf.mxu0
    %v1903 = vadd.f32 %v396, %v1902
    %v1904 = vpop.f32.mrf.mxu0
    %v1905 = vadd.f32 %v396, %v1904
    %1906 = vmatmul.bf16.gmra.mxu0 %v1335
    %v1907 = vpop.f32.mrf.mxu0
    %v1908 = vadd.f32 %v396, %v1907
    %v1909 = vpop.f32.mrf.mxu0
    %v1910 = vadd.f32 %v396, %v1909
    %1911 = vmatmul.bf16.gmra.mxu0 %v1338
    %v1912 = vpop.f32.mrf.mxu0
    %v1913 = vadd.f32 %v396, %v1912
    %v1914 = vpop.f32.mrf.mxu0
    %v1915 = vadd.f32 %v396, %v1914
    %1916 = vmatmul.bf16.gmra.mxu0 %v1341
    %v1917 = vpop.f32.mrf.mxu0
    %v1918 = vadd.f32 %v396, %v1917
    %v1919 = vpop.f32.mrf.mxu0
    %v1920 = vadd.f32 %v396, %v1919
    %1921 = vmatmul.bf16.gmra.mxu0 %v1344
    %v1922 = vpop.f32.mrf.mxu0
    %v1923 = vadd.f32 %v396, %v1922
    %v1924 = vpop.f32.mrf.mxu0
    %v1925 = vadd.f32 %v396, %v1924
    %1926 = vmatmul.bf16.gmra.mxu0 %v1347
    %v1927 = vpop.f32.mrf.mxu0
    %v1928 = vadd.f32 %v396, %v1927
    %v1929 = vpop.f32.mrf.mxu0
    %v1930 = vadd.f32 %v396, %v1929
    %1931 = vmatmul.bf16.gmra.mxu0 %v1350
    %v1932 = vpop.f32.mrf.mxu0
    %v1933 = vadd.f32 %v396, %v1932
    %v1934 = vpop.f32.mrf.mxu0
    %v1935 = vadd.f32 %v396, %v1934
    %1936 = vmatmul.bf16.gmra.mxu0 %v1353
    %v1937 = vpop.f32.mrf.mxu0
    %v1938 = vadd.f32 %v396, %v1937
    %v1939 = vpop.f32.mrf.mxu0
    %v1940 = vadd.f32 %v396, %v1939
    %1941 = vmatmul.bf16.gmra.mxu0 %v1356
    %v1942 = vpop.f32.mrf.mxu0
    %v1943 = vadd.f32 %v396, %v1942
    %v1944 = vpop.f32.mrf.mxu0
    %v1945 = vadd.f32 %v396, %v1944
    %1946 = vmatmul.bf16.gmra.mxu0 %v1359
    %v1947 = vpop.f32.mrf.mxu0
    %v1948 = vadd.f32 %v396, %v1947
    %v1949 = vpop.f32.mrf.mxu0
    %v1950 = vadd.f32 %v396, %v1949
    %1951 = vmatmul.bf16.gmra.mxu0 %v1362
    %v1952 = vpop.f32.mrf.mxu0
    %v1953 = vadd.f32 %v396, %v1952
    %v1954 = vpop.f32.mrf.mxu0
    %v1955 = vadd.f32 %v396, %v1954
    %1956 = vmatmul.bf16.gmra.mxu0 %v1365
    %v1957 = vpop.f32.mrf.mxu0
    %v1958 = vadd.f32 %v396, %v1957
    %v1959 = vpop.f32.mrf.mxu0
    %v1960 = vadd.f32 %v396, %v1959
    %1961 = vmatmul.bf16.gmra.mxu0 %v1368
    %v1962 = vpop.f32.mrf.mxu0
    %v1963 = vadd.f32 %v396, %v1962
    %v1964 = vpop.f32.mrf.mxu0
    %v1965 = vadd.f32 %v396, %v1964
    %1966 = vmatmul.bf16.gmra.mxu0 %v1371
    %v1967 = vpop.f32.mrf.mxu0
    %v1968 = vadd.f32 %v396, %v1967
    %v1969 = vpop.f32.mrf.mxu0
    %v1970 = vadd.f32 %v396, %v1969
    %1971 = vmatmul.bf16.gmra.mxu0 %v1374
    %v1972 = vpop.f32.mrf.mxu0
    %v1973 = vadd.f32 %v396, %v1972
    %v1974 = vpop.f32.mrf.mxu0
    %v1975 = vadd.f32 %v396, %v1974
    %1976 = vmatmul.bf16.gmra.mxu0 %v1377
    %v1977 = vpop.f32.mrf.mxu0
    %v1978 = vadd.f32 %v396, %v1977
    %v1979 = vpop.f32.mrf.mxu0
    %v1980 = vadd.f32 %v396, %v1979
    %1981 = vmatmul.bf16.gmra.mxu0 %v1380
    %v1982 = vpop.f32.mrf.mxu0
    %v1983 = vadd.f32 %v396, %v1982
    %v1984 = vpop.f32.mrf.mxu0
    %v1985 = vadd.f32 %v396, %v1984
    %1986 = vmatmul.bf16.gmra.mxu0 %v1383
    %v1987 = vpop.f32.mrf.mxu0
    %v1988 = vadd.f32 %v396, %v1987
    %v1989 = vpop.f32.mrf.mxu0
    %v1990 = vadd.f32 %v396, %v1989
    %1991 = vmatmul.bf16.gmra.mxu0 %v1386
    %v1992 = vpop.f32.mrf.mxu0
    %v1993 = vadd.f32 %v396, %v1992
    %v1994 = vpop.f32.mrf.mxu0
    %v1995 = vadd.f32 %v396, %v1994
    %1996 = vmatmul.bf16.gmra.mxu0 %v1389
    %v1997 = vpop.f32.mrf.mxu0
    %v1998 = vadd.f32 %v396, %v1997
    %v1999 = vpop.f32.mrf.mxu0
    %v2000 = vadd.f32 %v396, %v1999
    %2001 = vmatmul.bf16.gmra.mxu0 %v1392
    %v2002 = vpop.f32.mrf.mxu0
    %v2003 = vadd.f32 %v396, %v2002
    %v2004 = vpop.f32.mrf.mxu0
    %v2005 = vadd.f32 %v396, %v2004
    %2006 = vmatmul.bf16.gmra.mxu0 %v1395
    %v2007 = vpop.f32.mrf.mxu0
    %v2008 = vadd.f32 %v396, %v2007
    %v2009 = vpop.f32.mrf.mxu0
    %v2010 = vadd.f32 %v396, %v2009
    %2011 = vmatmul.bf16.gmra.mxu0 %v1398
    %v2012 = vpop.f32.mrf.mxu0
    %v2013 = vadd.f32 %v396, %v2012
    %v2014 = vpop.f32.mrf.mxu0
    %v2015 = vadd.f32 %v396, %v2014
    %2016 = vmatmul.bf16.gmra.mxu0 %v1401
    %v2017 = vpop.f32.mrf.mxu0
    %v2018 = vadd.f32 %v396, %v2017
    %v2019 = vpop.f32.mrf.mxu0
    %v2020 = vadd.f32 %v396, %v2019
    %2021 = vmatmul.bf16.gmra.mxu0 %v1404
    %v2022 = vpop.f32.mrf.mxu0
    %v2023 = vadd.f32 %v396, %v2022
    %v2024 = vpop.f32.mrf.mxu0
    %v2025 = vadd.f32 %v396, %v2024
    %2026 = vmatmul.bf16.gmra.mxu0 %v1407
    %v2027 = vpop.f32.mrf.mxu0
    %v2028 = vadd.f32 %v396, %v2027
    %v2029 = vpop.f32.mrf.mxu0
    %v2030 = vadd.f32 %v396, %v2029
    %2031 = vmatmul.bf16.gmra.mxu0 %v1410
    %v2032 = vpop.f32.mrf.mxu0
    %v2033 = vadd.f32 %v396, %v2032
    %v2034 = vpop.f32.mrf.mxu0
    %v2035 = vadd.f32 %v396, %v2034
    %2036 = vmatmul.bf16.gmra.mxu0 %v1413
    %v2037 = vpop.f32.mrf.mxu0
    %v2038 = vadd.f32 %v396, %v2037
    %v2039 = vpop.f32.mrf.mxu0
    %v2040 = vadd.f32 %v396, %v2039
    %2041 = vmatmul.bf16.gmra.mxu0 %v1416
    %v2042 = vpop.f32.mrf.mxu0
    %v2043 = vadd.f32 %v396, %v2042
    %v2044 = vpop.f32.mrf.mxu0
    %v2045 = vadd.f32 %v396, %v2044
    %2046 = vmatmul.bf16.gmra.mxu0 %v1419
    %v2047 = vpop.f32.mrf.mxu0
    %v2048 = vadd.f32 %v396, %v2047
    %v2049 = vpop.f32.mrf.mxu0
    %v2050 = vadd.f32 %v396, %v2049
    %2051 = vmatmul.bf16.gmra.mxu0 %v1422
    %v2052 = vpop.f32.mrf.mxu0
    %v2053 = vadd.f32 %v396, %v2052
    %v2054 = vpop.f32.mrf.mxu0
    %v2055 = vadd.f32 %v396, %v2054
    %2056 = vmatmul.bf16.gmra.mxu0 %v1425
    %v2057 = vpop.f32.mrf.mxu0
    %v2058 = vadd.f32 %v396, %v2057
    %v2059 = vpop.f32.mrf.mxu0
    %v2060 = vadd.f32 %v396, %v2059
    %2061 = vmatmul.bf16.gmra.mxu0 %v1428
    %v2062 = vpop.f32.mrf.mxu0
    %v2063 = vadd.f32 %v396, %v2062
    %v2064 = vpop.f32.mrf.mxu0
    %v2065 = vadd.f32 %v396, %v2064
    %2066 = vmatmul.bf16.gmra.mxu0 %v1431
    %v2067 = vpop.f32.mrf.mxu0
    %v2068 = vadd.f32 %v396, %v2067
    %v2069 = vpop.f32.mrf.mxu0
    %v2070 = vadd.f32 %v396, %v2069
    %2071 = vmatmul.bf16.gmra.mxu0 %v1434
    %v2072 = vpop.f32.mrf.mxu0
    %v2073 = vadd.f32 %v396, %v2072
    %v2074 = vpop.f32.mrf.mxu0
    %v2075 = vadd.f32 %v396, %v2074
    %2076 = vmatmul.bf16.gmra.mxu0 %v1437
    %v2077 = vpop.f32.mrf.mxu0
    %v2078 = vadd.f32 %v396, %v2077
    %v2079 = vpop.f32.mrf.mxu0
    %v2080 = vadd.f32 %v396, %v2079
    %2081 = vmatmul.bf16.gmra.mxu0 %v1440
    %v2082 = vpop.f32.mrf.mxu0
    %v2083 = vadd.f32 %v396, %v2082
    %v2084 = vpop.f32.mrf.mxu0
    %v2085 = vadd.f32 %v396, %v2084
    %2086 = vmatmul.bf16.gmra.mxu0 %v1443
    %v2087 = vpop.f32.mrf.mxu0
    %v2088 = vadd.f32 %v396, %v2087
    %v2089 = vpop.f32.mrf.mxu0
    %v2090 = vadd.f32 %v396, %v2089
    %2091 = vmatmul.bf16.gmra.mxu0 %v1446
    %v2092 = vpop.f32.mrf.mxu0
    %v2093 = vadd.f32 %v396, %v2092
    %v2094 = vpop.f32.mrf.mxu0
    %v2095 = vadd.f32 %v396, %v2094
    %2096 = vmatmul.bf16.gmra.mxu0 %v1449
    %v2097 = vpop.f32.mrf.mxu0
    %v2098 = vadd.f32 %v396, %v2097
    %v2099 = vpop.f32.mrf.mxu0
    %v2100 = vadd.f32 %v396, %v2099
    %2101 = vmatmul.bf16.gmra.mxu0 %v1452
    %v2102 = vpop.f32.mrf.mxu0
    %v2103 = vadd.f32 %v396, %v2102
    %v2104 = vpop.f32.mrf.mxu0
    %v2105 = vadd.f32 %v396, %v2104
    %2106 = vmatmul.bf16.gmra.mxu0 %v1455
    %v2107 = vpop.f32.mrf.mxu0
    %v2108 = vadd.f32 %v396, %v2107
    %v2109 = vpop.f32.mrf.mxu0
    %v2110 = vadd.f32 %v396, %v2109
    %2111 = vmatmul.bf16.gmra.mxu0 %v1458
    %v2112 = vpop.f32.mrf.mxu0
    %v2113 = vadd.f32 %v396, %v2112
    %v2114 = vpop.f32.mrf.mxu0
    %v2115 = vadd.f32 %v396, %v2114
    %2116 = vmatmul.bf16.gmra.mxu0 %v1461
    %v2117 = vpop.f32.mrf.mxu0
    %v2118 = vadd.f32 %v396, %v2117
    %v2119 = vpop.f32.mrf.mxu0
    %v2120 = vadd.f32 %v396, %v2119
    %2121 = vmatmul.bf16.gmra.mxu0 %v1464
    %v2122 = vpop.f32.mrf.mxu0
    %v2123 = vadd.f32 %v396, %v2122
    %v2124 = vpop.f32.mrf.mxu0
    %v2125 = vadd.f32 %v396, %v2124
    %2126 = vmatmul.bf16.gmra.mxu0 %v1467
    %v2127 = vpop.f32.mrf.mxu0
    %v2128 = vadd.f32 %v396, %v2127
    %v2129 = vpop.f32.mrf.mxu0
    %v2130 = vadd.f32 %v396, %v2129
    %2131 = vmatmul.bf16.gmra.mxu0 %v1470
    %v2132 = vpop.f32.mrf.mxu0
    %v2133 = vadd.f32 %v396, %v2132
    %v2134 = vpop.f32.mrf.mxu0
    %v2135 = vadd.f32 %v396, %v2134
    %2136 = vmatmul.bf16.gmra.mxu0 %v1473
    %v2137 = vpop.f32.mrf.mxu0
    %v2138 = vadd.f32 %v396, %v2137
    %v2139 = vpop.f32.mrf.mxu0
    %v2140 = vadd.f32 %v396, %v2139
    %2141 = vmatmul.bf16.gmra.mxu0 %v1476
    %v2142 = vpop.f32.mrf.mxu0
    %v2143 = vadd.f32 %v396, %v2142
    %v2144 = vpop.f32.mrf.mxu0
    %v2145 = vadd.f32 %v396, %v2144
    %2146 = vmatmul.bf16.gmra.mxu0 %v1479
    %v2147 = vpop.f32.mrf.mxu0
    %v2148 = vadd.f32 %v396, %v2147
    %v2149 = vpop.f32.mrf.mxu0
    %v2150 = vadd.f32 %v396, %v2149
    %2151 = vmatmul.bf16.gmra.mxu0 %v1482
    %v2152 = vpop.f32.mrf.mxu0
    %v2153 = vadd.f32 %v396, %v2152
    %v2154 = vpop.f32.mrf.mxu0
    %v2155 = vadd.f32 %v396, %v2154
    %2156 = vmatmul.bf16.gmra.mxu0 %v1485
    %v2157 = vpop.f32.mrf.mxu0
    %v2158 = vadd.f32 %v396, %v2157
    %v2159 = vpop.f32.mrf.mxu0
    %v2160 = vadd.f32 %v396, %v2159
    %2161 = vmatmul.bf16.gmra.mxu0 %v1488
    %v2162 = vpop.f32.mrf.mxu0
    %v2163 = vadd.f32 %v396, %v2162
    %v2164 = vpop.f32.mrf.mxu0
    %v2165 = vadd.f32 %v396, %v2164
    %2166 = vmatmul.bf16.gmra.mxu0 %v1491
    %v2167 = vpop.f32.mrf.mxu0
    %v2168 = vadd.f32 %v396, %v2167
    %v2169 = vpop.f32.mrf.mxu0
    %v2170 = vadd.f32 %v396, %v2169
    %2171 = vmatmul.bf16.gmra.mxu0 %v1494
    %v2172 = vpop.f32.mrf.mxu0
    %v2173 = vadd.f32 %v396, %v2172
    %v2174 = vpop.f32.mrf.mxu0
    %v2175 = vadd.f32 %v396, %v2174
    %2176 = vmatmul.bf16.gmra.mxu0 %v1497
    %v2177 = vpop.f32.mrf.mxu0
    %v2178 = vadd.f32 %v396, %v2177
    %v2179 = vpop.f32.mrf.mxu0
    %v2180 = vadd.f32 %v396, %v2179
    %2181 = vmatmul.bf16.gmra.mxu0 %v1500
    %v2182 = vpop.f32.mrf.mxu0
    %v2183 = vadd.f32 %v396, %v2182
    %v2184 = vpop.f32.mrf.mxu0
    %v2185 = vadd.f32 %v396, %v2184
    %2186 = vmatmul.bf16.gmra.mxu0 %v1503
    %v2187 = vpop.f32.mrf.mxu0
    %v2188 = vadd.f32 %v396, %v2187
    %v2189 = vpop.f32.mrf.mxu0
    %v2190 = vadd.f32 %v396, %v2189
    %2191 = vmatmul.bf16.gmra.mxu0 %v1506
    %v2192 = vpop.f32.mrf.mxu0
    %v2193 = vadd.f32 %v396, %v2192
    %v2194 = vpop.f32.mrf.mxu0
    %v2195 = vadd.f32 %v396, %v2194
    %2196 = vmatmul.bf16.gmra.mxu0 %v1509
    %v2197 = vpop.f32.mrf.mxu0
    %v2198 = vadd.f32 %v396, %v2197
    %v2199 = vpop.f32.mrf.mxu0
    %v2200 = vadd.f32 %v396, %v2199
    %2201 = vmatmul.bf16.gmra.mxu0 %v1512
    %v2202 = vpop.f32.mrf.mxu0
    %v2203 = vadd.f32 %v396, %v2202
    %v2204 = vpop.f32.mrf.mxu0
    %v2205 = vadd.f32 %v396, %v2204
    %2206 = vmatmul.bf16.gmra.mxu0 %v1515
    %v2207 = vpop.f32.mrf.mxu0
    %v2208 = vadd.f32 %v396, %v2207
    %v2209 = vpop.f32.mrf.mxu0
    %v2210 = vadd.f32 %v396, %v2209
    %2211 = vmatmul.bf16.gmra.mxu0 %v1518
    %v2212 = vpop.f32.mrf.mxu0
    %v2213 = vadd.f32 %v396, %v2212
    %v2214 = vpop.f32.mrf.mxu0
    %v2215 = vadd.f32 %v396, %v2214
    %2216 = vmatmul.bf16.gmra.mxu0 %v1521
    %v2217 = vpop.f32.mrf.mxu0
    %v2218 = vadd.f32 %v396, %v2217
    %v2219 = vpop.f32.mrf.mxu0
    %v2220 = vadd.f32 %v396, %v2219
    %2221 = vmatmul.bf16.gmra.mxu0 %v1524
    %v2222 = vpop.f32.mrf.mxu0
    %v2223 = vadd.f32 %v396, %v2222
    %v2224 = vpop.f32.mrf.mxu0
    %v2225 = vadd.f32 %v396, %v2224
    %2226 = vmatmul.bf16.gmra.mxu0 %v1527
    %v2227 = vpop.f32.mrf.mxu0
    %v2228 = vadd.f32 %v396, %v2227
    %v2229 = vpop.f32.mrf.mxu0
    %v2230 = vadd.f32 %v396, %v2229
    %2231 = vmatmul.bf16.gmra.mxu0 %v1530
    %v2232 = vpop.f32.mrf.mxu0
    %v2233 = vadd.f32 %v396, %v2232
    %v2234 = vpop.f32.mrf.mxu0
    %v2235 = vadd.f32 %v396, %v2234
    %2236 = vmatmul.bf16.gmra.mxu0 %v1533
    %v2237 = vpop.f32.mrf.mxu0
    %v2238 = vadd.f32 %v396, %v2237
    %v2239 = vpop.f32.mrf.mxu0
    %v2240 = vadd.f32 %v396, %v2239
    %2241 = vmatmul.bf16.gmra.mxu0 %v1536
    %v2242 = vpop.f32.mrf.mxu0
    %v2243 = vadd.f32 %v396, %v2242
    %v2244 = vpop.f32.mrf.mxu0
    %v2245 = vadd.f32 %v396, %v2244
    %2246 = vmatmul.bf16.gmra.mxu0 %v1539
    %v2247 = vpop.f32.mrf.mxu0
    %v2248 = vadd.f32 %v396, %v2247
    %v2249 = vpop.f32.mrf.mxu0
    %v2250 = vadd.f32 %v396, %v2249
    %2251 = vmatmul.bf16.gmra.mxu0 %v1542
    %v2252 = vpop.f32.mrf.mxu0
    %v2253 = vadd.f32 %v396, %v2252
    %v2254 = vpop.f32.mrf.mxu0
    %v2255 = vadd.f32 %v396, %v2254
    %2256 = vmatmul.bf16.gmra.mxu0 %v1545
    %v2257 = vpop.f32.mrf.mxu0
    %v2258 = vadd.f32 %v396, %v2257
    %v2259 = vpop.f32.mrf.mxu0
    %v2260 = vadd.f32 %v396, %v2259
    %2261 = vmatmul.bf16.gmra.mxu0 %v1548
    %v2262 = vpop.f32.mrf.mxu0
    %v2263 = vadd.f32 %v396, %v2262
    %v2264 = vpop.f32.mrf.mxu0
    %v2265 = vadd.f32 %v396, %v2264
    %2266 = vmatmul.bf16.gmra.mxu0 %v1551
    %v2267 = vpop.f32.mrf.mxu0
    %v2268 = vadd.f32 %v396, %v2267
    %v2269 = vpop.f32.mrf.mxu0
    %v2270 = vadd.f32 %v396, %v2269
    %2271 = vmatmul.bf16.gmra.mxu0 %v1554
    %v2272 = vpop.f32.mrf.mxu0
    %v2273 = vadd.f32 %v396, %v2272
    %v2274 = vpop.f32.mrf.mxu0
    %v2275 = vadd.f32 %v396, %v2274
    %2276 = vmatmul.bf16.gmra.mxu0 %v1557
    %v2277 = vpop.f32.mrf.mxu0
    %v2278 = vadd.f32 %v396, %v2277
    %v2279 = vpop.f32.mrf.mxu0
    %v2280 = vadd.f32 %v396, %v2279
    %2281 = vmatmul.bf16.gmra.mxu0 %v1560
    %v2282 = vpop.f32.mrf.mxu0
    %v2283 = vadd.f32 %v396, %v2282
    %v2284 = vpop.f32.mrf.mxu0
    %v2285 = vadd.f32 %v396, %v2284
    %2286 = vmatmul.bf16.gmra.mxu0 %v1563
    %v2287 = vpop.f32.mrf.mxu0
    %v2288 = vadd.f32 %v396, %v2287
    %v2289 = vpop.f32.mrf.mxu0
    %v2290 = vadd.f32 %v396, %v2289
    %2291 = vmatmul.bf16.gmra.mxu0 %v1566
    %v2292 = vpop.f32.mrf.mxu0
    %v2293 = vadd.f32 %v396, %v2292
    %v2294 = vpop.f32.mrf.mxu0
    %v2295 = vadd.f32 %v396, %v2294
    %2296 = vmatmul.bf16.gmra.mxu0 %v1569
    %v2297 = vpop.f32.mrf.mxu0
    %v2298 = vadd.f32 %v396, %v2297
    %v2299 = vpop.f32.mrf.mxu0
    %v2300 = vadd.f32 %v396, %v2299
    %2301 = vmatmul.bf16.gmra.mxu0 %v1572
    %v2302 = vpop.f32.mrf.mxu0
    %v2303 = vadd.f32 %v396, %v2302
    %v2304 = vpop.f32.mrf.mxu0
    %v2305 = vadd.f32 %v396, %v2304
    %2306 = vmatmul.bf16.gmra.mxu0 %v1575
    %v2307 = vpop.f32.mrf.mxu0
    %v2308 = vadd.f32 %v396, %v2307
    %v2309 = vpop.f32.mrf.mxu0
    %v2310 = vadd.f32 %v396, %v2309
    %2311 = vmatmul.bf16.gmra.mxu0 %v1578
    %v2312 = vpop.f32.mrf.mxu0
    %v2313 = vadd.f32 %v396, %v2312
    %v2314 = vpop.f32.mrf.mxu0
    %v2315 = vadd.f32 %v396, %v2314
    %2316 = vmatmul.bf16.gmra.mxu0 %v1581
    %v2317 = vpop.f32.mrf.mxu0
    %v2318 = vadd.f32 %v396, %v2317
    %v2319 = vpop.f32.mrf.mxu0
    %v2320 = vadd.f32 %v396, %v2319
    %2321 = vmatmul.bf16.gmra.mxu0 %v1584
    %v2322 = vpop.f32.mrf.mxu0
    %v2323 = vadd.f32 %v396, %v2322
    %v2324 = vpop.f32.mrf.mxu0
    %v2325 = vadd.f32 %v396, %v2324
    %2326 = vmatmul.bf16.gmra.mxu0 %v1587
    %v2327 = vpop.f32.mrf.mxu0
    %v2328 = vadd.f32 %v396, %v2327
    %v2329 = vpop.f32.mrf.mxu0
    %v2330 = vadd.f32 %v396, %v2329
    %2331 = vmatmul.bf16.gmra.mxu0 %v1590
    %v2332 = vpop.f32.mrf.mxu0
    %v2333 = vadd.f32 %v396, %v2332
    %v2334 = vpop.f32.mrf.mxu0
    %v2335 = vadd.f32 %v396, %v2334
    %2336 = vmatmul.bf16.gmra.mxu0 %v1593
    %v2337 = vpop.f32.mrf.mxu0
    %v2338 = vadd.f32 %v396, %v2337
    %v2339 = vpop.f32.mrf.mxu0
    %v2340 = vadd.f32 %v396, %v2339
    %2341 = vmatmul.bf16.gmra.mxu0 %v1596
    %v2342 = vpop.f32.mrf.mxu0
    %v2343 = vadd.f32 %v396, %v2342
    %v2344 = vpop.f32.mrf.mxu0
    %v2345 = vadd.f32 %v396, %v2344
    %2346 = vmatmul.bf16.gmra.mxu0 %v1599
    %v2347 = vpop.f32.mrf.mxu0
    %v2348 = vadd.f32 %v396, %v2347
    %v2349 = vpop.f32.mrf.mxu0
    %v2350 = vadd.f32 %v396, %v2349
    %2351 = vmatmul.bf16.gmra.mxu0 %v1602
    %v2352 = vpop.f32.mrf.mxu0
    %v2353 = vadd.f32 %v396, %v2352
    %v2354 = vpop.f32.mrf.mxu0
    %v2355 = vadd.f32 %v396, %v2354
    %2356 = vmatmul.bf16.gmra.mxu0 %v1605
    %v2357 = vpop.f32.mrf.mxu0
    %v2358 = vadd.f32 %v396, %v2357
    %v2359 = vpop.f32.mrf.mxu0
    %v2360 = vadd.f32 %v396, %v2359
    %2361 = vmatmul.bf16.gmra.mxu0 %v1608
    %v2362 = vpop.f32.mrf.mxu0
    %v2363 = vadd.f32 %v396, %v2362
    %v2364 = vpop.f32.mrf.mxu0
    %v2365 = vadd.f32 %v396, %v2364
    %2366 = vmatmul.bf16.gmra.mxu0 %v1611
    %v2367 = vpop.f32.mrf.mxu0
    %v2368 = vadd.f32 %v396, %v2367
    %v2369 = vpop.f32.mrf.mxu0
    %v2370 = vadd.f32 %v396, %v2369
    %2371 = vmatmul.bf16.gmra.mxu0 %v1614
    %v2372 = vpop.f32.mrf.mxu0
    %v2373 = vadd.f32 %v396, %v2372
    %v2374 = vpop.f32.mrf.mxu0
    %v2375 = vadd.f32 %v396, %v2374
    %2376 = vmatmul.bf16.gmra.mxu0 %v1617
    %v2377 = vpop.f32.mrf.mxu0
    %v2378 = vadd.f32 %v396, %v2377
    %v2379 = vpop.f32.mrf.mxu0
    %v2380 = vadd.f32 %v396, %v2379
    %2381 = vmatmul.bf16.gmra.mxu0 %v1620
    %v2382 = vpop.f32.mrf.mxu0
    %v2383 = vadd.f32 %v396, %v2382
    %v2384 = vpop.f32.mrf.mxu0
    %v2385 = vadd.f32 %v396, %v2384
    %2386 = vmatmul.bf16.gmra.mxu0 %v1623
    %v2387 = vpop.f32.mrf.mxu0
    %v2388 = vadd.f32 %v396, %v2387
    %v2389 = vpop.f32.mrf.mxu0
    %v2390 = vadd.f32 %v396, %v2389
    %2391 = vmatmul.bf16.gmra.mxu0 %v1626
    %v2392 = vpop.f32.mrf.mxu0
    %v2393 = vadd.f32 %v396, %v2392
    %v2394 = vpop.f32.mrf.mxu0
    %v2395 = vadd.f32 %v396, %v2394
    %2396 = vmatmul.bf16.gmra.mxu0 %v1629
    %v2397 = vpop.f32.mrf.mxu0
    %v2398 = vadd.f32 %v396, %v2397
    %v2399 = vpop.f32.mrf.mxu0
    %v2400 = vadd.f32 %v396, %v2399
    %2401 = vmatmul.bf16.gmra.mxu0 %v1632
    %v2402 = vpop.f32.mrf.mxu0
    %v2403 = vadd.f32 %v396, %v2402
    %v2404 = vpop.f32.mrf.mxu0
    %v2405 = vadd.f32 %v396, %v2404
    %2406 = vmatmul.bf16.gmra.mxu0 %v1635
    %v2407 = vpop.f32.mrf.mxu0
    %v2408 = vadd.f32 %v396, %v2407
    %v2409 = vpop.f32.mrf.mxu0
    %v2410 = vadd.f32 %v396, %v2409
    %2411 = vmatmul.bf16.gmra.mxu0 %v1638
    %v2412 = vpop.f32.mrf.mxu0
    %v2413 = vadd.f32 %v396, %v2412
    %v2414 = vpop.f32.mrf.mxu0
    %v2415 = vadd.f32 %v396, %v2414
    %2416 = vmatmul.bf16.gmra.mxu0 %v1641
    %v2417 = vpop.f32.mrf.mxu0
    %v2418 = vadd.f32 %v396, %v2417
    %v2419 = vpop.f32.mrf.mxu0
    %v2420 = vadd.f32 %v396, %v2419
    %2421 = vmatmul.bf16.gmra.mxu0 %v1644
    %v2422 = vpop.f32.mrf.mxu0
    %v2423 = vadd.f32 %v396, %v2422
    %v2424 = vpop.f32.mrf.mxu0
    %v2425 = vadd.f32 %v396, %v2424
    %2426 = vmatmul.bf16.gmra.mxu0 %v1647
    %v2427 = vpop.f32.mrf.mxu0
    %v2428 = vadd.f32 %v396, %v2427
    %v2429 = vpop.f32.mrf.mxu0
    %v2430 = vadd.f32 %v396, %v2429
    %2431 = vmatmul.bf16.gmra.mxu0 %v1650
    %v2432 = vpop.f32.mrf.mxu0
    %v2433 = vadd.f32 %v396, %v2432
    %v2434 = vpop.f32.mrf.mxu0
    %v2435 = vadd.f32 %v396, %v2434
    %2436 = vmatmul.bf16.gmra.mxu0 %v1653
    %v2437 = vpop.f32.mrf.mxu0
    %v2438 = vadd.f32 %v396, %v2437
    %v2439 = vpop.f32.mrf.mxu0
    %v2440 = vadd.f32 %v396, %v2439
    %2441 = vmatmul.bf16.gmra.mxu0 %v1656
    %v2442 = vpop.f32.mrf.mxu0
    %v2443 = vadd.f32 %v396, %v2442
    %v2444 = vpop.f32.mrf.mxu0
    %v2445 = vadd.f32 %v396, %v2444
    %2446 = vmatmul.bf16.gmra.mxu0 %v1659
    %v2447 = vpop.f32.mrf.mxu0
    %v2448 = vadd.f32 %v396, %v2447
    %v2449 = vpop.f32.mrf.mxu0
    %v2450 = vadd.f32 %v396, %v2449
    %2451 = vmatmul.bf16.gmra.mxu0 %v1662
    %v2452 = vpop.f32.mrf.mxu0
    %v2453 = vadd.f32 %v396, %v2452
    %v2454 = vpop.f32.mrf.mxu0
    %v2455 = vadd.f32 %v396, %v2454
    %2456 = vmatmul.bf16.gmra.mxu0 %v1665
    %v2457 = vpop.f32.mrf.mxu0
    %v2458 = vadd.f32 %v396, %v2457
    %v2459 = vpop.f32.mrf.mxu0
    %v2460 = vadd.f32 %v396, %v2459
    %2461 = vmatmul.bf16.gmra.mxu0 %v1668
    %v2462 = vpop.f32.mrf.mxu0
    %v2463 = vadd.f32 %v396, %v2462
    %v2464 = vpop.f32.mrf.mxu0
    %v2465 = vadd.f32 %v396, %v2464
    %2466 = vmatmul.bf16.gmra.mxu0 %v1671
    %v2467 = vpop.f32.mrf.mxu0
    %v2468 = vadd.f32 %v396, %v2467
    %v2469 = vpop.f32.mrf.mxu0
    %v2470 = vadd.f32 %v396, %v2469
    %2471 = vmatmul.bf16.gmra.mxu0 %v1674
    %v2472 = vpop.f32.mrf.mxu0
    %v2473 = vadd.f32 %v396, %v2472
    %v2474 = vpop.f32.mrf.mxu0
    %v2475 = vadd.f32 %v396, %v2474
    %2476 = vmatmul.bf16.gmra.mxu0 %v1677
    %v2477 = vpop.f32.mrf.mxu0
    %v2478 = vadd.f32 %v396, %v2477
    %v2479 = vpop.f32.mrf.mxu0
    %v2480 = vadd.f32 %v396, %v2479
    %2481 = vmatmul.bf16.gmra.mxu0 %v1680
    %v2482 = vpop.f32.mrf.mxu0
    %v2483 = vadd.f32 %v396, %v2482
    %v2484 = vpop.f32.mrf.mxu0
    %v2485 = vadd.f32 %v396, %v2484
    %2486 = vmatmul.bf16.gmra.mxu0 %v1683
    %v2487 = vpop.f32.mrf.mxu0
    %v2488 = vadd.f32 %v396, %v2487
    %v2489 = vpop.f32.mrf.mxu0
    %v2490 = vadd.f32 %v396, %v2489
    %2491 = vmatmul.bf16.gmra.mxu0 %v1686
    %v2492 = vpop.f32.mrf.mxu0
    %v2493 = vadd.f32 %v396, %v2492
    %v2494 = vpop.f32.mrf.mxu0
    %v2495 = vadd.f32 %v396, %v2494
    %2496 = vmatmul.bf16.gmra.mxu0 %v1689
    %v2497 = vpop.f32.mrf.mxu0
    %v2498 = vadd.f32 %v396, %v2497
    %v2499 = vpop.f32.mrf.mxu0
    %v2500 = vadd.f32 %v396, %v2499
    %2501 = vmatmul.bf16.gmra.mxu0 %v1692
    %v2502 = vpop.f32.mrf.mxu0
    %v2503 = vadd.f32 %v396, %v2502
    %v2504 = vpop.f32.mrf.mxu0
    %v2505 = vadd.f32 %v396, %v2504
    %2506 = vmatmul.bf16.gmra.mxu0 %v1695
    %v2507 = vpop.f32.mrf.mxu0
    %v2508 = vadd.f32 %v396, %v2507
    %v2509 = vpop.f32.mrf.mxu0
    %v2510 = vadd.f32 %v396, %v2509
    %2511 = vmatmul.bf16.gmra.mxu0 %v1698
    %v2512 = vpop.f32.mrf.mxu0
    %v2513 = vadd.f32 %v396, %v2512
    %v2514 = vpop.f32.mrf.mxu0
    %v2515 = vadd.f32 %v396, %v2514
    %2516 = vmatmul.bf16.gmra.mxu0 %v1701
    %v2517 = vpop.f32.mrf.mxu0
    %v2518 = vadd.f32 %v396, %v2517
    %v2519 = vpop.f32.mrf.mxu0
    %v2520 = vadd.f32 %v396, %v2519
    %2521 = vmatmul.bf16.gmra.mxu0 %v1704
    %v2522 = vpop.f32.mrf.mxu0
    %v2523 = vadd.f32 %v396, %v2522
    %v2524 = vpop.f32.mrf.mxu0
    %v2525 = vadd.f32 %v396, %v2524
    %2526 = vmatmul.bf16.gmra.mxu0 %v1707
    %v2527 = vpop.f32.mrf.mxu0
    %v2528 = vadd.f32 %v396, %v2527
    %v2529 = vpop.f32.mrf.mxu0
    %v2530 = vadd.f32 %v396, %v2529
    %2531 = vmatmul.bf16.gmra.mxu0 %v1710
    %v2532 = vpop.f32.mrf.mxu0
    %v2533 = vadd.f32 %v396, %v2532
    %v2534 = vpop.f32.mrf.mxu0
    %v2535 = vadd.f32 %v396, %v2534
    %2536 = vmatmul.bf16.gmra.mxu0 %v1713
    %v2537 = vpop.f32.mrf.mxu0
    %v2538 = vadd.f32 %v396, %v2537
    %v2539 = vpop.f32.mrf.mxu0
    %v2540 = vadd.f32 %v396, %v2539
    %2541 = vmatmul.bf16.gmra.mxu0 %v1716
    %v2542 = vpop.f32.mrf.mxu0
    %v2543 = vadd.f32 %v396, %v2542
    %v2544 = vpop.f32.mrf.mxu0
    %v2545 = vadd.f32 %v396, %v2544
    %2546 = vmatmul.bf16.gmra.mxu0 %v1719
    %v2547 = vpop.f32.mrf.mxu0
    %v2548 = vadd.f32 %v396, %v2547
    %v2549 = vpop.f32.mrf.mxu0
    %v2550 = vadd.f32 %v396, %v2549
    %2551 = vmatmul.bf16.gmra.mxu0 %v1722
    %v2552 = vpop.f32.mrf.mxu0
    %v2553 = vadd.f32 %v396, %v2552
    %v2554 = vpop.f32.mrf.mxu0
    %v2555 = vadd.f32 %v396, %v2554
    %2556 = vmatmul.bf16.gmra.mxu0 %v1725
    %v2557 = vpop.f32.mrf.mxu0
    %v2558 = vadd.f32 %v396, %v2557
    %v2559 = vpop.f32.mrf.mxu0
    %v2560 = vadd.f32 %v396, %v2559
    %2561 = vmatmul.bf16.gmra.mxu0 %v1728
    %v2562 = vpop.f32.mrf.mxu0
    %v2563 = vadd.f32 %v396, %v2562
    %v2564 = vpop.f32.mrf.mxu0
    %v2565 = vadd.f32 %v396, %v2564
    %2566 = vmatmul.bf16.gmra.mxu0 %v1731
    %v2567 = vpop.f32.mrf.mxu0
    %v2568 = vadd.f32 %v396, %v2567
    %v2569 = vpop.f32.mrf.mxu0
    %v2570 = vadd.f32 %v396, %v2569
    %2571 = vmatmul.bf16.gmra.mxu0 %v1734
    %v2572 = vpop.f32.mrf.mxu0
    %v2573 = vadd.f32 %v396, %v2572
    %v2574 = vpop.f32.mrf.mxu0
    %v2575 = vadd.f32 %v396, %v2574
    %2576 = vmatmul.bf16.gmra.mxu0 %v1737
    %v2577 = vpop.f32.mrf.mxu0
    %v2578 = vadd.f32 %v396, %v2577
    %v2579 = vpop.f32.mrf.mxu0
    %v2580 = vadd.f32 %v396, %v2579
    %2581 = vmatmul.bf16.gmra.mxu0 %v1740
    %v2582 = vpop.f32.mrf.mxu0
    %v2583 = vadd.f32 %v396, %v2582
    %v2584 = vpop.f32.mrf.mxu0
    %v2585 = vadd.f32 %v396, %v2584
    %2586 = vmatmul.bf16.gmra.mxu0 %v1743
    %v2587 = vpop.f32.mrf.mxu0
    %v2588 = vadd.f32 %v396, %v2587
    %v2589 = vpop.f32.mrf.mxu0
    %v2590 = vadd.f32 %v396, %v2589
    %2591 = vmatmul.bf16.gmra.mxu0 %v1746
    %v2592 = vpop.f32.mrf.mxu0
    %v2593 = vadd.f32 %v396, %v2592
    %v2594 = vpop.f32.mrf.mxu0
    %v2595 = vadd.f32 %v396, %v2594
    %2596 = vmatmul.bf16.gmra.mxu0 %v1749
    %v2597 = vpop.f32.mrf.mxu0
    %v2598 = vadd.f32 %v396, %v2597
    %v2599 = vpop.f32.mrf.mxu0
    %v2600 = vadd.f32 %v396, %v2599
    %2601 = vmatmul.bf16.gmra.mxu0 %v1752
    %v2602 = vpop.f32.mrf.mxu0
    %v2603 = vadd.f32 %v396, %v2602
    %v2604 = vpop.f32.mrf.mxu0
    %v2605 = vadd.f32 %v396, %v2604
    %2606 = vmatmul.bf16.gmra.mxu0 %v1755
    %v2607 = vpop.f32.mrf.mxu0
    %v2608 = vadd.f32 %v396, %v2607
    %v2609 = vpop.f32.mrf.mxu0
    %v2610 = vadd.f32 %v396, %v2609
    %2611 = vmatmul.bf16.gmra.mxu0 %v1758
    %v2612 = vpop.f32.mrf.mxu0
    %v2613 = vadd.f32 %v396, %v2612
    %v2614 = vpop.f32.mrf.mxu0
    %v2615 = vadd.f32 %v396, %v2614
    %2616 = vmatmul.bf16.gmra.mxu0 %v1761
    %v2617 = vpop.f32.mrf.mxu0
    %v2618 = vadd.f32 %v396, %v2617
    %v2619 = vpop.f32.mrf.mxu0
    %v2620 = vadd.f32 %v396, %v2619
    %2621 = vmatmul.bf16.gmra.mxu0 %v1764
    %v2622 = vpop.f32.mrf.mxu0
    %v2623 = vadd.f32 %v396, %v2622
    %v2624 = vpop.f32.mrf.mxu0
    %v2625 = vadd.f32 %v396, %v2624
    %2626 = vmatmul.bf16.gmra.mxu0 %v1767
    %v2627 = vpop.f32.mrf.mxu0
    %v2628 = vadd.f32 %v396, %v2627
    %v2629 = vpop.f32.mrf.mxu0
    %v2630 = vadd.f32 %v396, %v2629
    %2631 = vmatmul.bf16.gmra.mxu0 %v1770
    %v2632 = vpop.f32.mrf.mxu0
    %v2633 = vadd.f32 %v396, %v2632
    %v2634 = vpop.f32.mrf.mxu0
    %v2635 = vadd.f32 %v396, %v2634
    %2636 = vmatmul.bf16.gmra.mxu0 %v1773
    %v2637 = vpop.f32.mrf.mxu0
    %v2638 = vadd.f32 %v396, %v2637
    %v2639 = vpop.f32.mrf.mxu0
    %v2640 = vadd.f32 %v396, %v2639
    %2641 = vmatmul.bf16.gmra.mxu0 %v1776
    %v2642 = vpop.f32.mrf.mxu0
    %v2643 = vadd.f32 %v396, %v2642
    %v2644 = vpop.f32.mrf.mxu0
    %v2645 = vadd.f32 %v396, %v2644
    %2646 = vmatmul.bf16.gmra.mxu0 %v1779
    %v2647 = vpop.f32.mrf.mxu0
    %v2648 = vadd.f32 %v396, %v2647
    %v2649 = vpop.f32.mrf.mxu0
    %v2650 = vadd.f32 %v396, %v2649
    %2651 = vmatmul.bf16.gmra.mxu0 %v1782
    %v2652 = vpop.f32.mrf.mxu0
    %v2653 = vadd.f32 %v396, %v2652
    %v2654 = vpop.f32.mrf.mxu0
    %v2655 = vadd.f32 %v396, %v2654
    %2656 = vmatmul.bf16.gmra.mxu0 %v1785
    %v2657 = vpop.f32.mrf.mxu0
    %v2658 = vadd.f32 %v396, %v2657
    %v2659 = vpop.f32.mrf.mxu0
    %v2660 = vadd.f32 %v396, %v2659
    %2661 = vmatmul.bf16.gmra.mxu0 %v1788
    %v2662 = vpop.f32.mrf.mxu0
    %v2663 = vadd.f32 %v396, %v2662
    %v2664 = vpop.f32.mrf.mxu0
    %v2665 = vadd.f32 %v396, %v2664
    %2666 = vmatmul.bf16.gmra.mxu0 %v1791
    %v2667 = vpop.f32.mrf.mxu0
    %v2668 = vadd.f32 %v396, %v2667
    %v2669 = vpop.f32.mrf.mxu0
    %v2670 = vadd.f32 %v396, %v2669
    %2671 = vmatmul.bf16.gmra.mxu0 %v1794
    %v2672 = vpop.f32.mrf.mxu0
    %v2673 = vadd.f32 %v396, %v2672
    %v2674 = vpop.f32.mrf.mxu0
    %v2675 = vadd.f32 %v396, %v2674
    %2676 = vmatmul.bf16.gmra.mxu0 %v1797
    %v2677 = vpop.f32.mrf.mxu0
    %v2678 = vadd.f32 %v396, %v2677
    %v2679 = vpop.f32.mrf.mxu0
    %v2680 = vadd.f32 %v396, %v2679
    %2681 = vmatmul.bf16.gmra.mxu0 %v1800
    %v2682 = vpop.f32.mrf.mxu0
    %v2683 = vadd.f32 %v396, %v2682
    %v2684 = vpop.f32.mrf.mxu0
    %v2685 = vadd.f32 %v396, %v2684
    %2686 = vmatmul.bf16.gmra.mxu0 %v1803
    %v2687 = vpop.f32.mrf.mxu0
    %v2688 = vadd.f32 %v396, %v2687
    %v2689 = vpop.f32.mrf.mxu0
    %v2690 = vadd.f32 %v396, %v2689
    %2691 = vmatmul.bf16.gmra.mxu0 %v1806
    %v2692 = vpop.f32.mrf.mxu0
    %v2693 = vadd.f32 %v396, %v2692
    %v2694 = vpop.f32.mrf.mxu0
    %v2695 = vadd.f32 %v396, %v2694
    %2696 = vmatmul.bf16.gmra.mxu0 %v1809
    %v2697 = vpop.f32.mrf.mxu0
    %v2698 = vadd.f32 %v396, %v2697
    %v2699 = vpop.f32.mrf.mxu0
    %v2700 = vadd.f32 %v396, %v2699
    %2701 = vmatmul.bf16.gmra.mxu0 %v1812
    %v2702 = vpop.f32.mrf.mxu0
    %v2703 = vadd.f32 %v396, %v2702
    %v2704 = vpop.f32.mrf.mxu0
    %v2705 = vadd.f32 %v396, %v2704
    %2706 = vmatmul.bf16.gmra.mxu0 %v1815
    %v2707 = vpop.f32.mrf.mxu0
    %v2708 = vadd.f32 %v396, %v2707
    %v2709 = vpop.f32.mrf.mxu0
    %v2710 = vadd.f32 %v396, %v2709
    %2711 = vmatmul.bf16.gmra.mxu0 %v1818
    %v2712 = vpop.f32.mrf.mxu0
    %v2713 = vadd.f32 %v396, %v2712
    %v2714 = vpop.f32.mrf.mxu0
    %v2715 = vadd.f32 %v396, %v2714
    %2716 = vmatmul.bf16.gmra.mxu0 %v1821
    %v2717 = vpop.f32.mrf.mxu0
    %v2718 = vadd.f32 %v396, %v2717
    %v2719 = vpop.f32.mrf.mxu0
    %v2720 = vadd.f32 %v396, %v2719
    %2721 = vmatmul.bf16.gmra.mxu0 %v1824
    %v2722 = vpop.f32.mrf.mxu0
    %v2723 = vadd.f32 %v396, %v2722
    %v2724 = vpop.f32.mrf.mxu0
    %v2725 = vadd.f32 %v396, %v2724
    %2726 = vmatmul.bf16.gmra.mxu0 %v1827
    %v2727 = vpop.f32.mrf.mxu0
    %v2728 = vadd.f32 %v396, %v2727
    %v2729 = vpop.f32.mrf.mxu0
    %v2730 = vadd.f32 %v396, %v2729
    %2731 = vmatmul.bf16.gmra.mxu0 %v1830
    %v2732 = vpop.f32.mrf.mxu0
    %v2733 = vadd.f32 %v396, %v2732
    %v2734 = vpop.f32.mrf.mxu0
    %v2735 = vadd.f32 %v396, %v2734
    %2736 = vmatmul.bf16.gmra.mxu0 %v1833
    %v2737 = vpop.f32.mrf.mxu0
    %v2738 = vadd.f32 %v396, %v2737
    %v2739 = vpop.f32.mrf.mxu0
    %v2740 = vadd.f32 %v396, %v2739
    %2741 = vmatmul.bf16.gmra.mxu0 %v1836
    %v2742 = vpop.f32.mrf.mxu0
    %v2743 = vadd.f32 %v396, %v2742
    %v2744 = vpop.f32.mrf.mxu0
    %v2745 = vadd.f32 %v396, %v2744
    %2746 = vmatmul.bf16.gmra.mxu0 %v1839
    %v2747 = vpop.f32.mrf.mxu0
    %v2748 = vadd.f32 %v396, %v2747
    %v2749 = vpop.f32.mrf.mxu0
    %v2750 = vadd.f32 %v396, %v2749
    %2751 = vmatmul.bf16.gmra.mxu0 %v1842
    %v2752 = vpop.f32.mrf.mxu0
    %v2753 = vadd.f32 %v396, %v2752
    %v2754 = vpop.f32.mrf.mxu0
    %v2755 = vadd.f32 %v396, %v2754
    %2756 = vmatmul.bf16.gmra.mxu0 %v1845
    %v2757 = vpop.f32.mrf.mxu0
    %v2758 = vadd.f32 %v396, %v2757
    %v2759 = vpop.f32.mrf.mxu0
    %v2760 = vadd.f32 %v396, %v2759
    %2761 = vmatmul.bf16.gmra.mxu0 %v1848
    %v2762 = vpop.f32.mrf.mxu0
    %v2763 = vadd.f32 %v396, %v2762
    %v2764 = vpop.f32.mrf.mxu0
    %v2765 = vadd.f32 %v396, %v2764
    %2766 = vmatmul.bf16.gmra.mxu0 %v1851
    %v2767 = vpop.f32.mrf.mxu0
    %v2768 = vadd.f32 %v396, %v2767
    %v2769 = vpop.f32.mrf.mxu0
    %v2770 = vadd.f32 %v396, %v2769
    %2771 = vmatmul.bf16.gmra.mxu0 %v1854
    %v2772 = vpop.f32.mrf.mxu0
    %v2773 = vadd.f32 %v396, %v2772
    %v2774 = vpop.f32.mrf.mxu0
    %2775 = vdwg.mxu0
    %v2776 = vmax.f32 %v1873, 0.0
    %v2777 = vmax.f32 %v1875, 0.0
    %v2778 = vmax.f32 %v1878, 0.0
    %v2779 = vmax.f32 %v1880, 0.0
    %v2780 = vmax.f32 %v1883, 0.0
    %v2781 = vmax.f32 %v1885, 0.0
    %v2782 = vmax.f32 %v1888, 0.0
    %v2783 = vmax.f32 %v1890, 0.0
    %v2784 = vmax.f32 %v1893, 0.0
    %v2785 = vmax.f32 %v1895, 0.0
    %v2786 = vmax.f32 %v1898, 0.0
    %v2787 = vmax.f32 %v1900, 0.0
    %v2788 = vmax.f32 %v1903, 0.0
    %v2789 = vmax.f32 %v1905, 0.0
    %v2790 = vmax.f32 %v1908, 0.0
    %v2791 = vmax.f32 %v1910, 0.0
    %v2792 = vmax.f32 %v1913, 0.0
    %v2793 = vmax.f32 %v1915, 0.0
    %v2794 = vmax.f32 %v1918, 0.0
    %v2795 = vmax.f32 %v1920, 0.0
    %v2796 = vmax.f32 %v1923, 0.0
    %v2797 = vmax.f32 %v1925, 0.0
    %v2798 = vmax.f32 %v1928, 0.0
    %v2799 = vmax.f32 %v1930, 0.0
    %v2800 = vmax.f32 %v1933, 0.0
    %v2801 = vmax.f32 %v1935, 0.0
    %v2802 = vmax.f32 %v1938, 0.0
    %v2803 = vmax.f32 %v1940, 0.0
    %v2804 = vmax.f32 %v1943, 0.0
    %v2805 = vmax.f32 %v1945, 0.0
    %v2806 = vmax.f32 %v1948, 0.0
    %v2807 = vmax.f32 %v1950, 0.0
    %v2808 = vmax.f32 %v1953, 0.0
    %v2809 = vmax.f32 %v1955, 0.0
    %v2810 = vmax.f32 %v1958, 0.0
    %v2811 = vmax.f32 %v1960, 0.0
    %v2812 = vmax.f32 %v1963, 0.0
    %v2813 = vmax.f32 %v1965, 0.0
    %v2814 = vmax.f32 %v1968, 0.0
    %v2815 = vmax.f32 %v1970, 0.0
    %v2816 = vmax.f32 %v1973, 0.0
    %v2817 = vmax.f32 %v1975, 0.0
    %v2818 = vmax.f32 %v1978, 0.0
    %v2819 = vmax.f32 %v1980, 0.0
    %v2820 = vmax.f32 %v1983, 0.0
    %v2821 = vmax.f32 %v1985, 0.0
    %v2822 = vmax.f32 %v1988, 0.0
    %v2823 = vmax.f32 %v1990, 0.0
    %v2824 = vmax.f32 %v1993, 0.0
    %v2825 = vmax.f32 %v1995, 0.0
    %v2826 = vmax.f32 %v1998, 0.0
    %v2827 = vmax.f32 %v2000, 0.0
    %v2828 = vmax.f32 %v2003, 0.0
    %v2829 = vmax.f32 %v2005, 0.0
    %v2830 = vmax.f32 %v2008, 0.0
    %v2831 = vmax.f32 %v2010, 0.0
    %v2832 = vmax.f32 %v2013, 0.0
    %v2833 = vmax.f32 %v2015, 0.0
    %v2834 = vmax.f32 %v2018, 0.0
    %v2835 = vmax.f32 %v2020, 0.0
    %v2836 = vmax.f32 %v2023, 0.0
    %v2837 = vmax.f32 %v2025, 0.0
    %v2838 = vmax.f32 %v2028, 0.0
    %v2839 = vmax.f32 %v2030, 0.0
    %v2840 = vmax.f32 %v2033, 0.0
    %v2841 = vmax.f32 %v2035, 0.0
    %v2842 = vmax.f32 %v2038, 0.0
    %v2843 = vmax.f32 %v2040, 0.0
    %v2844 = vmax.f32 %v2043, 0.0
    %v2845 = vmax.f32 %v2045, 0.0
    %v2846 = vmax.f32 %v2048, 0.0
    %v2847 = vmax.f32 %v2050, 0.0
    %v2848 = vmax.f32 %v2053, 0.0
    %v2849 = vmax.f32 %v2055, 0.0
    %v2850 = vmax.f32 %v2058, 0.0
    %v2851 = vmax.f32 %v2060, 0.0
    %v2852 = vmax.f32 %v2063, 0.0
    %v2853 = vmax.f32 %v2065, 0.0
    %v2854 = vmax.f32 %v2068, 0.0
    %v2855 = vmax.f32 %v2070, 0.0
    %v2856 = vmax.f32 %v2073, 0.0
    %v2857 = vmax.f32 %v2075, 0.0
    %v2858 = vmax.f32 %v2078, 0.0
    %v2859 = vmax.f32 %v2080, 0.0
    %v2860 = vmax.f32 %v2083, 0.0
    %v2861 = vmax.f32 %v2085, 0.0
    %v2862 = vmax.f32 %v2088, 0.0
    %v2863 = vmax.f32 %v2090, 0.0
    %v2864 = vmax.f32 %v2093, 0.0
    %v2865 = vmax.f32 %v2095, 0.0
    %v2866 = vmax.f32 %v2098, 0.0
    %v2867 = vmax.f32 %v2100, 0.0
    %v2868 = vmax.f32 %v2103, 0.0
    %v2869 = vmax.f32 %v2105, 0.0
    %v2870 = vmax.f32 %v2108, 0.0
    %v2871 = vmax.f32 %v2110, 0.0
    %v2872 = vmax.f32 %v2113, 0.0
    %v2873 = vmax.f32 %v2115, 0.0
    %v2874 = vmax.f32 %v2118, 0.0
    %v2875 = vmax.f32 %v2120, 0.0
    %v2876 = vmax.f32 %v2123, 0.0
    %v2877 = vmax.f32 %v2125, 0.0
    %v2878 = vmax.f32 %v2128, 0.0
    %v2879 = vmax.f32 %v2130, 0.0
    %v2880 = vmax.f32 %v2133, 0.0
    %v2881 = vmax.f32 %v2135, 0.0
    %v2882 = vmax.f32 %v2138, 0.0
    %v2883 = vmax.f32 %v2140, 0.0
    %v2884 = vmax.f32 %v2143, 0.0
    %v2885 = vmax.f32 %v2145, 0.0
    %v2886 = vmax.f32 %v2148, 0.0
    %v2887 = vmax.f32 %v2150, 0.0
    %v2888 = vmax.f32 %v2153, 0.0
    %v2889 = vmax.f32 %v2155, 0.0
    %v2890 = vmax.f32 %v2158, 0.0
    %v2891 = vmax.f32 %v2160, 0.0
    %v2892 = vmax.f32 %v2163, 0.0
    %v2893 = vmax.f32 %v2165, 0.0
    %v2894 = vmax.f32 %v2168, 0.0
    %v2895 = vmax.f32 %v2170, 0.0
    %v2896 = vmax.f32 %v2173, 0.0
    %v2897 = vmax.f32 %v2175, 0.0
    %v2898 = vmax.f32 %v2178, 0.0
    %v2899 = vmax.f32 %v2180, 0.0
    %v2900 = vmax.f32 %v2183, 0.0
    %v2901 = vmax.f32 %v2185, 0.0
    %v2902 = vmax.f32 %v2188, 0.0
    %v2903 = vmax.f32 %v2190, 0.0
    %v2904 = vmax.f32 %v2193, 0.0
    %v2905 = vmax.f32 %v2195, 0.0
    %v2906 = vmax.f32 %v2198, 0.0
    %v2907 = vmax.f32 %v2200, 0.0
    %v2908 = vmax.f32 %v2203, 0.0
    %v2909 = vmax.f32 %v2205, 0.0
    %v2910 = vmax.f32 %v2208, 0.0
    %v2911 = vmax.f32 %v2210, 0.0
    %v2912 = vmax.f32 %v2213, 0.0
    %v2913 = vmax.f32 %v2215, 0.0
    %v2914 = vmax.f32 %v2218, 0.0
    %v2915 = vmax.f32 %v2220, 0.0
    %v2916 = vmax.f32 %v2223, 0.0
    %v2917 = vmax.f32 %v2225, 0.0
    %v2918 = vmax.f32 %v2228, 0.0
    %v2919 = vmax.f32 %v2230, 0.0
    %v2920 = vmax.f32 %v2233, 0.0
    %v2921 = vmax.f32 %v2235, 0.0
    %v2922 = vmax.f32 %v2238, 0.0
    %v2923 = vmax.f32 %v2240, 0.0
    %v2924 = vmax.f32 %v2243, 0.0
    %v2925 = vmax.f32 %v2245, 0.0
    %v2926 = vmax.f32 %v2248, 0.0
    %v2927 = vmax.f32 %v2250, 0.0
    %v2928 = vmax.f32 %v2253, 0.0
    %v2929 = vmax.f32 %v2255, 0.0
    %v2930 = vmax.f32 %v2258, 0.0
    %v2931 = vmax.f32 %v2260, 0.0
    %v2932 = vmax.f32 %v2263, 0.0
    %v2933 = vmax.f32 %v2265, 0.0
    %v2934 = vmax.f32 %v2268, 0.0
    %v2935 = vmax.f32 %v2270, 0.0
    %v2936 = vmax.f32 %v2273, 0.0
    %v2937 = vmax.f32 %v2275, 0.0
    %v2938 = vmax.f32 %v2278, 0.0
    %v2939 = vmax.f32 %v2280, 0.0
    %v2940 = vmax.f32 %v2283, 0.0
    %v2941 = vmax.f32 %v2285, 0.0
    %v2942 = vmax.f32 %v2288, 0.0
    %v2943 = vmax.f32 %v2290, 0.0
    %v2944 = vmax.f32 %v2293, 0.0
    %v2945 = vmax.f32 %v2295, 0.0
    %v2946 = vmax.f32 %v2298, 0.0
    %v2947 = vmax.f32 %v2300, 0.0
    %v2948 = vmax.f32 %v2303, 0.0
    %v2949 = vmax.f32 %v2305, 0.0
    %v2950 = vmax.f32 %v2308, 0.0
    %v2951 = vmax.f32 %v2310, 0.0
    %v2952 = vmax.f32 %v2313, 0.0
    %v2953 = vmax.f32 %v2315, 0.0
    %v2954 = vmax.f32 %v2318, 0.0
    %v2955 = vmax.f32 %v2320, 0.0
    %v2956 = vmax.f32 %v2323, 0.0
    %v2957 = vmax.f32 %v2325, 0.0
    %v2958 = vmax.f32 %v2328, 0.0
    %v2959 = vmax.f32 %v2330, 0.0
    %v2960 = vmax.f32 %v2333, 0.0
    %v2961 = vmax.f32 %v2335, 0.0
    %v2962 = vmax.f32 %v2338, 0.0
    %v2963 = vmax.f32 %v2340, 0.0
    %v2964 = vmax.f32 %v2343, 0.0
    %v2965 = vmax.f32 %v2345, 0.0
    %v2966 = vmax.f32 %v2348, 0.0
    %v2967 = vmax.f32 %v2350, 0.0
    %v2968 = vmax.f32 %v2353, 0.0
    %v2969 = vmax.f32 %v2355, 0.0
    %v2970 = vmax.f32 %v2358, 0.0
    %v2971 = vmax.f32 %v2360, 0.0
    %v2972 = vmax.f32 %v2363, 0.0
    %v2973 = vmax.f32 %v2365, 0.0
    %v2974 = vmax.f32 %v2368, 0.0
    %v2975 = vmax.f32 %v2370, 0.0
    %v2976 = vmax.f32 %v2373, 0.0
    %v2977 = vmax.f32 %v2375, 0.0
    %v2978 = vmax.f32 %v2378, 0.0
    %v2979 = vmax.f32 %v2380, 0.0
    %v2980 = vmax.f32 %v2383, 0.0
    %v2981 = vmax.f32 %v2385, 0.0
    %v2982 = vmax.f32 %v2388, 0.0
    %v2983 = vmax.f32 %v2390, 0.0
    %v2984 = vmax.f32 %v2393, 0.0
    %v2985 = vmax.f32 %v2395, 0.0
    %v2986 = vmax.f32 %v2398, 0.0
    %v2987 = vmax.f32 %v2400, 0.0
    %v2988 = vmax.f32 %v2403, 0.0
    %v2989 = vmax.f32 %v2405, 0.0
    %v2990 = vmax.f32 %v2408, 0.0
    %v2991 = vmax.f32 %v2410, 0.0
    %v2992 = vmax.f32 %v2413, 0.0
    %v2993 = vmax.f32 %v2415, 0.0
    %v2994 = vmax.f32 %v2418, 0.0
    %v2995 = vmax.f32 %v2420, 0.0
    %v2996 = vmax.f32 %v2423, 0.0
    %v2997 = vmax.f32 %v2425, 0.0
    %v2998 = vmax.f32 %v2428, 0.0
    %v2999 = vmax.f32 %v2430, 0.0
    %v3000 = vmax.f32 %v2433, 0.0
    %v3001 = vmax.f32 %v2435, 0.0
    %v3002 = vmax.f32 %v2438, 0.0
    %v3003 = vmax.f32 %v2440, 0.0
    %v3004 = vmax.f32 %v2443, 0.0
    %v3005 = vmax.f32 %v2445, 0.0
    %v3006 = vmax.f32 %v2448, 0.0
    %v3007 = vmax.f32 %v2450, 0.0
    %v3008 = vmax.f32 %v2453, 0.0
    %v3009 = vmax.f32 %v2455, 0.0
    %v3010 = vmax.f32 %v2458, 0.0
    %v3011 = vmax.f32 %v2460, 0.0
    %v3012 = vmax.f32 %v2463, 0.0
    %v3013 = vmax.f32 %v2465, 0.0
    %v3014 = vmax.f32 %v2468, 0.0
    %v3015 = vmax.f32 %v2470, 0.0
    %v3016 = vmax.f32 %v2473, 0.0
    %v3017 = vmax.f32 %v2475, 0.0
    %v3018 = vmax.f32 %v2478, 0.0
    %v3019 = vmax.f32 %v2480, 0.0
    %v3020 = vmax.f32 %v2483, 0.0
    %v3021 = vmax.f32 %v2485, 0.0
    %v3022 = vmax.f32 %v2488, 0.0
    %v3023 = vmax.f32 %v2490, 0.0
    %v3024 = vmax.f32 %v2493, 0.0
    %v3025 = vmax.f32 %v2495, 0.0
    %v3026 = vmax.f32 %v2498, 0.0
    %v3027 = vmax.f32 %v2500, 0.0
    %v3028 = vmax.f32 %v2503, 0.0
    %v3029 = vmax.f32 %v2505, 0.0
    %v3030 = vmax.f32 %v2508, 0.0
    %v3031 = vmax.f32 %v2510, 0.0
    %v3032 = vmax.f32 %v2513, 0.0
    %v3033 = vmax.f32 %v2515, 0.0
    %v3034 = vmax.f32 %v2518, 0.0
    %v3035 = vmax.f32 %v2520, 0.0
    %v3036 = vmax.f32 %v2523, 0.0
    %v3037 = vmax.f32 %v2525, 0.0
    %v3038 = vmax.f32 %v2528, 0.0
    %v3039 = vmax.f32 %v2530, 0.0
    %v3040 = vmax.f32 %v2533, 0.0
    %v3041 = vmax.f32 %v2535, 0.0
    %v3042 = vmax.f32 %v2538, 0.0
    %v3043 = vmax.f32 %v2540, 0.0
    %v3044 = vmax.f32 %v2543, 0.0
    %v3045 = vmax.f32 %v2545, 0.0
    %v3046 = vmax.f32 %v2548, 0.0
    %v3047 = vmax.f32 %v2550, 0.0
    %v3048 = vmax.f32 %v2553, 0.0
    %v3049 = vmax.f32 %v2555, 0.0
    %v3050 = vmax.f32 %v2558, 0.0
    %v3051 = vmax.f32 %v2560, 0.0
    %v3052 = vmax.f32 %v2563, 0.0
    %v3053 = vmax.f32 %v2565, 0.0
    %v3054 = vmax.f32 %v2568, 0.0
    %v3055 = vmax.f32 %v2570, 0.0
    %v3056 = vmax.f32 %v2573, 0.0
    %v3057 = vmax.f32 %v2575, 0.0
    %v3058 = vmax.f32 %v2578, 0.0
    %v3059 = vmax.f32 %v2580, 0.0
    %v3060 = vmax.f32 %v2583, 0.0
    %v3061 = vmax.f32 %v2585, 0.0
    %v3062 = vmax.f32 %v2588, 0.0
    %v3063 = vmax.f32 %v2590, 0.0
    %v3064 = vmax.f32 %v2593, 0.0
    %v3065 = vmax.f32 %v2595, 0.0
    %v3066 = vmax.f32 %v2598, 0.0
    %v3067 = vmax.f32 %v2600, 0.0
    %v3068 = vmax.f32 %v2603, 0.0
    %v3069 = vmax.f32 %v2605, 0.0
    %v3070 = vmax.f32 %v2608, 0.0
    %v3071 = vmax.f32 %v2610, 0.0
    %v3072 = vmax.f32 %v2613, 0.0
    %v3073 = vmax.f32 %v2615, 0.0
    %v3074 = vmax.f32 %v2618, 0.0
    %v3075 = vmax.f32 %v2620, 0.0
    %v3076 = vmax.f32 %v2623, 0.0
    %v3077 = vmax.f32 %v2625, 0.0
    %v3078 = vmax.f32 %v2628, 0.0
    %v3079 = vmax.f32 %v2630, 0.0
    %v3080 = vmax.f32 %v2633, 0.0
    %v3081 = vmax.f32 %v2635, 0.0
    %v3082 = vmax.f32 %v2638, 0.0
    %v3083 = vmax.f32 %v2640, 0.0
    %v3084 = vmax.f32 %v2643, 0.0
    %v3085 = vmax.f32 %v2645, 0.0
    %v3086 = vmax.f32 %v2648, 0.0
    %v3087 = vmax.f32 %v2650, 0.0
    %v3088 = vmax.f32 %v2653, 0.0
    %v3089 = vmax.f32 %v2655, 0.0
    %v3090 = vmax.f32 %v2658, 0.0
    %v3091 = vmax.f32 %v2660, 0.0
    %v3092 = vmax.f32 %v2663, 0.0
    %v3093 = vmax.f32 %v2665, 0.0
    %v3094 = vmax.f32 %v2668, 0.0
    %v3095 = vmax.f32 %v2670, 0.0
    %v3096 = vmax.f32 %v2673, 0.0
    %v3097 = vmax.f32 %v2675, 0.0
    %v3098 = vmax.f32 %v2678, 0.0
    %v3099 = vmax.f32 %v2680, 0.0
    %v3100 = vmax.f32 %v2683, 0.0
    %v3101 = vmax.f32 %v2685, 0.0
    %v3102 = vmax.f32 %v2688, 0.0
    %v3103 = vmax.f32 %v2690, 0.0
    %v3104 = vmax.f32 %v2693, 0.0
    %v3105 = vmax.f32 %v2695, 0.0
    %v3106 = vmax.f32 %v2698, 0.0
    %v3107 = vmax.f32 %v2700, 0.0
    %v3108 = vmax.f32 %v2703, 0.0
    %v3109 = vmax.f32 %v2705, 0.0
    %v3110 = vmax.f32 %v2708, 0.0
    %v3111 = vmax.f32 %v2710, 0.0
    %v3112 = vmax.f32 %v2713, 0.0
    %v3113 = vmax.f32 %v2715, 0.0
    %v3114 = vmax.f32 %v2718, 0.0
    %v3115 = vmax.f32 %v2720, 0.0
    %v3116 = vmax.f32 %v2723, 0.0
    %v3117 = vmax.f32 %v2725, 0.0
    %v3118 = vmax.f32 %v2728, 0.0
    %v3119 = vmax.f32 %v2730, 0.0
    %v3120 = vmax.f32 %v2733, 0.0
    %v3121 = vmax.f32 %v2735, 0.0
    %v3122 = vmax.f32 %v2738, 0.0
    %v3123 = vmax.f32 %v2740, 0.0
    %v3124 = vmax.f32 %v2743, 0.0
    %v3125 = vmax.f32 %v2745, 0.0
    %v3126 = vmax.f32 %v2748, 0.0
    %v3127 = vmax.f32 %v2750, 0.0
    %v3128 = vmax.f32 %v2753, 0.0
    %v3129 = vmax.f32 %v2755, 0.0
    %v3130 = vmax.f32 %v2758, 0.0
    %v3131 = vmax.f32 %v2760, 0.0
    %v3132 = vmax.f32 %v2763, 0.0
    %v3133 = vmax.f32 %v2765, 0.0
    %v3134 = vmax.f32 %v2768, 0.0
    %v3135 = vmax.f32 %v2770, 0.0
    %v3136 = vmax.f32 %v2773, 0.0
    %vm3137 = vcmask 130048
    %3138 = vst.msk [vmem:[%s3] sm:$0xff] %vm3137, %v2776
    %3139 = vst.msk [vmem:[%s3 + $0x8] sm:$0xff] %vm3137, %v2777
    %3140 = vst.msk [vmem:[%s3 + $0x10] sm:$0xff] %vm3137, %v2778
    %3141 = vst.msk [vmem:[%s3 + $0x18] sm:$0xff] %vm3137, %v2779
    %3142 = vst.msk [vmem:[%s3 + $0x20] sm:$0xff] %vm3137, %v2780
    %3143 = vst.msk [vmem:[%s3 + $0x28] sm:$0xff] %vm3137, %v2781
    %3144 = vst.msk [vmem:[%s3 + $0x30] sm:$0xff] %vm3137, %v2782
    %3145 = vst.msk [vmem:[%s3 + $0x38] sm:$0xff] %vm3137, %v2783
    %3146 = vst.msk [vmem:[%s3 + $0x40] sm:$0xff] %vm3137, %v2784
    %3147 = vst.msk [vmem:[%s3 + $0x48] sm:$0xff] %vm3137, %v2785
    %3148 = vst.msk [vmem:[%s3 + $0x50] sm:$0xff] %vm3137, %v2786
    %3149 = vst.msk [vmem:[%s3 + $0x58] sm:$0xff] %vm3137, %v2787
    %3150 = vst.msk [vmem:[%s3 + $0x60] sm:$0xff] %vm3137, %v2788
    %3151 = vst.msk [vmem:[%s3 + $0x68] sm:$0xff] %vm3137, %v2789
    %3152 = vst.msk [vmem:[%s3 + $0x70] sm:$0xff] %vm3137, %v2790
    %3153 = vst.msk [vmem:[%s3 + $0x78] sm:$0xff] %vm3137, %v2791
    %3154 = vst.msk [vmem:[%s3 + $0x80] sm:$0xff] %vm3137, %v2792
    %3155 = vst.msk [vmem:[%s3 + $0x88] sm:$0xff] %vm3137, %v2793
    %3156 = vst.msk [vmem:[%s3 + $0x90] sm:$0xff] %vm3137, %v2794
    %3157 = vst.msk [vmem:[%s3 + $0x98] sm:$0xff] %vm3137, %v2795
    %3158 = vst.msk [vmem:[%s3 + $0xa0] sm:$0xff] %vm3137, %v2796
    %3159 = vst.msk [vmem:[%s3 + $0xa8] sm:$0xff] %vm3137, %v2797
    %3160 = vst.msk [vmem:[%s3 + $0xb0] sm:$0xff] %vm3137, %v2798
    %3161 = vst.msk [vmem:[%s3 + $0xb8] sm:$0xff] %vm3137, %v2799
    %3162 = vst.msk [vmem:[%s3 + $0xc0] sm:$0xff] %vm3137, %v2800
    %3163 = vst.msk [vmem:[%s3 + $0xc8] sm:$0xff] %vm3137, %v2801
    %3164 = vst.msk [vmem:[%s3 + $0xd0] sm:$0xff] %vm3137, %v2802
    %3165 = vst.msk [vmem:[%s3 + $0xd8] sm:$0xff] %vm3137, %v2803
    %3166 = vst.msk [vmem:[%s3 + $0xe0] sm:$0xff] %vm3137, %v2804
    %3167 = vst.msk [vmem:[%s3 + $0xe8] sm:$0xff] %vm3137, %v2805
    %3168 = vst.msk [vmem:[%s3 + $0xf0] sm:$0xff] %vm3137, %v2806
    %3169 = vst.msk [vmem:[%s3 + $0xf8] sm:$0xff] %vm3137, %v2807
    %3170 = vst.msk [vmem:[%s3 + $0x100] sm:$0xff] %vm3137, %v2808
    %3171 = vst.msk [vmem:[%s3 + $0x108] sm:$0xff] %vm3137, %v2809
    %3172 = vst.msk [vmem:[%s3 + $0x110] sm:$0xff] %vm3137, %v2810
    %3173 = vst.msk [vmem:[%s3 + $0x118] sm:$0xff] %vm3137, %v2811
    %3174 = vst.msk [vmem:[%s3 + $0x120] sm:$0xff] %vm3137, %v2812
    %3175 = vst.msk [vmem:[%s3 + $0x128] sm:$0xff] %vm3137, %v2813
    %3176 = vst.msk [vmem:[%s3 + $0x130] sm:$0xff] %vm3137, %v2814
    %3177 = vst.msk [vmem:[%s3 + $0x138] sm:$0xff] %vm3137, %v2815
    %3178 = vst.msk [vmem:[%s3 + $0x140] sm:$0xff] %vm3137, %v2816
    %3179 = vst.msk [vmem:[%s3 + $0x148] sm:$0xff] %vm3137, %v2817
    %3180 = vst.msk [vmem:[%s3 + $0x150] sm:$0xff] %vm3137, %v2818
    %3181 = vst.msk [vmem:[%s3 + $0x158] sm:$0xff] %vm3137, %v2819
    %3182 = vst.msk [vmem:[%s3 + $0x160] sm:$0xff] %vm3137, %v2820
    %3183 = vst.msk [vmem:[%s3 + $0x168] sm:$0xff] %vm3137, %v2821
    %3184 = vst.msk [vmem:[%s3 + $0x170] sm:$0xff] %vm3137, %v2822
    %3185 = vst.msk [vmem:[%s3 + $0x178] sm:$0xff] %vm3137, %v2823
    %3186 = vst.msk [vmem:[%s3 + $0x180] sm:$0xff] %vm3137, %v2824
    %3187 = vst.msk [vmem:[%s3 + $0x188] sm:$0xff] %vm3137, %v2825
    %3188 = vst.msk [vmem:[%s3 + $0x190] sm:$0xff] %vm3137, %v2826
    %3189 = vst.msk [vmem:[%s3 + $0x198] sm:$0xff] %vm3137, %v2827
    %3190 = vst.msk [vmem:[%s3 + $0x1a0] sm:$0xff] %vm3137, %v2828
    %3191 = vst.msk [vmem:[%s3 + $0x1a8] sm:$0xff] %vm3137, %v2829
    %3192 = vst.msk [vmem:[%s3 + $0x1b0] sm:$0xff] %vm3137, %v2830
    %3193 = vst.msk [vmem:[%s3 + $0x1b8] sm:$0xff] %vm3137, %v2831
    %3194 = vst.msk [vmem:[%s3 + $0x1c0] sm:$0xff] %vm3137, %v2832
    %3195 = vst.msk [vmem:[%s3 + $0x1c8] sm:$0xff] %vm3137, %v2833
    %3196 = vst.msk [vmem:[%s3 + $0x1d0] sm:$0xff] %vm3137, %v2834
    %3197 = vst.msk [vmem:[%s3 + $0x1d8] sm:$0xff] %vm3137, %v2835
    %3198 = vst.msk [vmem:[%s3 + $0x1e0] sm:$0xff] %vm3137, %v2836
    %3199 = vst.msk [vmem:[%s3 + $0x1e8] sm:$0xff] %vm3137, %v2837
    %3200 = vst.msk [vmem:[%s3 + $0x1f0] sm:$0xff] %vm3137, %v2838
    %3201 = vst.msk [vmem:[%s3 + $0x1f8] sm:$0xff] %vm3137, %v2839
    %3202 = vst.msk [vmem:[%s3 + $0x200] sm:$0xff] %vm3137, %v2840
    %3203 = vst.msk [vmem:[%s3 + $0x208] sm:$0xff] %vm3137, %v2841
    %3204 = vst.msk [vmem:[%s3 + $0x210] sm:$0xff] %vm3137, %v2842
    %3205 = vst.msk [vmem:[%s3 + $0x218] sm:$0xff] %vm3137, %v2843
    %3206 = vst.msk [vmem:[%s3 + $0x220] sm:$0xff] %vm3137, %v2844
    %3207 = vst.msk [vmem:[%s3 + $0x228] sm:$0xff] %vm3137, %v2845
    %3208 = vst.msk [vmem:[%s3 + $0x230] sm:$0xff] %vm3137, %v2846
    %3209 = vst.msk [vmem:[%s3 + $0x238] sm:$0xff] %vm3137, %v2847
    %3210 = vst.msk [vmem:[%s3 + $0x240] sm:$0xff] %vm3137, %v2848
    %3211 = vst.msk [vmem:[%s3 + $0x248] sm:$0xff] %vm3137, %v2849
    %3212 = vst.msk [vmem:[%s3 + $0x250] sm:$0xff] %vm3137, %v2850
    %3213 = vst.msk [vmem:[%s3 + $0x258] sm:$0xff] %vm3137, %v2851
    %3214 = vst.msk [vmem:[%s3 + $0x260] sm:$0xff] %vm3137, %v2852
    %3215 = vst.msk [vmem:[%s3 + $0x268] sm:$0xff] %vm3137, %v2853
    %3216 = vst.msk [vmem:[%s3 + $0x270] sm:$0xff] %vm3137, %v2854
    %3217 = vst.msk [vmem:[%s3 + $0x278] sm:$0xff] %vm3137, %v2855
    %3218 = vst.msk [vmem:[%s3 + $0x280] sm:$0xff] %vm3137, %v2856
    %3219 = vst.msk [vmem:[%s3 + $0x288] sm:$0xff] %vm3137, %v2857
    %3220 = vst.msk [vmem:[%s3 + $0x290] sm:$0xff] %vm3137, %v2858
    %3221 = vst.msk [vmem:[%s3 + $0x298] sm:$0xff] %vm3137, %v2859
    %3222 = vst.msk [vmem:[%s3 + $0x2a0] sm:$0xff] %vm3137, %v2860
    %3223 = vst.msk [vmem:[%s3 + $0x2a8] sm:$0xff] %vm3137, %v2861
    %3224 = vst.msk [vmem:[%s3 + $0x2b0] sm:$0xff] %vm3137, %v2862
    %3225 = vst.msk [vmem:[%s3 + $0x2b8] sm:$0xff] %vm3137, %v2863
    %3226 = vst.msk [vmem:[%s3 + $0x2c0] sm:$0xff] %vm3137, %v2864
    %3227 = vst.msk [vmem:[%s3 + $0x2c8] sm:$0xff] %vm3137, %v2865
    %3228 = vst.msk [vmem:[%s3 + $0x2d0] sm:$0xff] %vm3137, %v2866
    %3229 = vst.msk [vmem:[%s3 + $0x2d8] sm:$0xff] %vm3137, %v2867
    %3230 = vst.msk [vmem:[%s3 + $0x2e0] sm:$0xff] %vm3137, %v2868
    %3231 = vst.msk [vmem:[%s3 + $0x2e8] sm:$0xff] %vm3137, %v2869
    %3232 = vst.msk [vmem:[%s3 + $0x2f0] sm:$0xff] %vm3137, %v2870
    %3233 = vst.msk [vmem:[%s3 + $0x2f8] sm:$0xff] %vm3137, %v2871
    %3234 = vst.msk [vmem:[%s3 + $0x300] sm:$0xff] %vm3137, %v2872
    %3235 = vst.msk [vmem:[%s3 + $0x308] sm:$0xff] %vm3137, %v2873
    %3236 = vst.msk [vmem:[%s3 + $0x310] sm:$0xff] %vm3137, %v2874
    %3237 = vst.msk [vmem:[%s3 + $0x318] sm:$0xff] %vm3137, %v2875
    %3238 = vst.msk [vmem:[%s3 + $0x320] sm:$0xff] %vm3137, %v2876
    %3239 = vst.msk [vmem:[%s3 + $0x328] sm:$0xff] %vm3137, %v2877
    %3240 = vst.msk [vmem:[%s3 + $0x330] sm:$0xff] %vm3137, %v2878
    %3241 = vst.msk [vmem:[%s3 + $0x338] sm:$0xff] %vm3137, %v2879
    %3242 = vst.msk [vmem:[%s3 + $0x340] sm:$0xff] %vm3137, %v2880
    %3243 = vst.msk [vmem:[%s3 + $0x348] sm:$0xff] %vm3137, %v2881
    %3244 = vst.msk [vmem:[%s3 + $0x350] sm:$0xff] %vm3137, %v2882
    %3245 = vst.msk [vmem:[%s3 + $0x358] sm:$0xff] %vm3137, %v2883
    %3246 = vst.msk [vmem:[%s3 + $0x360] sm:$0xff] %vm3137, %v2884
    %3247 = vst.msk [vmem:[%s3 + $0x368] sm:$0xff] %vm3137, %v2885
    %3248 = vst.msk [vmem:[%s3 + $0x370] sm:$0xff] %vm3137, %v2886
    %3249 = vst.msk [vmem:[%s3 + $0x378] sm:$0xff] %vm3137, %v2887
    %3250 = vst.msk [vmem:[%s3 + $0x380] sm:$0xff] %vm3137, %v2888
    %3251 = vst.msk [vmem:[%s3 + $0x388] sm:$0xff] %vm3137, %v2889
    %3252 = vst.msk [vmem:[%s3 + $0x390] sm:$0xff] %vm3137, %v2890
    %3253 = vst.msk [vmem:[%s3 + $0x398] sm:$0xff] %vm3137, %v2891
    %3254 = vst.msk [vmem:[%s3 + $0x3a0] sm:$0xff] %vm3137, %v2892
    %3255 = vst.msk [vmem:[%s3 + $0x3a8] sm:$0xff] %vm3137, %v2893
    %3256 = vst.msk [vmem:[%s3 + $0x3b0] sm:$0xff] %vm3137, %v2894
    %3257 = vst.msk [vmem:[%s3 + $0x3b8] sm:$0xff] %vm3137, %v2895
    %3258 = vst.msk [vmem:[%s3 + $0x3c0] sm:$0xff] %vm3137, %v2896
    %3259 = vst.msk [vmem:[%s3 + $0x3c8] sm:$0xff] %vm3137, %v2897
    %3260 = vst.msk [vmem:[%s3 + $0x3d0] sm:$0xff] %vm3137, %v2898
    %3261 = vst.msk [vmem:[%s3 + $0x3d8] sm:$0xff] %vm3137, %v2899
    %3262 = vst.msk [vmem:[%s3 + $0x3e0] sm:$0xff] %vm3137, %v2900
    %3263 = vst.msk [vmem:[%s3 + $0x3e8] sm:$0xff] %vm3137, %v2901
    %3264 = vst.msk [vmem:[%s3 + $0x3f0] sm:$0xff] %vm3137, %v2902
    %3265 = vst.msk [vmem:[%s3 + $0x3f8] sm:$0xff] %vm3137, %v2903
    %3266 = vst.msk [vmem:[%s3 + $0x400] sm:$0xff] %vm3137, %v2904
    %3267 = vst.msk [vmem:[%s3 + $0x408] sm:$0xff] %vm3137, %v2905
    %3268 = vst.msk [vmem:[%s3 + $0x410] sm:$0xff] %vm3137, %v2906
    %3269 = vst.msk [vmem:[%s3 + $0x418] sm:$0xff] %vm3137, %v2907
    %3270 = vst.msk [vmem:[%s3 + $0x420] sm:$0xff] %vm3137, %v2908
    %3271 = vst.msk [vmem:[%s3 + $0x428] sm:$0xff] %vm3137, %v2909
    %3272 = vst.msk [vmem:[%s3 + $0x430] sm:$0xff] %vm3137, %v2910
    %3273 = vst.msk [vmem:[%s3 + $0x438] sm:$0xff] %vm3137, %v2911
    %3274 = vst.msk [vmem:[%s3 + $0x440] sm:$0xff] %vm3137, %v2912
    %3275 = vst.msk [vmem:[%s3 + $0x448] sm:$0xff] %vm3137, %v2913
    %3276 = vst.msk [vmem:[%s3 + $0x450] sm:$0xff] %vm3137, %v2914
    %3277 = vst.msk [vmem:[%s3 + $0x458] sm:$0xff] %vm3137, %v2915
    %3278 = vst.msk [vmem:[%s3 + $0x460] sm:$0xff] %vm3137, %v2916
    %3279 = vst.msk [vmem:[%s3 + $0x468] sm:$0xff] %vm3137, %v2917
    %3280 = vst.msk [vmem:[%s3 + $0x470] sm:$0xff] %vm3137, %v2918
    %3281 = vst.msk [vmem:[%s3 + $0x478] sm:$0xff] %vm3137, %v2919
    %3282 = vst.msk [vmem:[%s3 + $0x480] sm:$0xff] %vm3137, %v2920
    %3283 = vst.msk [vmem:[%s3 + $0x488] sm:$0xff] %vm3137, %v2921
    %3284 = vst.msk [vmem:[%s3 + $0x490] sm:$0xff] %vm3137, %v2922
    %3285 = vst.msk [vmem:[%s3 + $0x498] sm:$0xff] %vm3137, %v2923
    %3286 = vst.msk [vmem:[%s3 + $0x4a0] sm:$0xff] %vm3137, %v2924
    %3287 = vst.msk [vmem:[%s3 + $0x4a8] sm:$0xff] %vm3137, %v2925
    %3288 = vst.msk [vmem:[%s3 + $0x4b0] sm:$0xff] %vm3137, %v2926
    %3289 = vst.msk [vmem:[%s3 + $0x4b8] sm:$0xff] %vm3137, %v2927
    %3290 = vst.msk [vmem:[%s3 + $0x4c0] sm:$0xff] %vm3137, %v2928
    %3291 = vst.msk [vmem:[%s3 + $0x4c8] sm:$0xff] %vm3137, %v2929
    %3292 = vst.msk [vmem:[%s3 + $0x4d0] sm:$0xff] %vm3137, %v2930
    %3293 = vst.msk [vmem:[%s3 + $0x4d8] sm:$0xff] %vm3137, %v2931
    %3294 = vst.msk [vmem:[%s3 + $0x4e0] sm:$0xff] %vm3137, %v2932
    %3295 = vst.msk [vmem:[%s3 + $0x4e8] sm:$0xff] %vm3137, %v2933
    %3296 = vst.msk [vmem:[%s3 + $0x4f0] sm:$0xff] %vm3137, %v2934
    %3297 = vst.msk [vmem:[%s3 + $0x4f8] sm:$0xff] %vm3137, %v2935
    %3298 = vst.msk [vmem:[%s3 + $0x500] sm:$0xff] %vm3137, %v2936
    %3299 = vst.msk [vmem:[%s3 + $0x508] sm:$0xff] %vm3137, %v2937
    %3300 = vst.msk [vmem:[%s3 + $0x510] sm:$0xff] %vm3137, %v2938
    %3301 = vst.msk [vmem:[%s3 + $0x518] sm:$0xff] %vm3137, %v2939
    %3302 = vst.msk [vmem:[%s3 + $0x520] sm:$0xff] %vm3137, %v2940
    %3303 = vst.msk [vmem:[%s3 + $0x528] sm:$0xff] %vm3137, %v2941
    %3304 = vst.msk [vmem:[%s3 + $0x530] sm:$0xff] %vm3137, %v2942
    %3305 = vst.msk [vmem:[%s3 + $0x538] sm:$0xff] %vm3137, %v2943
    %3306 = vst.msk [vmem:[%s3 + $0x540] sm:$0xff] %vm3137, %v2944
    %3307 = vst.msk [vmem:[%s3 + $0x548] sm:$0xff] %vm3137, %v2945
    %3308 = vst.msk [vmem:[%s3 + $0x550] sm:$0xff] %vm3137, %v2946
    %3309 = vst.msk [vmem:[%s3 + $0x558] sm:$0xff] %vm3137, %v2947
    %3310 = vst.msk [vmem:[%s3 + $0x560] sm:$0xff] %vm3137, %v2948
    %3311 = vst.msk [vmem:[%s3 + $0x568] sm:$0xff] %vm3137, %v2949
    %3312 = vst.msk [vmem:[%s3 + $0x570] sm:$0xff] %vm3137, %v2950
    %3313 = vst.msk [vmem:[%s3 + $0x578] sm:$0xff] %vm3137, %v2951
    %3314 = vst.msk [vmem:[%s3 + $0x580] sm:$0xff] %vm3137, %v2952
    %3315 = vst.msk [vmem:[%s3 + $0x588] sm:$0xff] %vm3137, %v2953
    %3316 = vst.msk [vmem:[%s3 + $0x590] sm:$0xff] %vm3137, %v2954
    %3317 = vst.msk [vmem:[%s3 + $0x598] sm:$0xff] %vm3137, %v2955
    %3318 = vst.msk [vmem:[%s3 + $0x5a0] sm:$0xff] %vm3137, %v2956
    %3319 = vst.msk [vmem:[%s3 + $0x5a8] sm:$0xff] %vm3137, %v2957
    %3320 = vst.msk [vmem:[%s3 + $0x5b0] sm:$0xff] %vm3137, %v2958
    %3321 = vst.msk [vmem:[%s3 + $0x5b8] sm:$0xff] %vm3137, %v2959
    %3322 = vst.msk [vmem:[%s3 + $0x5c0] sm:$0xff] %vm3137, %v2960
    %3323 = vst.msk [vmem:[%s3 + $0x5c8] sm:$0xff] %vm3137, %v2961
    %3324 = vst.msk [vmem:[%s3 + $0x5d0] sm:$0xff] %vm3137, %v2962
    %3325 = vst.msk [vmem:[%s3 + $0x5d8] sm:$0xff] %vm3137, %v2963
    %3326 = vst.msk [vmem:[%s3 + $0x5e0] sm:$0xff] %vm3137, %v2964
    %3327 = vst.msk [vmem:[%s3 + $0x5e8] sm:$0xff] %vm3137, %v2965
    %3328 = vst.msk [vmem:[%s3 + $0x5f0] sm:$0xff] %vm3137, %v2966
    %3329 = vst.msk [vmem:[%s3 + $0x5f8] sm:$0xff] %vm3137, %v2967
    %3330 = vst.msk [vmem:[%s3 + $0x600] sm:$0xff] %vm3137, %v2968
    %3331 = vst.msk [vmem:[%s3 + $0x608] sm:$0xff] %vm3137, %v2969
    %3332 = vst.msk [vmem:[%s3 + $0x610] sm:$0xff] %vm3137, %v2970
    %3333 = vst.msk [vmem:[%s3 + $0x618] sm:$0xff] %vm3137, %v2971
    %3334 = vst.msk [vmem:[%s3 + $0x620] sm:$0xff] %vm3137, %v2972
    %3335 = vst.msk [vmem:[%s3 + $0x628] sm:$0xff] %vm3137, %v2973
    %3336 = vst.msk [vmem:[%s3 + $0x630] sm:$0xff] %vm3137, %v2974
    %3337 = vst.msk [vmem:[%s3 + $0x638] sm:$0xff] %vm3137, %v2975
    %3338 = vst.msk [vmem:[%s3 + $0x640] sm:$0xff] %vm3137, %v2976
    %3339 = vst.msk [vmem:[%s3 + $0x648] sm:$0xff] %vm3137, %v2977
    %3340 = vst.msk [vmem:[%s3 + $0x650] sm:$0xff] %vm3137, %v2978
    %3341 = vst.msk [vmem:[%s3 + $0x658] sm:$0xff] %vm3137, %v2979
    %3342 = vst.msk [vmem:[%s3 + $0x660] sm:$0xff] %vm3137, %v2980
    %3343 = vst.msk [vmem:[%s3 + $0x668] sm:$0xff] %vm3137, %v2981
    %3344 = vst.msk [vmem:[%s3 + $0x670] sm:$0xff] %vm3137, %v2982
    %3345 = vst.msk [vmem:[%s3 + $0x678] sm:$0xff] %vm3137, %v2983
    %3346 = vst.msk [vmem:[%s3 + $0x680] sm:$0xff] %vm3137, %v2984
    %3347 = vst.msk [vmem:[%s3 + $0x688] sm:$0xff] %vm3137, %v2985
    %3348 = vst.msk [vmem:[%s3 + $0x690] sm:$0xff] %vm3137, %v2986
    %3349 = vst.msk [vmem:[%s3 + $0x698] sm:$0xff] %vm3137, %v2987
    %3350 = vst.msk [vmem:[%s3 + $0x6a0] sm:$0xff] %vm3137, %v2988
    %3351 = vst.msk [vmem:[%s3 + $0x6a8] sm:$0xff] %vm3137, %v2989
    %3352 = vst.msk [vmem:[%s3 + $0x6b0] sm:$0xff] %vm3137, %v2990
    %3353 = vst.msk [vmem:[%s3 + $0x6b8] sm:$0xff] %vm3137, %v2991
    %3354 = vst.msk [vmem:[%s3 + $0x6c0] sm:$0xff] %vm3137, %v2992
    %3355 = vst.msk [vmem:[%s3 + $0x6c8] sm:$0xff] %vm3137, %v2993
    %3356 = vst.msk [vmem:[%s3 + $0x6d0] sm:$0xff] %vm3137, %v2994
    %3357 = vst.msk [vmem:[%s3 + $0x6d8] sm:$0xff] %vm3137, %v2995
    %3358 = vst.msk [vmem:[%s3 + $0x6e0] sm:$0xff] %vm3137, %v2996
    %3359 = vst.msk [vmem:[%s3 + $0x6e8] sm:$0xff] %vm3137, %v2997
    %3360 = vst.msk [vmem:[%s3 + $0x6f0] sm:$0xff] %vm3137, %v2998
    %3361 = vst.msk [vmem:[%s3 + $0x6f8] sm:$0xff] %vm3137, %v2999
    %3362 = vst.msk [vmem:[%s3 + $0x700] sm:$0xff] %vm3137, %v3000
    %3363 = vst.msk [vmem:[%s3 + $0x708] sm:$0xff] %vm3137, %v3001
    %3364 = vst.msk [vmem:[%s3 + $0x710] sm:$0xff] %vm3137, %v3002
    %3365 = vst.msk [vmem:[%s3 + $0x718] sm:$0xff] %vm3137, %v3003
    %3366 = vst.msk [vmem:[%s3 + $0x720] sm:$0xff] %vm3137, %v3004
    %3367 = vst.msk [vmem:[%s3 + $0x728] sm:$0xff] %vm3137, %v3005
    %3368 = vst.msk [vmem:[%s3 + $0x730] sm:$0xff] %vm3137, %v3006
    %3369 = vst.msk [vmem:[%s3 + $0x738] sm:$0xff] %vm3137, %v3007
    %3370 = vst.msk [vmem:[%s3 + $0x740] sm:$0xff] %vm3137, %v3008
    %3371 = vst.msk [vmem:[%s3 + $0x748] sm:$0xff] %vm3137, %v3009
    %3372 = vst.msk [vmem:[%s3 + $0x750] sm:$0xff] %vm3137, %v3010
    %3373 = vst.msk [vmem:[%s3 + $0x758] sm:$0xff] %vm3137, %v3011
    %3374 = vst.msk [vmem:[%s3 + $0x760] sm:$0xff] %vm3137, %v3012
    %3375 = vst.msk [vmem:[%s3 + $0x768] sm:$0xff] %vm3137, %v3013
    %3376 = vst.msk [vmem:[%s3 + $0x770] sm:$0xff] %vm3137, %v3014
    %3377 = vst.msk [vmem:[%s3 + $0x778] sm:$0xff] %vm3137, %v3015
    %3378 = vst.msk [vmem:[%s3 + $0x780] sm:$0xff] %vm3137, %v3016
    %3379 = vst.msk [vmem:[%s3 + $0x788] sm:$0xff] %vm3137, %v3017
    %3380 = vst.msk [vmem:[%s3 + $0x790] sm:$0xff] %vm3137, %v3018
    %3381 = vst.msk [vmem:[%s3 + $0x798] sm:$0xff] %vm3137, %v3019
    %3382 = vst.msk [vmem:[%s3 + $0x7a0] sm:$0xff] %vm3137, %v3020
    %3383 = vst.msk [vmem:[%s3 + $0x7a8] sm:$0xff] %vm3137, %v3021
    %3384 = vst.msk [vmem:[%s3 + $0x7b0] sm:$0xff] %vm3137, %v3022
    %3385 = vst.msk [vmem:[%s3 + $0x7b8] sm:$0xff] %vm3137, %v3023
    %3386 = vst.msk [vmem:[%s3 + $0x7c0] sm:$0xff] %vm3137, %v3024
    %3387 = vst.msk [vmem:[%s3 + $0x7c8] sm:$0xff] %vm3137, %v3025
    %3388 = vst.msk [vmem:[%s3 + $0x7d0] sm:$0xff] %vm3137, %v3026
    %3389 = vst.msk [vmem:[%s3 + $0x7d8] sm:$0xff] %vm3137, %v3027
    %3390 = vst.msk [vmem:[%s3 + $0x7e0] sm:$0xff] %vm3137, %v3028
    %3391 = vst.msk [vmem:[%s3 + $0x7e8] sm:$0xff] %vm3137, %v3029
    %3392 = vst.msk [vmem:[%s3 + $0x7f0] sm:$0xff] %vm3137, %v3030
    %3393 = vst.msk [vmem:[%s3 + $0x7f8] sm:$0xff] %vm3137, %v3031
    %3394 = vst.msk [vmem:[%s3 + $0x800] sm:$0xff] %vm3137, %v3032
    %3395 = vst.msk [vmem:[%s3 + $0x808] sm:$0xff] %vm3137, %v3033
    %3396 = vst.msk [vmem:[%s3 + $0x810] sm:$0xff] %vm3137, %v3034
    %3397 = vst.msk [vmem:[%s3 + $0x818] sm:$0xff] %vm3137, %v3035
    %3398 = vst.msk [vmem:[%s3 + $0x820] sm:$0xff] %vm3137, %v3036
    %3399 = vst.msk [vmem:[%s3 + $0x828] sm:$0xff] %vm3137, %v3037
    %3400 = vst.msk [vmem:[%s3 + $0x830] sm:$0xff] %vm3137, %v3038
    %3401 = vst.msk [vmem:[%s3 + $0x838] sm:$0xff] %vm3137, %v3039
    %3402 = vst.msk [vmem:[%s3 + $0x840] sm:$0xff] %vm3137, %v3040
    %3403 = vst.msk [vmem:[%s3 + $0x848] sm:$0xff] %vm3137, %v3041
    %3404 = vst.msk [vmem:[%s3 + $0x850] sm:$0xff] %vm3137, %v3042
    %3405 = vst.msk [vmem:[%s3 + $0x858] sm:$0xff] %vm3137, %v3043
    %3406 = vst.msk [vmem:[%s3 + $0x860] sm:$0xff] %vm3137, %v3044
    %3407 = vst.msk [vmem:[%s3 + $0x868] sm:$0xff] %vm3137, %v3045
    %3408 = vst.msk [vmem:[%s3 + $0x870] sm:$0xff] %vm3137, %v3046
    %3409 = vst.msk [vmem:[%s3 + $0x878] sm:$0xff] %vm3137, %v3047
    %3410 = vst.msk [vmem:[%s3 + $0x880] sm:$0xff] %vm3137, %v3048
    %3411 = vst.msk [vmem:[%s3 + $0x888] sm:$0xff] %vm3137, %v3049
    %3412 = vst.msk [vmem:[%s3 + $0x890] sm:$0xff] %vm3137, %v3050
    %3413 = vst.msk [vmem:[%s3 + $0x898] sm:$0xff] %vm3137, %v3051
    %3414 = vst.msk [vmem:[%s3 + $0x8a0] sm:$0xff] %vm3137, %v3052
    %3415 = vst.msk [vmem:[%s3 + $0x8a8] sm:$0xff] %vm3137, %v3053
    %3416 = vst.msk [vmem:[%s3 + $0x8b0] sm:$0xff] %vm3137, %v3054
    %3417 = vst.msk [vmem:[%s3 + $0x8b8] sm:$0xff] %vm3137, %v3055
    %3418 = vst.msk [vmem:[%s3 + $0x8c0] sm:$0xff] %vm3137, %v3056
    %3419 = vst.msk [vmem:[%s3 + $0x8c8] sm:$0xff] %vm3137, %v3057
    %3420 = vst.msk [vmem:[%s3 + $0x8d0] sm:$0xff] %vm3137, %v3058
    %3421 = vst.msk [vmem:[%s3 + $0x8d8] sm:$0xff] %vm3137, %v3059
    %3422 = vst.msk [vmem:[%s3 + $0x8e0] sm:$0xff] %vm3137, %v3060
    %3423 = vst.msk [vmem:[%s3 + $0x8e8] sm:$0xff] %vm3137, %v3061
    %3424 = vst.msk [vmem:[%s3 + $0x8f0] sm:$0xff] %vm3137, %v3062
    %3425 = vst.msk [vmem:[%s3 + $0x8f8] sm:$0xff] %vm3137, %v3063
    %3426 = vst.msk [vmem:[%s3 + $0x900] sm:$0xff] %vm3137, %v3064
    %3427 = vst.msk [vmem:[%s3 + $0x908] sm:$0xff] %vm3137, %v3065
    %3428 = vst.msk [vmem:[%s3 + $0x910] sm:$0xff] %vm3137, %v3066
    %3429 = vst.msk [vmem:[%s3 + $0x918] sm:$0xff] %vm3137, %v3067
    %3430 = vst.msk [vmem:[%s3 + $0x920] sm:$0xff] %vm3137, %v3068
    %3431 = vst.msk [vmem:[%s3 + $0x928] sm:$0xff] %vm3137, %v3069
    %3432 = vst.msk [vmem:[%s3 + $0x930] sm:$0xff] %vm3137, %v3070
    %3433 = vst.msk [vmem:[%s3 + $0x938] sm:$0xff] %vm3137, %v3071
    %3434 = vst.msk [vmem:[%s3 + $0x940] sm:$0xff] %vm3137, %v3072
    %3435 = vst.msk [vmem:[%s3 + $0x948] sm:$0xff] %vm3137, %v3073
    %3436 = vst.msk [vmem:[%s3 + $0x950] sm:$0xff] %vm3137, %v3074
    %3437 = vst.msk [vmem:[%s3 + $0x958] sm:$0xff] %vm3137, %v3075
    %3438 = vst.msk [vmem:[%s3 + $0x960] sm:$0xff] %vm3137, %v3076
    %3439 = vst.msk [vmem:[%s3 + $0x968] sm:$0xff] %vm3137, %v3077
    %3440 = vst.msk [vmem:[%s3 + $0x970] sm:$0xff] %vm3137, %v3078
    %3441 = vst.msk [vmem:[%s3 + $0x978] sm:$0xff] %vm3137, %v3079
    %3442 = vst.msk [vmem:[%s3 + $0x980] sm:$0xff] %vm3137, %v3080
    %3443 = vst.msk [vmem:[%s3 + $0x988] sm:$0xff] %vm3137, %v3081
    %3444 = vst.msk [vmem:[%s3 + $0x990] sm:$0xff] %vm3137, %v3082
    %3445 = vst.msk [vmem:[%s3 + $0x998] sm:$0xff] %vm3137, %v3083
    %3446 = vst.msk [vmem:[%s3 + $0x9a0] sm:$0xff] %vm3137, %v3084
    %3447 = vst.msk [vmem:[%s3 + $0x9a8] sm:$0xff] %vm3137, %v3085
    %3448 = vst.msk [vmem:[%s3 + $0x9b0] sm:$0xff] %vm3137, %v3086
    %3449 = vst.msk [vmem:[%s3 + $0x9b8] sm:$0xff] %vm3137, %v3087
    %3450 = vst.msk [vmem:[%s3 + $0x9c0] sm:$0xff] %vm3137, %v3088
    %3451 = vst.msk [vmem:[%s3 + $0x9c8] sm:$0xff] %vm3137, %v3089
    %3452 = vst.msk [vmem:[%s3 + $0x9d0] sm:$0xff] %vm3137, %v3090
    %3453 = vst.msk [vmem:[%s3 + $0x9d8] sm:$0xff] %vm3137, %v3091
    %3454 = vst.msk [vmem:[%s3 + $0x9e0] sm:$0xff] %vm3137, %v3092
    %3455 = vst.msk [vmem:[%s3 + $0x9e8] sm:$0xff] %vm3137, %v3093
    %3456 = vst.msk [vmem:[%s3 + $0x9f0] sm:$0xff] %vm3137, %v3094
    %3457 = vst.msk [vmem:[%s3 + $0x9f8] sm:$0xff] %vm3137, %v3095
    %3458 = vst.msk [vmem:[%s3 + $0xa00] sm:$0xff] %vm3137, %v3096
    %3459 = vst.msk [vmem:[%s3 + $0xa08] sm:$0xff] %vm3137, %v3097
    %3460 = vst.msk [vmem:[%s3 + $0xa10] sm:$0xff] %vm3137, %v3098
    %3461 = vst.msk [vmem:[%s3 + $0xa18] sm:$0xff] %vm3137, %v3099
    %3462 = vst.msk [vmem:[%s3 + $0xa20] sm:$0xff] %vm3137, %v3100
    %3463 = vst.msk [vmem:[%s3 + $0xa28] sm:$0xff] %vm3137, %v3101
    %3464 = vst.msk [vmem:[%s3 + $0xa30] sm:$0xff] %vm3137, %v3102
    %3465 = vst.msk [vmem:[%s3 + $0xa38] sm:$0xff] %vm3137, %v3103
    %3466 = vst.msk [vmem:[%s3 + $0xa40] sm:$0xff] %vm3137, %v3104
    %3467 = vst.msk [vmem:[%s3 + $0xa48] sm:$0xff] %vm3137, %v3105
    %3468 = vst.msk [vmem:[%s3 + $0xa50] sm:$0xff] %vm3137, %v3106
    %3469 = vst.msk [vmem:[%s3 + $0xa58] sm:$0xff] %vm3137, %v3107
    %3470 = vst.msk [vmem:[%s3 + $0xa60] sm:$0xff] %vm3137, %v3108
    %3471 = vst.msk [vmem:[%s3 + $0xa68] sm:$0xff] %vm3137, %v3109
    %3472 = vst.msk [vmem:[%s3 + $0xa70] sm:$0xff] %vm3137, %v3110
    %3473 = vst.msk [vmem:[%s3 + $0xa78] sm:$0xff] %vm3137, %v3111
    %3474 = vst.msk [vmem:[%s3 + $0xa80] sm:$0xff] %vm3137, %v3112
    %3475 = vst.msk [vmem:[%s3 + $0xa88] sm:$0xff] %vm3137, %v3113
    %3476 = vst.msk [vmem:[%s3 + $0xa90] sm:$0xff] %vm3137, %v3114
    %3477 = vst.msk [vmem:[%s3 + $0xa98] sm:$0xff] %vm3137, %v3115
    %3478 = vst.msk [vmem:[%s3 + $0xaa0] sm:$0xff] %vm3137, %v3116
    %3479 = vst.msk [vmem:[%s3 + $0xaa8] sm:$0xff] %vm3137, %v3117
    %3480 = vst.msk [vmem:[%s3 + $0xab0] sm:$0xff] %vm3137, %v3118
    %3481 = vst.msk [vmem:[%s3 + $0xab8] sm:$0xff] %vm3137, %v3119
    %3482 = vst.msk [vmem:[%s3 + $0xac0] sm:$0xff] %vm3137, %v3120
    %3483 = vst.msk [vmem:[%s3 + $0xac8] sm:$0xff] %vm3137, %v3121
    %3484 = vst.msk [vmem:[%s3 + $0xad0] sm:$0xff] %vm3137, %v3122
    %3485 = vst.msk [vmem:[%s3 + $0xad8] sm:$0xff] %vm3137, %v3123
    %3486 = vst.msk [vmem:[%s3 + $0xae0] sm:$0xff] %vm3137, %v3124
    %3487 = vst.msk [vmem:[%s3 + $0xae8] sm:$0xff] %vm3137, %v3125
    %3488 = vst.msk [vmem:[%s3 + $0xaf0] sm:$0xff] %vm3137, %v3126
    %3489 = vst.msk [vmem:[%s3 + $0xaf8] sm:$0xff] %vm3137, %v3127
    %3490 = vst.msk [vmem:[%s3 + $0xb00] sm:$0xff] %vm3137, %v3128
    %3491 = vst.msk [vmem:[%s3 + $0xb08] sm:$0xff] %vm3137, %v3129
    %3492 = vst.msk [vmem:[%s3 + $0xb10] sm:$0xff] %vm3137, %v3130
    %3493 = vst.msk [vmem:[%s3 + $0xb18] sm:$0xff] %vm3137, %v3131
    %3494 = vst.msk [vmem:[%s3 + $0xb20] sm:$0xff] %vm3137, %v3132
    %3495 = vst.msk [vmem:[%s3 + $0xb28] sm:$0xff] %vm3137, %v3133
    %3496 = vst.msk [vmem:[%s3 + $0xb30] sm:$0xff] %vm3137, %v3134
    %3497 = vst.msk [vmem:[%s3 + $0xb38] sm:$0xff] %vm3137, %v3135
    %3498 = vst.msk [vmem:[%s3 + $0xb40] sm:$0xff] %vm3137, %v3136
    // Predicated region
    $region18: #{dqn_forward.4} parent=1 // pred_check
      _
    $region19: #{dqn_forward.4} parent=1 // pred_check_branch
      %3500 = sbr.rel (0) target = $region21
    $region20: #{dqn_forward.4} parent=1 // pred_region
      _
    $region21: #{dqn_forward.4} parent=1 // pred_fallthru
      _
    // Predicated region
    $region22: #{dqn_forward.4} parent=1 // pred_check
      _
    $region23: #{dqn_forward.4} parent=1 // pred_check_branch
      %3502 = sbr.rel (0) target = $region25
    $region24: #{dqn_forward.4} parent=1 // pred_region
      _
    $region25: #{dqn_forward.4} parent=1 // pred_fallthru
      _
    %3503 = vsyncpa [#allocation3], 1

// kernel: dqn_forward.5
$region0: #{dqn_forward.5}
  #allocation0 [shape = 'u32[]', space=smem, size = 0x4, offset = 0x4, fixed_abs, tag = 'smem constant byte address 0x4 - core index']
  #allocation1 [shape = 'u32[72,128]{1,0:T(1,128)}', space=vmem, size = 0x9000, scoped, tag = 'internal scratch']
  %s0 = inlined_call_operand.vmem [shape: bf16[578,400], index: 0, kind: input, shape index: {}]
  %s1 = inlined_call_operand.vmem [shape: bf16[400,32], index: 1, kind: input, shape index: {}]
  %s2 = inlined_call_operand.vmem [shape: f32[1,32], index: 2, kind: input, shape index: {}]
  %s3 = inlined_call_operand.vmem [shape: f32[578,32], index: 3, kind: output, shape index: {}]
  %s4 = sld [smem:[#allocation0]]
  $region22: #{dqn_forward.5} parent=0
    _
  %s6 = ssub.s32 1, %s4
  %s7 = scalar_select 0, %s6, %s4
  // Predicated region
  $region2: #{dqn_forward.5} parent=0 // pred_check
    _
  $region3: #{dqn_forward.5} parent=0 // pred_check_branch
    %9 = sbr.rel (0) target = $region5
  $region4: #{dqn_forward.5} parent=0 // pred_region
    _
  $region5: #{dqn_forward.5} parent=0 // pred_fallthru
    _
  // Predicated region
  $region6: #{dqn_forward.5} parent=0 // pred_check
    _
  $region7: #{dqn_forward.5} parent=0 // pred_check_branch
    %11 = sbr.rel (0) target = $region9
  $region8: #{dqn_forward.5} parent=0 // pred_region
    _
  $region9: #{dqn_forward.5} parent=0 // pred_fallthru
    _
  // Predicated region
  $region10: #{dqn_forward.5} parent=0 // pred_check
    _
  $region11: #{dqn_forward.5} parent=0 // pred_check_branch
    %13 = sbr.rel (0) target = $region13
  $region12: #{dqn_forward.5} parent=0 // pred_region
    _
  $region13: #{dqn_forward.5} parent=0 // pred_fallthru
    _
  %v15 = vld [vmem:[%s0] sm:$0xff]
  %v16 = vld [vmem:[%s0 + $0x8] sm:$0xff]
  %v17 = vld [vmem:[%s0 + $0x10] sm:$0xff]
  %v18 = vld [vmem:[%s0 + $0x18] sm:$0xff]
  %v19 = vld [vmem:[%s0 + $0x20] sm:$0xff]
  %v20 = vld [vmem:[%s0 + $0x28] sm:$0xff]
  %v21 = vld [vmem:[%s0 + $0x30] sm:$0xff]
  %v22 = vld [vmem:[%s0 + $0x38] sm:$0xff]
  %v23 = vld [vmem:[%s0 + $0x40] sm:$0xff]
  %v24 = vld [vmem:[%s0 + $0x48] sm:$0xff]
  %v25 = vld [vmem:[%s0 + $0x50] sm:$0xff]
  %v26 = vld [vmem:[%s0 + $0x58] sm:$0xff]
  %v27 = vld [vmem:[%s0 + $0x60] sm:$0xff]
  %v28 = vld [vmem:[%s0 + $0x68] sm:$0xff]
  %v29 = vld [vmem:[%s0 + $0x70] sm:$0xff]
  %v30 = vld [vmem:[%s0 + $0x78] sm:$0xff]
  %v31 = vld [vmem:[%s0 + $0x80] sm:$0xff]
  %v32 = vld [vmem:[%s0 + $0x88] sm:$0xff]
  %v33 = vld [vmem:[%s0 + $0x90] sm:$0xff]
  %v34 = vld [vmem:[%s0 + $0x98] sm:$0xff]
  %v35 = vld [vmem:[%s0 + $0xa0] sm:$0xff]
  %v36 = vld [vmem:[%s0 + $0xa8] sm:$0xff]
  %v37 = vld [vmem:[%s0 + $0xb0] sm:$0xff]
  %v38 = vld [vmem:[%s0 + $0xb8] sm:$0xff]
  %v39 = vld [vmem:[%s0 + $0xc0] sm:$0xff]
  %v40 = vld [vmem:[%s0 + $0xc8] sm:$0xff]
  %v41 = vld [vmem:[%s0 + $0xd0] sm:$0xff]
  %v42 = vld [vmem:[%s0 + $0xd8] sm:$0xff]
  %v43 = vld [vmem:[%s0 + $0xe0] sm:$0xff]
  %v44 = vld [vmem:[%s0 + $0xe8] sm:$0xff]
  %v45 = vld [vmem:[%s0 + $0xf0] sm:$0xff]
  %v46 = vld [vmem:[%s0 + $0xf8] sm:$0xff]
  %v47 = vld [vmem:[%s0 + $0x100] sm:$0xff]
  %v48 = vld [vmem:[%s0 + $0x108] sm:$0xff]
  %v49 = vld [vmem:[%s0 + $0x110] sm:$0xff]
  %v50 = vld [vmem:[%s0 + $0x118] sm:$0xff]
  %v51 = vld [vmem:[%s0 + $0x120] sm:$0xff]
  %v52 = vld [vmem:[%s0 + $0x128] sm:$0xff]
  %v53 = vld [vmem:[%s0 + $0x130] sm:$0xff]
  %v54 = vld [vmem:[%s0 + $0x138] sm:$0xff]
  %v55 = vld [vmem:[%s0 + $0x140] sm:$0xff]
  %v56 = vld [vmem:[%s0 + $0x148] sm:$0xff]
  %v57 = vld [vmem:[%s0 + $0x150] sm:$0xff]
  %v58 = vld [vmem:[%s0 + $0x158] sm:$0xff]
  %v59 = vld [vmem:[%s0 + $0x160] sm:$0xff]
  %v60 = vld [vmem:[%s0 + $0x168] sm:$0xff]
  %v61 = vld [vmem:[%s0 + $0x170] sm:$0xff]
  %v62 = vld [vmem:[%s0 + $0x178] sm:$0xff]
  %v63 = vld [vmem:[%s0 + $0x180] sm:$0xff]
  %v64 = vld [vmem:[%s0 + $0x188] sm:$0xff]
  %v65 = vld [vmem:[%s0 + $0x190] sm:$0xff]
  %v66 = vld [vmem:[%s0 + $0x198] sm:$0xff]
  %v67 = vld [vmem:[%s0 + $0x1a0] sm:$0xff]
  %v68 = vld [vmem:[%s0 + $0x1a8] sm:$0xff]
  %v69 = vld [vmem:[%s0 + $0x1b0] sm:$0xff]
  %v70 = vld [vmem:[%s0 + $0x1b8] sm:$0xff]
  %v71 = vld [vmem:[%s0 + $0x1c0] sm:$0xff]
  %v72 = vld [vmem:[%s0 + $0x1c8] sm:$0xff]
  %v73 = vld [vmem:[%s0 + $0x1d0] sm:$0xff]
  %v74 = vld [vmem:[%s0 + $0x1d8] sm:$0xff]
  %v75 = vld [vmem:[%s0 + $0x1e0] sm:$0xff]
  %v76 = vld [vmem:[%s0 + $0x1e8] sm:$0xff]
  %v77 = vld [vmem:[%s0 + $0x1f0] sm:$0xff]
  %v78 = vld [vmem:[%s0 + $0x1f8] sm:$0xff]
  %v79 = vld [vmem:[%s0 + $0x200] sm:$0xff]
  %v80 = vld [vmem:[%s0 + $0x208] sm:$0xff]
  %v81 = vld [vmem:[%s0 + $0x210] sm:$0xff]
  %v82 = vld [vmem:[%s0 + $0x218] sm:$0xff]
  %v83 = vld [vmem:[%s0 + $0x220] sm:$0xff]
  %v84 = vld [vmem:[%s0 + $0x228] sm:$0xff]
  %v85 = vld [vmem:[%s0 + $0x230] sm:$0xff]
  %v86 = vld [vmem:[%s0 + $0x238] sm:$0xff]
  %v87 = vld [vmem:[%s0 + $0x240] sm:$0xff]
  %v88 = vld [vmem:[%s0 + $0x248] sm:$0xff]
  %v89 = vld [vmem:[%s0 + $0x250] sm:$0xff]
  %v90 = vld [vmem:[%s0 + $0x258] sm:$0xff]
  %v91 = vld [vmem:[%s0 + $0x260] sm:$0xff]
  %v92 = vld [vmem:[%s0 + $0x268] sm:$0xff]
  %v93 = vld [vmem:[%s0 + $0x270] sm:$0xff]
  %v94 = vld [vmem:[%s0 + $0x278] sm:$0xff]
  %v95 = vld [vmem:[%s0 + $0x280] sm:$0xff]
  %v96 = vld [vmem:[%s0 + $0x288] sm:$0xff]
  %v97 = vld [vmem:[%s0 + $0x290] sm:$0xff]
  %v98 = vld [vmem:[%s0 + $0x298] sm:$0xff]
  %v99 = vld [vmem:[%s0 + $0x2a0] sm:$0xff]
  %v100 = vld [vmem:[%s0 + $0x2a8] sm:$0xff]
  %v101 = vld [vmem:[%s0 + $0x2b0] sm:$0xff]
  %v102 = vld [vmem:[%s0 + $0x2b8] sm:$0xff]
  %v103 = vld [vmem:[%s0 + $0x2c0] sm:$0xff]
  %v104 = vld [vmem:[%s0 + $0x2c8] sm:$0xff]
  %v105 = vld [vmem:[%s0 + $0x2d0] sm:$0xff]
  %v106 = vld [vmem:[%s0 + $0x2d8] sm:$0xff]
  %v107 = vld [vmem:[%s0 + $0x2e0] sm:$0xff]
  %v108 = vld [vmem:[%s0 + $0x2e8] sm:$0xff]
  %v109 = vld [vmem:[%s0 + $0x2f0] sm:$0xff]
  %v110 = vld [vmem:[%s0 + $0x2f8] sm:$0xff]
  %v111 = vld [vmem:[%s0 + $0x300] sm:$0xff]
  %v112 = vld [vmem:[%s0 + $0x308] sm:$0xff]
  %v113 = vld [vmem:[%s0 + $0x310] sm:$0xff]
  %v114 = vld [vmem:[%s0 + $0x318] sm:$0xff]
  %v115 = vld [vmem:[%s0 + $0x320] sm:$0xff]
  %v116 = vld [vmem:[%s0 + $0x328] sm:$0xff]
  %v117 = vld [vmem:[%s0 + $0x330] sm:$0xff]
  %v118 = vld [vmem:[%s0 + $0x338] sm:$0xff]
  %v119 = vld [vmem:[%s0 + $0x340] sm:$0xff]
  %v120 = vld [vmem:[%s0 + $0x348] sm:$0xff]
  %v121 = vld [vmem:[%s0 + $0x350] sm:$0xff]
  %v122 = vld [vmem:[%s0 + $0x358] sm:$0xff]
  %v123 = vld [vmem:[%s0 + $0x360] sm:$0xff]
  %v124 = vld [vmem:[%s0 + $0x368] sm:$0xff]
  %v125 = vld [vmem:[%s0 + $0x370] sm:$0xff]
  %v126 = vld [vmem:[%s0 + $0x378] sm:$0xff]
  %v127 = vld [vmem:[%s0 + $0x380] sm:$0xff]
  %v128 = vld [vmem:[%s0 + $0x388] sm:$0xff]
  %v129 = vld [vmem:[%s0 + $0x390] sm:$0xff]
  %v130 = vld [vmem:[%s0 + $0x398] sm:$0xff]
  %v131 = vld [vmem:[%s0 + $0x3a0] sm:$0xff]
  %v132 = vld [vmem:[%s0 + $0x3a8] sm:$0xff]
  %v133 = vld [vmem:[%s0 + $0x3b0] sm:$0xff]
  %v134 = vld [vmem:[%s0 + $0x3b8] sm:$0xff]
  %v135 = vld [vmem:[%s0 + $0x3c0] sm:$0xff]
  %v136 = vld [vmem:[%s0 + $0x3c8] sm:$0xff]
  %v137 = vld [vmem:[%s0 + $0x3d0] sm:$0xff]
  %v138 = vld [vmem:[%s0 + $0x3d8] sm:$0xff]
  %v139 = vld [vmem:[%s0 + $0x3e0] sm:$0xff]
  %v140 = vld [vmem:[%s0 + $0x3e8] sm:$0xff]
  %v141 = vld [vmem:[%s0 + $0x3f0] sm:$0xff]
  %v142 = vld [vmem:[%s0 + $0x3f8] sm:$0xff]
  %v143 = vld [vmem:[%s0 + $0x400] sm:$0xff]
  %v144 = vld [vmem:[%s0 + $0x408] sm:$0xff]
  %v145 = vld [vmem:[%s0 + $0x410] sm:$0xff]
  %v146 = vld [vmem:[%s0 + $0x418] sm:$0xff]
  %v147 = vld [vmem:[%s0 + $0x420] sm:$0xff]
  %v148 = vld [vmem:[%s0 + $0x428] sm:$0xff]
  %v149 = vld [vmem:[%s0 + $0x430] sm:$0xff]
  %v150 = vld [vmem:[%s0 + $0x438] sm:$0xff]
  %v151 = vld [vmem:[%s0 + $0x440] sm:$0xff]
  %v152 = vld [vmem:[%s0 + $0x448] sm:$0xff]
  %v153 = vld [vmem:[%s0 + $0x450] sm:$0xff]
  %v154 = vld [vmem:[%s0 + $0x458] sm:$0xff]
  %v155 = vld [vmem:[%s0 + $0x460] sm:$0xff]
  %v156 = vld [vmem:[%s0 + $0x468] sm:$0xff]
  %v157 = vld [vmem:[%s0 + $0x470] sm:$0xff]
  %v158 = vld [vmem:[%s0 + $0x478] sm:$0xff]
  %v159 = vld [vmem:[%s0 + $0x480] sm:$0x11]
  %v160 = vld [vmem:[%s0 + $0x488] sm:$0x11]
  %v161 = vld [vmem:[%s1] sm:$0xf]
  %v162 = vld [vmem:[%s1 + $0x4] sm:$0xf]
  %v163 = vld [vmem:[%s1 + $0x8] sm:$0xf]
  %v164 = vld [vmem:[%s1 + $0xc] sm:$0xf]
  %v165 = vld [vmem:[%s1 + $0x10] sm:$0xf]
  %v166 = vld [vmem:[%s1 + $0x14] sm:$0xf]
  %v167 = vld [vmem:[%s1 + $0x18] sm:$0xf]
  %v168 = vld [vmem:[%s1 + $0x1c] sm:$0xf]
  %v169 = vld [vmem:[%s1 + $0x20] sm:$0xf]
  %v170 = vld [vmem:[%s1 + $0x24] sm:$0xf]
  %v171 = vld [vmem:[%s1 + $0x28] sm:$0xf]
  %v172 = vld [vmem:[%s1 + $0x2c] sm:$0xf]
  %v173 = vld [vmem:[%s1 + $0x30] sm:$0xf]
  %v174 = vld [vmem:[%s1 + $0x34] sm:$0xf]
  %v175 = vld [vmem:[%s1 + $0x38] sm:$0xf]
  %v176 = vld [vmem:[%s1 + $0x3c] sm:$0xf]
  %v177 = vld [vmem:[%s1 + $0x40] sm:$0xf]
  %v178 = vld [vmem:[%s1 + $0x44] sm:$0xf]
  %v179 = vld [vmem:[%s1 + $0x48] sm:$0xf]
  %v180 = vld [vmem:[%s1 + $0x4c] sm:$0xf]
  %v181 = vld [vmem:[%s1 + $0x50] sm:$0xf]
  %v182 = vld [vmem:[%s1 + $0x54] sm:$0xf]
  %v183 = vld [vmem:[%s1 + $0x58] sm:$0xf]
  %v184 = vld [vmem:[%s1 + $0x5c] sm:$0xf]
  %v185 = vld [vmem:[%s1 + $0x60] sm:$0xf]
  %v186 = vld [vmem:[%s1 + $0x64] sm:$0xf]
  %v187 = vld [vmem:[%s1 + $0x68] sm:$0xf]
  %v188 = vld [vmem:[%s1 + $0x6c] sm:$0xf]
  %v189 = vld [vmem:[%s1 + $0x70] sm:$0xf]
  %v190 = vld [vmem:[%s1 + $0x74] sm:$0xf]
  %v191 = vld [vmem:[%s1 + $0x78] sm:$0xf]
  %v192 = vld [vmem:[%s1 + $0x7c] sm:$0xf]
  %v193 = vld [vmem:[%s1 + $0x80] sm:$0xf]
  %v194 = vld [vmem:[%s1 + $0x84] sm:$0xf]
  %v195 = vld [vmem:[%s1 + $0x88] sm:$0xf]
  %v196 = vld [vmem:[%s1 + $0x8c] sm:$0xf]
  %v197 = vld [vmem:[%s1 + $0x90] sm:$0xf]
  %v198 = vld [vmem:[%s1 + $0x94] sm:$0xf]
  %v199 = vld [vmem:[%s1 + $0x98] sm:$0xf]
  %v200 = vld [vmem:[%s1 + $0x9c] sm:$0xf]
  %v201 = vld [vmem:[%s1 + $0xa0] sm:$0xf]
  %v202 = vld [vmem:[%s1 + $0xa4] sm:$0xf]
  %v203 = vld [vmem:[%s1 + $0xa8] sm:$0xf]
  %v204 = vld [vmem:[%s1 + $0xac] sm:$0xf]
  %v205 = vld [vmem:[%s1 + $0xb0] sm:$0xf]
  %v206 = vld [vmem:[%s1 + $0xb4] sm:$0xf]
  %v207 = vld [vmem:[%s1 + $0xb8] sm:$0xf]
  %v208 = vld [vmem:[%s1 + $0xbc] sm:$0xf]
  %v209 = vld [vmem:[%s1 + $0xc0] sm:$0xf]
  %v210 = vld [vmem:[%s1 + $0xc4] sm:$0xf]
  %v211 = vld [vmem:[%s2] sm:$0x1]
  %v213 = vperm.slane %v211, 0
  %v361 = vunpack.c.l.b16 %v15
  %v362 = vunpack.c.h.b16 %v15
  %v363 = vunpack.c.l.b16 %v16
  %v364 = vunpack.c.h.b16 %v16
  %v365 = vunpack.c.l.b16 %v17
  %v366 = vunpack.c.h.b16 %v17
  %v367 = vunpack.c.l.b16 %v18
  %v368 = vunpack.c.h.b16 %v18
  %v369 = vunpack.c.l.b16 %v19
  %v370 = vunpack.c.h.b16 %v19
  %v371 = vunpack.c.l.b16 %v20
  %v372 = vunpack.c.h.b16 %v20
  %v373 = vunpack.c.l.b16 %v21
  %v374 = vunpack.c.h.b16 %v21
  %v375 = vunpack.c.l.b16 %v22
  %v376 = vunpack.c.h.b16 %v22
  %v377 = vunpack.c.l.b16 %v23
  %v378 = vunpack.c.h.b16 %v23
  %v379 = vunpack.c.l.b16 %v24
  %v380 = vunpack.c.h.b16 %v24
  %v381 = vunpack.c.l.b16 %v25
  %v382 = vunpack.c.h.b16 %v25
  %v383 = vunpack.c.l.b16 %v26
  %v384 = vunpack.c.h.b16 %v26
  %v385 = vunpack.c.l.b16 %v27
  %v386 = vunpack.c.h.b16 %v27
  %v387 = vunpack.c.l.b16 %v28
  %v388 = vunpack.c.h.b16 %v28
  %v389 = vunpack.c.l.b16 %v29
  %v390 = vunpack.c.h.b16 %v29
  %v391 = vunpack.c.l.b16 %v30
  %v392 = vunpack.c.h.b16 %v30
  %v393 = vunpack.c.l.b16 %v31
  %v394 = vunpack.c.h.b16 %v31
  %v395 = vunpack.c.l.b16 %v32
  %v396 = vunpack.c.h.b16 %v32
  %v397 = vunpack.c.l.b16 %v33
  %v398 = vunpack.c.h.b16 %v33
  %v399 = vunpack.c.l.b16 %v34
  %v400 = vunpack.c.h.b16 %v34
  %v401 = vunpack.c.l.b16 %v35
  %v402 = vunpack.c.h.b16 %v35
  %v403 = vunpack.c.l.b16 %v36
  %v404 = vunpack.c.h.b16 %v36
  %v405 = vunpack.c.l.b16 %v37
  %v406 = vunpack.c.h.b16 %v37
  %v407 = vunpack.c.l.b16 %v38
  %v408 = vunpack.c.h.b16 %v38
  %v409 = vunpack.c.l.b16 %v39
  %v410 = vunpack.c.h.b16 %v39
  %v411 = vunpack.c.l.b16 %v40
  %v412 = vunpack.c.h.b16 %v40
  %v413 = vunpack.c.l.b16 %v41
  %v414 = vunpack.c.h.b16 %v41
  %v415 = vunpack.c.l.b16 %v42
  %v416 = vunpack.c.h.b16 %v42
  %v417 = vunpack.c.l.b16 %v43
  %v418 = vunpack.c.h.b16 %v43
  %v419 = vunpack.c.l.b16 %v44
  %v420 = vunpack.c.h.b16 %v44
  %v421 = vunpack.c.l.b16 %v45
  %v422 = vunpack.c.h.b16 %v45
  %v423 = vunpack.c.l.b16 %v46
  %v424 = vunpack.c.h.b16 %v46
  %v425 = vunpack.c.l.b16 %v47
  %v426 = vunpack.c.h.b16 %v47
  %v427 = vunpack.c.l.b16 %v48
  %v428 = vunpack.c.h.b16 %v48
  %v429 = vunpack.c.l.b16 %v49
  %v430 = vunpack.c.h.b16 %v49
  %v431 = vunpack.c.l.b16 %v50
  %v432 = vunpack.c.h.b16 %v50
  %v433 = vunpack.c.l.b16 %v51
  %v434 = vunpack.c.h.b16 %v51
  %v435 = vunpack.c.l.b16 %v52
  %v436 = vunpack.c.h.b16 %v52
  %v437 = vunpack.c.l.b16 %v53
  %v438 = vunpack.c.h.b16 %v53
  %v439 = vunpack.c.l.b16 %v54
  %v440 = vunpack.c.h.b16 %v54
  %v441 = vunpack.c.l.b16 %v55
  %v442 = vunpack.c.h.b16 %v55
  %v443 = vunpack.c.l.b16 %v56
  %v444 = vunpack.c.h.b16 %v56
  %v445 = vunpack.c.l.b16 %v57
  %v446 = vunpack.c.h.b16 %v57
  %v447 = vunpack.c.l.b16 %v58
  %v448 = vunpack.c.h.b16 %v58
  %v449 = vunpack.c.l.b16 %v59
  %v450 = vunpack.c.h.b16 %v59
  %v451 = vunpack.c.l.b16 %v60
  %v452 = vunpack.c.h.b16 %v60
  %v453 = vunpack.c.l.b16 %v61
  %v454 = vunpack.c.h.b16 %v61
  %v455 = vunpack.c.l.b16 %v62
  %v456 = vunpack.c.h.b16 %v62
  %v457 = vunpack.c.l.b16 %v63
  %v458 = vunpack.c.h.b16 %v63
  %v459 = vunpack.c.l.b16 %v64
  %v460 = vunpack.c.h.b16 %v64
  %v461 = vunpack.c.l.b16 %v65
  %v462 = vunpack.c.h.b16 %v65
  %v463 = vunpack.c.l.b16 %v66
  %v464 = vunpack.c.h.b16 %v66
  %v465 = vunpack.c.l.b16 %v67
  %v466 = vunpack.c.h.b16 %v67
  %v467 = vunpack.c.l.b16 %v68
  %v468 = vunpack.c.h.b16 %v68
  %v469 = vunpack.c.l.b16 %v69
  %v470 = vunpack.c.h.b16 %v69
  %v471 = vunpack.c.l.b16 %v70
  %v472 = vunpack.c.h.b16 %v70
  %v473 = vunpack.c.l.b16 %v71
  %v474 = vunpack.c.h.b16 %v71
  %v475 = vunpack.c.l.b16 %v72
  %v476 = vunpack.c.h.b16 %v72
  %v477 = vunpack.c.l.b16 %v73
  %v478 = vunpack.c.h.b16 %v73
  %v479 = vunpack.c.l.b16 %v74
  %v480 = vunpack.c.h.b16 %v74
  %v481 = vunpack.c.l.b16 %v75
  %v482 = vunpack.c.h.b16 %v75
  %v483 = vunpack.c.l.b16 %v76
  %v484 = vunpack.c.h.b16 %v76
  %v485 = vunpack.c.l.b16 %v77
  %v486 = vunpack.c.h.b16 %v77
  %v487 = vunpack.c.l.b16 %v78
  %v488 = vunpack.c.h.b16 %v78
  %v489 = vunpack.c.l.b16 %v79
  %v490 = vunpack.c.h.b16 %v79
  %v491 = vunpack.c.l.b16 %v80
  %v492 = vunpack.c.h.b16 %v80
  %v493 = vunpack.c.l.b16 %v81
  %v494 = vunpack.c.h.b16 %v81
  %v495 = vunpack.c.l.b16 %v82
  %v496 = vunpack.c.h.b16 %v82
  %v497 = vunpack.c.l.b16 %v83
  %v498 = vunpack.c.h.b16 %v83
  %v499 = vunpack.c.l.b16 %v84
  %v500 = vunpack.c.h.b16 %v84
  %v501 = vunpack.c.l.b16 %v85
  %v502 = vunpack.c.h.b16 %v85
  %v503 = vunpack.c.l.b16 %v86
  %v504 = vunpack.c.h.b16 %v86
  %v505 = vunpack.c.l.b16 %v87
  %v506 = vunpack.c.h.b16 %v87
  %v507 = vunpack.c.l.b16 %v88
  %v508 = vunpack.c.h.b16 %v88
  %v509 = vunpack.c.l.b16 %v89
  %v510 = vunpack.c.h.b16 %v89
  %v511 = vunpack.c.l.b16 %v90
  %v512 = vunpack.c.h.b16 %v90
  %v513 = vunpack.c.l.b16 %v91
  %v514 = vunpack.c.h.b16 %v91
  %v515 = vunpack.c.l.b16 %v92
  %v516 = vunpack.c.h.b16 %v92
  %v517 = vunpack.c.l.b16 %v93
  %v518 = vunpack.c.h.b16 %v93
  %v519 = vunpack.c.l.b16 %v94
  %v520 = vunpack.c.h.b16 %v94
  %v521 = vunpack.c.l.b16 %v95
  %v522 = vunpack.c.h.b16 %v95
  %v523 = vunpack.c.l.b16 %v96
  %v524 = vunpack.c.h.b16 %v96
  %v525 = vunpack.c.l.b16 %v97
  %v526 = vunpack.c.h.b16 %v97
  %v527 = vunpack.c.l.b16 %v98
  %v528 = vunpack.c.h.b16 %v98
  %v529 = vunpack.c.l.b16 %v99
  %v530 = vunpack.c.h.b16 %v99
  %v531 = vunpack.c.l.b16 %v100
  %v532 = vunpack.c.h.b16 %v100
  %v533 = vunpack.c.l.b16 %v101
  %v534 = vunpack.c.h.b16 %v101
  %v535 = vunpack.c.l.b16 %v102
  %v536 = vunpack.c.h.b16 %v102
  %v537 = vunpack.c.l.b16 %v103
  %v538 = vunpack.c.h.b16 %v103
  %v539 = vunpack.c.l.b16 %v104
  %v540 = vunpack.c.h.b16 %v104
  %v541 = vunpack.c.l.b16 %v105
  %v542 = vunpack.c.h.b16 %v105
  %v543 = vunpack.c.l.b16 %v106
  %v544 = vunpack.c.h.b16 %v106
  %v545 = vunpack.c.l.b16 %v107
  %v546 = vunpack.c.h.b16 %v107
  %v547 = vunpack.c.l.b16 %v108
  %v548 = vunpack.c.h.b16 %v108
  %v549 = vunpack.c.l.b16 %v109
  %v550 = vunpack.c.h.b16 %v109
  %v551 = vunpack.c.l.b16 %v110
  %v552 = vunpack.c.h.b16 %v110
  %v553 = vunpack.c.l.b16 %v111
  %v554 = vunpack.c.h.b16 %v111
  %v555 = vunpack.c.l.b16 %v112
  %v556 = vunpack.c.h.b16 %v112
  %v557 = vunpack.c.l.b16 %v113
  %v558 = vunpack.c.h.b16 %v113
  %v559 = vunpack.c.l.b16 %v114
  %v560 = vunpack.c.h.b16 %v114
  %v561 = vunpack.c.l.b16 %v115
  %v562 = vunpack.c.h.b16 %v115
  %v563 = vunpack.c.l.b16 %v116
  %v564 = vunpack.c.h.b16 %v116
  %v565 = vunpack.c.l.b16 %v117
  %v566 = vunpack.c.h.b16 %v117
  %v567 = vunpack.c.l.b16 %v118
  %v568 = vunpack.c.h.b16 %v118
  %v569 = vunpack.c.l.b16 %v119
  %v570 = vunpack.c.h.b16 %v119
  %v571 = vunpack.c.l.b16 %v120
  %v572 = vunpack.c.h.b16 %v120
  %v573 = vunpack.c.l.b16 %v121
  %v574 = vunpack.c.h.b16 %v121
  %v575 = vunpack.c.l.b16 %v122
  %v576 = vunpack.c.h.b16 %v122
  %v577 = vunpack.c.l.b16 %v123
  %v578 = vunpack.c.h.b16 %v123
  %v579 = vunpack.c.l.b16 %v124
  %v580 = vunpack.c.h.b16 %v124
  %v581 = vunpack.c.l.b16 %v125
  %v582 = vunpack.c.h.b16 %v125
  %v583 = vunpack.c.l.b16 %v126
  %v584 = vunpack.c.h.b16 %v126
  %v585 = vunpack.c.l.b16 %v127
  %v586 = vunpack.c.h.b16 %v127
  %v587 = vunpack.c.l.b16 %v128
  %v588 = vunpack.c.h.b16 %v128
  %v589 = vunpack.c.l.b16 %v129
  %v590 = vunpack.c.h.b16 %v129
  %v591 = vunpack.c.l.b16 %v130
  %v592 = vunpack.c.h.b16 %v130
  %v593 = vunpack.c.l.b16 %v131
  %v594 = vunpack.c.h.b16 %v131
  %v595 = vunpack.c.l.b16 %v132
  %v596 = vunpack.c.h.b16 %v132
  %v597 = vunpack.c.l.b16 %v133
  %v598 = vunpack.c.h.b16 %v133
  %v599 = vunpack.c.l.b16 %v134
  %v600 = vunpack.c.h.b16 %v134
  %v601 = vunpack.c.l.b16 %v135
  %v602 = vunpack.c.h.b16 %v135
  %v603 = vunpack.c.l.b16 %v136
  %v604 = vunpack.c.h.b16 %v136
  %v605 = vunpack.c.l.b16 %v137
  %v606 = vunpack.c.h.b16 %v137
  %v607 = vunpack.c.l.b16 %v138
  %v608 = vunpack.c.h.b16 %v138
  %v609 = vunpack.c.l.b16 %v139
  %v610 = vunpack.c.h.b16 %v139
  %v611 = vunpack.c.l.b16 %v140
  %v612 = vunpack.c.h.b16 %v140
  %v613 = vunpack.c.l.b16 %v141
  %v614 = vunpack.c.h.b16 %v141
  %v615 = vunpack.c.l.b16 %v142
  %v616 = vunpack.c.h.b16 %v142
  %v617 = vunpack.c.l.b16 %v143
  %v618 = vunpack.c.h.b16 %v143
  %v619 = vunpack.c.l.b16 %v144
  %v620 = vunpack.c.h.b16 %v144
  %v621 = vunpack.c.l.b16 %v145
  %v622 = vunpack.c.h.b16 %v145
  %v623 = vunpack.c.l.b16 %v146
  %v624 = vunpack.c.h.b16 %v146
  %v625 = vunpack.c.l.b16 %v147
  %v626 = vunpack.c.h.b16 %v147
  %v627 = vunpack.c.l.b16 %v148
  %v628 = vunpack.c.h.b16 %v148
  %v629 = vunpack.c.l.b16 %v149
  %v630 = vunpack.c.h.b16 %v149
  %v631 = vunpack.c.l.b16 %v150
  %v632 = vunpack.c.h.b16 %v150
  %v633 = vunpack.c.l.b16 %v151
  %v634 = vunpack.c.h.b16 %v151
  %v635 = vunpack.c.l.b16 %v152
  %v636 = vunpack.c.h.b16 %v152
  %v637 = vunpack.c.l.b16 %v153
  %v638 = vunpack.c.h.b16 %v153
  %v639 = vunpack.c.l.b16 %v154
  %v640 = vunpack.c.h.b16 %v154
  %v641 = vunpack.c.l.b16 %v155
  %v642 = vunpack.c.h.b16 %v155
  %v643 = vunpack.c.l.b16 %v156
  %v644 = vunpack.c.h.b16 %v156
  %v645 = vunpack.c.l.b16 %v157
  %v646 = vunpack.c.h.b16 %v157
  %v647 = vunpack.c.l.b16 %v158
  %v648 = vunpack.c.h.b16 %v158
  %v649 = vunpack.c.l.b16 %v159
  %v650 = vunpack.c.h.b16 %v159
  %v651 = vunpack.c.l.b16 %v160
  %v652 = vunpack.c.h.b16 %v160
  %v653 = vpack.c.b16 %v365, %v361
  %v654 = vpack.c.b16 %v366, %v362
  %v655 = vpack.c.b16 %v367, %v363
  %v656 = vpack.c.b16 %v368, %v364
  %v657 = vpack.c.b16 %v373, %v369
  %v658 = vpack.c.b16 %v374, %v370
  %v659 = vpack.c.b16 %v375, %v371
  %v660 = vpack.c.b16 %v376, %v372
  %v661 = vpack.c.b16 %v381, %v377
  %v662 = vpack.c.b16 %v382, %v378
  %v663 = vpack.c.b16 %v383, %v379
  %v664 = vpack.c.b16 %v384, %v380
  %v665 = vpack.c.b16 %v389, %v385
  %v666 = vpack.c.b16 %v390, %v386
  %v667 = vpack.c.b16 %v391, %v387
  %v668 = vpack.c.b16 %v392, %v388
  %v669 = vpack.c.b16 %v397, %v393
  %v670 = vpack.c.b16 %v398, %v394
  %v671 = vpack.c.b16 %v399, %v395
  %v672 = vpack.c.b16 %v400, %v396
  %v673 = vpack.c.b16 %v405, %v401
  %v674 = vpack.c.b16 %v406, %v402
  %v675 = vpack.c.b16 %v407, %v403
  %v676 = vpack.c.b16 %v408, %v404
  %v677 = vpack.c.b16 %v413, %v409
  %v678 = vpack.c.b16 %v414, %v410
  %v679 = vpack.c.b16 %v415, %v411
  %v680 = vpack.c.b16 %v416, %v412
  %v681 = vpack.c.b16 %v421, %v417
  %v682 = vpack.c.b16 %v422, %v418
  %v683 = vpack.c.b16 %v423, %v419
  %v684 = vpack.c.b16 %v424, %v420
  %v685 = vpack.c.b16 %v429, %v425
  %v686 = vpack.c.b16 %v430, %v426
  %v687 = vpack.c.b16 %v431, %v427
  %v688 = vpack.c.b16 %v432, %v428
  %v689 = vpack.c.b16 %v437, %v433
  %v690 = vpack.c.b16 %v438, %v434
  %v691 = vpack.c.b16 %v439, %v435
  %v692 = vpack.c.b16 %v440, %v436
  %v693 = vpack.c.b16 %v445, %v441
  %v694 = vpack.c.b16 %v446, %v442
  %v695 = vpack.c.b16 %v447, %v443
  %v696 = vpack.c.b16 %v448, %v444
  %v697 = vpack.c.b16 %v453, %v449
  %v698 = vpack.c.b16 %v454, %v450
  %v699 = vpack.c.b16 %v455, %v451
  %v700 = vpack.c.b16 %v456, %v452
  %v701 = vpack.c.b16 %v461, %v457
  %v702 = vpack.c.b16 %v462, %v458
  %v703 = vpack.c.b16 %v463, %v459
  %v704 = vpack.c.b16 %v464, %v460
  %v705 = vpack.c.b16 %v469, %v465
  %v706 = vpack.c.b16 %v470, %v466
  %v707 = vpack.c.b16 %v471, %v467
  %v708 = vpack.c.b16 %v472, %v468
  %v709 = vpack.c.b16 %v477, %v473
  %v710 = vpack.c.b16 %v478, %v474
  %v711 = vpack.c.b16 %v479, %v475
  %v712 = vpack.c.b16 %v480, %v476
  %v713 = vpack.c.b16 %v485, %v481
  %v714 = vpack.c.b16 %v486, %v482
  %v715 = vpack.c.b16 %v487, %v483
  %v716 = vpack.c.b16 %v488, %v484
  %v717 = vpack.c.b16 %v493, %v489
  %v718 = vpack.c.b16 %v494, %v490
  %v719 = vpack.c.b16 %v495, %v491
  %v720 = vpack.c.b16 %v496, %v492
  %v721 = vpack.c.b16 %v501, %v497
  %v722 = vpack.c.b16 %v502, %v498
  %v723 = vpack.c.b16 %v503, %v499
  %v724 = vpack.c.b16 %v504, %v500
  %v725 = vpack.c.b16 %v509, %v505
  %v726 = vpack.c.b16 %v510, %v506
  %v727 = vpack.c.b16 %v511, %v507
  %v728 = vpack.c.b16 %v512, %v508
  %v729 = vpack.c.b16 %v517, %v513
  %v730 = vpack.c.b16 %v518, %v514
  %v731 = vpack.c.b16 %v519, %v515
  %v732 = vpack.c.b16 %v520, %v516
  %v733 = vpack.c.b16 %v525, %v521
  %v734 = vpack.c.b16 %v526, %v522
  %v735 = vpack.c.b16 %v527, %v523
  %v736 = vpack.c.b16 %v528, %v524
  %v737 = vpack.c.b16 %v533, %v529
  %v738 = vpack.c.b16 %v534, %v530
  %v739 = vpack.c.b16 %v535, %v531
  %v740 = vpack.c.b16 %v536, %v532
  %v741 = vpack.c.b16 %v541, %v537
  %v742 = vpack.c.b16 %v542, %v538
  %v743 = vpack.c.b16 %v543, %v539
  %v744 = vpack.c.b16 %v544, %v540
  %v745 = vpack.c.b16 %v549, %v545
  %v746 = vpack.c.b16 %v550, %v546
  %v747 = vpack.c.b16 %v551, %v547
  %v748 = vpack.c.b16 %v552, %v548
  %v749 = vpack.c.b16 %v557, %v553
  %v750 = vpack.c.b16 %v558, %v554
  %v751 = vpack.c.b16 %v559, %v555
  %v752 = vpack.c.b16 %v560, %v556
  %v753 = vpack.c.b16 %v565, %v561
  %v754 = vpack.c.b16 %v566, %v562
  %v755 = vpack.c.b16 %v567, %v563
  %v756 = vpack.c.b16 %v568, %v564
  %v757 = vpack.c.b16 %v573, %v569
  %v758 = vpack.c.b16 %v574, %v570
  %v759 = vpack.c.b16 %v575, %v571
  %v760 = vpack.c.b16 %v576, %v572
  %v761 = vpack.c.b16 %v581, %v577
  %v762 = vpack.c.b16 %v582, %v578
  %v763 = vpack.c.b16 %v583, %v579
  %v764 = vpack.c.b16 %v584, %v580
  %v765 = vpack.c.b16 %v589, %v585
  %v766 = vpack.c.b16 %v590, %v586
  %v767 = vpack.c.b16 %v591, %v587
  %v768 = vpack.c.b16 %v592, %v588
  %v769 = vpack.c.b16 %v597, %v593
  %v770 = vpack.c.b16 %v598, %v594
  %v771 = vpack.c.b16 %v599, %v595
  %v772 = vpack.c.b16 %v600, %v596
  %v773 = vpack.c.b16 %v605, %v601
  %v774 = vpack.c.b16 %v606, %v602
  %v775 = vpack.c.b16 %v607, %v603
  %v776 = vpack.c.b16 %v608, %v604
  %v777 = vpack.c.b16 %v613, %v609
  %v778 = vpack.c.b16 %v614, %v610
  %v779 = vpack.c.b16 %v615, %v611
  %v780 = vpack.c.b16 %v616, %v612
  %v781 = vpack.c.b16 %v621, %v617
  %v782 = vpack.c.b16 %v622, %v618
  %v783 = vpack.c.b16 %v623, %v619
  %v784 = vpack.c.b16 %v624, %v620
  %v785 = vpack.c.b16 %v629, %v625
  %v786 = vpack.c.b16 %v630, %v626
  %v787 = vpack.c.b16 %v631, %v627
  %v788 = vpack.c.b16 %v632, %v628
  %v789 = vpack.c.b16 %v637, %v633
  %v790 = vpack.c.b16 %v638, %v634
  %v791 = vpack.c.b16 %v639, %v635
  %v792 = vpack.c.b16 %v640, %v636
  %v793 = vpack.c.b16 %v645, %v641
  %v794 = vpack.c.b16 %v646, %v642
  %v795 = vpack.c.b16 %v647, %v643
  %v796 = vpack.c.b16 %v648, %v644
  %v797 = vpack.c.b16 %v649, %v649
  %v798 = vpack.c.b16 %v650, %v650
  %v799 = vpack.c.b16 %v651, %v651
  %v800 = vpack.c.b16 %v652, %v652
  %v962 = vunpack.c.l.b16 %v161
  %v963 = vunpack.c.l.b16 %v162
  %v964 = vunpack.c.l.b16 %v163
  %v965 = vunpack.c.l.b16 %v164
  %v966 = vunpack.c.l.b16 %v165
  %v967 = vunpack.c.l.b16 %v166
  %v968 = vunpack.c.l.b16 %v167
  %v969 = vunpack.c.l.b16 %v168
  %v970 = vunpack.c.l.b16 %v169
  %v971 = vunpack.c.l.b16 %v170
  %v972 = vunpack.c.l.b16 %v171
  %v973 = vunpack.c.l.b16 %v172
  %v974 = vunpack.c.l.b16 %v173
  %v975 = vunpack.c.l.b16 %v174
  %v976 = vunpack.c.l.b16 %v175
  %v977 = vunpack.c.l.b16 %v176
  %v978 = vunpack.c.l.b16 %v177
  %v979 = vunpack.c.l.b16 %v178
  %v980 = vunpack.c.l.b16 %v179
  %v981 = vunpack.c.l.b16 %v180
  %v982 = vunpack.c.l.b16 %v181
  %v983 = vunpack.c.l.b16 %v182
  %v984 = vunpack.c.l.b16 %v183
  %v985 = vunpack.c.l.b16 %v184
  %v986 = vunpack.c.l.b16 %v185
  %v987 = vunpack.c.l.b16 %v186
  %v988 = vunpack.c.l.b16 %v187
  %v989 = vunpack.c.l.b16 %v188
  %v990 = vunpack.c.l.b16 %v189
  %v991 = vunpack.c.l.b16 %v190
  %v992 = vunpack.c.l.b16 %v191
  %v993 = vunpack.c.l.b16 %v192
  %v994 = vunpack.c.l.b16 %v193
  %v995 = vunpack.c.l.b16 %v194
  %v996 = vunpack.c.l.b16 %v195
  %v997 = vunpack.c.l.b16 %v196
  %v998 = vunpack.c.l.b16 %v197
  %v999 = vunpack.c.l.b16 %v198
  %v1000 = vunpack.c.l.b16 %v199
  %v1001 = vunpack.c.l.b16 %v200
  %v1002 = vunpack.c.l.b16 %v201
  %v1003 = vunpack.c.l.b16 %v202
  %v1004 = vunpack.c.l.b16 %v203
  %v1005 = vunpack.c.l.b16 %v204
  %v1006 = vunpack.c.l.b16 %v205
  %v1007 = vunpack.c.l.b16 %v206
  %v1008 = vunpack.c.l.b16 %v207
  %v1009 = vunpack.c.l.b16 %v208
  %v1010 = vunpack.c.l.b16 %v209
  %v1011 = vunpack.c.l.b16 %v210
  %v1012 = vpack.c.b16 %v963, %v962
  %v1013 = vpack.c.b16 %v965, %v964
  %v1014 = vpack.c.b16 %v967, %v966
  %v1015 = vpack.c.b16 %v969, %v968
  %v1016 = vpack.c.b16 %v971, %v970
  %v1017 = vpack.c.b16 %v973, %v972
  %v1018 = vpack.c.b16 %v975, %v974
  %v1019 = vpack.c.b16 %v977, %v976
  %v1020 = vpack.c.b16 %v979, %v978
  %v1021 = vpack.c.b16 %v981, %v980
  %v1022 = vpack.c.b16 %v983, %v982
  %v1023 = vpack.c.b16 %v985, %v984
  %v1024 = vpack.c.b16 %v987, %v986
  %v1025 = vpack.c.b16 %v989, %v988
  %v1026 = vpack.c.b16 %v991, %v990
  %v1027 = vpack.c.b16 %v993, %v992
  %v1028 = vpack.c.b16 %v995, %v994
  %v1029 = vpack.c.b16 %v997, %v996
  %v1030 = vpack.c.b16 %v999, %v998
  %v1031 = vpack.c.b16 %v1001, %v1000
  %v1032 = vpack.c.b16 %v1003, %v1002
  %v1033 = vpack.c.b16 %v1005, %v1004
  %v1034 = vpack.c.b16 %v1007, %v1006
  %v1035 = vpack.c.b16 %v1009, %v1008
  %v1036 = vpack.c.b16 %v1011, %v1010
  %vm1062 = vcmask 130048
  %v1064 = vsel %vm1062, %v656, 0
  %v1067 = vsel %vm1062, %v660, 0
  %v1070 = vsel %vm1062, %v664, 0
  %v1073 = vsel %vm1062, %v668, 0
  %v1076 = vsel %vm1062, %v672, 0
  %v1079 = vsel %vm1062, %v676, 0
  %v1082 = vsel %vm1062, %v680, 0
  %v1085 = vsel %vm1062, %v684, 0
  %v1088 = vsel %vm1062, %v688, 0
  %v1091 = vsel %vm1062, %v692, 0
  %v1094 = vsel %vm1062, %v696, 0
  %v1097 = vsel %vm1062, %v700, 0
  %v1100 = vsel %vm1062, %v704, 0
  %v1103 = vsel %vm1062, %v708, 0
  %v1106 = vsel %vm1062, %v712, 0
  %v1109 = vsel %vm1062, %v716, 0
  %v1112 = vsel %vm1062, %v720, 0
  %v1115 = vsel %vm1062, %v724, 0
  %v1118 = vsel %vm1062, %v728, 0
  %v1121 = vsel %vm1062, %v732, 0
  %v1124 = vsel %vm1062, %v736, 0
  %v1127 = vsel %vm1062, %v740, 0
  %v1130 = vsel %vm1062, %v744, 0
  %v1133 = vsel %vm1062, %v748, 0
  %v1136 = vsel %vm1062, %v752, 0
  %v1139 = vsel %vm1062, %v756, 0
  %v1142 = vsel %vm1062, %v760, 0
  %v1145 = vsel %vm1062, %v764, 0
  %v1148 = vsel %vm1062, %v768, 0
  %v1151 = vsel %vm1062, %v772, 0
  %v1154 = vsel %vm1062, %v776, 0
  %v1157 = vsel %vm1062, %v780, 0
  %v1160 = vsel %vm1062, %v784, 0
  %v1163 = vsel %vm1062, %v788, 0
  %v1166 = vsel %vm1062, %v792, 0
  %v1169 = vsel %vm1062, %v796, 0
  %v1172 = vsel %vm1062, %v800, 0
  %1174 = vmatpush.bf16.msra.mxu0 %v1019
  %1175 = vmatpush.bf16.msra.mxu0 %v1018
  %1176 = vmatpush.bf16.msra.mxu0 %v1017
  %1177 = vmatpush.bf16.msra.mxu0 %v1016
  %1178 = vmatpush.bf16.msra.mxu0 %v1015
  %1179 = vmatpush.bf16.msra.mxu0 %v1014
  %1180 = vmatpush.bf16.msra.mxu0 %v1013
  %1181 = vmatpush.bf16.msra.mxu0 %v1012
  %1182 = vmatmul.bf16.gmra.mxu0 %v653
  %v1183 = vpop.f32.mrf.mxu0
  %v1184 = vadd.f32 %v213, %v1183
  %v1185 = vpop.f32.mrf.mxu0
  %v1186 = vadd.f32 %v213, %v1185
  %1187 = vmatmul.bf16.gmra.mxu0 %v657
  %v1188 = vpop.f32.mrf.mxu0
  %v1189 = vadd.f32 %v213, %v1188
  %v1190 = vpop.f32.mrf.mxu0
  %v1191 = vadd.f32 %v213, %v1190
  %1192 = vmatmul.bf16.gmra.mxu0 %v661
  %v1193 = vpop.f32.mrf.mxu0
  %v1194 = vadd.f32 %v213, %v1193
  %v1195 = vpop.f32.mrf.mxu0
  %v1196 = vadd.f32 %v213, %v1195
  %1197 = vmatmul.bf16.gmra.mxu0 %v665
  %v1198 = vpop.f32.mrf.mxu0
  %v1199 = vadd.f32 %v213, %v1198
  %v1200 = vpop.f32.mrf.mxu0
  %v1201 = vadd.f32 %v213, %v1200
  %1202 = vmatmul.bf16.gmra.mxu0 %v669
  %v1203 = vpop.f32.mrf.mxu0
  %v1204 = vadd.f32 %v213, %v1203
  %v1205 = vpop.f32.mrf.mxu0
  %v1206 = vadd.f32 %v213, %v1205
  %1207 = vmatmul.bf16.gmra.mxu0 %v673
  %v1208 = vpop.f32.mrf.mxu0
  %v1209 = vadd.f32 %v213, %v1208
  %v1210 = vpop.f32.mrf.mxu0
  %v1211 = vadd.f32 %v213, %v1210
  %1212 = vmatmul.bf16.gmra.mxu0 %v677
  %v1213 = vpop.f32.mrf.mxu0
  %v1214 = vadd.f32 %v213, %v1213
  %v1215 = vpop.f32.mrf.mxu0
  %v1216 = vadd.f32 %v213, %v1215
  %1217 = vmatmul.bf16.gmra.mxu0 %v681
  %v1218 = vpop.f32.mrf.mxu0
  %v1219 = vadd.f32 %v213, %v1218
  %v1220 = vpop.f32.mrf.mxu0
  %v1221 = vadd.f32 %v213, %v1220
  %1222 = vmatmul.bf16.gmra.mxu0 %v685
  %v1223 = vpop.f32.mrf.mxu0
  %v1224 = vadd.f32 %v213, %v1223
  %v1225 = vpop.f32.mrf.mxu0
  %v1226 = vadd.f32 %v213, %v1225
  %1227 = vmatmul.bf16.gmra.mxu0 %v689
  %v1228 = vpop.f32.mrf.mxu0
  %v1229 = vadd.f32 %v213, %v1228
  %v1230 = vpop.f32.mrf.mxu0
  %v1231 = vadd.f32 %v213, %v1230
  %1232 = vmatmul.bf16.gmra.mxu0 %v693
  %v1233 = vpop.f32.mrf.mxu0
  %v1234 = vadd.f32 %v213, %v1233
  %v1235 = vpop.f32.mrf.mxu0
  %v1236 = vadd.f32 %v213, %v1235
  %1237 = vmatmul.bf16.gmra.mxu0 %v697
  %v1238 = vpop.f32.mrf.mxu0
  %v1239 = vadd.f32 %v213, %v1238
  %v1240 = vpop.f32.mrf.mxu0
  %v1241 = vadd.f32 %v213, %v1240
  %1242 = vmatmul.bf16.gmra.mxu0 %v701
  %v1243 = vpop.f32.mrf.mxu0
  %v1244 = vadd.f32 %v213, %v1243
  %v1245 = vpop.f32.mrf.mxu0
  %v1246 = vadd.f32 %v213, %v1245
  %1247 = vmatmul.bf16.gmra.mxu0 %v705
  %v1248 = vpop.f32.mrf.mxu0
  %v1249 = vadd.f32 %v213, %v1248
  %v1250 = vpop.f32.mrf.mxu0
  %v1251 = vadd.f32 %v213, %v1250
  %1252 = vmatmul.bf16.gmra.mxu0 %v709
  %v1253 = vpop.f32.mrf.mxu0
  %v1254 = vadd.f32 %v213, %v1253
  %v1255 = vpop.f32.mrf.mxu0
  %v1256 = vadd.f32 %v213, %v1255
  %1257 = vmatmul.bf16.gmra.mxu0 %v713
  %v1258 = vpop.f32.mrf.mxu0
  %v1259 = vadd.f32 %v213, %v1258
  %v1260 = vpop.f32.mrf.mxu0
  %v1261 = vadd.f32 %v213, %v1260
  %1262 = vmatmul.bf16.gmra.mxu0 %v717
  %v1263 = vpop.f32.mrf.mxu0
  %v1264 = vadd.f32 %v213, %v1263
  %v1265 = vpop.f32.mrf.mxu0
  %v1266 = vadd.f32 %v213, %v1265
  %1267 = vmatmul.bf16.gmra.mxu0 %v721
  %v1268 = vpop.f32.mrf.mxu0
  %v1269 = vadd.f32 %v213, %v1268
  %v1270 = vpop.f32.mrf.mxu0
  %v1271 = vadd.f32 %v213, %v1270
  %1272 = vmatmul.bf16.gmra.mxu0 %v725
  %v1273 = vpop.f32.mrf.mxu0
  %v1274 = vadd.f32 %v213, %v1273
  %v1275 = vpop.f32.mrf.mxu0
  %v1276 = vadd.f32 %v213, %v1275
  %1277 = vmatmul.bf16.gmra.mxu0 %v729
  %v1278 = vpop.f32.mrf.mxu0
  %v1279 = vadd.f32 %v213, %v1278
  %v1280 = vpop.f32.mrf.mxu0
  %v1281 = vadd.f32 %v213, %v1280
  %1282 = vmatmul.bf16.gmra.mxu0 %v733
  %v1283 = vpop.f32.mrf.mxu0
  %v1284 = vadd.f32 %v213, %v1283
  %v1285 = vpop.f32.mrf.mxu0
  %v1286 = vadd.f32 %v213, %v1285
  %1287 = vmatmul.bf16.gmra.mxu0 %v737
  %v1288 = vpop.f32.mrf.mxu0
  %v1289 = vadd.f32 %v213, %v1288
  %v1290 = vpop.f32.mrf.mxu0
  %v1291 = vadd.f32 %v213, %v1290
  %1292 = vmatmul.bf16.gmra.mxu0 %v741
  %v1293 = vpop.f32.mrf.mxu0
  %v1294 = vadd.f32 %v213, %v1293
  %v1295 = vpop.f32.mrf.mxu0
  %v1296 = vadd.f32 %v213, %v1295
  %1297 = vmatmul.bf16.gmra.mxu0 %v745
  %v1298 = vpop.f32.mrf.mxu0
  %v1299 = vadd.f32 %v213, %v1298
  %v1300 = vpop.f32.mrf.mxu0
  %v1301 = vadd.f32 %v213, %v1300
  %1302 = vmatmul.bf16.gmra.mxu0 %v749
  %v1303 = vpop.f32.mrf.mxu0
  %v1304 = vadd.f32 %v213, %v1303
  %v1305 = vpop.f32.mrf.mxu0
  %v1306 = vadd.f32 %v213, %v1305
  %1307 = vmatmul.bf16.gmra.mxu0 %v753
  %v1308 = vpop.f32.mrf.mxu0
  %v1309 = vadd.f32 %v213, %v1308
  %v1310 = vpop.f32.mrf.mxu0
  %v1311 = vadd.f32 %v213, %v1310
  %1312 = vmatmul.bf16.gmra.mxu0 %v757
  %v1313 = vpop.f32.mrf.mxu0
  %v1314 = vadd.f32 %v213, %v1313
  %v1315 = vpop.f32.mrf.mxu0
  %v1316 = vadd.f32 %v213, %v1315
  %1317 = vmatmul.bf16.gmra.mxu0 %v761
  %v1318 = vpop.f32.mrf.mxu0
  %v1319 = vadd.f32 %v213, %v1318
  %v1320 = vpop.f32.mrf.mxu0
  %v1321 = vadd.f32 %v213, %v1320
  %1322 = vmatmul.bf16.gmra.mxu0 %v765
  %v1323 = vpop.f32.mrf.mxu0
  %v1324 = vadd.f32 %v213, %v1323
  %v1325 = vpop.f32.mrf.mxu0
  %v1326 = vadd.f32 %v213, %v1325
  %1327 = vmatmul.bf16.gmra.mxu0 %v769
  %v1328 = vpop.f32.mrf.mxu0
  %v1329 = vadd.f32 %v213, %v1328
  %v1330 = vpop.f32.mrf.mxu0
  %v1331 = vadd.f32 %v213, %v1330
  %1332 = vmatmul.bf16.gmra.mxu0 %v773
  %v1333 = vpop.f32.mrf.mxu0
  %v1334 = vadd.f32 %v213, %v1333
  %v1335 = vpop.f32.mrf.mxu0
  %v1336 = vadd.f32 %v213, %v1335
  %1337 = vmatmul.bf16.gmra.mxu0 %v777
  %v1338 = vpop.f32.mrf.mxu0
  %v1339 = vadd.f32 %v213, %v1338
  %v1340 = vpop.f32.mrf.mxu0
  %v1341 = vadd.f32 %v213, %v1340
  %1342 = vmatmul.bf16.gmra.mxu0 %v781
  %v1343 = vpop.f32.mrf.mxu0
  %v1344 = vadd.f32 %v213, %v1343
  %v1345 = vpop.f32.mrf.mxu0
  %v1346 = vadd.f32 %v213, %v1345
  %1347 = vmatmul.bf16.gmra.mxu0 %v785
  %v1348 = vpop.f32.mrf.mxu0
  %v1349 = vadd.f32 %v213, %v1348
  %v1350 = vpop.f32.mrf.mxu0
  %v1351 = vadd.f32 %v213, %v1350
  %1352 = vmatmul.bf16.gmra.mxu0 %v789
  %v1353 = vpop.f32.mrf.mxu0
  %v1354 = vadd.f32 %v213, %v1353
  %v1355 = vpop.f32.mrf.mxu0
  %v1356 = vadd.f32 %v213, %v1355
  %1357 = vmatmul.bf16.gmra.mxu0 %v793
  %v1358 = vpop.f32.mrf.mxu0
  %v1359 = vadd.f32 %v213, %v1358
  %v1360 = vpop.f32.mrf.mxu0
  %v1361 = vadd.f32 %v213, %v1360
  %1362 = vmatmul.bf16.gmra.mxu0 %v797
  %v1363 = vpop.f32.mrf.mxu0
  %v1364 = vadd.f32 %v213, %v1363
  %v1365 = vpop.f32.mrf.mxu0
  %1366 = vdwg.mxu0
  %1367 = vmatpush.bf16.msra.mxu0 %v1027
  %1368 = vmatpush.bf16.msra.mxu0 %v1026
  %1369 = vmatpush.bf16.msra.mxu0 %v1025
  %1370 = vmatpush.bf16.msra.mxu0 %v1024
  %1371 = vmatpush.bf16.msra.mxu0 %v1023
  %1372 = vmatpush.bf16.msra.mxu0 %v1022
  %1373 = vmatpush.bf16.msra.mxu0 %v1021
  %1374 = vmatpush.bf16.msra.mxu0 %v1020
  %1375 = vmatmul.bf16.gmra.mxu0 %v654
  %v1376 = vpop.f32.mrf.mxu0
  %v1377 = vadd.f32 %v1184, %v1376
  %v1378 = vpop.f32.mrf.mxu0
  %v1379 = vadd.f32 %v1186, %v1378
  %1380 = vmatmul.bf16.gmra.mxu0 %v658
  %v1381 = vpop.f32.mrf.mxu0
  %v1382 = vadd.f32 %v1189, %v1381
  %v1383 = vpop.f32.mrf.mxu0
  %v1384 = vadd.f32 %v1191, %v1383
  %1385 = vmatmul.bf16.gmra.mxu0 %v662
  %v1386 = vpop.f32.mrf.mxu0
  %v1387 = vadd.f32 %v1194, %v1386
  %v1388 = vpop.f32.mrf.mxu0
  %v1389 = vadd.f32 %v1196, %v1388
  %1390 = vmatmul.bf16.gmra.mxu0 %v666
  %v1391 = vpop.f32.mrf.mxu0
  %v1392 = vadd.f32 %v1199, %v1391
  %v1393 = vpop.f32.mrf.mxu0
  %v1394 = vadd.f32 %v1201, %v1393
  %1395 = vmatmul.bf16.gmra.mxu0 %v670
  %v1396 = vpop.f32.mrf.mxu0
  %v1397 = vadd.f32 %v1204, %v1396
  %v1398 = vpop.f32.mrf.mxu0
  %v1399 = vadd.f32 %v1206, %v1398
  %1400 = vmatmul.bf16.gmra.mxu0 %v674
  %v1401 = vpop.f32.mrf.mxu0
  %v1402 = vadd.f32 %v1209, %v1401
  %v1403 = vpop.f32.mrf.mxu0
  %v1404 = vadd.f32 %v1211, %v1403
  %1405 = vmatmul.bf16.gmra.mxu0 %v678
  %v1406 = vpop.f32.mrf.mxu0
  %v1407 = vadd.f32 %v1214, %v1406
  %v1408 = vpop.f32.mrf.mxu0
  %v1409 = vadd.f32 %v1216, %v1408
  %1410 = vmatmul.bf16.gmra.mxu0 %v682
  %v1411 = vpop.f32.mrf.mxu0
  %v1412 = vadd.f32 %v1219, %v1411
  %v1413 = vpop.f32.mrf.mxu0
  %v1414 = vadd.f32 %v1221, %v1413
  %1415 = vmatmul.bf16.gmra.mxu0 %v686
  %v1416 = vpop.f32.mrf.mxu0
  %v1417 = vadd.f32 %v1224, %v1416
  %v1418 = vpop.f32.mrf.mxu0
  %v1419 = vadd.f32 %v1226, %v1418
  %1420 = vmatmul.bf16.gmra.mxu0 %v690
  %v1421 = vpop.f32.mrf.mxu0
  %v1422 = vadd.f32 %v1229, %v1421
  %v1423 = vpop.f32.mrf.mxu0
  %v1424 = vadd.f32 %v1231, %v1423
  %1425 = vmatmul.bf16.gmra.mxu0 %v694
  %v1426 = vpop.f32.mrf.mxu0
  %v1427 = vadd.f32 %v1234, %v1426
  %v1428 = vpop.f32.mrf.mxu0
  %v1429 = vadd.f32 %v1236, %v1428
  %1430 = vmatmul.bf16.gmra.mxu0 %v698
  %v1431 = vpop.f32.mrf.mxu0
  %v1432 = vadd.f32 %v1239, %v1431
  %v1433 = vpop.f32.mrf.mxu0
  %v1434 = vadd.f32 %v1241, %v1433
  %1435 = vmatmul.bf16.gmra.mxu0 %v702
  %v1436 = vpop.f32.mrf.mxu0
  %v1437 = vadd.f32 %v1244, %v1436
  %v1438 = vpop.f32.mrf.mxu0
  %v1439 = vadd.f32 %v1246, %v1438
  %1440 = vmatmul.bf16.gmra.mxu0 %v706
  %v1441 = vpop.f32.mrf.mxu0
  %v1442 = vadd.f32 %v1249, %v1441
  %v1443 = vpop.f32.mrf.mxu0
  %v1444 = vadd.f32 %v1251, %v1443
  %1445 = vmatmul.bf16.gmra.mxu0 %v710
  %v1446 = vpop.f32.mrf.mxu0
  %v1447 = vadd.f32 %v1254, %v1446
  %v1448 = vpop.f32.mrf.mxu0
  %v1449 = vadd.f32 %v1256, %v1448
  %1450 = vmatmul.bf16.gmra.mxu0 %v714
  %v1451 = vpop.f32.mrf.mxu0
  %v1452 = vadd.f32 %v1259, %v1451
  %v1453 = vpop.f32.mrf.mxu0
  %v1454 = vadd.f32 %v1261, %v1453
  %1455 = vmatmul.bf16.gmra.mxu0 %v718
  %v1456 = vpop.f32.mrf.mxu0
  %v1457 = vadd.f32 %v1264, %v1456
  %v1458 = vpop.f32.mrf.mxu0
  %v1459 = vadd.f32 %v1266, %v1458
  %1460 = vmatmul.bf16.gmra.mxu0 %v722
  %v1461 = vpop.f32.mrf.mxu0
  %v1462 = vadd.f32 %v1269, %v1461
  %v1463 = vpop.f32.mrf.mxu0
  %v1464 = vadd.f32 %v1271, %v1463
  %1465 = vmatmul.bf16.gmra.mxu0 %v726
  %v1466 = vpop.f32.mrf.mxu0
  %v1467 = vadd.f32 %v1274, %v1466
  %v1468 = vpop.f32.mrf.mxu0
  %v1469 = vadd.f32 %v1276, %v1468
  %1470 = vmatmul.bf16.gmra.mxu0 %v730
  %v1471 = vpop.f32.mrf.mxu0
  %v1472 = vadd.f32 %v1279, %v1471
  %v1473 = vpop.f32.mrf.mxu0
  %v1474 = vadd.f32 %v1281, %v1473
  %1475 = vmatmul.bf16.gmra.mxu0 %v734
  %v1476 = vpop.f32.mrf.mxu0
  %v1477 = vadd.f32 %v1284, %v1476
  %v1478 = vpop.f32.mrf.mxu0
  %v1479 = vadd.f32 %v1286, %v1478
  %1480 = vmatmul.bf16.gmra.mxu0 %v738
  %v1481 = vpop.f32.mrf.mxu0
  %v1482 = vadd.f32 %v1289, %v1481
  %v1483 = vpop.f32.mrf.mxu0
  %v1484 = vadd.f32 %v1291, %v1483
  %1485 = vmatmul.bf16.gmra.mxu0 %v742
  %v1486 = vpop.f32.mrf.mxu0
  %v1487 = vadd.f32 %v1294, %v1486
  %v1488 = vpop.f32.mrf.mxu0
  %v1489 = vadd.f32 %v1296, %v1488
  %1490 = vmatmul.bf16.gmra.mxu0 %v746
  %v1491 = vpop.f32.mrf.mxu0
  %v1492 = vadd.f32 %v1299, %v1491
  %v1493 = vpop.f32.mrf.mxu0
  %v1494 = vadd.f32 %v1301, %v1493
  %1495 = vmatmul.bf16.gmra.mxu0 %v750
  %v1496 = vpop.f32.mrf.mxu0
  %v1497 = vadd.f32 %v1304, %v1496
  %v1498 = vpop.f32.mrf.mxu0
  %v1499 = vadd.f32 %v1306, %v1498
  %1500 = vmatmul.bf16.gmra.mxu0 %v754
  %v1501 = vpop.f32.mrf.mxu0
  %v1502 = vadd.f32 %v1309, %v1501
  %v1503 = vpop.f32.mrf.mxu0
  %v1504 = vadd.f32 %v1311, %v1503
  %1505 = vmatmul.bf16.gmra.mxu0 %v758
  %v1506 = vpop.f32.mrf.mxu0
  %v1507 = vadd.f32 %v1314, %v1506
  %v1508 = vpop.f32.mrf.mxu0
  %v1509 = vadd.f32 %v1316, %v1508
  %1510 = vmatmul.bf16.gmra.mxu0 %v762
  %v1511 = vpop.f32.mrf.mxu0
  %v1512 = vadd.f32 %v1319, %v1511
  %v1513 = vpop.f32.mrf.mxu0
  %v1514 = vadd.f32 %v1321, %v1513
  %1515 = vmatmul.bf16.gmra.mxu0 %v766
  %v1516 = vpop.f32.mrf.mxu0
  %v1517 = vadd.f32 %v1324, %v1516
  %v1518 = vpop.f32.mrf.mxu0
  %v1519 = vadd.f32 %v1326, %v1518
  %1520 = vmatmul.bf16.gmra.mxu0 %v770
  %v1521 = vpop.f32.mrf.mxu0
  %v1522 = vadd.f32 %v1329, %v1521
  %v1523 = vpop.f32.mrf.mxu0
  %v1524 = vadd.f32 %v1331, %v1523
  %1525 = vmatmul.bf16.gmra.mxu0 %v774
  %v1526 = vpop.f32.mrf.mxu0
  %v1527 = vadd.f32 %v1334, %v1526
  %v1528 = vpop.f32.mrf.mxu0
  %v1529 = vadd.f32 %v1336, %v1528
  %1530 = vmatmul.bf16.gmra.mxu0 %v778
  %v1531 = vpop.f32.mrf.mxu0
  %v1532 = vadd.f32 %v1339, %v1531
  %v1533 = vpop.f32.mrf.mxu0
  %v1534 = vadd.f32 %v1341, %v1533
  %1535 = vmatmul.bf16.gmra.mxu0 %v782
  %v1536 = vpop.f32.mrf.mxu0
  %v1537 = vadd.f32 %v1344, %v1536
  %v1538 = vpop.f32.mrf.mxu0
  %v1539 = vadd.f32 %v1346, %v1538
  %1540 = vmatmul.bf16.gmra.mxu0 %v786
  %v1541 = vpop.f32.mrf.mxu0
  %v1542 = vadd.f32 %v1349, %v1541
  %v1543 = vpop.f32.mrf.mxu0
  %v1544 = vadd.f32 %v1351, %v1543
  %1545 = vmatmul.bf16.gmra.mxu0 %v790
  %v1546 = vpop.f32.mrf.mxu0
  %v1547 = vadd.f32 %v1354, %v1546
  %v1548 = vpop.f32.mrf.mxu0
  %v1549 = vadd.f32 %v1356, %v1548
  %1550 = vmatmul.bf16.gmra.mxu0 %v794
  %v1551 = vpop.f32.mrf.mxu0
  %v1552 = vadd.f32 %v1359, %v1551
  %v1553 = vpop.f32.mrf.mxu0
  %v1554 = vadd.f32 %v1361, %v1553
  %1555 = vmatmul.bf16.gmra.mxu0 %v798
  %v1556 = vpop.f32.mrf.mxu0
  %v1557 = vadd.f32 %v1364, %v1556
  %v1558 = vpop.f32.mrf.mxu0
  %1559 = vdwg.mxu0
  %1560 = vmatpush.bf16.msra.mxu0 %v1035
  %1561 = vmatpush.bf16.msra.mxu0 %v1034
  %1562 = vmatpush.bf16.msra.mxu0 %v1033
  %1563 = vmatpush.bf16.msra.mxu0 %v1032
  %1564 = vmatpush.bf16.msra.mxu0 %v1031
  %1565 = vmatpush.bf16.msra.mxu0 %v1030
  %1566 = vmatpush.bf16.msra.mxu0 %v1029
  %1567 = vmatpush.bf16.msra.mxu0 %v1028
  %1568 = vmatmul.bf16.gmra.mxu0 %v655
  %v1569 = vpop.f32.mrf.mxu0
  %v1570 = vadd.f32 %v1377, %v1569
  %v1571 = vpop.f32.mrf.mxu0
  %v1572 = vadd.f32 %v1379, %v1571
  %1573 = vmatmul.bf16.gmra.mxu0 %v659
  %v1574 = vpop.f32.mrf.mxu0
  %v1575 = vadd.f32 %v1382, %v1574
  %v1576 = vpop.f32.mrf.mxu0
  %v1577 = vadd.f32 %v1384, %v1576
  %1578 = vmatmul.bf16.gmra.mxu0 %v663
  %v1579 = vpop.f32.mrf.mxu0
  %v1580 = vadd.f32 %v1387, %v1579
  %v1581 = vpop.f32.mrf.mxu0
  %v1582 = vadd.f32 %v1389, %v1581
  %1583 = vmatmul.bf16.gmra.mxu0 %v667
  %v1584 = vpop.f32.mrf.mxu0
  %v1585 = vadd.f32 %v1392, %v1584
  %v1586 = vpop.f32.mrf.mxu0
  %v1587 = vadd.f32 %v1394, %v1586
  %1588 = vmatmul.bf16.gmra.mxu0 %v671
  %v1589 = vpop.f32.mrf.mxu0
  %v1590 = vadd.f32 %v1397, %v1589
  %v1591 = vpop.f32.mrf.mxu0
  %v1592 = vadd.f32 %v1399, %v1591
  %1593 = vmatmul.bf16.gmra.mxu0 %v675
  %v1594 = vpop.f32.mrf.mxu0
  %v1595 = vadd.f32 %v1402, %v1594
  %v1596 = vpop.f32.mrf.mxu0
  %v1597 = vadd.f32 %v1404, %v1596
  %1598 = vmatmul.bf16.gmra.mxu0 %v679
  %v1599 = vpop.f32.mrf.mxu0
  %v1600 = vadd.f32 %v1407, %v1599
  %v1601 = vpop.f32.mrf.mxu0
  %v1602 = vadd.f32 %v1409, %v1601
  %1603 = vmatmul.bf16.gmra.mxu0 %v683
  %v1604 = vpop.f32.mrf.mxu0
  %v1605 = vadd.f32 %v1412, %v1604
  %v1606 = vpop.f32.mrf.mxu0
  %v1607 = vadd.f32 %v1414, %v1606
  %1608 = vmatmul.bf16.gmra.mxu0 %v687
  %v1609 = vpop.f32.mrf.mxu0
  %v1610 = vadd.f32 %v1417, %v1609
  %v1611 = vpop.f32.mrf.mxu0
  %v1612 = vadd.f32 %v1419, %v1611
  %1613 = vmatmul.bf16.gmra.mxu0 %v691
  %v1614 = vpop.f32.mrf.mxu0
  %v1615 = vadd.f32 %v1422, %v1614
  %v1616 = vpop.f32.mrf.mxu0
  %v1617 = vadd.f32 %v1424, %v1616
  %1618 = vmatmul.bf16.gmra.mxu0 %v695
  %v1619 = vpop.f32.mrf.mxu0
  %v1620 = vadd.f32 %v1427, %v1619
  %v1621 = vpop.f32.mrf.mxu0
  %v1622 = vadd.f32 %v1429, %v1621
  %1623 = vmatmul.bf16.gmra.mxu0 %v699
  %v1624 = vpop.f32.mrf.mxu0
  %v1625 = vadd.f32 %v1432, %v1624
  %v1626 = vpop.f32.mrf.mxu0
  %v1627 = vadd.f32 %v1434, %v1626
  %1628 = vmatmul.bf16.gmra.mxu0 %v703
  %v1629 = vpop.f32.mrf.mxu0
  %v1630 = vadd.f32 %v1437, %v1629
  %v1631 = vpop.f32.mrf.mxu0
  %v1632 = vadd.f32 %v1439, %v1631
  %1633 = vmatmul.bf16.gmra.mxu0 %v707
  %v1634 = vpop.f32.mrf.mxu0
  %v1635 = vadd.f32 %v1442, %v1634
  %v1636 = vpop.f32.mrf.mxu0
  %v1637 = vadd.f32 %v1444, %v1636
  %1638 = vmatmul.bf16.gmra.mxu0 %v711
  %v1639 = vpop.f32.mrf.mxu0
  %v1640 = vadd.f32 %v1447, %v1639
  %v1641 = vpop.f32.mrf.mxu0
  %v1642 = vadd.f32 %v1449, %v1641
  %1643 = vmatmul.bf16.gmra.mxu0 %v715
  %v1644 = vpop.f32.mrf.mxu0
  %v1645 = vadd.f32 %v1452, %v1644
  %v1646 = vpop.f32.mrf.mxu0
  %v1647 = vadd.f32 %v1454, %v1646
  %1648 = vmatmul.bf16.gmra.mxu0 %v719
  %v1649 = vpop.f32.mrf.mxu0
  %v1650 = vadd.f32 %v1457, %v1649
  %v1651 = vpop.f32.mrf.mxu0
  %v1652 = vadd.f32 %v1459, %v1651
  %1653 = vmatmul.bf16.gmra.mxu0 %v723
  %v1654 = vpop.f32.mrf.mxu0
  %v1655 = vadd.f32 %v1462, %v1654
  %v1656 = vpop.f32.mrf.mxu0
  %v1657 = vadd.f32 %v1464, %v1656
  %1658 = vmatmul.bf16.gmra.mxu0 %v727
  %v1659 = vpop.f32.mrf.mxu0
  %v1660 = vadd.f32 %v1467, %v1659
  %v1661 = vpop.f32.mrf.mxu0
  %v1662 = vadd.f32 %v1469, %v1661
  %1663 = vmatmul.bf16.gmra.mxu0 %v731
  %v1664 = vpop.f32.mrf.mxu0
  %v1665 = vadd.f32 %v1472, %v1664
  %v1666 = vpop.f32.mrf.mxu0
  %v1667 = vadd.f32 %v1474, %v1666
  %1668 = vmatmul.bf16.gmra.mxu0 %v735
  %v1669 = vpop.f32.mrf.mxu0
  %v1670 = vadd.f32 %v1477, %v1669
  %v1671 = vpop.f32.mrf.mxu0
  %v1672 = vadd.f32 %v1479, %v1671
  %1673 = vmatmul.bf16.gmra.mxu0 %v739
  %v1674 = vpop.f32.mrf.mxu0
  %v1675 = vadd.f32 %v1482, %v1674
  %v1676 = vpop.f32.mrf.mxu0
  %v1677 = vadd.f32 %v1484, %v1676
  %1678 = vmatmul.bf16.gmra.mxu0 %v743
  %v1679 = vpop.f32.mrf.mxu0
  %v1680 = vadd.f32 %v1487, %v1679
  %v1681 = vpop.f32.mrf.mxu0
  %v1682 = vadd.f32 %v1489, %v1681
  %1683 = vmatmul.bf16.gmra.mxu0 %v747
  %v1684 = vpop.f32.mrf.mxu0
  %v1685 = vadd.f32 %v1492, %v1684
  %v1686 = vpop.f32.mrf.mxu0
  %v1687 = vadd.f32 %v1494, %v1686
  %1688 = vmatmul.bf16.gmra.mxu0 %v751
  %v1689 = vpop.f32.mrf.mxu0
  %v1690 = vadd.f32 %v1497, %v1689
  %v1691 = vpop.f32.mrf.mxu0
  %v1692 = vadd.f32 %v1499, %v1691
  %1693 = vmatmul.bf16.gmra.mxu0 %v755
  %v1694 = vpop.f32.mrf.mxu0
  %v1695 = vadd.f32 %v1502, %v1694
  %v1696 = vpop.f32.mrf.mxu0
  %v1697 = vadd.f32 %v1504, %v1696
  %1698 = vmatmul.bf16.gmra.mxu0 %v759
  %v1699 = vpop.f32.mrf.mxu0
  %v1700 = vadd.f32 %v1507, %v1699
  %v1701 = vpop.f32.mrf.mxu0
  %v1702 = vadd.f32 %v1509, %v1701
  %1703 = vmatmul.bf16.gmra.mxu0 %v763
  %v1704 = vpop.f32.mrf.mxu0
  %v1705 = vadd.f32 %v1512, %v1704
  %v1706 = vpop.f32.mrf.mxu0
  %v1707 = vadd.f32 %v1514, %v1706
  %1708 = vmatmul.bf16.gmra.mxu0 %v767
  %v1709 = vpop.f32.mrf.mxu0
  %v1710 = vadd.f32 %v1517, %v1709
  %v1711 = vpop.f32.mrf.mxu0
  %v1712 = vadd.f32 %v1519, %v1711
  %1713 = vmatmul.bf16.gmra.mxu0 %v771
  %v1714 = vpop.f32.mrf.mxu0
  %v1715 = vadd.f32 %v1522, %v1714
  %v1716 = vpop.f32.mrf.mxu0
  %v1717 = vadd.f32 %v1524, %v1716
  %1718 = vmatmul.bf16.gmra.mxu0 %v775
  %v1719 = vpop.f32.mrf.mxu0
  %v1720 = vadd.f32 %v1527, %v1719
  %v1721 = vpop.f32.mrf.mxu0
  %v1722 = vadd.f32 %v1529, %v1721
  %1723 = vmatmul.bf16.gmra.mxu0 %v779
  %v1724 = vpop.f32.mrf.mxu0
  %v1725 = vadd.f32 %v1532, %v1724
  %v1726 = vpop.f32.mrf.mxu0
  %v1727 = vadd.f32 %v1534, %v1726
  %1728 = vmatmul.bf16.gmra.mxu0 %v783
  %v1729 = vpop.f32.mrf.mxu0
  %v1730 = vadd.f32 %v1537, %v1729
  %v1731 = vpop.f32.mrf.mxu0
  %v1732 = vadd.f32 %v1539, %v1731
  %1733 = vmatmul.bf16.gmra.mxu0 %v787
  %v1734 = vpop.f32.mrf.mxu0
  %v1735 = vadd.f32 %v1542, %v1734
  %v1736 = vpop.f32.mrf.mxu0
  %v1737 = vadd.f32 %v1544, %v1736
  %1738 = vmatmul.bf16.gmra.mxu0 %v791
  %v1739 = vpop.f32.mrf.mxu0
  %v1740 = vadd.f32 %v1547, %v1739
  %v1741 = vpop.f32.mrf.mxu0
  %v1742 = vadd.f32 %v1549, %v1741
  %1743 = vmatmul.bf16.gmra.mxu0 %v795
  %v1744 = vpop.f32.mrf.mxu0
  %v1745 = vadd.f32 %v1552, %v1744
  %v1746 = vpop.f32.mrf.mxu0
  %v1747 = vadd.f32 %v1554, %v1746
  %1748 = vmatmul.bf16.gmra.mxu0 %v799
  %v1749 = vpop.f32.mrf.mxu0
  %v1750 = vadd.f32 %v1557, %v1749
  %v1751 = vpop.f32.mrf.mxu0
  %1752 = vdwg.mxu0
  %1753 = vmatpush.bf16.msra.mxu0 0
  %1754 = vmatpush.bf16.msra.mxu0 0
  %1755 = vmatpush.bf16.msra.mxu0 0
  %1756 = vmatpush.bf16.msra.mxu0 0
  %1757 = vmatpush.bf16.msra.mxu0 0
  %1758 = vmatpush.bf16.msra.mxu0 0
  %1759 = vmatpush.bf16.msra.mxu0 0
  %1760 = vmatpush.bf16.msra.mxu0 %v1036
  %1761 = vmatmul.bf16.gmra.mxu0 %v1064
  %v1762 = vpop.f32.mrf.mxu0
  %v1763 = vadd.f32 %v1570, %v1762
  %v1764 = vpop.f32.mrf.mxu0
  %v1765 = vadd.f32 %v1572, %v1764
  %1766 = vmatmul.bf16.gmra.mxu0 %v1067
  %v1767 = vpop.f32.mrf.mxu0
  %v1768 = vadd.f32 %v1575, %v1767
  %v1769 = vpop.f32.mrf.mxu0
  %v1770 = vadd.f32 %v1577, %v1769
  %1771 = vmatmul.bf16.gmra.mxu0 %v1070
  %v1772 = vpop.f32.mrf.mxu0
  %v1773 = vadd.f32 %v1580, %v1772
  %v1774 = vpop.f32.mrf.mxu0
  %v1775 = vadd.f32 %v1582, %v1774
  %1776 = vmatmul.bf16.gmra.mxu0 %v1073
  %v1777 = vpop.f32.mrf.mxu0
  %v1778 = vadd.f32 %v1585, %v1777
  %v1779 = vpop.f32.mrf.mxu0
  %v1780 = vadd.f32 %v1587, %v1779
  %1781 = vmatmul.bf16.gmra.mxu0 %v1076
  %v1782 = vpop.f32.mrf.mxu0
  %v1783 = vadd.f32 %v1590, %v1782
  %v1784 = vpop.f32.mrf.mxu0
  %v1785 = vadd.f32 %v1592, %v1784
  %1786 = vmatmul.bf16.gmra.mxu0 %v1079
  %v1787 = vpop.f32.mrf.mxu0
  %v1788 = vadd.f32 %v1595, %v1787
  %v1789 = vpop.f32.mrf.mxu0
  %v1790 = vadd.f32 %v1597, %v1789
  %1791 = vmatmul.bf16.gmra.mxu0 %v1082
  %v1792 = vpop.f32.mrf.mxu0
  %v1793 = vadd.f32 %v1600, %v1792
  %v1794 = vpop.f32.mrf.mxu0
  %v1795 = vadd.f32 %v1602, %v1794
  %1796 = vmatmul.bf16.gmra.mxu0 %v1085
  %v1797 = vpop.f32.mrf.mxu0
  %v1798 = vadd.f32 %v1605, %v1797
  %v1799 = vpop.f32.mrf.mxu0
  %v1800 = vadd.f32 %v1607, %v1799
  %1801 = vmatmul.bf16.gmra.mxu0 %v1088
  %v1802 = vpop.f32.mrf.mxu0
  %v1803 = vadd.f32 %v1610, %v1802
  %v1804 = vpop.f32.mrf.mxu0
  %v1805 = vadd.f32 %v1612, %v1804
  %1806 = vmatmul.bf16.gmra.mxu0 %v1091
  %v1807 = vpop.f32.mrf.mxu0
  %v1808 = vadd.f32 %v1615, %v1807
  %v1809 = vpop.f32.mrf.mxu0
  %v1810 = vadd.f32 %v1617, %v1809
  %1811 = vmatmul.bf16.gmra.mxu0 %v1094
  %v1812 = vpop.f32.mrf.mxu0
  %v1813 = vadd.f32 %v1620, %v1812
  %v1814 = vpop.f32.mrf.mxu0
  %v1815 = vadd.f32 %v1622, %v1814
  %1816 = vmatmul.bf16.gmra.mxu0 %v1097
  %v1817 = vpop.f32.mrf.mxu0
  %v1818 = vadd.f32 %v1625, %v1817
  %v1819 = vpop.f32.mrf.mxu0
  %v1820 = vadd.f32 %v1627, %v1819
  %1821 = vmatmul.bf16.gmra.mxu0 %v1100
  %v1822 = vpop.f32.mrf.mxu0
  %v1823 = vadd.f32 %v1630, %v1822
  %v1824 = vpop.f32.mrf.mxu0
  %v1825 = vadd.f32 %v1632, %v1824
  %1826 = vmatmul.bf16.gmra.mxu0 %v1103
  %v1827 = vpop.f32.mrf.mxu0
  %v1828 = vadd.f32 %v1635, %v1827
  %v1829 = vpop.f32.mrf.mxu0
  %v1830 = vadd.f32 %v1637, %v1829
  %1831 = vmatmul.bf16.gmra.mxu0 %v1106
  %v1832 = vpop.f32.mrf.mxu0
  %v1833 = vadd.f32 %v1640, %v1832
  %v1834 = vpop.f32.mrf.mxu0
  %v1835 = vadd.f32 %v1642, %v1834
  %1836 = vmatmul.bf16.gmra.mxu0 %v1109
  %v1837 = vpop.f32.mrf.mxu0
  %v1838 = vadd.f32 %v1645, %v1837
  %v1839 = vpop.f32.mrf.mxu0
  %v1840 = vadd.f32 %v1647, %v1839
  %1841 = vmatmul.bf16.gmra.mxu0 %v1112
  %v1842 = vpop.f32.mrf.mxu0
  %v1843 = vadd.f32 %v1650, %v1842
  %v1844 = vpop.f32.mrf.mxu0
  %v1845 = vadd.f32 %v1652, %v1844
  %1846 = vmatmul.bf16.gmra.mxu0 %v1115
  %v1847 = vpop.f32.mrf.mxu0
  %v1848 = vadd.f32 %v1655, %v1847
  %v1849 = vpop.f32.mrf.mxu0
  %v1850 = vadd.f32 %v1657, %v1849
  %1851 = vmatmul.bf16.gmra.mxu0 %v1118
  %v1852 = vpop.f32.mrf.mxu0
  %v1853 = vadd.f32 %v1660, %v1852
  %v1854 = vpop.f32.mrf.mxu0
  %v1855 = vadd.f32 %v1662, %v1854
  %1856 = vmatmul.bf16.gmra.mxu0 %v1121
  %v1857 = vpop.f32.mrf.mxu0
  %v1858 = vadd.f32 %v1665, %v1857
  %v1859 = vpop.f32.mrf.mxu0
  %v1860 = vadd.f32 %v1667, %v1859
  %1861 = vmatmul.bf16.gmra.mxu0 %v1124
  %v1862 = vpop.f32.mrf.mxu0
  %v1863 = vadd.f32 %v1670, %v1862
  %v1864 = vpop.f32.mrf.mxu0
  %v1865 = vadd.f32 %v1672, %v1864
  %1866 = vmatmul.bf16.gmra.mxu0 %v1127
  %v1867 = vpop.f32.mrf.mxu0
  %v1868 = vadd.f32 %v1675, %v1867
  %v1869 = vpop.f32.mrf.mxu0
  %v1870 = vadd.f32 %v1677, %v1869
  %1871 = vmatmul.bf16.gmra.mxu0 %v1130
  %v1872 = vpop.f32.mrf.mxu0
  %v1873 = vadd.f32 %v1680, %v1872
  %v1874 = vpop.f32.mrf.mxu0
  %v1875 = vadd.f32 %v1682, %v1874
  %1876 = vmatmul.bf16.gmra.mxu0 %v1133
  %v1877 = vpop.f32.mrf.mxu0
  %v1878 = vadd.f32 %v1685, %v1877
  %v1879 = vpop.f32.mrf.mxu0
  %v1880 = vadd.f32 %v1687, %v1879
  %1881 = vmatmul.bf16.gmra.mxu0 %v1136
  %v1882 = vpop.f32.mrf.mxu0
  %v1883 = vadd.f32 %v1690, %v1882
  %v1884 = vpop.f32.mrf.mxu0
  %v1885 = vadd.f32 %v1692, %v1884
  %1886 = vmatmul.bf16.gmra.mxu0 %v1139
  %v1887 = vpop.f32.mrf.mxu0
  %v1888 = vadd.f32 %v1695, %v1887
  %v1889 = vpop.f32.mrf.mxu0
  %v1890 = vadd.f32 %v1697, %v1889
  %1891 = vmatmul.bf16.gmra.mxu0 %v1142
  %v1892 = vpop.f32.mrf.mxu0
  %v1893 = vadd.f32 %v1700, %v1892
  %v1894 = vpop.f32.mrf.mxu0
  %v1895 = vadd.f32 %v1702, %v1894
  %1896 = vmatmul.bf16.gmra.mxu0 %v1145
  %v1897 = vpop.f32.mrf.mxu0
  %v1898 = vadd.f32 %v1705, %v1897
  %v1899 = vpop.f32.mrf.mxu0
  %v1900 = vadd.f32 %v1707, %v1899
  %1901 = vmatmul.bf16.gmra.mxu0 %v1148
  %v1902 = vpop.f32.mrf.mxu0
  %v1903 = vadd.f32 %v1710, %v1902
  %v1904 = vpop.f32.mrf.mxu0
  %v1905 = vadd.f32 %v1712, %v1904
  %1906 = vmatmul.bf16.gmra.mxu0 %v1151
  %v1907 = vpop.f32.mrf.mxu0
  %v1908 = vadd.f32 %v1715, %v1907
  %v1909 = vpop.f32.mrf.mxu0
  %v1910 = vadd.f32 %v1717, %v1909
  %1911 = vmatmul.bf16.gmra.mxu0 %v1154
  %v1912 = vpop.f32.mrf.mxu0
  %v1913 = vadd.f32 %v1720, %v1912
  %v1914 = vpop.f32.mrf.mxu0
  %v1915 = vadd.f32 %v1722, %v1914
  %1916 = vmatmul.bf16.gmra.mxu0 %v1157
  %v1917 = vpop.f32.mrf.mxu0
  %v1918 = vadd.f32 %v1725, %v1917
  %v1919 = vpop.f32.mrf.mxu0
  %v1920 = vadd.f32 %v1727, %v1919
  %1921 = vmatmul.bf16.gmra.mxu0 %v1160
  %v1922 = vpop.f32.mrf.mxu0
  %v1923 = vadd.f32 %v1730, %v1922
  %v1924 = vpop.f32.mrf.mxu0
  %v1925 = vadd.f32 %v1732, %v1924
  %1926 = vmatmul.bf16.gmra.mxu0 %v1163
  %v1927 = vpop.f32.mrf.mxu0
  %v1928 = vadd.f32 %v1735, %v1927
  %v1929 = vpop.f32.mrf.mxu0
  %v1930 = vadd.f32 %v1737, %v1929
  %1931 = vmatmul.bf16.gmra.mxu0 %v1166
  %v1932 = vpop.f32.mrf.mxu0
  %v1933 = vadd.f32 %v1740, %v1932
  %v1934 = vpop.f32.mrf.mxu0
  %v1935 = vadd.f32 %v1742, %v1934
  %1936 = vmatmul.bf16.gmra.mxu0 %v1169
  %v1937 = vpop.f32.mrf.mxu0
  %v1938 = vadd.f32 %v1745, %v1937
  %v1939 = vpop.f32.mrf.mxu0
  %v1940 = vadd.f32 %v1747, %v1939
  %1941 = vmatmul.bf16.gmra.mxu0 %v1172
  %v1942 = vpop.f32.mrf.mxu0
  %v1943 = vadd.f32 %v1750, %v1942
  %v1944 = vpop.f32.mrf.mxu0
  %1945 = vdwg.mxu0
  %v1946 = vmax.f32 %v1763, 0.0
  %v1947 = vmax.f32 %v1765, 0.0
  %v1948 = vmax.f32 %v1768, 0.0
  %v1949 = vmax.f32 %v1770, 0.0
  %v1950 = vmax.f32 %v1773, 0.0
  %v1951 = vmax.f32 %v1775, 0.0
  %v1952 = vmax.f32 %v1778, 0.0
  %v1953 = vmax.f32 %v1780, 0.0
  %v1954 = vmax.f32 %v1783, 0.0
  %v1955 = vmax.f32 %v1785, 0.0
  %v1956 = vmax.f32 %v1788, 0.0
  %v1957 = vmax.f32 %v1790, 0.0
  %v1958 = vmax.f32 %v1793, 0.0
  %v1959 = vmax.f32 %v1795, 0.0
  %v1960 = vmax.f32 %v1798, 0.0
  %v1961 = vmax.f32 %v1800, 0.0
  %v1962 = vmax.f32 %v1803, 0.0
  %v1963 = vmax.f32 %v1805, 0.0
  %v1964 = vmax.f32 %v1808, 0.0
  %v1965 = vmax.f32 %v1810, 0.0
  %v1966 = vmax.f32 %v1813, 0.0
  %v1967 = vmax.f32 %v1815, 0.0
  %v1968 = vmax.f32 %v1818, 0.0
  %v1969 = vmax.f32 %v1820, 0.0
  %v1970 = vmax.f32 %v1823, 0.0
  %v1971 = vmax.f32 %v1825, 0.0
  %v1972 = vmax.f32 %v1828, 0.0
  %v1973 = vmax.f32 %v1830, 0.0
  %v1974 = vmax.f32 %v1833, 0.0
  %v1975 = vmax.f32 %v1835, 0.0
  %v1976 = vmax.f32 %v1838, 0.0
  %v1977 = vmax.f32 %v1840, 0.0
  %v1978 = vmax.f32 %v1843, 0.0
  %v1979 = vmax.f32 %v1845, 0.0
  %v1980 = vmax.f32 %v1848, 0.0
  %v1981 = vmax.f32 %v1850, 0.0
  %v1982 = vmax.f32 %v1853, 0.0
  %v1983 = vmax.f32 %v1855, 0.0
  %v1984 = vmax.f32 %v1858, 0.0
  %v1985 = vmax.f32 %v1860, 0.0
  %v1986 = vmax.f32 %v1863, 0.0
  %v1987 = vmax.f32 %v1865, 0.0
  %v1988 = vmax.f32 %v1868, 0.0
  %v1989 = vmax.f32 %v1870, 0.0
  %v1990 = vmax.f32 %v1873, 0.0
  %v1991 = vmax.f32 %v1875, 0.0
  %v1992 = vmax.f32 %v1878, 0.0
  %v1993 = vmax.f32 %v1880, 0.0
  %v1994 = vmax.f32 %v1883, 0.0
  %v1995 = vmax.f32 %v1885, 0.0
  %v1996 = vmax.f32 %v1888, 0.0
  %v1997 = vmax.f32 %v1890, 0.0
  %v1998 = vmax.f32 %v1893, 0.0
  %v1999 = vmax.f32 %v1895, 0.0
  %v2000 = vmax.f32 %v1898, 0.0
  %v2001 = vmax.f32 %v1900, 0.0
  %v2002 = vmax.f32 %v1903, 0.0
  %v2003 = vmax.f32 %v1905, 0.0
  %v2004 = vmax.f32 %v1908, 0.0
  %v2005 = vmax.f32 %v1910, 0.0
  %v2006 = vmax.f32 %v1913, 0.0
  %v2007 = vmax.f32 %v1915, 0.0
  %v2008 = vmax.f32 %v1918, 0.0
  %v2009 = vmax.f32 %v1920, 0.0
  %v2010 = vmax.f32 %v1923, 0.0
  %v2011 = vmax.f32 %v1925, 0.0
  %v2012 = vmax.f32 %v1928, 0.0
  %v2013 = vmax.f32 %v1930, 0.0
  %v2014 = vmax.f32 %v1933, 0.0
  %v2015 = vmax.f32 %v1935, 0.0
  %v2016 = vmax.f32 %v1938, 0.0
  %v2017 = vmax.f32 %v1940, 0.0
  %v2018 = vmax.f32 %v1943, 0.0
  %vm2019 = vcmask 261120
  %2020 = vst.msk [vmem:[%s3] sm:$0xff] %vm2019, %v1946
  %2021 = vst.msk [vmem:[%s3 + $0x8] sm:$0xff] %vm2019, %v1947
  %2022 = vst.msk [vmem:[%s3 + $0x10] sm:$0xff] %vm2019, %v1948
  %2023 = vst.msk [vmem:[%s3 + $0x18] sm:$0xff] %vm2019, %v1949
  %2024 = vst.msk [vmem:[%s3 + $0x20] sm:$0xff] %vm2019, %v1950
  %2025 = vst.msk [vmem:[%s3 + $0x28] sm:$0xff] %vm2019, %v1951
  %2026 = vst.msk [vmem:[%s3 + $0x30] sm:$0xff] %vm2019, %v1952
  %2027 = vst.msk [vmem:[%s3 + $0x38] sm:$0xff] %vm2019, %v1953
  %2028 = vst.msk [vmem:[%s3 + $0x40] sm:$0xff] %vm2019, %v1954
  %2029 = vst.msk [vmem:[%s3 + $0x48] sm:$0xff] %vm2019, %v1955
  %2030 = vst.msk [vmem:[%s3 + $0x50] sm:$0xff] %vm2019, %v1956
  %2031 = vst.msk [vmem:[%s3 + $0x58] sm:$0xff] %vm2019, %v1957
  %2032 = vst.msk [vmem:[%s3 + $0x60] sm:$0xff] %vm2019, %v1958
  %2033 = vst.msk [vmem:[%s3 + $0x68] sm:$0xff] %vm2019, %v1959
  %2034 = vst.msk [vmem:[%s3 + $0x70] sm:$0xff] %vm2019, %v1960
  %2035 = vst.msk [vmem:[%s3 + $0x78] sm:$0xff] %vm2019, %v1961
  %2036 = vst.msk [vmem:[%s3 + $0x80] sm:$0xff] %vm2019, %v1962
  %2037 = vst.msk [vmem:[%s3 + $0x88] sm:$0xff] %vm2019, %v1963
  %2038 = vst.msk [vmem:[%s3 + $0x90] sm:$0xff] %vm2019, %v1964
  %2039 = vst.msk [vmem:[%s3 + $0x98] sm:$0xff] %vm2019, %v1965
  %2040 = vst.msk [vmem:[%s3 + $0xa0] sm:$0xff] %vm2019, %v1966
  %2041 = vst.msk [vmem:[%s3 + $0xa8] sm:$0xff] %vm2019, %v1967
  %2042 = vst.msk [vmem:[%s3 + $0xb0] sm:$0xff] %vm2019, %v1968
  %2043 = vst.msk [vmem:[%s3 + $0xb8] sm:$0xff] %vm2019, %v1969
  %2044 = vst.msk [vmem:[%s3 + $0xc0] sm:$0xff] %vm2019, %v1970
  %2045 = vst.msk [vmem:[%s3 + $0xc8] sm:$0xff] %vm2019, %v1971
  %2046 = vst.msk [vmem:[%s3 + $0xd0] sm:$0xff] %vm2019, %v1972
  %2047 = vst.msk [vmem:[%s3 + $0xd8] sm:$0xff] %vm2019, %v1973
  %2048 = vst.msk [vmem:[%s3 + $0xe0] sm:$0xff] %vm2019, %v1974
  %2049 = vst.msk [vmem:[%s3 + $0xe8] sm:$0xff] %vm2019, %v1975
  %2050 = vst.msk [vmem:[%s3 + $0xf0] sm:$0xff] %vm2019, %v1976
  %2051 = vst.msk [vmem:[%s3 + $0xf8] sm:$0xff] %vm2019, %v1977
  %2052 = vst.msk [vmem:[%s3 + $0x100] sm:$0xff] %vm2019, %v1978
  %2053 = vst.msk [vmem:[%s3 + $0x108] sm:$0xff] %vm2019, %v1979
  %2054 = vst.msk [vmem:[%s3 + $0x110] sm:$0xff] %vm2019, %v1980
  %2055 = vst.msk [vmem:[%s3 + $0x118] sm:$0xff] %vm2019, %v1981
  %2056 = vst.msk [vmem:[%s3 + $0x120] sm:$0xff] %vm2019, %v1982
  %2057 = vst.msk [vmem:[%s3 + $0x128] sm:$0xff] %vm2019, %v1983
  %2058 = vst.msk [vmem:[%s3 + $0x130] sm:$0xff] %vm2019, %v1984
  %2059 = vst.msk [vmem:[%s3 + $0x138] sm:$0xff] %vm2019, %v1985
  %2060 = vst.msk [vmem:[%s3 + $0x140] sm:$0xff] %vm2019, %v1986
  %2061 = vst.msk [vmem:[%s3 + $0x148] sm:$0xff] %vm2019, %v1987
  %2062 = vst.msk [vmem:[%s3 + $0x150] sm:$0xff] %vm2019, %v1988
  %2063 = vst.msk [vmem:[%s3 + $0x158] sm:$0xff] %vm2019, %v1989
  %2064 = vst.msk [vmem:[%s3 + $0x160] sm:$0xff] %vm2019, %v1990
  %2065 = vst.msk [vmem:[%s3 + $0x168] sm:$0xff] %vm2019, %v1991
  %2066 = vst.msk [vmem:[%s3 + $0x170] sm:$0xff] %vm2019, %v1992
  %2067 = vst.msk [vmem:[%s3 + $0x178] sm:$0xff] %vm2019, %v1993
  %2068 = vst.msk [vmem:[%s3 + $0x180] sm:$0xff] %vm2019, %v1994
  %2069 = vst.msk [vmem:[%s3 + $0x188] sm:$0xff] %vm2019, %v1995
  %2070 = vst.msk [vmem:[%s3 + $0x190] sm:$0xff] %vm2019, %v1996
  %2071 = vst.msk [vmem:[%s3 + $0x198] sm:$0xff] %vm2019, %v1997
  %2072 = vst.msk [vmem:[%s3 + $0x1a0] sm:$0xff] %vm2019, %v1998
  %2073 = vst.msk [vmem:[%s3 + $0x1a8] sm:$0xff] %vm2019, %v1999
  %2074 = vst.msk [vmem:[%s3 + $0x1b0] sm:$0xff] %vm2019, %v2000
  %2075 = vst.msk [vmem:[%s3 + $0x1b8] sm:$0xff] %vm2019, %v2001
  %2076 = vst.msk [vmem:[%s3 + $0x1c0] sm:$0xff] %vm2019, %v2002
  %2077 = vst.msk [vmem:[%s3 + $0x1c8] sm:$0xff] %vm2019, %v2003
  %2078 = vst.msk [vmem:[%s3 + $0x1d0] sm:$0xff] %vm2019, %v2004
  %2079 = vst.msk [vmem:[%s3 + $0x1d8] sm:$0xff] %vm2019, %v2005
  %2080 = vst.msk [vmem:[%s3 + $0x1e0] sm:$0xff] %vm2019, %v2006
  %2081 = vst.msk [vmem:[%s3 + $0x1e8] sm:$0xff] %vm2019, %v2007
  %2082 = vst.msk [vmem:[%s3 + $0x1f0] sm:$0xff] %vm2019, %v2008
  %2083 = vst.msk [vmem:[%s3 + $0x1f8] sm:$0xff] %vm2019, %v2009
  %2084 = vst.msk [vmem:[%s3 + $0x200] sm:$0xff] %vm2019, %v2010
  %2085 = vst.msk [vmem:[%s3 + $0x208] sm:$0xff] %vm2019, %v2011
  %2086 = vst.msk [vmem:[%s3 + $0x210] sm:$0xff] %vm2019, %v2012
  %2087 = vst.msk [vmem:[%s3 + $0x218] sm:$0xff] %vm2019, %v2013
  %2088 = vst.msk [vmem:[%s3 + $0x220] sm:$0xff] %vm2019, %v2014
  %2089 = vst.msk [vmem:[%s3 + $0x228] sm:$0xff] %vm2019, %v2015
  %2090 = vst.msk [vmem:[%s3 + $0x230] sm:$0xff] %vm2019, %v2016
  %2091 = vst.msk [vmem:[%s3 + $0x238] sm:$0xff] %vm2019, %v2017
  %vm2092 = vcmask 254976
  %2093 = vst.msk [vmem:[%s3 + $0x240] sm:$0x3] %vm2092, %v2018
  // Predicated region
  $region14: #{dqn_forward.5} parent=0 // pred_check
    _
  $region15: #{dqn_forward.5} parent=0 // pred_check_branch
    %2095 = sbr.rel (0) target = $region17
  $region16: #{dqn_forward.5} parent=0 // pred_region
    _
  $region17: #{dqn_forward.5} parent=0 // pred_fallthru
    _
  // Predicated region
  $region18: #{dqn_forward.5} parent=0 // pred_check
    _
  $region19: #{dqn_forward.5} parent=0 // pred_check_branch
    %2097 = sbr.rel (0) target = $region21
  $region20: #{dqn_forward.5} parent=0 // pred_region
    _
  $region21: #{dqn_forward.5} parent=0 // pred_fallthru
    _

// kernel: dqn_forward.6
$region0: #{dqn_forward.6}
  #allocation0 [shape = 'u32[]', space=smem, size = 0x4, offset = 0x4, fixed_abs, tag = 'smem constant byte address 0x4 - core index']
  #allocation1 [shape = 'u32[72,128]{1,0:T(1,128)}', space=vmem, size = 0x9000, scoped, tag = 'internal scratch']
  %s0 = inlined_call_operand.vmem [shape: bf16[98,800], index: 0, kind: input, shape index: {}]
  %s1 = inlined_call_operand.vmem [shape: bf16[800,32], index: 1, kind: input, shape index: {}]
  %s2 = inlined_call_operand.vmem [shape: f32[1,32], index: 2, kind: input, shape index: {}]
  %s3 = inlined_call_operand.vmem [shape: f32[98,32], index: 3, kind: output, shape index: {}]
  %s4 = sld [smem:[#allocation0]]
  $region22: #{dqn_forward.6} parent=0
    _
  %s6 = ssub.s32 1, %s4
  %s7 = scalar_select 0, %s6, %s4
  // Predicated region
  $region2: #{dqn_forward.6} parent=0 // pred_check
    _
  $region3: #{dqn_forward.6} parent=0 // pred_check_branch
    %9 = sbr.rel (0) target = $region5
  $region4: #{dqn_forward.6} parent=0 // pred_region
    _
  $region5: #{dqn_forward.6} parent=0 // pred_fallthru
    _
  // Predicated region
  $region6: #{dqn_forward.6} parent=0 // pred_check
    _
  $region7: #{dqn_forward.6} parent=0 // pred_check_branch
    %11 = sbr.rel (0) target = $region9
  $region8: #{dqn_forward.6} parent=0 // pred_region
    _
  $region9: #{dqn_forward.6} parent=0 // pred_fallthru
    _
  // Predicated region
  $region10: #{dqn_forward.6} parent=0 // pred_check
    _
  $region11: #{dqn_forward.6} parent=0 // pred_check_branch
    %13 = sbr.rel (0) target = $region13
  $region12: #{dqn_forward.6} parent=0 // pred_region
    _
  $region13: #{dqn_forward.6} parent=0 // pred_fallthru
    _
  %v15 = vld [vmem:[%s0] sm:$0xff]
  %v16 = vld [vmem:[%s0 + $0x8] sm:$0xff]
  %v17 = vld [vmem:[%s0 + $0x10] sm:$0xff]
  %v18 = vld [vmem:[%s0 + $0x18] sm:$0xf]
  %v19 = vld [vmem:[%s0 + $0x1c] sm:$0xff]
  %v20 = vld [vmem:[%s0 + $0x24] sm:$0xff]
  %v21 = vld [vmem:[%s0 + $0x2c] sm:$0xff]
  %v22 = vld [vmem:[%s0 + $0x34] sm:$0xf]
  %v23 = vld [vmem:[%s0 + $0x38] sm:$0xff]
  %v24 = vld [vmem:[%s0 + $0x40] sm:$0xff]
  %v25 = vld [vmem:[%s0 + $0x48] sm:$0xff]
  %v26 = vld [vmem:[%s0 + $0x50] sm:$0xf]
  %v27 = vld [vmem:[%s0 + $0x54] sm:$0xff]
  %v28 = vld [vmem:[%s0 + $0x5c] sm:$0xff]
  %v29 = vld [vmem:[%s0 + $0x64] sm:$0xff]
  %v30 = vld [vmem:[%s0 + $0x6c] sm:$0xf]
  %v31 = vld [vmem:[%s0 + $0x70] sm:$0xff]
  %v32 = vld [vmem:[%s0 + $0x78] sm:$0xff]
  %v33 = vld [vmem:[%s0 + $0x80] sm:$0xff]
  %v34 = vld [vmem:[%s0 + $0x88] sm:$0xf]
  %v35 = vld [vmem:[%s0 + $0x8c] sm:$0xff]
  %v36 = vld [vmem:[%s0 + $0x94] sm:$0xff]
  %v37 = vld [vmem:[%s0 + $0x9c] sm:$0xff]
  %v38 = vld [vmem:[%s0 + $0xa4] sm:$0xf]
  %v39 = vld [vmem:[%s0 + $0xa8] sm:$0xff]
  %v40 = vld [vmem:[%s0 + $0xb0] sm:$0xff]
  %v41 = vld [vmem:[%s0 + $0xb8] sm:$0xff]
  %v42 = vld [vmem:[%s0 + $0xc0] sm:$0xf]
  %v43 = vld [vmem:[%s0 + $0xc4] sm:$0xff]
  %v44 = vld [vmem:[%s0 + $0xcc] sm:$0xff]
  %v45 = vld [vmem:[%s0 + $0xd4] sm:$0xff]
  %v46 = vld [vmem:[%s0 + $0xdc] sm:$0xf]
  %v47 = vld [vmem:[%s0 + $0xe0] sm:$0xff]
  %v48 = vld [vmem:[%s0 + $0xe8] sm:$0xff]
  %v49 = vld [vmem:[%s0 + $0xf0] sm:$0xff]
  %v50 = vld [vmem:[%s0 + $0xf8] sm:$0xf]
  %v51 = vld [vmem:[%s0 + $0xfc] sm:$0xff]
  %v52 = vld [vmem:[%s0 + $0x104] sm:$0xff]
  %v53 = vld [vmem:[%s0 + $0x10c] sm:$0xff]
  %v54 = vld [vmem:[%s0 + $0x114] sm:$0xf]
  %v55 = vld [vmem:[%s0 + $0x118] sm:$0xff]
  %v56 = vld [vmem:[%s0 + $0x120] sm:$0xff]
  %v57 = vld [vmem:[%s0 + $0x128] sm:$0xff]
  %v58 = vld [vmem:[%s0 + $0x130] sm:$0xf]
  %v59 = vld [vmem:[%s0 + $0x134] sm:$0xff]
  %v60 = vld [vmem:[%s0 + $0x13c] sm:$0xff]
  %v61 = vld [vmem:[%s0 + $0x144] sm:$0xff]
  %v62 = vld [vmem:[%s0 + $0x14c] sm:$0xf]
  %v63 = vld [vmem:[%s0 + $0x150] sm:$0x11]
  %v64 = vld [vmem:[%s0 + $0x158] sm:$0x11]
  %v65 = vld [vmem:[%s0 + $0x160] sm:$0x11]
  %v66 = vld [vmem:[%s0 + $0x168] sm:$0x1]
  %v67 = vld [vmem:[%s1] sm:$0xf]
  %v68 = vld [vmem:[%s1 + $0x4] sm:$0xf]
  %v69 = vld [vmem:[%s1 + $0x8] sm:$0xf]
  %v70 = vld [vmem:[%s1 + $0xc] sm:$0xf]
  %v71 = vld [vmem:[%s1 + $0x10] sm:$0xf]
  %v72 = vld [vmem:[%s1 + $0x14] sm:$0xf]
  %v73 = vld [vmem:[%s1 + $0x18] sm:$0xf]
  %v74 = vld [vmem:[%s1 + $0x1c] sm:$0xf]
  %v75 = vld [vmem:[%s1 + $0x20] sm:$0xf]
  %v76 = vld [vmem:[%s1 + $0x24] sm:$0xf]
  %v77 = vld [vmem:[%s1 + $0x28] sm:$0xf]
  %v78 = vld [vmem:[%s1 + $0x2c] sm:$0xf]
  %v79 = vld [vmem:[%s1 + $0x30] sm:$0xf]
  %v80 = vld [vmem:[%s1 + $0x34] sm:$0xf]
  %v81 = vld [vmem:[%s1 + $0x38] sm:$0xf]
  %v82 = vld [vmem:[%s1 + $0x3c] sm:$0xf]
  %v83 = vld [vmem:[%s1 + $0x40] sm:$0xf]
  %v84 = vld [vmem:[%s1 + $0x44] sm:$0xf]
  %v85 = vld [vmem:[%s1 + $0x48] sm:$0xf]
  %v86 = vld [vmem:[%s1 + $0x4c] sm:$0xf]
  %v87 = vld [vmem:[%s1 + $0x50] sm:$0xf]
  %v88 = vld [vmem:[%s1 + $0x54] sm:$0xf]
  %v89 = vld [vmem:[%s1 + $0x58] sm:$0xf]
  %v90 = vld [vmem:[%s1 + $0x5c] sm:$0xf]
  %v91 = vld [vmem:[%s1 + $0x60] sm:$0xf]
  %v92 = vld [vmem:[%s1 + $0x64] sm:$0xf]
  %v93 = vld [vmem:[%s1 + $0x68] sm:$0xf]
  %v94 = vld [vmem:[%s1 + $0x6c] sm:$0xf]
  %v95 = vld [vmem:[%s1 + $0x70] sm:$0xf]
  %v96 = vld [vmem:[%s1 + $0x74] sm:$0xf]
  %v97 = vld [vmem:[%s1 + $0x78] sm:$0xf]
  %v98 = vld [vmem:[%s1 + $0x7c] sm:$0xf]
  %v99 = vld [vmem:[%s1 + $0x80] sm:$0xf]
  %v100 = vld [vmem:[%s1 + $0x84] sm:$0xf]
  %v101 = vld [vmem:[%s1 + $0x88] sm:$0xf]
  %v102 = vld [vmem:[%s1 + $0x8c] sm:$0xf]
  %v103 = vld [vmem:[%s1 + $0x90] sm:$0xf]
  %v104 = vld [vmem:[%s1 + $0x94] sm:$0xf]
  %v105 = vld [vmem:[%s1 + $0x98] sm:$0xf]
  %v106 = vld [vmem:[%s1 + $0x9c] sm:$0xf]
  %v107 = vld [vmem:[%s1 + $0xa0] sm:$0xf]
  %v108 = vld [vmem:[%s1 + $0xa4] sm:$0xf]
  %v109 = vld [vmem:[%s1 + $0xa8] sm:$0xf]
  %v110 = vld [vmem:[%s1 + $0xac] sm:$0xf]
  %v111 = vld [vmem:[%s1 + $0xb0] sm:$0xf]
  %v112 = vld [vmem:[%s1 + $0xb4] sm:$0xf]
  %v113 = vld [vmem:[%s1 + $0xb8] sm:$0xf]
  %v114 = vld [vmem:[%s1 + $0xbc] sm:$0xf]
  %v115 = vld [vmem:[%s1 + $0xc0] sm:$0xf]
  %v116 = vld [vmem:[%s1 + $0xc4] sm:$0xf]
  %v117 = vld [vmem:[%s1 + $0xc8] sm:$0xf]
  %v118 = vld [vmem:[%s1 + $0xcc] sm:$0xf]
  %v119 = vld [vmem:[%s1 + $0xd0] sm:$0xf]
  %v120 = vld [vmem:[%s1 + $0xd4] sm:$0xf]
  %v121 = vld [vmem:[%s1 + $0xd8] sm:$0xf]
  %v122 = vld [vmem:[%s1 + $0xdc] sm:$0xf]
  %v123 = vld [vmem:[%s1 + $0xe0] sm:$0xf]
  %v124 = vld [vmem:[%s1 + $0xe4] sm:$0xf]
  %v125 = vld [vmem:[%s1 + $0xe8] sm:$0xf]
  %v126 = vld [vmem:[%s1 + $0xec] sm:$0xf]
  %v127 = vld [vmem:[%s1 + $0xf0] sm:$0xf]
  %v128 = vld [vmem:[%s1 + $0xf4] sm:$0xf]
  %v129 = vld [vmem:[%s1 + $0xf8] sm:$0xf]
  %v130 = vld [vmem:[%s1 + $0xfc] sm:$0xf]
  %v131 = vld [vmem:[%s1 + $0x100] sm:$0xf]
  %v132 = vld [vmem:[%s1 + $0x104] sm:$0xf]
  %v133 = vld [vmem:[%s1 + $0x108] sm:$0xf]
  %v134 = vld [vmem:[%s1 + $0x10c] sm:$0xf]
  %v135 = vld [vmem:[%s1 + $0x110] sm:$0xf]
  %v136 = vld [vmem:[%s1 + $0x114] sm:$0xf]
  %v137 = vld [vmem:[%s1 + $0x118] sm:$0xf]
  %v138 = vld [vmem:[%s1 + $0x11c] sm:$0xf]
  %v139 = vld [vmem:[%s1 + $0x120] sm:$0xf]
  %v140 = vld [vmem:[%s1 + $0x124] sm:$0xf]
  %v141 = vld [vmem:[%s1 + $0x128] sm:$0xf]
  %v142 = vld [vmem:[%s1 + $0x12c] sm:$0xf]
  %v143 = vld [vmem:[%s1 + $0x130] sm:$0xf]
  %v144 = vld [vmem:[%s1 + $0x134] sm:$0xf]
  %v145 = vld [vmem:[%s1 + $0x138] sm:$0xf]
  %v146 = vld [vmem:[%s1 + $0x13c] sm:$0xf]
  %v147 = vld [vmem:[%s1 + $0x140] sm:$0xf]
  %v148 = vld [vmem:[%s1 + $0x144] sm:$0xf]
  %v149 = vld [vmem:[%s1 + $0x148] sm:$0xf]
  %v150 = vld [vmem:[%s1 + $0x14c] sm:$0xf]
  %v151 = vld [vmem:[%s1 + $0x150] sm:$0xf]
  %v152 = vld [vmem:[%s1 + $0x154] sm:$0xf]
  %v153 = vld [vmem:[%s1 + $0x158] sm:$0xf]
  %v154 = vld [vmem:[%s1 + $0x15c] sm:$0xf]
  %v155 = vld [vmem:[%s1 + $0x160] sm:$0xf]
  %v156 = vld [vmem:[%s1 + $0x164] sm:$0xf]
  %v157 = vld [vmem:[%s1 + $0x168] sm:$0xf]
  %v158 = vld [vmem:[%s1 + $0x16c] sm:$0xf]
  %v159 = vld [vmem:[%s1 + $0x170] sm:$0xf]
  %v160 = vld [vmem:[%s1 + $0x174] sm:$0xf]
  %v161 = vld [vmem:[%s1 + $0x178] sm:$0xf]
  %v162 = vld [vmem:[%s1 + $0x17c] sm:$0xf]
  %v163 = vld [vmem:[%s1 + $0x180] sm:$0xf]
  %v164 = vld [vmem:[%s1 + $0x184] sm:$0xf]
  %v165 = vld [vmem:[%s1 + $0x188] sm:$0xf]
  %v166 = vld [vmem:[%s1 + $0x18c] sm:$0xf]
  %v167 = vld [vmem:[%s2] sm:$0x1]
  %v169 = vperm.slane %v167, 0
  %v223 = vunpack.c.l.b16 %v15
  %v224 = vunpack.c.h.b16 %v15
  %v225 = vunpack.c.l.b16 %v16
  %v226 = vunpack.c.h.b16 %v16
  %v227 = vunpack.c.l.b16 %v17
  %v228 = vunpack.c.h.b16 %v17
  %v229 = vunpack.c.l.b16 %v18
  %v230 = vunpack.c.l.b16 %v19
  %v231 = vunpack.c.h.b16 %v19
  %v232 = vunpack.c.l.b16 %v20
  %v233 = vunpack.c.h.b16 %v20
  %v234 = vunpack.c.l.b16 %v21
  %v235 = vunpack.c.h.b16 %v21
  %v236 = vunpack.c.l.b16 %v22
  %v237 = vunpack.c.l.b16 %v23
  %v238 = vunpack.c.h.b16 %v23
  %v239 = vunpack.c.l.b16 %v24
  %v240 = vunpack.c.h.b16 %v24
  %v241 = vunpack.c.l.b16 %v25
  %v242 = vunpack.c.h.b16 %v25
  %v243 = vunpack.c.l.b16 %v26
  %v244 = vunpack.c.l.b16 %v27
  %v245 = vunpack.c.h.b16 %v27
  %v246 = vunpack.c.l.b16 %v28
  %v247 = vunpack.c.h.b16 %v28
  %v248 = vunpack.c.l.b16 %v29
  %v249 = vunpack.c.h.b16 %v29
  %v250 = vunpack.c.l.b16 %v30
  %v251 = vunpack.c.l.b16 %v31
  %v252 = vunpack.c.h.b16 %v31
  %v253 = vunpack.c.l.b16 %v32
  %v254 = vunpack.c.h.b16 %v32
  %v255 = vunpack.c.l.b16 %v33
  %v256 = vunpack.c.h.b16 %v33
  %v257 = vunpack.c.l.b16 %v34
  %v258 = vunpack.c.l.b16 %v35
  %v259 = vunpack.c.h.b16 %v35
  %v260 = vunpack.c.l.b16 %v36
  %v261 = vunpack.c.h.b16 %v36
  %v262 = vunpack.c.l.b16 %v37
  %v263 = vunpack.c.h.b16 %v37
  %v264 = vunpack.c.l.b16 %v38
  %v265 = vunpack.c.l.b16 %v39
  %v266 = vunpack.c.h.b16 %v39
  %v267 = vunpack.c.l.b16 %v40
  %v268 = vunpack.c.h.b16 %v40
  %v269 = vunpack.c.l.b16 %v41
  %v270 = vunpack.c.h.b16 %v41
  %v271 = vunpack.c.l.b16 %v42
  %v272 = vunpack.c.l.b16 %v43
  %v273 = vunpack.c.h.b16 %v43
  %v274 = vunpack.c.l.b16 %v44
  %v275 = vunpack.c.h.b16 %v44
  %v276 = vunpack.c.l.b16 %v45
  %v277 = vunpack.c.h.b16 %v45
  %v278 = vunpack.c.l.b16 %v46
  %v279 = vunpack.c.l.b16 %v47
  %v280 = vunpack.c.h.b16 %v47
  %v281 = vunpack.c.l.b16 %v48
  %v282 = vunpack.c.h.b16 %v48
  %v283 = vunpack.c.l.b16 %v49
  %v284 = vunpack.c.h.b16 %v49
  %v285 = vunpack.c.l.b16 %v50
  %v286 = vunpack.c.l.b16 %v51
  %v287 = vunpack.c.h.b16 %v51
  %v288 = vunpack.c.l.b16 %v52
  %v289 = vunpack.c.h.b16 %v52
  %v290 = vunpack.c.l.b16 %v53
  %v291 = vunpack.c.h.b16 %v53
  %v292 = vunpack.c.l.b16 %v54
  %v293 = vunpack.c.l.b16 %v55
  %v294 = vunpack.c.h.b16 %v55
  %v295 = vunpack.c.l.b16 %v56
  %v296 = vunpack.c.h.b16 %v56
  %v297 = vunpack.c.l.b16 %v57
  %v298 = vunpack.c.h.b16 %v57
  %v299 = vunpack.c.l.b16 %v58
  %v300 = vunpack.c.l.b16 %v59
  %v301 = vunpack.c.h.b16 %v59
  %v302 = vunpack.c.l.b16 %v60
  %v303 = vunpack.c.h.b16 %v60
  %v304 = vunpack.c.l.b16 %v61
  %v305 = vunpack.c.h.b16 %v61
  %v306 = vunpack.c.l.b16 %v62
  %v307 = vunpack.c.l.b16 %v63
  %v308 = vunpack.c.h.b16 %v63
  %v309 = vunpack.c.l.b16 %v64
  %v310 = vunpack.c.h.b16 %v64
  %v311 = vunpack.c.l.b16 %v65
  %v312 = vunpack.c.h.b16 %v65
  %v313 = vunpack.c.l.b16 %v66
  %v314 = vpack.c.b16 %v230, %v223
  %v315 = vpack.c.b16 %v231, %v224
  %v316 = vpack.c.b16 %v232, %v225
  %v317 = vpack.c.b16 %v233, %v226
  %v318 = vpack.c.b16 %v234, %v227
  %v319 = vpack.c.b16 %v235, %v228
  %v320 = vpack.c.b16 %v236, %v229
  %v321 = vpack.c.b16 %v244, %v237
  %v322 = vpack.c.b16 %v245, %v238
  %v323 = vpack.c.b16 %v246, %v239
  %v324 = vpack.c.b16 %v247, %v240
  %v325 = vpack.c.b16 %v248, %v241
  %v326 = vpack.c.b16 %v249, %v242
  %v327 = vpack.c.b16 %v250, %v243
  %v328 = vpack.c.b16 %v258, %v251
  %v329 = vpack.c.b16 %v259, %v252
  %v330 = vpack.c.b16 %v260, %v253
  %v331 = vpack.c.b16 %v261, %v254
  %v332 = vpack.c.b16 %v262, %v255
  %v333 = vpack.c.b16 %v263, %v256
  %v334 = vpack.c.b16 %v264, %v257
  %v335 = vpack.c.b16 %v272, %v265
  %v336 = vpack.c.b16 %v273, %v266
  %v337 = vpack.c.b16 %v274, %v267
  %v338 = vpack.c.b16 %v275, %v268
  %v339 = vpack.c.b16 %v276, %v269
  %v340 = vpack.c.b16 %v277, %v270
  %v341 = vpack.c.b16 %v278, %v271
  %v342 = vpack.c.b16 %v286, %v279
  %v343 = vpack.c.b16 %v287, %v280
  %v344 = vpack.c.b16 %v288, %v281
  %v345 = vpack.c.b16 %v289, %v282
  %v346 = vpack.c.b16 %v290, %v283
  %v347 = vpack.c.b16 %v291, %v284
  %v348 = vpack.c.b16 %v292, %v285
  %v349 = vpack.c.b16 %v300, %v293
  %v350 = vpack.c.b16 %v301, %v294
  %v351 = vpack.c.b16 %v302, %v295
  %v352 = vpack.c.b16 %v303, %v296
  %v353 = vpack.c.b16 %v304, %v297
  %v354 = vpack.c.b16 %v305, %v298
  %v355 = vpack.c.b16 %v306, %v299
  %v356 = vpack.c.b16 %v307, %v307
  %v357 = vpack.c.b16 %v308, %v308
  %v358 = vpack.c.b16 %v309, %v309
  %v359 = vpack.c.b16 %v310, %v310
  %v360 = vpack.c.b16 %v311, %v311
  %v361 = vpack.c.b16 %v312, %v312
  %v362 = vpack.c.b16 %v313, %v313
  %v505 = vunpack.c.l.b16 %v67
  %v506 = vunpack.c.l.b16 %v68
  %v507 = vunpack.c.l.b16 %v69
  %v508 = vunpack.c.l.b16 %v70
  %v509 = vunpack.c.l.b16 %v71
  %v510 = vunpack.c.l.b16 %v72
  %v511 = vunpack.c.l.b16 %v73
  %v512 = vunpack.c.l.b16 %v74
  %v513 = vunpack.c.l.b16 %v75
  %v514 = vunpack.c.l.b16 %v76
  %v515 = vunpack.c.l.b16 %v77
  %v516 = vunpack.c.l.b16 %v78
  %v517 = vunpack.c.l.b16 %v79
  %v518 = vunpack.c.l.b16 %v80
  %v519 = vunpack.c.l.b16 %v81
  %v520 = vunpack.c.l.b16 %v82
  %v521 = vunpack.c.l.b16 %v83
  %v522 = vunpack.c.l.b16 %v84
  %v523 = vunpack.c.l.b16 %v85
  %v524 = vunpack.c.l.b16 %v86
  %v525 = vunpack.c.l.b16 %v87
  %v526 = vunpack.c.l.b16 %v88
  %v527 = vunpack.c.l.b16 %v89
  %v528 = vunpack.c.l.b16 %v90
  %v529 = vunpack.c.l.b16 %v91
  %v530 = vunpack.c.l.b16 %v92
  %v531 = vunpack.c.l.b16 %v93
  %v532 = vunpack.c.l.b16 %v94
  %v533 = vunpack.c.l.b16 %v95
  %v534 = vunpack.c.l.b16 %v96
  %v535 = vunpack.c.l.b16 %v97
  %v536 = vunpack.c.l.b16 %v98
  %v537 = vunpack.c.l.b16 %v99
  %v538 = vunpack.c.l.b16 %v100
  %v539 = vunpack.c.l.b16 %v101
  %v540 = vunpack.c.l.b16 %v102
  %v541 = vunpack.c.l.b16 %v103
  %v542 = vunpack.c.l.b16 %v104
  %v543 = vunpack.c.l.b16 %v105
  %v544 = vunpack.c.l.b16 %v106
  %v545 = vunpack.c.l.b16 %v107
  %v546 = vunpack.c.l.b16 %v108
  %v547 = vunpack.c.l.b16 %v109
  %v548 = vunpack.c.l.b16 %v110
  %v549 = vunpack.c.l.b16 %v111
  %v550 = vunpack.c.l.b16 %v112
  %v551 = vunpack.c.l.b16 %v113
  %v552 = vunpack.c.l.b16 %v114
  %v553 = vunpack.c.l.b16 %v115
  %v554 = vunpack.c.l.b16 %v116
  %v555 = vunpack.c.l.b16 %v117
  %v556 = vunpack.c.l.b16 %v118
  %v557 = vunpack.c.l.b16 %v119
  %v558 = vunpack.c.l.b16 %v120
  %v559 = vunpack.c.l.b16 %v121
  %v560 = vunpack.c.l.b16 %v122
  %v561 = vunpack.c.l.b16 %v123
  %v562 = vunpack.c.l.b16 %v124
  %v563 = vunpack.c.l.b16 %v125
  %v564 = vunpack.c.l.b16 %v126
  %v565 = vunpack.c.l.b16 %v127
  %v566 = vunpack.c.l.b16 %v128
  %v567 = vunpack.c.l.b16 %v129
  %v568 = vunpack.c.l.b16 %v130
  %v569 = vunpack.c.l.b16 %v131
  %v570 = vunpack.c.l.b16 %v132
  %v571 = vunpack.c.l.b16 %v133
  %v572 = vunpack.c.l.b16 %v134
  %v573 = vunpack.c.l.b16 %v135
  %v574 = vunpack.c.l.b16 %v136
  %v575 = vunpack.c.l.b16 %v137
  %v576 = vunpack.c.l.b16 %v138
  %v577 = vunpack.c.l.b16 %v139
  %v578 = vunpack.c.l.b16 %v140
  %v579 = vunpack.c.l.b16 %v141
  %v580 = vunpack.c.l.b16 %v142
  %v581 = vunpack.c.l.b16 %v143
  %v582 = vunpack.c.l.b16 %v144
  %v583 = vunpack.c.l.b16 %v145
  %v584 = vunpack.c.l.b16 %v146
  %v585 = vunpack.c.l.b16 %v147
  %v586 = vunpack.c.l.b16 %v148
  %v587 = vunpack.c.l.b16 %v149
  %v588 = vunpack.c.l.b16 %v150
  %v589 = vunpack.c.l.b16 %v151
  %v590 = vunpack.c.l.b16 %v152
  %v591 = vunpack.c.l.b16 %v153
  %v592 = vunpack.c.l.b16 %v154
  %v593 = vunpack.c.l.b16 %v155
  %v594 = vunpack.c.l.b16 %v156
  %v595 = vunpack.c.l.b16 %v157
  %v596 = vunpack.c.l.b16 %v158
  %v597 = vunpack.c.l.b16 %v159
  %v598 = vunpack.c.l.b16 %v160
  %v599 = vunpack.c.l.b16 %v161
  %v600 = vunpack.c.l.b16 %v162
  %v601 = vunpack.c.l.b16 %v163
  %v602 = vunpack.c.l.b16 %v164
  %v603 = vunpack.c.l.b16 %v165
  %v604 = vunpack.c.l.b16 %v166
  %v605 = vpack.c.b16 %v506, %v505
  %v606 = vpack.c.b16 %v508, %v507
  %v607 = vpack.c.b16 %v510, %v509
  %v608 = vpack.c.b16 %v512, %v511
  %v609 = vpack.c.b16 %v514, %v513
  %v610 = vpack.c.b16 %v516, %v515
  %v611 = vpack.c.b16 %v518, %v517
  %v612 = vpack.c.b16 %v520, %v519
  %v613 = vpack.c.b16 %v522, %v521
  %v614 = vpack.c.b16 %v524, %v523
  %v615 = vpack.c.b16 %v526, %v525
  %v616 = vpack.c.b16 %v528, %v527
  %v617 = vpack.c.b16 %v530, %v529
  %v618 = vpack.c.b16 %v532, %v531
  %v619 = vpack.c.b16 %v534, %v533
  %v620 = vpack.c.b16 %v536, %v535
  %v621 = vpack.c.b16 %v538, %v537
  %v622 = vpack.c.b16 %v540, %v539
  %v623 = vpack.c.b16 %v542, %v541
  %v624 = vpack.c.b16 %v544, %v543
  %v625 = vpack.c.b16 %v546, %v545
  %v626 = vpack.c.b16 %v548, %v547
  %v627 = vpack.c.b16 %v550, %v549
  %v628 = vpack.c.b16 %v552, %v551
  %v629 = vpack.c.b16 %v554, %v553
  %v630 = vpack.c.b16 %v556, %v555
  %v631 = vpack.c.b16 %v558, %v557
  %v632 = vpack.c.b16 %v560, %v559
  %v633 = vpack.c.b16 %v562, %v561
  %v634 = vpack.c.b16 %v564, %v563
  %v635 = vpack.c.b16 %v566, %v565
  %v636 = vpack.c.b16 %v568, %v567
  %v637 = vpack.c.b16 %v570, %v569
  %v638 = vpack.c.b16 %v572, %v571
  %v639 = vpack.c.b16 %v574, %v573
  %v640 = vpack.c.b16 %v576, %v575
  %v641 = vpack.c.b16 %v578, %v577
  %v642 = vpack.c.b16 %v580, %v579
  %v643 = vpack.c.b16 %v582, %v581
  %v644 = vpack.c.b16 %v584, %v583
  %v645 = vpack.c.b16 %v586, %v585
  %v646 = vpack.c.b16 %v588, %v587
  %v647 = vpack.c.b16 %v590, %v589
  %v648 = vpack.c.b16 %v592, %v591
  %v649 = vpack.c.b16 %v594, %v593
  %v650 = vpack.c.b16 %v596, %v595
  %v651 = vpack.c.b16 %v598, %v597
  %v652 = vpack.c.b16 %v600, %v599
  %v653 = vpack.c.b16 %v602, %v601
  %v654 = vpack.c.b16 %v604, %v603
  %vm705 = vcmask 261120
  %v707 = vsel %vm705, %v320, 0
  %v710 = vsel %vm705, %v327, 0
  %v713 = vsel %vm705, %v334, 0
  %v716 = vsel %vm705, %v341, 0
  %v719 = vsel %vm705, %v348, 0
  %v722 = vsel %vm705, %v355, 0
  %v725 = vsel %vm705, %v362, 0
  %727 = vmatpush.bf16.msra.mxu0 %v612
  %728 = vmatpush.bf16.msra.mxu0 %v611
  %729 = vmatpush.bf16.msra.mxu0 %v610
  %730 = vmatpush.bf16.msra.mxu0 %v609
  %731 = vmatpush.bf16.msra.mxu0 %v608
  %732 = vmatpush.bf16.msra.mxu0 %v607
  %733 = vmatpush.bf16.msra.mxu0 %v606
  %734 = vmatpush.bf16.msra.mxu0 %v605
  %735 = vmatmul.bf16.gmra.mxu0 %v314
  %v736 = vpop.f32.mrf.mxu0
  %v737 = vadd.f32 %v169, %v736
  %v738 = vpop.f32.mrf.mxu0
  %v739 = vadd.f32 %v169, %v738
  %740 = vmatmul.bf16.gmra.mxu0 %v321
  %v741 = vpop.f32.mrf.mxu0
  %v742 = vadd.f32 %v169, %v741
  %v743 = vpop.f32.mrf.mxu0
  %v744 = vadd.f32 %v169, %v743
  %745 = vmatmul.bf16.gmra.mxu0 %v328
  %v746 = vpop.f32.mrf.mxu0
  %v747 = vadd.f32 %v169, %v746
  %v748 = vpop.f32.mrf.mxu0
  %v749 = vadd.f32 %v169, %v748
  %750 = vmatmul.bf16.gmra.mxu0 %v335
  %v751 = vpop.f32.mrf.mxu0
  %v752 = vadd.f32 %v169, %v751
  %v753 = vpop.f32.mrf.mxu0
  %v754 = vadd.f32 %v169, %v753
  %755 = vmatmul.bf16.gmra.mxu0 %v342
  %v756 = vpop.f32.mrf.mxu0
  %v757 = vadd.f32 %v169, %v756
  %v758 = vpop.f32.mrf.mxu0
  %v759 = vadd.f32 %v169, %v758
  %760 = vmatmul.bf16.gmra.mxu0 %v349
  %v761 = vpop.f32.mrf.mxu0
  %v762 = vadd.f32 %v169, %v761
  %v763 = vpop.f32.mrf.mxu0
  %v764 = vadd.f32 %v169, %v763
  %765 = vmatmul.bf16.gmra.mxu0 %v356
  %v766 = vpop.f32.mrf.mxu0
  %v767 = vadd.f32 %v169, %v766
  %v768 = vpop.f32.mrf.mxu0
  %769 = vdwg.mxu0
  %770 = vmatpush.bf16.msra.mxu0 %v620
  %771 = vmatpush.bf16.msra.mxu0 %v619
  %772 = vmatpush.bf16.msra.mxu0 %v618
  %773 = vmatpush.bf16.msra.mxu0 %v617
  %774 = vmatpush.bf16.msra.mxu0 %v616
  %775 = vmatpush.bf16.msra.mxu0 %v615
  %776 = vmatpush.bf16.msra.mxu0 %v614
  %777 = vmatpush.bf16.msra.mxu0 %v613
  %778 = vmatmul.bf16.gmra.mxu0 %v315
  %v779 = vpop.f32.mrf.mxu0
  %v780 = vadd.f32 %v737, %v779
  %v781 = vpop.f32.mrf.mxu0
  %v782 = vadd.f32 %v739, %v781
  %783 = vmatmul.bf16.gmra.mxu0 %v322
  %v784 = vpop.f32.mrf.mxu0
  %v785 = vadd.f32 %v742, %v784
  %v786 = vpop.f32.mrf.mxu0
  %v787 = vadd.f32 %v744, %v786
  %788 = vmatmul.bf16.gmra.mxu0 %v329
  %v789 = vpop.f32.mrf.mxu0
  %v790 = vadd.f32 %v747, %v789
  %v791 = vpop.f32.mrf.mxu0
  %v792 = vadd.f32 %v749, %v791
  %793 = vmatmul.bf16.gmra.mxu0 %v336
  %v794 = vpop.f32.mrf.mxu0
  %v795 = vadd.f32 %v752, %v794
  %v796 = vpop.f32.mrf.mxu0
  %v797 = vadd.f32 %v754, %v796
  %798 = vmatmul.bf16.gmra.mxu0 %v343
  %v799 = vpop.f32.mrf.mxu0
  %v800 = vadd.f32 %v757, %v799
  %v801 = vpop.f32.mrf.mxu0
  %v802 = vadd.f32 %v759, %v801
  %803 = vmatmul.bf16.gmra.mxu0 %v350
  %v804 = vpop.f32.mrf.mxu0
  %v805 = vadd.f32 %v762, %v804
  %v806 = vpop.f32.mrf.mxu0
  %v807 = vadd.f32 %v764, %v806
  %808 = vmatmul.bf16.gmra.mxu0 %v357
  %v809 = vpop.f32.mrf.mxu0
  %v810 = vadd.f32 %v767, %v809
  %v811 = vpop.f32.mrf.mxu0
  %812 = vdwg.mxu0
  %813 = vmatpush.bf16.msra.mxu0 %v628
  %814 = vmatpush.bf16.msra.mxu0 %v627
  %815 = vmatpush.bf16.msra.mxu0 %v626
  %816 = vmatpush.bf16.msra.mxu0 %v625
  %817 = vmatpush.bf16.msra.mxu0 %v624
  %818 = vmatpush.bf16.msra.mxu0 %v623
  %819 = vmatpush.bf16.msra.mxu0 %v622
  %820 = vmatpush.bf16.msra.mxu0 %v621
  %821 = vmatmul.bf16.gmra.mxu0 %v316
  %v822 = vpop.f32.mrf.mxu0
  %v823 = vadd.f32 %v780, %v822
  %v824 = vpop.f32.mrf.mxu0
  %v825 = vadd.f32 %v782, %v824
  %826 = vmatmul.bf16.gmra.mxu0 %v323
  %v827 = vpop.f32.mrf.mxu0
  %v828 = vadd.f32 %v785, %v827
  %v829 = vpop.f32.mrf.mxu0
  %v830 = vadd.f32 %v787, %v829
  %831 = vmatmul.bf16.gmra.mxu0 %v330
  %v832 = vpop.f32.mrf.mxu0
  %v833 = vadd.f32 %v790, %v832
  %v834 = vpop.f32.mrf.mxu0
  %v835 = vadd.f32 %v792, %v834
  %836 = vmatmul.bf16.gmra.mxu0 %v337
  %v837 = vpop.f32.mrf.mxu0
  %v838 = vadd.f32 %v795, %v837
  %v839 = vpop.f32.mrf.mxu0
  %v840 = vadd.f32 %v797, %v839
  %841 = vmatmul.bf16.gmra.mxu0 %v344
  %v842 = vpop.f32.mrf.mxu0
  %v843 = vadd.f32 %v800, %v842
  %v844 = vpop.f32.mrf.mxu0
  %v845 = vadd.f32 %v802, %v844
  %846 = vmatmul.bf16.gmra.mxu0 %v351
  %v847 = vpop.f32.mrf.mxu0
  %v848 = vadd.f32 %v805, %v847
  %v849 = vpop.f32.mrf.mxu0
  %v850 = vadd.f32 %v807, %v849
  %851 = vmatmul.bf16.gmra.mxu0 %v358
  %v852 = vpop.f32.mrf.mxu0
  %v853 = vadd.f32 %v810, %v852
  %v854 = vpop.f32.mrf.mxu0
  %855 = vdwg.mxu0
  %856 = vmatpush.bf16.msra.mxu0 %v636
  %857 = vmatpush.bf16.msra.mxu0 %v635
  %858 = vmatpush.bf16.msra.mxu0 %v634
  %859 = vmatpush.bf16.msra.mxu0 %v633
  %860 = vmatpush.bf16.msra.mxu0 %v632
  %861 = vmatpush.bf16.msra.mxu0 %v631
  %862 = vmatpush.bf16.msra.mxu0 %v630
  %863 = vmatpush.bf16.msra.mxu0 %v629
  %864 = vmatmul.bf16.gmra.mxu0 %v317
  %v865 = vpop.f32.mrf.mxu0
  %v866 = vadd.f32 %v823, %v865
  %v867 = vpop.f32.mrf.mxu0
  %v868 = vadd.f32 %v825, %v867
  %869 = vmatmul.bf16.gmra.mxu0 %v324
  %v870 = vpop.f32.mrf.mxu0
  %v871 = vadd.f32 %v828, %v870
  %v872 = vpop.f32.mrf.mxu0
  %v873 = vadd.f32 %v830, %v872
  %874 = vmatmul.bf16.gmra.mxu0 %v331
  %v875 = vpop.f32.mrf.mxu0
  %v876 = vadd.f32 %v833, %v875
  %v877 = vpop.f32.mrf.mxu0
  %v878 = vadd.f32 %v835, %v877
  %879 = vmatmul.bf16.gmra.mxu0 %v338
  %v880 = vpop.f32.mrf.mxu0
  %v881 = vadd.f32 %v838, %v880
  %v882 = vpop.f32.mrf.mxu0
  %v883 = vadd.f32 %v840, %v882
  %884 = vmatmul.bf16.gmra.mxu0 %v345
  %v885 = vpop.f32.mrf.mxu0
  %v886 = vadd.f32 %v843, %v885
  %v887 = vpop.f32.mrf.mxu0
  %v888 = vadd.f32 %v845, %v887
  %889 = vmatmul.bf16.gmra.mxu0 %v352
  %v890 = vpop.f32.mrf.mxu0
  %v891 = vadd.f32 %v848, %v890
  %v892 = vpop.f32.mrf.mxu0
  %v893 = vadd.f32 %v850, %v892
  %894 = vmatmul.bf16.gmra.mxu0 %v359
  %v895 = vpop.f32.mrf.mxu0
  %v896 = vadd.f32 %v853, %v895
  %v897 = vpop.f32.mrf.mxu0
  %898 = vdwg.mxu0
  %899 = vmatpush.bf16.msra.mxu0 %v644
  %900 = vmatpush.bf16.msra.mxu0 %v643
  %901 = vmatpush.bf16.msra.mxu0 %v642
  %902 = vmatpush.bf16.msra.mxu0 %v641
  %903 = vmatpush.bf16.msra.mxu0 %v640
  %904 = vmatpush.bf16.msra.mxu0 %v639
  %905 = vmatpush.bf16.msra.mxu0 %v638
  %906 = vmatpush.bf16.msra.mxu0 %v637
  %907 = vmatmul.bf16.gmra.mxu0 %v318
  %v908 = vpop.f32.mrf.mxu0
  %v909 = vadd.f32 %v866, %v908
  %v910 = vpop.f32.mrf.mxu0
  %v911 = vadd.f32 %v868, %v910
  %912 = vmatmul.bf16.gmra.mxu0 %v325
  %v913 = vpop.f32.mrf.mxu0
  %v914 = vadd.f32 %v871, %v913
  %v915 = vpop.f32.mrf.mxu0
  %v916 = vadd.f32 %v873, %v915
  %917 = vmatmul.bf16.gmra.mxu0 %v332
  %v918 = vpop.f32.mrf.mxu0
  %v919 = vadd.f32 %v876, %v918
  %v920 = vpop.f32.mrf.mxu0
  %v921 = vadd.f32 %v878, %v920
  %922 = vmatmul.bf16.gmra.mxu0 %v339
  %v923 = vpop.f32.mrf.mxu0
  %v924 = vadd.f32 %v881, %v923
  %v925 = vpop.f32.mrf.mxu0
  %v926 = vadd.f32 %v883, %v925
  %927 = vmatmul.bf16.gmra.mxu0 %v346
  %v928 = vpop.f32.mrf.mxu0
  %v929 = vadd.f32 %v886, %v928
  %v930 = vpop.f32.mrf.mxu0
  %v931 = vadd.f32 %v888, %v930
  %932 = vmatmul.bf16.gmra.mxu0 %v353
  %v933 = vpop.f32.mrf.mxu0
  %v934 = vadd.f32 %v891, %v933
  %v935 = vpop.f32.mrf.mxu0
  %v936 = vadd.f32 %v893, %v935
  %937 = vmatmul.bf16.gmra.mxu0 %v360
  %v938 = vpop.f32.mrf.mxu0
  %v939 = vadd.f32 %v896, %v938
  %v940 = vpop.f32.mrf.mxu0
  %941 = vdwg.mxu0
  %942 = vmatpush.bf16.msra.mxu0 %v652
  %943 = vmatpush.bf16.msra.mxu0 %v651
  %944 = vmatpush.bf16.msra.mxu0 %v650
  %945 = vmatpush.bf16.msra.mxu0 %v649
  %946 = vmatpush.bf16.msra.mxu0 %v648
  %947 = vmatpush.bf16.msra.mxu0 %v647
  %948 = vmatpush.bf16.msra.mxu0 %v646
  %949 = vmatpush.bf16.msra.mxu0 %v645
  %950 = vmatmul.bf16.gmra.mxu0 %v319
  %v951 = vpop.f32.mrf.mxu0
  %v952 = vadd.f32 %v909, %v951
  %v953 = vpop.f32.mrf.mxu0
  %v954 = vadd.f32 %v911, %v953
  %955 = vmatmul.bf16.gmra.mxu0 %v326
  %v956 = vpop.f32.mrf.mxu0
  %v957 = vadd.f32 %v914, %v956
  %v958 = vpop.f32.mrf.mxu0
  %v959 = vadd.f32 %v916, %v958
  %960 = vmatmul.bf16.gmra.mxu0 %v333
  %v961 = vpop.f32.mrf.mxu0
  %v962 = vadd.f32 %v919, %v961
  %v963 = vpop.f32.mrf.mxu0
  %v964 = vadd.f32 %v921, %v963
  %965 = vmatmul.bf16.gmra.mxu0 %v340
  %v966 = vpop.f32.mrf.mxu0
  %v967 = vadd.f32 %v924, %v966
  %v968 = vpop.f32.mrf.mxu0
  %v969 = vadd.f32 %v926, %v968
  %970 = vmatmul.bf16.gmra.mxu0 %v347
  %v971 = vpop.f32.mrf.mxu0
  %v972 = vadd.f32 %v929, %v971
  %v973 = vpop.f32.mrf.mxu0
  %v974 = vadd.f32 %v931, %v973
  %975 = vmatmul.bf16.gmra.mxu0 %v354
  %v976 = vpop.f32.mrf.mxu0
  %v977 = vadd.f32 %v934, %v976
  %v978 = vpop.f32.mrf.mxu0
  %v979 = vadd.f32 %v936, %v978
  %980 = vmatmul.bf16.gmra.mxu0 %v361
  %v981 = vpop.f32.mrf.mxu0
  %v982 = vadd.f32 %v939, %v981
  %v983 = vpop.f32.mrf.mxu0
  %984 = vdwg.mxu0
  %985 = vmatpush.bf16.msra.mxu0 0
  %986 = vmatpush.bf16.msra.mxu0 0
  %987 = vmatpush.bf16.msra.mxu0 0
  %988 = vmatpush.bf16.msra.mxu0 0
  %989 = vmatpush.bf16.msra.mxu0 0
  %990 = vmatpush.bf16.msra.mxu0 0
  %991 = vmatpush.bf16.msra.mxu0 %v654
  %992 = vmatpush.bf16.msra.mxu0 %v653
  %993 = vmatmul.bf16.gmra.mxu0 %v707
  %v994 = vpop.f32.mrf.mxu0
  %v995 = vadd.f32 %v952, %v994
  %v996 = vpop.f32.mrf.mxu0
  %v997 = vadd.f32 %v954, %v996
  %998 = vmatmul.bf16.gmra.mxu0 %v710
  %v999 = vpop.f32.mrf.mxu0
  %v1000 = vadd.f32 %v957, %v999
  %v1001 = vpop.f32.mrf.mxu0
  %v1002 = vadd.f32 %v959, %v1001
  %1003 = vmatmul.bf16.gmra.mxu0 %v713
  %v1004 = vpop.f32.mrf.mxu0
  %v1005 = vadd.f32 %v962, %v1004
  %v1006 = vpop.f32.mrf.mxu0
  %v1007 = vadd.f32 %v964, %v1006
  %1008 = vmatmul.bf16.gmra.mxu0 %v716
  %v1009 = vpop.f32.mrf.mxu0
  %v1010 = vadd.f32 %v967, %v1009
  %v1011 = vpop.f32.mrf.mxu0
  %v1012 = vadd.f32 %v969, %v1011
  %1013 = vmatmul.bf16.gmra.mxu0 %v719
  %v1014 = vpop.f32.mrf.mxu0
  %v1015 = vadd.f32 %v972, %v1014
  %v1016 = vpop.f32.mrf.mxu0
  %v1017 = vadd.f32 %v974, %v1016
  %1018 = vmatmul.bf16.gmra.mxu0 %v722
  %v1019 = vpop.f32.mrf.mxu0
  %v1020 = vadd.f32 %v977, %v1019
  %v1021 = vpop.f32.mrf.mxu0
  %v1022 = vadd.f32 %v979, %v1021
  %1023 = vmatmul.bf16.gmra.mxu0 %v725
  %v1024 = vpop.f32.mrf.mxu0
  %v1025 = vadd.f32 %v982, %v1024
  %v1026 = vpop.f32.mrf.mxu0
  %1027 = vdwg.mxu0
  %v1028 = vmax.f32 %v995, 0.0
  %v1029 = vmax.f32 %v997, 0.0
  %v1030 = vmax.f32 %v1000, 0.0
  %v1031 = vmax.f32 %v1002, 0.0
  %v1032 = vmax.f32 %v1005, 0.0
  %v1033 = vmax.f32 %v1007, 0.0
  %v1034 = vmax.f32 %v1010, 0.0
  %v1035 = vmax.f32 %v1012, 0.0
  %v1036 = vmax.f32 %v1015, 0.0
  %v1037 = vmax.f32 %v1017, 0.0
  %v1038 = vmax.f32 %v1020, 0.0
  %v1039 = vmax.f32 %v1022, 0.0
  %v1040 = vmax.f32 %v1025, 0.0
  %1041 = vst.msk [vmem:[%s3] sm:$0xff] %vm705, %v1028
  %1042 = vst.msk [vmem:[%s3 + $0x8] sm:$0xff] %vm705, %v1029
  %1043 = vst.msk [vmem:[%s3 + $0x10] sm:$0xff] %vm705, %v1030
  %1044 = vst.msk [vmem:[%s3 + $0x18] sm:$0xff] %vm705, %v1031
  %1045 = vst.msk [vmem:[%s3 + $0x20] sm:$0xff] %vm705, %v1032
  %1046 = vst.msk [vmem:[%s3 + $0x28] sm:$0xff] %vm705, %v1033
  %1047 = vst.msk [vmem:[%s3 + $0x30] sm:$0xff] %vm705, %v1034
  %1048 = vst.msk [vmem:[%s3 + $0x38] sm:$0xff] %vm705, %v1035
  %1049 = vst.msk [vmem:[%s3 + $0x40] sm:$0xff] %vm705, %v1036
  %1050 = vst.msk [vmem:[%s3 + $0x48] sm:$0xff] %vm705, %v1037
  %1051 = vst.msk [vmem:[%s3 + $0x50] sm:$0xff] %vm705, %v1038
  %1052 = vst.msk [vmem:[%s3 + $0x58] sm:$0xff] %vm705, %v1039
  %vm1053 = vcmask 254976
  %1054 = vst.msk [vmem:[%s3 + $0x60] sm:$0x3] %vm1053, %v1040
  // Predicated region
  $region14: #{dqn_forward.6} parent=0 // pred_check
    _
  $region15: #{dqn_forward.6} parent=0 // pred_check_branch
    %1056 = sbr.rel (0) target = $region17
  $region16: #{dqn_forward.6} parent=0 // pred_region
    _
  $region17: #{dqn_forward.6} parent=0 // pred_fallthru
    _
  // Predicated region
  $region18: #{dqn_forward.6} parent=0 // pred_check
    _
  $region19: #{dqn_forward.6} parent=0 // pred_check_branch
    %1058 = sbr.rel (0) target = $region21
  $region20: #{dqn_forward.6} parent=0 // pred_region
    _
  $region21: #{dqn_forward.6} parent=0 // pred_fallthru
    _

// kernel: dqn_forward.7
$region0: #{dqn_forward.7}
  #allocation0 [shape = 'u32[]', space=smem, size = 0x4, offset = 0x4, fixed_abs, tag = 'smem constant byte address 0x4 - core index']
  #allocation1 [shape = 'u32[72,128]{1,0:T(1,128)}', space=vmem, size = 0x9000, scoped, tag = 'internal scratch']
  %s0 = inlined_call_operand.vmem [shape: f32[2,1568], index: 0, kind: input, shape index: {}]
  %s1 = inlined_call_operand.vmem [shape: bf16[1568,256], index: 1, kind: input, shape index: {}]
  %s2 = inlined_call_operand.vmem [shape: f32[1,256], index: 2, kind: input, shape index: {}]
  %s3 = inlined_call_operand.vmem [shape: bf16[256,6], index: 3, kind: input, shape index: {}]
  %s4 = inlined_call_operand.vmem [shape: f32[1,6], index: 4, kind: input, shape index: {}]
  %s5 = inlined_call_operand.hbm [shape: f32[2,6], index: 5, kind: output, shape index: {}]
  %s6 = sld [smem:[#allocation0]]
  $region30: #{dqn_forward.7} parent=0
    _
  %s8 = ssub.s32 1, %s6
  %s9 = scalar_select 0, %s8, %s6
  $region1: #{dqn_forward.7} parent=0
    #allocation2 [shape = 'u8[1024]{0}', space=vmem, size = 0x400, scoped, tag = 'output window, operand 0, single buffered']
    #allocation3 [shape = 's32[1]{0}', space=sflag, size = 0x4, scoped, tag = 'scoped memory for dqn_forward.7']
    %10 = vsyncpa [#allocation3], 0
    // Predicated region
    $region2: #{dqn_forward.7} parent=1 // pred_check
      _
    $region3: #{dqn_forward.7} parent=1 // pred_check_branch
      %12 = sbr.rel (0) target = $region5
    $region4: #{dqn_forward.7} parent=1 // pred_region
      _
    $region5: #{dqn_forward.7} parent=1 // pred_fallthru
      _
    // Predicated region
    $region6: #{dqn_forward.7} parent=1 // pred_check
      _
    $region7: #{dqn_forward.7} parent=1 // pred_check_branch
      %14 = sbr.rel (0) target = $region9
    $region8: #{dqn_forward.7} parent=1 // pred_region
      _
    $region9: #{dqn_forward.7} parent=1 // pred_fallthru
      _
    // Predicated region
    $region10: #{dqn_forward.7} parent=1 // pred_check
      _
    $region11: #{dqn_forward.7} parent=1 // pred_check_branch
      %16 = sbr.rel (0) target = $region13
    $region12: #{dqn_forward.7} parent=1 // pred_region
      _
    $region13: #{dqn_forward.7} parent=1 // pred_fallthru
      _
    // Predicated region
    $region14: #{dqn_forward.7} parent=1 // pred_check
      _
    $region15: #{dqn_forward.7} parent=1 // pred_check_branch
      %18 = sbr.rel (0) target = $region17
    $region16: #{dqn_forward.7} parent=1 // pred_region
      _
    $region17: #{dqn_forward.7} parent=1 // pred_fallthru
      _
    // Predicated region
    $region18: #{dqn_forward.7} parent=1 // pred_check
      _
    $region19: #{dqn_forward.7} parent=1 // pred_check_branch
      %20 = sbr.rel (0) target = $region21
    $region20: #{dqn_forward.7} parent=1 // pred_region
      _
    $region21: #{dqn_forward.7} parent=1 // pred_fallthru
      _
    %v22 = vld [vmem:[%s0] sm:$0xff]
    %v23 = vld [vmem:[%s0 + $0x8] sm:$0xff]
    %v24 = vld [vmem:[%s0 + $0x10] sm:$0xff]
    %v25 = vld [vmem:[%s0 + $0x18] sm:$0x3]
    %30 = vst [vmem:[#allocation1] ss:$4 sm:$0xff] %v22
    %s31 = scalar_lea.vmem [#allocation1], 32
    %32 = vst [vmem:[%s31] ss:$4 sm:$0xff] %v23
    %v33 = vld.sshfl [vmem:[#allocation1] sm:$0xff pattern:$0x73625140]
    %v34 = vld.sshfl [vmem:[#allocation1 + $0x8] sm:$0xff pattern:$0x73625140]
    %v35 = vld.sshfl [vmem:[#allocation1 + $0x10] sm:$0xff pattern:$0x73625140]
    %v36 = vld.sshfl [vmem:[#allocation1 + $0x18] sm:$0xff pattern:$0x73625140]
    %v37 = vld.sshfl [vmem:[#allocation1 + $0x20] sm:$0xff pattern:$0x73625140]
    %v38 = vld.sshfl [vmem:[#allocation1 + $0x28] sm:$0xff pattern:$0x73625140]
    %v39 = vld.sshfl [vmem:[#allocation1 + $0x30] sm:$0xff pattern:$0x73625140]
    %v40 = vld.sshfl [vmem:[#allocation1 + $0x38] sm:$0xff pattern:$0x73625140]
    %41 = vst [vmem:[#allocation1] ss:$4 sm:$0xff] %v24
    %42 = vst [vmem:[%s31] ss:$4 sm:$0xff] %v25
    %v43 = vld.sshfl [vmem:[#allocation1] sm:$0xff pattern:$0x73625140]
    %v44 = vld.sshfl [vmem:[#allocation1 + $0x8] sm:$0xff pattern:$0x73625140]
    %v45 = vld.sshfl [vmem:[#allocation1 + $0x10] sm:$0xff pattern:$0x73625140]
    %v46 = vld.sshfl [vmem:[#allocation1 + $0x18] sm:$0xff pattern:$0x73625140]
    %v47 = vld.sshfl [vmem:[#allocation1 + $0x20] sm:$0xff pattern:$0x73625140]
    %v61 = vpack.c.bf16 %v33, %v33
    %v62 = vpack.c.bf16 %v34, %v34
    %v63 = vpack.c.bf16 %v35, %v35
    %v64 = vpack.c.bf16 %v36, %v36
    %v65 = vpack.c.bf16 %v37, %v37
    %v66 = vpack.c.bf16 %v38, %v38
    %v67 = vpack.c.bf16 %v39, %v39
    %v68 = vpack.c.bf16 %v40, %v40
    %v69 = vpack.c.bf16 %v43, %v43
    %v70 = vpack.c.bf16 %v44, %v44
    %v71 = vpack.c.bf16 %v45, %v45
    %v72 = vpack.c.bf16 %v46, %v46
    %v73 = vpack.c.bf16 %v47, %v47
    %v74 = vld [vmem:[%s1] sm:$0xff]
    %v75 = vld [vmem:[%s1 + $0x8] sm:$0xff]
    %v76 = vld [vmem:[%s1 + $0x10] sm:$0xff]
    %v77 = vld [vmem:[%s1 + $0x18] sm:$0xff]
    %v78 = vld [vmem:[%s1 + $0x20] sm:$0xff]
    %v79 = vld [vmem:[%s1 + $0x28] sm:$0xff]
    %v80 = vld [vmem:[%s1 + $0x30] sm:$0xff]
    %v81 = vld [vmem:[%s1 + $0x38] sm:$0xff]
    %v82 = vld [vmem:[%s1 + $0x40] sm:$0xff]
    %v83 = vld [vmem:[%s1 + $0x48] sm:$0xff]
    %v84 = vld [vmem:[%s1 + $0x50] sm:$0xff]
    %v85 = vld [vmem:[%s1 + $0x58] sm:$0xff]
    %v86 = vld [vmem:[%s1 + $0x60] sm:$0xff]
    %v87 = vld [vmem:[%s1 + $0x68] sm:$0xff]
    %v88 = vld [vmem:[%s1 + $0x70] sm:$0xff]
    %v89 = vld [vmem:[%s1 + $0x78] sm:$0xff]
    %v90 = vld [vmem:[%s1 + $0x80] sm:$0xff]
    %v91 = vld [vmem:[%s1 + $0x88] sm:$0xff]
    %v92 = vld [vmem:[%s1 + $0x90] sm:$0xff]
    %v93 = vld [vmem:[%s1 + $0x98] sm:$0xff]
    %v94 = vld [vmem:[%s1 + $0xa0] sm:$0xff]
    %v95 = vld [vmem:[%s1 + $0xa8] sm:$0xff]
    %v96 = vld [vmem:[%s1 + $0xb0] sm:$0xff]
    %v97 = vld [vmem:[%s1 + $0xb8] sm:$0xff]
    %v98 = vld [vmem:[%s1 + $0xc0] sm:$0xff]
    %v99 = vld [vmem:[%s1 + $0xc8] sm:$0xff]
    %v100 = vld [vmem:[%s1 + $0xd0] sm:$0xff]
    %v101 = vld [vmem:[%s1 + $0xd8] sm:$0xff]
    %v102 = vld [vmem:[%s1 + $0xe0] sm:$0xff]
    %v103 = vld [vmem:[%s1 + $0xe8] sm:$0xff]
    %v104 = vld [vmem:[%s1 + $0xf0] sm:$0xff]
    %v105 = vld [vmem:[%s1 + $0xf8] sm:$0xff]
    %v106 = vld [vmem:[%s1 + $0x100] sm:$0xff]
    %v107 = vld [vmem:[%s1 + $0x108] sm:$0xff]
    %v108 = vld [vmem:[%s1 + $0x110] sm:$0xff]
    %v109 = vld [vmem:[%s1 + $0x118] sm:$0xff]
    %v110 = vld [vmem:[%s1 + $0x120] sm:$0xff]
    %v111 = vld [vmem:[%s1 + $0x128] sm:$0xff]
    %v112 = vld [vmem:[%s1 + $0x130] sm:$0xff]
    %v113 = vld [vmem:[%s1 + $0x138] sm:$0xff]
    %v114 = vld [vmem:[%s1 + $0x140] sm:$0xff]
    %v115 = vld [vmem:[%s1 + $0x148] sm:$0xff]
    %v116 = vld [vmem:[%s1 + $0x150] sm:$0xff]
    %v117 = vld [vmem:[%s1 + $0x158] sm:$0xff]
    %v118 = vld [vmem:[%s1 + $0x160] sm:$0xff]
    %v119 = vld [vmem:[%s1 + $0x168] sm:$0xff]
    %v120 = vld [vmem:[%s1 + $0x170] sm:$0xff]
    %v121 = vld [vmem:[%s1 + $0x178] sm:$0xff]
    %v122 = vld [vmem:[%s1 + $0x180] sm:$0xff]
    %v123 = vld [vmem:[%s1 + $0x188] sm:$0xff]
    %v124 = vld [vmem:[%s1 + $0x190] sm:$0xff]
    %v125 = vld [vmem:[%s1 + $0x198] sm:$0xff]
    %v126 = vld [vmem:[%s1 + $0x1a0] sm:$0xff]
    %v127 = vld [vmem:[%s1 + $0x1a8] sm:$0xff]
    %v128 = vld [vmem:[%s1 + $0x1b0] sm:$0xff]
    %v129 = vld [vmem:[%s1 + $0x1b8] sm:$0xff]
    %v130 = vld [vmem:[%s1 + $0x1c0] sm:$0xff]
    %v131 = vld [vmem:[%s1 + $0x1c8] sm:$0xff]
    %v132 = vld [vmem:[%s1 + $0x1d0] sm:$0xff]
    %v133 = vld [vmem:[%s1 + $0x1d8] sm:$0xff]
    %v134 = vld [vmem:[%s1 + $0x1e0] sm:$0xff]
    %v135 = vld [vmem:[%s1 + $0x1e8] sm:$0xff]
    %v136 = vld [vmem:[%s1 + $0x1f0] sm:$0xff]
    %v137 = vld [vmem:[%s1 + $0x1f8] sm:$0xff]
    %v138 = vld [vmem:[%s1 + $0x200] sm:$0xff]
    %v139 = vld [vmem:[%s1 + $0x208] sm:$0xff]
    %v140 = vld [vmem:[%s1 + $0x210] sm:$0xff]
    %v141 = vld [vmem:[%s1 + $0x218] sm:$0xff]
    %v142 = vld [vmem:[%s1 + $0x220] sm:$0xff]
    %v143 = vld [vmem:[%s1 + $0x228] sm:$0xff]
    %v144 = vld [vmem:[%s1 + $0x230] sm:$0xff]
    %v145 = vld [vmem:[%s1 + $0x238] sm:$0xff]
    %v146 = vld [vmem:[%s1 + $0x240] sm:$0xff]
    %v147 = vld [vmem:[%s1 + $0x248] sm:$0xff]
    %v148 = vld [vmem:[%s1 + $0x250] sm:$0xff]
    %v149 = vld [vmem:[%s1 + $0x258] sm:$0xff]
    %v150 = vld [vmem:[%s1 + $0x260] sm:$0xff]
    %v151 = vld [vmem:[%s1 + $0x268] sm:$0xff]
    %v152 = vld [vmem:[%s1 + $0x270] sm:$0xff]
    %v153 = vld [vmem:[%s1 + $0x278] sm:$0xff]
    %v154 = vld [vmem:[%s1 + $0x280] sm:$0xff]
    %v155 = vld [vmem:[%s1 + $0x288] sm:$0xff]
    %v156 = vld [vmem:[%s1 + $0x290] sm:$0xff]
    %v157 = vld [vmem:[%s1 + $0x298] sm:$0xff]
    %v158 = vld [vmem:[%s1 + $0x2a0] sm:$0xff]
    %v159 = vld [vmem:[%s1 + $0x2a8] sm:$0xff]
    %v160 = vld [vmem:[%s1 + $0x2b0] sm:$0xff]
    %v161 = vld [vmem:[%s1 + $0x2b8] sm:$0xff]
    %v162 = vld [vmem:[%s1 + $0x2c0] sm:$0xff]
    %v163 = vld [vmem:[%s1 + $0x2c8] sm:$0xff]
    %v164 = vld [vmem:[%s1 + $0x2d0] sm:$0xff]
    %v165 = vld [vmem:[%s1 + $0x2d8] sm:$0xff]
    %v166 = vld [vmem:[%s1 + $0x2e0] sm:$0xff]
    %v167 = vld [vmem:[%s1 + $0x2e8] sm:$0xff]
    %v168 = vld [vmem:[%s1 + $0x2f0] sm:$0xff]
    %v169 = vld [vmem:[%s1 + $0x2f8] sm:$0xff]
    %v170 = vld [vmem:[%s1 + $0x300] sm:$0xff]
    %v171 = vld [vmem:[%s1 + $0x308] sm:$0xff]
    %v172 = vld [vmem:[%s1 + $0x310] sm:$0xff]
    %v173 = vld [vmem:[%s1 + $0x318] sm:$0xff]
    %v174 = vld [vmem:[%s1 + $0x320] sm:$0xff]
    %v175 = vld [vmem:[%s1 + $0x328] sm:$0xff]
    %v176 = vld [vmem:[%s1 + $0x330] sm:$0xff]
    %v177 = vld [vmem:[%s1 + $0x338] sm:$0xff]
    %v178 = vld [vmem:[%s1 + $0x340] sm:$0xff]
    %v179 = vld [vmem:[%s1 + $0x348] sm:$0xff]
    %v180 = vld [vmem:[%s1 + $0x350] sm:$0xff]
    %v181 = vld [vmem:[%s1 + $0x358] sm:$0xff]
    %v182 = vld [vmem:[%s1 + $0x360] sm:$0xff]
    %v183 = vld [vmem:[%s1 + $0x368] sm:$0xff]
    %v184 = vld [vmem:[%s1 + $0x370] sm:$0xff]
    %v185 = vld [vmem:[%s1 + $0x378] sm:$0xff]
    %v186 = vld [vmem:[%s1 + $0x380] sm:$0xff]
    %v187 = vld [vmem:[%s1 + $0x388] sm:$0xff]
    %v188 = vld [vmem:[%s1 + $0x390] sm:$0xff]
    %v189 = vld [vmem:[%s1 + $0x398] sm:$0xff]
    %v190 = vld [vmem:[%s1 + $0x3a0] sm:$0xff]
    %v191 = vld [vmem:[%s1 + $0x3a8] sm:$0xff]
    %v192 = vld [vmem:[%s1 + $0x3b0] sm:$0xff]
    %v193 = vld [vmem:[%s1 + $0x3b8] sm:$0xff]
    %v194 = vld [vmem:[%s1 + $0x3c0] sm:$0xff]
    %v195 = vld [vmem:[%s1 + $0x3c8] sm:$0xff]
    %v196 = vld [vmem:[%s1 + $0x3d0] sm:$0xff]
    %v197 = vld [vmem:[%s1 + $0x3d8] sm:$0xff]
    %v198 = vld [vmem:[%s1 + $0x3e0] sm:$0xff]
    %v199 = vld [vmem:[%s1 + $0x3e8] sm:$0xff]
    %v200 = vld [vmem:[%s1 + $0x3f0] sm:$0xff]
    %v201 = vld [vmem:[%s1 + $0x3f8] sm:$0xff]
    %v202 = vld [vmem:[%s1 + $0x400] sm:$0xff]
    %v203 = vld [vmem:[%s1 + $0x408] sm:$0xff]
    %v204 = vld [vmem:[%s1 + $0x410] sm:$0xff]
    %v205 = vld [vmem:[%s1 + $0x418] sm:$0xff]
    %v206 = vld [vmem:[%s1 + $0x420] sm:$0xff]
    %v207 = vld [vmem:[%s1 + $0x428] sm:$0xff]
    %v208 = vld [vmem:[%s1 + $0x430] sm:$0xff]
    %v209 = vld [vmem:[%s1 + $0x438] sm:$0xff]
    %v210 = vld [vmem:[%s1 + $0x440] sm:$0xff]
    %v211 = vld [vmem:[%s1 + $0x448] sm:$0xff]
    %v212 = vld [vmem:[%s1 + $0x450] sm:$0xff]
    %v213 = vld [vmem:[%s1 + $0x458] sm:$0xff]
    %v214 = vld [vmem:[%s1 + $0x460] sm:$0xff]
    %v215 = vld [vmem:[%s1 + $0x468] sm:$0xff]
    %v216 = vld [vmem:[%s1 + $0x470] sm:$0xff]
    %v217 = vld [vmem:[%s1 + $0x478] sm:$0xff]
    %v218 = vld [vmem:[%s1 + $0x480] sm:$0xff]
    %v219 = vld [vmem:[%s1 + $0x488] sm:$0xff]
    %v220 = vld [vmem:[%s1 + $0x490] sm:$0xff]
    %v221 = vld [vmem:[%s1 + $0x498] sm:$0xff]
    %v222 = vld [vmem:[%s1 + $0x4a0] sm:$0xff]
    %v223 = vld [vmem:[%s1 + $0x4a8] sm:$0xff]
    %v224 = vld [vmem:[%s1 + $0x4b0] sm:$0xff]
    %v225 = vld [vmem:[%s1 + $0x4b8] sm:$0xff]
    %v226 = vld [vmem:[%s1 + $0x4c0] sm:$0xff]
    %v227 = vld [vmem:[%s1 + $0x4c8] sm:$0xff]
    %v228 = vld [vmem:[%s1 + $0x4d0] sm:$0xff]
    %v229 = vld [vmem:[%s1 + $0x4d8] sm:$0xff]
    %v230 = vld [vmem:[%s1 + $0x4e0] sm:$0xff]
    %v231 = vld [vmem:[%s1 + $0x4e8] sm:$0xff]
    %v232 = vld [vmem:[%s1 + $0x4f0] sm:$0xff]
    %v233 = vld [vmem:[%s1 + $0x4f8] sm:$0xff]
    %v234 = vld [vmem:[%s1 + $0x500] sm:$0xff]
    %v235 = vld [vmem:[%s1 + $0x508] sm:$0xff]
    %v236 = vld [vmem:[%s1 + $0x510] sm:$0xff]
    %v237 = vld [vmem:[%s1 + $0x518] sm:$0xff]
    %v238 = vld [vmem:[%s1 + $0x520] sm:$0xff]
    %v239 = vld [vmem:[%s1 + $0x528] sm:$0xff]
    %v240 = vld [vmem:[%s1 + $0x530] sm:$0xff]
    %v241 = vld [vmem:[%s1 + $0x538] sm:$0xff]
    %v242 = vld [vmem:[%s1 + $0x540] sm:$0xff]
    %v243 = vld [vmem:[%s1 + $0x548] sm:$0xff]
    %v244 = vld [vmem:[%s1 + $0x550] sm:$0xff]
    %v245 = vld [vmem:[%s1 + $0x558] sm:$0xff]
    %v246 = vld [vmem:[%s1 + $0x560] sm:$0xff]
    %v247 = vld [vmem:[%s1 + $0x568] sm:$0xff]
    %v248 = vld [vmem:[%s1 + $0x570] sm:$0xff]
    %v249 = vld [vmem:[%s1 + $0x578] sm:$0xff]
    %v250 = vld [vmem:[%s1 + $0x580] sm:$0xff]
    %v251 = vld [vmem:[%s1 + $0x588] sm:$0xff]
    %v252 = vld [vmem:[%s1 + $0x590] sm:$0xff]
    %v253 = vld [vmem:[%s1 + $0x598] sm:$0xff]
    %v254 = vld [vmem:[%s1 + $0x5a0] sm:$0xff]
    %v255 = vld [vmem:[%s1 + $0x5a8] sm:$0xff]
    %v256 = vld [vmem:[%s1 + $0x5b0] sm:$0xff]
    %v257 = vld [vmem:[%s1 + $0x5b8] sm:$0xff]
    %v258 = vld [vmem:[%s1 + $0x5c0] sm:$0xff]
    %v259 = vld [vmem:[%s1 + $0x5c8] sm:$0xff]
    %v260 = vld [vmem:[%s1 + $0x5d0] sm:$0xff]
    %v261 = vld [vmem:[%s1 + $0x5d8] sm:$0xff]
    %v262 = vld [vmem:[%s1 + $0x5e0] sm:$0xff]
    %v263 = vld [vmem:[%s1 + $0x5e8] sm:$0xff]
    %v264 = vld [vmem:[%s1 + $0x5f0] sm:$0xff]
    %v265 = vld [vmem:[%s1 + $0x5f8] sm:$0xff]
    %v266 = vld [vmem:[%s1 + $0x600] sm:$0xff]
    %v267 = vld [vmem:[%s1 + $0x608] sm:$0xff]
    %v268 = vld [vmem:[%s1 + $0x610] sm:$0xff]
    %v269 = vld [vmem:[%s1 + $0x618] sm:$0xff]
    %v270 = vld [vmem:[%s2] sm:$0x3]
    %v272 = vperm.slane %v270, 0
    %v273 = vperm.slane %v270, 1
    %v472 = vunpack.c.l.b16 %v74
    %v473 = vunpack.c.h.b16 %v74
    %v474 = vunpack.c.l.b16 %v75
    %v475 = vunpack.c.h.b16 %v75
    %v476 = vunpack.c.l.b16 %v76
    %v477 = vunpack.c.h.b16 %v76
    %v478 = vunpack.c.l.b16 %v77
    %v479 = vunpack.c.h.b16 %v77
    %v480 = vunpack.c.l.b16 %v78
    %v481 = vunpack.c.h.b16 %v78
    %v482 = vunpack.c.l.b16 %v79
    %v483 = vunpack.c.h.b16 %v79
    %v484 = vunpack.c.l.b16 %v80
    %v485 = vunpack.c.h.b16 %v80
    %v486 = vunpack.c.l.b16 %v81
    %v487 = vunpack.c.h.b16 %v81
    %v488 = vunpack.c.l.b16 %v82
    %v489 = vunpack.c.h.b16 %v82
    %v490 = vunpack.c.l.b16 %v83
    %v491 = vunpack.c.h.b16 %v83
    %v492 = vunpack.c.l.b16 %v84
    %v493 = vunpack.c.h.b16 %v84
    %v494 = vunpack.c.l.b16 %v85
    %v495 = vunpack.c.h.b16 %v85
    %v496 = vunpack.c.l.b16 %v86
    %v497 = vunpack.c.h.b16 %v86
    %v498 = vunpack.c.l.b16 %v87
    %v499 = vunpack.c.h.b16 %v87
    %v500 = vunpack.c.l.b16 %v88
    %v501 = vunpack.c.h.b16 %v88
    %v502 = vunpack.c.l.b16 %v89
    %v503 = vunpack.c.h.b16 %v89
    %v504 = vunpack.c.l.b16 %v90
    %v505 = vunpack.c.h.b16 %v90
    %v506 = vunpack.c.l.b16 %v91
    %v507 = vunpack.c.h.b16 %v91
    %v508 = vunpack.c.l.b16 %v92
    %v509 = vunpack.c.h.b16 %v92
    %v510 = vunpack.c.l.b16 %v93
    %v511 = vunpack.c.h.b16 %v93
    %v512 = vunpack.c.l.b16 %v94
    %v513 = vunpack.c.h.b16 %v94
    %v514 = vunpack.c.l.b16 %v95
    %v515 = vunpack.c.h.b16 %v95
    %v516 = vunpack.c.l.b16 %v96
    %v517 = vunpack.c.h.b16 %v96
    %v518 = vunpack.c.l.b16 %v97
    %v519 = vunpack.c.h.b16 %v97
    %v520 = vunpack.c.l.b16 %v98
    %v521 = vunpack.c.h.b16 %v98
    %v522 = vunpack.c.l.b16 %v99
    %v523 = vunpack.c.h.b16 %v99
    %v524 = vunpack.c.l.b16 %v100
    %v525 = vunpack.c.h.b16 %v100
    %v526 = vunpack.c.l.b16 %v101
    %v527 = vunpack.c.h.b16 %v101
    %v528 = vunpack.c.l.b16 %v102
    %v529 = vunpack.c.h.b16 %v102
    %v530 = vunpack.c.l.b16 %v103
    %v531 = vunpack.c.h.b16 %v103
    %v532 = vunpack.c.l.b16 %v104
    %v533 = vunpack.c.h.b16 %v104
    %v534 = vunpack.c.l.b16 %v105
    %v535 = vunpack.c.h.b16 %v105
    %v536 = vunpack.c.l.b16 %v106
    %v537 = vunpack.c.h.b16 %v106
    %v538 = vunpack.c.l.b16 %v107
    %v539 = vunpack.c.h.b16 %v107
    %v540 = vunpack.c.l.b16 %v108
    %v541 = vunpack.c.h.b16 %v108
    %v542 = vunpack.c.l.b16 %v109
    %v543 = vunpack.c.h.b16 %v109
    %v544 = vunpack.c.l.b16 %v110
    %v545 = vunpack.c.h.b16 %v110
    %v546 = vunpack.c.l.b16 %v111
    %v547 = vunpack.c.h.b16 %v111
    %v548 = vunpack.c.l.b16 %v112
    %v549 = vunpack.c.h.b16 %v112
    %v550 = vunpack.c.l.b16 %v113
    %v551 = vunpack.c.h.b16 %v113
    %v552 = vunpack.c.l.b16 %v114
    %v553 = vunpack.c.h.b16 %v114
    %v554 = vunpack.c.l.b16 %v115
    %v555 = vunpack.c.h.b16 %v115
    %v556 = vunpack.c.l.b16 %v116
    %v557 = vunpack.c.h.b16 %v116
    %v558 = vunpack.c.l.b16 %v117
    %v559 = vunpack.c.h.b16 %v117
    %v560 = vunpack.c.l.b16 %v118
    %v561 = vunpack.c.h.b16 %v118
    %v562 = vunpack.c.l.b16 %v119
    %v563 = vunpack.c.h.b16 %v119
    %v564 = vunpack.c.l.b16 %v120
    %v565 = vunpack.c.h.b16 %v120
    %v566 = vunpack.c.l.b16 %v121
    %v567 = vunpack.c.h.b16 %v121
    %v568 = vunpack.c.l.b16 %v122
    %v569 = vunpack.c.h.b16 %v122
    %v570 = vunpack.c.l.b16 %v123
    %v571 = vunpack.c.h.b16 %v123
    %v572 = vunpack.c.l.b16 %v124
    %v573 = vunpack.c.h.b16 %v124
    %v574 = vunpack.c.l.b16 %v125
    %v575 = vunpack.c.h.b16 %v125
    %v576 = vunpack.c.l.b16 %v126
    %v577 = vunpack.c.h.b16 %v126
    %v578 = vunpack.c.l.b16 %v127
    %v579 = vunpack.c.h.b16 %v127
    %v580 = vunpack.c.l.b16 %v128
    %v581 = vunpack.c.h.b16 %v128
    %v582 = vunpack.c.l.b16 %v129
    %v583 = vunpack.c.h.b16 %v129
    %v584 = vunpack.c.l.b16 %v130
    %v585 = vunpack.c.h.b16 %v130
    %v586 = vunpack.c.l.b16 %v131
    %v587 = vunpack.c.h.b16 %v131
    %v588 = vunpack.c.l.b16 %v132
    %v589 = vunpack.c.h.b16 %v132
    %v590 = vunpack.c.l.b16 %v133
    %v591 = vunpack.c.h.b16 %v133
    %v592 = vunpack.c.l.b16 %v134
    %v593 = vunpack.c.h.b16 %v134
    %v594 = vunpack.c.l.b16 %v135
    %v595 = vunpack.c.h.b16 %v135
    %v596 = vunpack.c.l.b16 %v136
    %v597 = vunpack.c.h.b16 %v136
    %v598 = vunpack.c.l.b16 %v137
    %v599 = vunpack.c.h.b16 %v137
    %v600 = vunpack.c.l.b16 %v138
    %v601 = vunpack.c.h.b16 %v138
    %v602 = vunpack.c.l.b16 %v139
    %v603 = vunpack.c.h.b16 %v139
    %v604 = vunpack.c.l.b16 %v140
    %v605 = vunpack.c.h.b16 %v140
    %v606 = vunpack.c.l.b16 %v141
    %v607 = vunpack.c.h.b16 %v141
    %v608 = vunpack.c.l.b16 %v142
    %v609 = vunpack.c.h.b16 %v142
    %v610 = vunpack.c.l.b16 %v143
    %v611 = vunpack.c.h.b16 %v143
    %v612 = vunpack.c.l.b16 %v144
    %v613 = vunpack.c.h.b16 %v144
    %v614 = vunpack.c.l.b16 %v145
    %v615 = vunpack.c.h.b16 %v145
    %v616 = vunpack.c.l.b16 %v146
    %v617 = vunpack.c.h.b16 %v146
    %v618 = vunpack.c.l.b16 %v147
    %v619 = vunpack.c.h.b16 %v147
    %v620 = vunpack.c.l.b16 %v148
    %v621 = vunpack.c.h.b16 %v148
    %v622 = vunpack.c.l.b16 %v149
    %v623 = vunpack.c.h.b16 %v149
    %v624 = vunpack.c.l.b16 %v150
    %v625 = vunpack.c.h.b16 %v150
    %v626 = vunpack.c.l.b16 %v151
    %v627 = vunpack.c.h.b16 %v151
    %v628 = vunpack.c.l.b16 %v152
    %v629 = vunpack.c.h.b16 %v152
    %v630 = vunpack.c.l.b16 %v153
    %v631 = vunpack.c.h.b16 %v153
    %v632 = vunpack.c.l.b16 %v154
    %v633 = vunpack.c.h.b16 %v154
    %v634 = vunpack.c.l.b16 %v155
    %v635 = vunpack.c.h.b16 %v155
    %v636 = vunpack.c.l.b16 %v156
    %v637 = vunpack.c.h.b16 %v156
    %v638 = vunpack.c.l.b16 %v157
    %v639 = vunpack.c.h.b16 %v157
    %v640 = vunpack.c.l.b16 %v158
    %v641 = vunpack.c.h.b16 %v158
    %v642 = vunpack.c.l.b16 %v159
    %v643 = vunpack.c.h.b16 %v159
    %v644 = vunpack.c.l.b16 %v160
    %v645 = vunpack.c.h.b16 %v160
    %v646 = vunpack.c.l.b16 %v161
    %v647 = vunpack.c.h.b16 %v161
    %v648 = vunpack.c.l.b16 %v162
    %v649 = vunpack.c.h.b16 %v162
    %v650 = vunpack.c.l.b16 %v163
    %v651 = vunpack.c.h.b16 %v163
    %v652 = vunpack.c.l.b16 %v164
    %v653 = vunpack.c.h.b16 %v164
    %v654 = vunpack.c.l.b16 %v165
    %v655 = vunpack.c.h.b16 %v165
    %v656 = vunpack.c.l.b16 %v166
    %v657 = vunpack.c.h.b16 %v166
    %v658 = vunpack.c.l.b16 %v167
    %v659 = vunpack.c.h.b16 %v167
    %v660 = vunpack.c.l.b16 %v168
    %v661 = vunpack.c.h.b16 %v168
    %v662 = vunpack.c.l.b16 %v169
    %v663 = vunpack.c.h.b16 %v169
    %v664 = vunpack.c.l.b16 %v170
    %v665 = vunpack.c.h.b16 %v170
    %v666 = vunpack.c.l.b16 %v171
    %v667 = vunpack.c.h.b16 %v171
    %v668 = vunpack.c.l.b16 %v172
    %v669 = vunpack.c.h.b16 %v172
    %v670 = vunpack.c.l.b16 %v173
    %v671 = vunpack.c.h.b16 %v173
    %v672 = vunpack.c.l.b16 %v174
    %v673 = vunpack.c.h.b16 %v174
    %v674 = vunpack.c.l.b16 %v175
    %v675 = vunpack.c.h.b16 %v175
    %v676 = vunpack.c.l.b16 %v176
    %v677 = vunpack.c.h.b16 %v176
    %v678 = vunpack.c.l.b16 %v177
    %v679 = vunpack.c.h.b16 %v177
    %v680 = vunpack.c.l.b16 %v178
    %v681 = vunpack.c.h.b16 %v178
    %v682 = vunpack.c.l.b16 %v179
    %v683 = vunpack.c.h.b16 %v179
    %v684 = vunpack.c.l.b16 %v180
    %v685 = vunpack.c.h.b16 %v180
    %v686 = vunpack.c.l.b16 %v181
    %v687 = vunpack.c.h.b16 %v181
    %v688 = vunpack.c.l.b16 %v182
    %v689 = vunpack.c.h.b16 %v182
    %v690 = vunpack.c.l.b16 %v183
    %v691 = vunpack.c.h.b16 %v183
    %v692 = vunpack.c.l.b16 %v184
    %v693 = vunpack.c.h.b16 %v184
    %v694 = vunpack.c.l.b16 %v185
    %v695 = vunpack.c.h.b16 %v185
    %v696 = vunpack.c.l.b16 %v186
    %v697 = vunpack.c.h.b16 %v186
    %v698 = vunpack.c.l.b16 %v187
    %v699 = vunpack.c.h.b16 %v187
    %v700 = vunpack.c.l.b16 %v188
    %v701 = vunpack.c.h.b16 %v188
    %v702 = vunpack.c.l.b16 %v189
    %v703 = vunpack.c.h.b16 %v189
    %v704 = vunpack.c.l.b16 %v190
    %v705 = vunpack.c.h.b16 %v190
    %v706 = vunpack.c.l.b16 %v191
    %v707 = vunpack.c.h.b16 %v191
    %v708 = vunpack.c.l.b16 %v192
    %v709 = vunpack.c.h.b16 %v192
    %v710 = vunpack.c.l.b16 %v193
    %v711 = vunpack.c.h.b16 %v193
    %v712 = vunpack.c.l.b16 %v194
    %v713 = vunpack.c.h.b16 %v194
    %v714 = vunpack.c.l.b16 %v195
    %v715 = vunpack.c.h.b16 %v195
    %v716 = vunpack.c.l.b16 %v196
    %v717 = vunpack.c.h.b16 %v196
    %v718 = vunpack.c.l.b16 %v197
    %v719 = vunpack.c.h.b16 %v197
    %v720 = vunpack.c.l.b16 %v198
    %v721 = vunpack.c.h.b16 %v198
    %v722 = vunpack.c.l.b16 %v199
    %v723 = vunpack.c.h.b16 %v199
    %v724 = vunpack.c.l.b16 %v200
    %v725 = vunpack.c.h.b16 %v200
    %v726 = vunpack.c.l.b16 %v201
    %v727 = vunpack.c.h.b16 %v201
    %v728 = vunpack.c.l.b16 %v202
    %v729 = vunpack.c.h.b16 %v202
    %v730 = vunpack.c.l.b16 %v203
    %v731 = vunpack.c.h.b16 %v203
    %v732 = vunpack.c.l.b16 %v204
    %v733 = vunpack.c.h.b16 %v204
    %v734 = vunpack.c.l.b16 %v205
    %v735 = vunpack.c.h.b16 %v205
    %v736 = vunpack.c.l.b16 %v206
    %v737 = vunpack.c.h.b16 %v206
    %v738 = vunpack.c.l.b16 %v207
    %v739 = vunpack.c.h.b16 %v207
    %v740 = vunpack.c.l.b16 %v208
    %v741 = vunpack.c.h.b16 %v208
    %v742 = vunpack.c.l.b16 %v209
    %v743 = vunpack.c.h.b16 %v209
    %v744 = vunpack.c.l.b16 %v210
    %v745 = vunpack.c.h.b16 %v210
    %v746 = vunpack.c.l.b16 %v211
    %v747 = vunpack.c.h.b16 %v211
    %v748 = vunpack.c.l.b16 %v212
    %v749 = vunpack.c.h.b16 %v212
    %v750 = vunpack.c.l.b16 %v213
    %v751 = vunpack.c.h.b16 %v213
    %v752 = vunpack.c.l.b16 %v214
    %v753 = vunpack.c.h.b16 %v214
    %v754 = vunpack.c.l.b16 %v215
    %v755 = vunpack.c.h.b16 %v215
    %v756 = vunpack.c.l.b16 %v216
    %v757 = vunpack.c.h.b16 %v216
    %v758 = vunpack.c.l.b16 %v217
    %v759 = vunpack.c.h.b16 %v217
    %v760 = vunpack.c.l.b16 %v218
    %v761 = vunpack.c.h.b16 %v218
    %v762 = vunpack.c.l.b16 %v219
    %v763 = vunpack.c.h.b16 %v219
    %v764 = vunpack.c.l.b16 %v220
    %v765 = vunpack.c.h.b16 %v220
    %v766 = vunpack.c.l.b16 %v221
    %v767 = vunpack.c.h.b16 %v221
    %v768 = vunpack.c.l.b16 %v222
    %v769 = vunpack.c.h.b16 %v222
    %v770 = vunpack.c.l.b16 %v223
    %v771 = vunpack.c.h.b16 %v223
    %v772 = vunpack.c.l.b16 %v224
    %v773 = vunpack.c.h.b16 %v224
    %v774 = vunpack.c.l.b16 %v225
    %v775 = vunpack.c.h.b16 %v225
    %v776 = vunpack.c.l.b16 %v226
    %v777 = vunpack.c.h.b16 %v226
    %v778 = vunpack.c.l.b16 %v227
    %v779 = vunpack.c.h.b16 %v227
    %v780 = vunpack.c.l.b16 %v228
    %v781 = vunpack.c.h.b16 %v228
    %v782 = vunpack.c.l.b16 %v229
    %v783 = vunpack.c.h.b16 %v229
    %v784 = vunpack.c.l.b16 %v230
    %v785 = vunpack.c.h.b16 %v230
    %v786 = vunpack.c.l.b16 %v231
    %v787 = vunpack.c.h.b16 %v231
    %v788 = vunpack.c.l.b16 %v232
    %v789 = vunpack.c.h.b16 %v232
    %v790 = vunpack.c.l.b16 %v233
    %v791 = vunpack.c.h.b16 %v233
    %v792 = vunpack.c.l.b16 %v234
    %v793 = vunpack.c.h.b16 %v234
    %v794 = vunpack.c.l.b16 %v235
    %v795 = vunpack.c.h.b16 %v235
    %v796 = vunpack.c.l.b16 %v236
    %v797 = vunpack.c.h.b16 %v236
    %v798 = vunpack.c.l.b16 %v237
    %v799 = vunpack.c.h.b16 %v237
    %v800 = vunpack.c.l.b16 %v238
    %v801 = vunpack.c.h.b16 %v238
    %v802 = vunpack.c.l.b16 %v239
    %v803 = vunpack.c.h.b16 %v239
    %v804 = vunpack.c.l.b16 %v240
    %v805 = vunpack.c.h.b16 %v240
    %v806 = vunpack.c.l.b16 %v241
    %v807 = vunpack.c.h.b16 %v241
    %v808 = vunpack.c.l.b16 %v242
    %v809 = vunpack.c.h.b16 %v242
    %v810 = vunpack.c.l.b16 %v243
    %v811 = vunpack.c.h.b16 %v243
    %v812 = vunpack.c.l.b16 %v244
    %v813 = vunpack.c.h.b16 %v244
    %v814 = vunpack.c.l.b16 %v245
    %v815 = vunpack.c.h.b16 %v245
    %v816 = vunpack.c.l.b16 %v246
    %v817 = vunpack.c.h.b16 %v246
    %v818 = vunpack.c.l.b16 %v247
    %v819 = vunpack.c.h.b16 %v247
    %v820 = vunpack.c.l.b16 %v248
    %v821 = vunpack.c.h.b16 %v248
    %v822 = vunpack.c.l.b16 %v249
    %v823 = vunpack.c.h.b16 %v249
    %v824 = vunpack.c.l.b16 %v250
    %v825 = vunpack.c.h.b16 %v250
    %v826 = vunpack.c.l.b16 %v251
    %v827 = vunpack.c.h.b16 %v251
    %v828 = vunpack.c.l.b16 %v252
    %v829 = vunpack.c.h.b16 %v252
    %v830 = vunpack.c.l.b16 %v253
    %v831 = vunpack.c.h.b16 %v253
    %v832 = vunpack.c.l.b16 %v254
    %v833 = vunpack.c.h.b16 %v254
    %v834 = vunpack.c.l.b16 %v255
    %v835 = vunpack.c.h.b16 %v255
    %v836 = vunpack.c.l.b16 %v256
    %v837 = vunpack.c.h.b16 %v256
    %v838 = vunpack.c.l.b16 %v257
    %v839 = vunpack.c.h.b16 %v257
    %v840 = vunpack.c.l.b16 %v258
    %v841 = vunpack.c.h.b16 %v258
    %v842 = vunpack.c.l.b16 %v259
    %v843 = vunpack.c.h.b16 %v259
    %v844 = vunpack.c.l.b16 %v260
    %v845 = vunpack.c.h.b16 %v260
    %v846 = vunpack.c.l.b16 %v261
    %v847 = vunpack.c.h.b16 %v261
    %v848 = vunpack.c.l.b16 %v262
    %v849 = vunpack.c.h.b16 %v262
    %v850 = vunpack.c.l.b16 %v263
    %v851 = vunpack.c.h.b16 %v263
    %v852 = vunpack.c.l.b16 %v264
    %v853 = vunpack.c.h.b16 %v264
    %v854 = vunpack.c.l.b16 %v265
    %v855 = vunpack.c.h.b16 %v265
    %v856 = vunpack.c.l.b16 %v266
    %v857 = vunpack.c.h.b16 %v266
    %v858 = vunpack.c.l.b16 %v267
    %v859 = vunpack.c.h.b16 %v267
    %v860 = vunpack.c.l.b16 %v268
    %v861 = vunpack.c.h.b16 %v268
    %v862 = vunpack.c.l.b16 %v269
    %v863 = vunpack.c.h.b16 %v269
    %v864 = vpack.c.b16 %v474, %v472
    %v865 = vpack.c.b16 %v475, %v473
    %v866 = vpack.c.b16 %v478, %v476
    %v867 = vpack.c.b16 %v479, %v477
    %v868 = vpack.c.b16 %v482, %v480
    %v869 = vpack.c.b16 %v483, %v481
    %v870 = vpack.c.b16 %v486, %v484
    %v871 = vpack.c.b16 %v487, %v485
    %v872 = vpack.c.b16 %v490, %v488
    %v873 = vpack.c.b16 %v491, %v489
    %v874 = vpack.c.b16 %v494, %v492
    %v875 = vpack.c.b16 %v495, %v493
    %v876 = vpack.c.b16 %v498, %v496
    %v877 = vpack.c.b16 %v499, %v497
    %v878 = vpack.c.b16 %v502, %v500
    %v879 = vpack.c.b16 %v503, %v501
    %v880 = vpack.c.b16 %v506, %v504
    %v881 = vpack.c.b16 %v507, %v505
    %v882 = vpack.c.b16 %v510, %v508
    %v883 = vpack.c.b16 %v511, %v509
    %v884 = vpack.c.b16 %v514, %v512
    %v885 = vpack.c.b16 %v515, %v513
    %v886 = vpack.c.b16 %v518, %v516
    %v887 = vpack.c.b16 %v519, %v517
    %v888 = vpack.c.b16 %v522, %v520
    %v889 = vpack.c.b16 %v523, %v521
    %v890 = vpack.c.b16 %v526, %v524
    %v891 = vpack.c.b16 %v527, %v525
    %v892 = vpack.c.b16 %v530, %v528
    %v893 = vpack.c.b16 %v531, %v529
    %v894 = vpack.c.b16 %v534, %v532
    %v895 = vpack.c.b16 %v535, %v533
    %v896 = vpack.c.b16 %v538, %v536
    %v897 = vpack.c.b16 %v539, %v537
    %v898 = vpack.c.b16 %v542, %v540
    %v899 = vpack.c.b16 %v543, %v541
    %v900 = vpack.c.b16 %v546, %v544
    %v901 = vpack.c.b16 %v547, %v545
    %v902 = vpack.c.b16 %v550, %v548
    %v903 = vpack.c.b16 %v551, %v549
    %v904 = vpack.c.b16 %v554, %v552
    %v905 = vpack.c.b16 %v555, %v553
    %v906 = vpack.c.b16 %v558, %v556
    %v907 = vpack.c.b16 %v559, %v557
    %v908 = vpack.c.b16 %v562, %v560
    %v909 = vpack.c.b16 %v563, %v561
    %v910 = vpack.c.b16 %v566, %v564
    %v911 = vpack.c.b16 %v567, %v565
    %v912 = vpack.c.b16 %v570, %v568
    %v913 = vpack.c.b16 %v571, %v569
    %v914 = vpack.c.b16 %v574, %v572
    %v915 = vpack.c.b16 %v575, %v573
    %v916 = vpack.c.b16 %v578, %v576
    %v917 = vpack.c.b16 %v579, %v577
    %v918 = vpack.c.b16 %v582, %v580
    %v919 = vpack.c.b16 %v583, %v581
    %v920 = vpack.c.b16 %v586, %v584
    %v921 = vpack.c.b16 %v587, %v585
    %v922 = vpack.c.b16 %v590, %v588
    %v923 = vpack.c.b16 %v591, %v589
    %v924 = vpack.c.b16 %v594, %v592
    %v925 = vpack.c.b16 %v595, %v593
    %v926 = vpack.c.b16 %v598, %v596
    %v927 = vpack.c.b16 %v599, %v597
    %v928 = vpack.c.b16 %v602, %v600
    %v929 = vpack.c.b16 %v603, %v601
    %v930 = vpack.c.b16 %v606, %v604
    %v931 = vpack.c.b16 %v607, %v605
    %v932 = vpack.c.b16 %v610, %v608
    %v933 = vpack.c.b16 %v611, %v609
    %v934 = vpack.c.b16 %v614, %v612
    %v935 = vpack.c.b16 %v615, %v613
    %v936 = vpack.c.b16 %v618, %v616
    %v937 = vpack.c.b16 %v619, %v617
    %v938 = vpack.c.b16 %v622, %v620
    %v939 = vpack.c.b16 %v623, %v621
    %v940 = vpack.c.b16 %v626, %v624
    %v941 = vpack.c.b16 %v627, %v625
    %v942 = vpack.c.b16 %v630, %v628
    %v943 = vpack.c.b16 %v631, %v629
    %v944 = vpack.c.b16 %v634, %v632
    %v945 = vpack.c.b16 %v635, %v633
    %v946 = vpack.c.b16 %v638, %v636
    %v947 = vpack.c.b16 %v639, %v637
    %v948 = vpack.c.b16 %v642, %v640
    %v949 = vpack.c.b16 %v643, %v641
    %v950 = vpack.c.b16 %v646, %v644
    %v951 = vpack.c.b16 %v647, %v645
    %v952 = vpack.c.b16 %v650, %v648
    %v953 = vpack.c.b16 %v651, %v649
    %v954 = vpack.c.b16 %v654, %v652
    %v955 = vpack.c.b16 %v655, %v653
    %v956 = vpack.c.b16 %v658, %v656
    %v957 = vpack.c.b16 %v659, %v657
    %v958 = vpack.c.b16 %v662, %v660
    %v959 = vpack.c.b16 %v663, %v661
    %v960 = vpack.c.b16 %v666, %v664
    %v961 = vpack.c.b16 %v667, %v665
    %v962 = vpack.c.b16 %v670, %v668
    %v963 = vpack.c.b16 %v671, %v669
    %v964 = vpack.c.b16 %v674, %v672
    %v965 = vpack.c.b16 %v675, %v673
    %v966 = vpack.c.b16 %v678, %v676
    %v967 = vpack.c.b16 %v679, %v677
    %v968 = vpack.c.b16 %v682, %v680
    %v969 = vpack.c.b16 %v683, %v681
    %v970 = vpack.c.b16 %v686, %v684
    %v971 = vpack.c.b16 %v687, %v685
    %v972 = vpack.c.b16 %v690, %v688
    %v973 = vpack.c.b16 %v691, %v689
    %v974 = vpack.c.b16 %v694, %v692
    %v975 = vpack.c.b16 %v695, %v693
    %v976 = vpack.c.b16 %v698, %v696
    %v977 = vpack.c.b16 %v699, %v697
    %v978 = vpack.c.b16 %v702, %v700
    %v979 = vpack.c.b16 %v703, %v701
    %v980 = vpack.c.b16 %v706, %v704
    %v981 = vpack.c.b16 %v707, %v705
    %v982 = vpack.c.b16 %v710, %v708
    %v983 = vpack.c.b16 %v711, %v709
    %v984 = vpack.c.b16 %v714, %v712
    %v985 = vpack.c.b16 %v715, %v713
    %v986 = vpack.c.b16 %v718, %v716
    %v987 = vpack.c.b16 %v719, %v717
    %v988 = vpack.c.b16 %v722, %v720
    %v989 = vpack.c.b16 %v723, %v721
    %v990 = vpack.c.b16 %v726, %v724
    %v991 = vpack.c.b16 %v727, %v725
    %v992 = vpack.c.b16 %v730, %v728
    %v993 = vpack.c.b16 %v731, %v729
    %v994 = vpack.c.b16 %v734, %v732
    %v995 = vpack.c.b16 %v735, %v733
    %v996 = vpack.c.b16 %v738, %v736
    %v997 = vpack.c.b16 %v739, %v737
    %v998 = vpack.c.b16 %v742, %v740
    %v999 = vpack.c.b16 %v743, %v741
    %v1000 = vpack.c.b16 %v746, %v744
    %v1001 = vpack.c.b16 %v747, %v745
    %v1002 = vpack.c.b16 %v750, %v748
    %v1003 = vpack.c.b16 %v751, %v749
    %v1004 = vpack.c.b16 %v754, %v752
    %v1005 = vpack.c.b16 %v755, %v753
    %v1006 = vpack.c.b16 %v758, %v756
    %v1007 = vpack.c.b16 %v759, %v757
    %v1008 = vpack.c.b16 %v762, %v760
    %v1009 = vpack.c.b16 %v763, %v761
    %v1010 = vpack.c.b16 %v766, %v764
    %v1011 = vpack.c.b16 %v767, %v765
    %v1012 = vpack.c.b16 %v770, %v768
    %v1013 = vpack.c.b16 %v771, %v769
    %v1014 = vpack.c.b16 %v774, %v772
    %v1015 = vpack.c.b16 %v775, %v773
    %v1016 = vpack.c.b16 %v778, %v776
    %v1017 = vpack.c.b16 %v779, %v777
    %v1018 = vpack.c.b16 %v782, %v780
    %v1019 = vpack.c.b16 %v783, %v781
    %v1020 = vpack.c.b16 %v786, %v784
    %v1021 = vpack.c.b16 %v787, %v785
    %v1022 = vpack.c.b16 %v790, %v788
    %v1023 = vpack.c.b16 %v791, %v789
    %v1024 = vpack.c.b16 %v794, %v792
    %v1025 = vpack.c.b16 %v795, %v793
    %v1026 = vpack.c.b16 %v798, %v796
    %v1027 = vpack.c.b16 %v799, %v797
    %v1028 = vpack.c.b16 %v802, %v800
    %v1029 = vpack.c.b16 %v803, %v801
    %v1030 = vpack.c.b16 %v806, %v804
    %v1031 = vpack.c.b16 %v807, %v805
    %v1032 = vpack.c.b16 %v810, %v808
    %v1033 = vpack.c.b16 %v811, %v809
    %v1034 = vpack.c.b16 %v814, %v812
    %v1035 = vpack.c.b16 %v815, %v813
    %v1036 = vpack.c.b16 %v818, %v816
    %v1037 = vpack.c.b16 %v819, %v817
    %v1038 = vpack.c.b16 %v822, %v820
    %v1039 = vpack.c.b16 %v823, %v821
    %v1040 = vpack.c.b16 %v826, %v824
    %v1041 = vpack.c.b16 %v827, %v825
    %v1042 = vpack.c.b16 %v830, %v828
    %v1043 = vpack.c.b16 %v831, %v829
    %v1044 = vpack.c.b16 %v834, %v832
    %v1045 = vpack.c.b16 %v835, %v833
    %v1046 = vpack.c.b16 %v838, %v836
    %v1047 = vpack.c.b16 %v839, %v837
    %v1048 = vpack.c.b16 %v842, %v840
    %v1049 = vpack.c.b16 %v843, %v841
    %v1050 = vpack.c.b16 %v846, %v844
    %v1051 = vpack.c.b16 %v847, %v845
    %v1052 = vpack.c.b16 %v850, %v848
    %v1053 = vpack.c.b16 %v851, %v849
    %v1054 = vpack.c.b16 %v854, %v852
    %v1055 = vpack.c.b16 %v855, %v853
    %v1056 = vpack.c.b16 %v858, %v856
    %v1057 = vpack.c.b16 %v859, %v857
    %v1058 = vpack.c.b16 %v862, %v860
    %v1059 = vpack.c.b16 %v863, %v861
    %vm1256 = vcmask 261120
    %v1258 = vsel %vm1256, %v73, 0
    %1260 = vmatpush.bf16.msra.mxu0 %v878
    %1261 = vmatpush.bf16.msra.mxu0 %v876
    %1262 = vmatpush.bf16.msra.mxu0 %v874
    %1263 = vmatpush.bf16.msra.mxu0 %v872
    %1264 = vmatpush.bf16.msra.mxu0 %v870
    %1265 = vmatpush.bf16.msra.mxu0 %v868
    %1266 = vmatpush.bf16.msra.mxu0 %v866
    %1267 = vmatpush.bf16.msra.mxu0 %v864
    %1268 = vmatmul.bf16.gmra.mxu0 %v61
    %v1269 = vpop.f32.mrf.mxu0
    %v1270 = vadd.f32 %v272, %v1269
    %v1271 = vpop.f32.mrf.mxu0
    %1272 = vdwg.mxu0
    %1273 = vmatpush.bf16.msra.mxu0 %v894
    %1274 = vmatpush.bf16.msra.mxu0 %v892
    %1275 = vmatpush.bf16.msra.mxu0 %v890
    %1276 = vmatpush.bf16.msra.mxu0 %v888
    %1277 = vmatpush.bf16.msra.mxu0 %v886
    %1278 = vmatpush.bf16.msra.mxu0 %v884
    %1279 = vmatpush.bf16.msra.mxu0 %v882
    %1280 = vmatpush.bf16.msra.mxu0 %v880
    %1281 = vmatmul.bf16.gmra.mxu0 %v62
    %v1282 = vpop.f32.mrf.mxu0
    %v1283 = vadd.f32 %v1270, %v1282
    %v1284 = vpop.f32.mrf.mxu0
    %1285 = vdwg.mxu0
    %1286 = vmatpush.bf16.msra.mxu0 %v910
    %1287 = vmatpush.bf16.msra.mxu0 %v908
    %1288 = vmatpush.bf16.msra.mxu0 %v906
    %1289 = vmatpush.bf16.msra.mxu0 %v904
    %1290 = vmatpush.bf16.msra.mxu0 %v902
    %1291 = vmatpush.bf16.msra.mxu0 %v900
    %1292 = vmatpush.bf16.msra.mxu0 %v898
    %1293 = vmatpush.bf16.msra.mxu0 %v896
    %1294 = vmatmul.bf16.gmra.mxu0 %v63
    %v1295 = vpop.f32.mrf.mxu0
    %v1296 = vadd.f32 %v1283, %v1295
    %v1297 = vpop.f32.mrf.mxu0
    %1298 = vdwg.mxu0
    %1299 = vmatpush.bf16.msra.mxu0 %v926
    %1300 = vmatpush.bf16.msra.mxu0 %v924
    %1301 = vmatpush.bf16.msra.mxu0 %v922
    %1302 = vmatpush.bf16.msra.mxu0 %v920
    %1303 = vmatpush.bf16.msra.mxu0 %v918
    %1304 = vmatpush.bf16.msra.mxu0 %v916
    %1305 = vmatpush.bf16.msra.mxu0 %v914
    %1306 = vmatpush.bf16.msra.mxu0 %v912
    %1307 = vmatmul.bf16.gmra.mxu0 %v64
    %v1308 = vpop.f32.mrf.mxu0
    %v1309 = vadd.f32 %v1296, %v1308
    %v1310 = vpop.f32.mrf.mxu0
    %1311 = vdwg.mxu0
    %1312 = vmatpush.bf16.msra.mxu0 %v942
    %1313 = vmatpush.bf16.msra.mxu0 %v940
    %1314 = vmatpush.bf16.msra.mxu0 %v938
    %1315 = vmatpush.bf16.msra.mxu0 %v936
    %1316 = vmatpush.bf16.msra.mxu0 %v934
    %1317 = vmatpush.bf16.msra.mxu0 %v932
    %1318 = vmatpush.bf16.msra.mxu0 %v930
    %1319 = vmatpush.bf16.msra.mxu0 %v928
    %1320 = vmatmul.bf16.gmra.mxu0 %v65
    %v1321 = vpop.f32.mrf.mxu0
    %v1322 = vadd.f32 %v1309, %v1321
    %v1323 = vpop.f32.mrf.mxu0
    %1324 = vdwg.mxu0
    %1325 = vmatpush.bf16.msra.mxu0 %v958
    %1326 = vmatpush.bf16.msra.mxu0 %v956
    %1327 = vmatpush.bf16.msra.mxu0 %v954
    %1328 = vmatpush.bf16.msra.mxu0 %v952
    %1329 = vmatpush.bf16.msra.mxu0 %v950
    %1330 = vmatpush.bf16.msra.mxu0 %v948
    %1331 = vmatpush.bf16.msra.mxu0 %v946
    %1332 = vmatpush.bf16.msra.mxu0 %v944
    %1333 = vmatmul.bf16.gmra.mxu0 %v66
    %v1334 = vpop.f32.mrf.mxu0
    %v1335 = vadd.f32 %v1322, %v1334
    %v1336 = vpop.f32.mrf.mxu0
    %1337 = vdwg.mxu0
    %1338 = vmatpush.bf16.msra.mxu0 %v974
    %1339 = vmatpush.bf16.msra.mxu0 %v972
    %1340 = vmatpush.bf16.msra.mxu0 %v970
    %1341 = vmatpush.bf16.msra.mxu0 %v968
    %1342 = vmatpush.bf16.msra.mxu0 %v966
    %1343 = vmatpush.bf16.msra.mxu0 %v964
    %1344 = vmatpush.bf16.msra.mxu0 %v962
    %1345 = vmatpush.bf16.msra.mxu0 %v960
    %1346 = vmatmul.bf16.gmra.mxu0 %v67
    %v1347 = vpop.f32.mrf.mxu0
    %v1348 = vadd.f32 %v1335, %v1347
    %v1349 = vpop.f32.mrf.mxu0
    %1350 = vdwg.mxu0
    %1351 = vmatpush.bf16.msra.mxu0 %v990
    %1352 = vmatpush.bf16.msra.mxu0 %v988
    %1353 = vmatpush.bf16.msra.mxu0 %v986
    %1354 = vmatpush.bf16.msra.mxu0 %v984
    %1355 = vmatpush.bf16.msra.mxu0 %v982
    %1356 = vmatpush.bf16.msra.mxu0 %v980
    %1357 = vmatpush.bf16.msra.mxu0 %v978
    %1358 = vmatpush.bf16.msra.mxu0 %v976
    %1359 = vmatmul.bf16.gmra.mxu0 %v68
    %v1360 = vpop.f32.mrf.mxu0
    %v1361 = vadd.f32 %v1348, %v1360
    %v1362 = vpop.f32.mrf.mxu0
    %1363 = vdwg.mxu0
    %1364 = vmatpush.bf16.msra.mxu0 %v1006
    %1365 = vmatpush.bf16.msra.mxu0 %v1004
    %1366 = vmatpush.bf16.msra.mxu0 %v1002
    %1367 = vmatpush.bf16.msra.mxu0 %v1000
    %1368 = vmatpush.bf16.msra.mxu0 %v998
    %1369 = vmatpush.bf16.msra.mxu0 %v996
    %1370 = vmatpush.bf16.msra.mxu0 %v994
    %1371 = vmatpush.bf16.msra.mxu0 %v992
    %1372 = vmatmul.bf16.gmra.mxu0 %v69
    %v1373 = vpop.f32.mrf.mxu0
    %v1374 = vadd.f32 %v1361, %v1373
    %v1375 = vpop.f32.mrf.mxu0
    %1376 = vdwg.mxu0
    %1377 = vmatpush.bf16.msra.mxu0 %v1022
    %1378 = vmatpush.bf16.msra.mxu0 %v1020
    %1379 = vmatpush.bf16.msra.mxu0 %v1018
    %1380 = vmatpush.bf16.msra.mxu0 %v1016
    %1381 = vmatpush.bf16.msra.mxu0 %v1014
    %1382 = vmatpush.bf16.msra.mxu0 %v1012
    %1383 = vmatpush.bf16.msra.mxu0 %v1010
    %1384 = vmatpush.bf16.msra.mxu0 %v1008
    %1385 = vmatmul.bf16.gmra.mxu0 %v70
    %v1386 = vpop.f32.mrf.mxu0
    %v1387 = vadd.f32 %v1374, %v1386
    %v1388 = vpop.f32.mrf.mxu0
    %1389 = vdwg.mxu0
    %1390 = vmatpush.bf16.msra.mxu0 %v1038
    %1391 = vmatpush.bf16.msra.mxu0 %v1036
    %1392 = vmatpush.bf16.msra.mxu0 %v1034
    %1393 = vmatpush.bf16.msra.mxu0 %v1032
    %1394 = vmatpush.bf16.msra.mxu0 %v1030
    %1395 = vmatpush.bf16.msra.mxu0 %v1028
    %1396 = vmatpush.bf16.msra.mxu0 %v1026
    %1397 = vmatpush.bf16.msra.mxu0 %v1024
    %1398 = vmatmul.bf16.gmra.mxu0 %v71
    %v1399 = vpop.f32.mrf.mxu0
    %v1400 = vadd.f32 %v1387, %v1399
    %v1401 = vpop.f32.mrf.mxu0
    %1402 = vdwg.mxu0
    %1403 = vmatpush.bf16.msra.mxu0 %v1054
    %1404 = vmatpush.bf16.msra.mxu0 %v1052
    %1405 = vmatpush.bf16.msra.mxu0 %v1050
    %1406 = vmatpush.bf16.msra.mxu0 %v1048
    %1407 = vmatpush.bf16.msra.mxu0 %v1046
    %1408 = vmatpush.bf16.msra.mxu0 %v1044
    %1409 = vmatpush.bf16.msra.mxu0 %v1042
    %1410 = vmatpush.bf16.msra.mxu0 %v1040
    %1411 = vmatmul.bf16.gmra.mxu0 %v72
    %v1412 = vpop.f32.mrf.mxu0
    %v1413 = vadd.f32 %v1400, %v1412
    %v1414 = vpop.f32.mrf.mxu0
    %1415 = vdwg.mxu0
    %1416 = vmatpush.bf16.msra.mxu0 0
    %1417 = vmatpush.bf16.msra.mxu0 0
    %1418 = vmatpush.bf16.msra.mxu0 0
    %1419 = vmatpush.bf16.msra.mxu0 0
    %1420 = vmatpush.bf16.msra.mxu0 0
    %1421 = vmatpush.bf16.msra.mxu0 0
    %1422 = vmatpush.bf16.msra.mxu0 %v1058
    %1423 = vmatpush.bf16.msra.mxu0 %v1056
    %1424 = vmatmul.bf16.gmra.mxu0 %v1258
    %v1425 = vpop.f32.mrf.mxu0
    %v1426 = vadd.f32 %v1413, %v1425
    %v1427 = vpop.f32.mrf.mxu0
    %1428 = vdwg.mxu0
    %1429 = vmatpush.bf16.msra.mxu0 %v879
    %1430 = vmatpush.bf16.msra.mxu0 %v877
    %1431 = vmatpush.bf16.msra.mxu0 %v875
    %1432 = vmatpush.bf16.msra.mxu0 %v873
    %1433 = vmatpush.bf16.msra.mxu0 %v871
    %1434 = vmatpush.bf16.msra.mxu0 %v869
    %1435 = vmatpush.bf16.msra.mxu0 %v867
    %1436 = vmatpush.bf16.msra.mxu0 %v865
    %1437 = vmatmul.bf16.gmra.mxu0 %v61
    %v1438 = vpop.f32.mrf.mxu0
    %v1439 = vadd.f32 %v273, %v1438
    %v1440 = vpop.f32.mrf.mxu0
    %1441 = vdwg.mxu0
    %1442 = vmatpush.bf16.msra.mxu0 %v895
    %1443 = vmatpush.bf16.msra.mxu0 %v893
    %1444 = vmatpush.bf16.msra.mxu0 %v891
    %1445 = vmatpush.bf16.msra.mxu0 %v889
    %1446 = vmatpush.bf16.msra.mxu0 %v887
    %1447 = vmatpush.bf16.msra.mxu0 %v885
    %1448 = vmatpush.bf16.msra.mxu0 %v883
    %1449 = vmatpush.bf16.msra.mxu0 %v881
    %1450 = vmatmul.bf16.gmra.mxu0 %v62
    %v1451 = vpop.f32.mrf.mxu0
    %v1452 = vadd.f32 %v1439, %v1451
    %v1453 = vpop.f32.mrf.mxu0
    %1454 = vdwg.mxu0
    %1455 = vmatpush.bf16.msra.mxu0 %v911
    %1456 = vmatpush.bf16.msra.mxu0 %v909
    %1457 = vmatpush.bf16.msra.mxu0 %v907
    %1458 = vmatpush.bf16.msra.mxu0 %v905
    %1459 = vmatpush.bf16.msra.mxu0 %v903
    %1460 = vmatpush.bf16.msra.mxu0 %v901
    %1461 = vmatpush.bf16.msra.mxu0 %v899
    %1462 = vmatpush.bf16.msra.mxu0 %v897
    %1463 = vmatmul.bf16.gmra.mxu0 %v63
    %v1464 = vpop.f32.mrf.mxu0
    %v1465 = vadd.f32 %v1452, %v1464
    %v1466 = vpop.f32.mrf.mxu0
    %1467 = vdwg.mxu0
    %1468 = vmatpush.bf16.msra.mxu0 %v927
    %1469 = vmatpush.bf16.msra.mxu0 %v925
    %1470 = vmatpush.bf16.msra.mxu0 %v923
    %1471 = vmatpush.bf16.msra.mxu0 %v921
    %1472 = vmatpush.bf16.msra.mxu0 %v919
    %1473 = vmatpush.bf16.msra.mxu0 %v917
    %1474 = vmatpush.bf16.msra.mxu0 %v915
    %1475 = vmatpush.bf16.msra.mxu0 %v913
    %1476 = vmatmul.bf16.gmra.mxu0 %v64
    %v1477 = vpop.f32.mrf.mxu0
    %v1478 = vadd.f32 %v1465, %v1477
    %v1479 = vpop.f32.mrf.mxu0
    %1480 = vdwg.mxu0
    %1481 = vmatpush.bf16.msra.mxu0 %v943
    %1482 = vmatpush.bf16.msra.mxu0 %v941
    %1483 = vmatpush.bf16.msra.mxu0 %v939
    %1484 = vmatpush.bf16.msra.mxu0 %v937
    %1485 = vmatpush.bf16.msra.mxu0 %v935
    %1486 = vmatpush.bf16.msra.mxu0 %v933
    %1487 = vmatpush.bf16.msra.mxu0 %v931
    %1488 = vmatpush.bf16.msra.mxu0 %v929
    %1489 = vmatmul.bf16.gmra.mxu0 %v65
    %v1490 = vpop.f32.mrf.mxu0
    %v1491 = vadd.f32 %v1478, %v1490
    %v1492 = vpop.f32.mrf.mxu0
    %1493 = vdwg.mxu0
    %1494 = vmatpush.bf16.msra.mxu0 %v959
    %1495 = vmatpush.bf16.msra.mxu0 %v957
    %1496 = vmatpush.bf16.msra.mxu0 %v955
    %1497 = vmatpush.bf16.msra.mxu0 %v953
    %1498 = vmatpush.bf16.msra.mxu0 %v951
    %1499 = vmatpush.bf16.msra.mxu0 %v949
    %1500 = vmatpush.bf16.msra.mxu0 %v947
    %1501 = vmatpush.bf16.msra.mxu0 %v945
    %1502 = vmatmul.bf16.gmra.mxu0 %v66
    %v1503 = vpop.f32.mrf.mxu0
    %v1504 = vadd.f32 %v1491, %v1503
    %v1505 = vpop.f32.mrf.mxu0
    %1506 = vdwg.mxu0
    %1507 = vmatpush.bf16.msra.mxu0 %v975
    %1508 = vmatpush.bf16.msra.mxu0 %v973
    %1509 = vmatpush.bf16.msra.mxu0 %v971
    %1510 = vmatpush.bf16.msra.mxu0 %v969
    %1511 = vmatpush.bf16.msra.mxu0 %v967
    %1512 = vmatpush.bf16.msra.mxu0 %v965
    %1513 = vmatpush.bf16.msra.mxu0 %v963
    %1514 = vmatpush.bf16.msra.mxu0 %v961
    %1515 = vmatmul.bf16.gmra.mxu0 %v67
    %v1516 = vpop.f32.mrf.mxu0
    %v1517 = vadd.f32 %v1504, %v1516
    %v1518 = vpop.f32.mrf.mxu0
    %1519 = vdwg.mxu0
    %1520 = vmatpush.bf16.msra.mxu0 %v991
    %1521 = vmatpush.bf16.msra.mxu0 %v989
    %1522 = vmatpush.bf16.msra.mxu0 %v987
    %1523 = vmatpush.bf16.msra.mxu0 %v985
    %1524 = vmatpush.bf16.msra.mxu0 %v983
    %1525 = vmatpush.bf16.msra.mxu0 %v981
    %1526 = vmatpush.bf16.msra.mxu0 %v979
    %1527 = vmatpush.bf16.msra.mxu0 %v977
    %1528 = vmatmul.bf16.gmra.mxu0 %v68
    %v1529 = vpop.f32.mrf.mxu0
    %v1530 = vadd.f32 %v1517, %v1529
    %v1531 = vpop.f32.mrf.mxu0
    %1532 = vdwg.mxu0
    %1533 = vmatpush.bf16.msra.mxu0 %v1007
    %1534 = vmatpush.bf16.msra.mxu0 %v1005
    %1535 = vmatpush.bf16.msra.mxu0 %v1003
    %1536 = vmatpush.bf16.msra.mxu0 %v1001
    %1537 = vmatpush.bf16.msra.mxu0 %v999
    %1538 = vmatpush.bf16.msra.mxu0 %v997
    %1539 = vmatpush.bf16.msra.mxu0 %v995
    %1540 = vmatpush.bf16.msra.mxu0 %v993
    %1541 = vmatmul.bf16.gmra.mxu0 %v69
    %v1542 = vpop.f32.mrf.mxu0
    %v1543 = vadd.f32 %v1530, %v1542
    %v1544 = vpop.f32.mrf.mxu0
    %1545 = vdwg.mxu0
    %1546 = vmatpush.bf16.msra.mxu0 %v1023
    %1547 = vmatpush.bf16.msra.mxu0 %v1021
    %1548 = vmatpush.bf16.msra.mxu0 %v1019
    %1549 = vmatpush.bf16.msra.mxu0 %v1017
    %1550 = vmatpush.bf16.msra.mxu0 %v1015
    %1551 = vmatpush.bf16.msra.mxu0 %v1013
    %1552 = vmatpush.bf16.msra.mxu0 %v1011
    %1553 = vmatpush.bf16.msra.mxu0 %v1009
    %1554 = vmatmul.bf16.gmra.mxu0 %v70
    %v1555 = vpop.f32.mrf.mxu0
    %v1556 = vadd.f32 %v1543, %v1555
    %v1557 = vpop.f32.mrf.mxu0
    %1558 = vdwg.mxu0
    %1559 = vmatpush.bf16.msra.mxu0 %v1039
    %1560 = vmatpush.bf16.msra.mxu0 %v1037
    %1561 = vmatpush.bf16.msra.mxu0 %v1035
    %1562 = vmatpush.bf16.msra.mxu0 %v1033
    %1563 = vmatpush.bf16.msra.mxu0 %v1031
    %1564 = vmatpush.bf16.msra.mxu0 %v1029
    %1565 = vmatpush.bf16.msra.mxu0 %v1027
    %1566 = vmatpush.bf16.msra.mxu0 %v1025
    %1567 = vmatmul.bf16.gmra.mxu0 %v71
    %v1568 = vpop.f32.mrf.mxu0
    %v1569 = vadd.f32 %v1556, %v1568
    %v1570 = vpop.f32.mrf.mxu0
    %1571 = vdwg.mxu0
    %1572 = vmatpush.bf16.msra.mxu0 %v1055
    %1573 = vmatpush.bf16.msra.mxu0 %v1053
    %1574 = vmatpush.bf16.msra.mxu0 %v1051
    %1575 = vmatpush.bf16.msra.mxu0 %v1049
    %1576 = vmatpush.bf16.msra.mxu0 %v1047
    %1577 = vmatpush.bf16.msra.mxu0 %v1045
    %1578 = vmatpush.bf16.msra.mxu0 %v1043
    %1579 = vmatpush.bf16.msra.mxu0 %v1041
    %1580 = vmatmul.bf16.gmra.mxu0 %v72
    %v1581 = vpop.f32.mrf.mxu0
    %v1582 = vadd.f32 %v1569, %v1581
    %v1583 = vpop.f32.mrf.mxu0
    %1584 = vdwg.mxu0
    %1585 = vmatpush.bf16.msra.mxu0 0
    %1586 = vmatpush.bf16.msra.mxu0 0
    %1587 = vmatpush.bf16.msra.mxu0 0
    %1588 = vmatpush.bf16.msra.mxu0 0
    %1589 = vmatpush.bf16.msra.mxu0 0
    %1590 = vmatpush.bf16.msra.mxu0 0
    %1591 = vmatpush.bf16.msra.mxu0 %v1059
    %1592 = vmatpush.bf16.msra.mxu0 %v1057
    %1593 = vmatmul.bf16.gmra.mxu0 %v1258
    %v1594 = vpop.f32.mrf.mxu0
    %v1595 = vadd.f32 %v1582, %v1594
    %v1596 = vpop.f32.mrf.mxu0
    %1597 = vdwg.mxu0
    %v1598 = vmax.f32 %v1426, 0.0
    %v1599 = vmax.f32 %v1595, 0.0
    %v1600 = vpack.c.bf16 %v1598, %v1598
    %v1601 = vpack.c.bf16 %v1599, %v1599
    %v1602 = vld [vmem:[%s3] sm:$0xf]
    %v1603 = vld [vmem:[%s3 + $0x4] sm:$0xf]
    %v1604 = vld [vmem:[%s3 + $0x8] sm:$0xf]
    %v1605 = vld [vmem:[%s3 + $0xc] sm:$0xf]
    %v1606 = vld [vmem:[%s3 + $0x10] sm:$0xf]
    %v1607 = vld [vmem:[%s3 + $0x14] sm:$0xf]
    %v1608 = vld [vmem:[%s3 + $0x18] sm:$0xf]
    %v1609 = vld [vmem:[%s3 + $0x1c] sm:$0xf]
    %v1610 = vld [vmem:[%s3 + $0x20] sm:$0xf]
    %v1611 = vld [vmem:[%s3 + $0x24] sm:$0xf]
    %v1612 = vld [vmem:[%s3 + $0x28] sm:$0xf]
    %v1613 = vld [vmem:[%s3 + $0x2c] sm:$0xf]
    %v1614 = vld [vmem:[%s3 + $0x30] sm:$0xf]
    %v1615 = vld [vmem:[%s3 + $0x34] sm:$0xf]
    %v1616 = vld [vmem:[%s3 + $0x38] sm:$0xf]
    %v1617 = vld [vmem:[%s3 + $0x3c] sm:$0xf]
    %v1618 = vld [vmem:[%s3 + $0x40] sm:$0xf]
    %v1619 = vld [vmem:[%s3 + $0x44] sm:$0xf]
    %v1620 = vld [vmem:[%s3 + $0x48] sm:$0xf]
    %v1621 = vld [vmem:[%s3 + $0x4c] sm:$0xf]
    %v1622 = vld [vmem:[%s3 + $0x50] sm:$0xf]
    %v1623 = vld [vmem:[%s3 + $0x54] sm:$0xf]
    %v1624 = vld [vmem:[%s3 + $0x58] sm:$0xf]
    %v1625 = vld [vmem:[%s3 + $0x5c] sm:$0xf]
    %v1626 = vld [vmem:[%s3 + $0x60] sm:$0xf]
    %v1627 = vld [vmem:[%s3 + $0x64] sm:$0xf]
    %v1628 = vld [vmem:[%s3 + $0x68] sm:$0xf]
    %v1629 = vld [vmem:[%s3 + $0x6c] sm:$0xf]
    %v1630 = vld [vmem:[%s3 + $0x70] sm:$0xf]
    %v1631 = vld [vmem:[%s3 + $0x74] sm:$0xf]
    %v1632 = vld [vmem:[%s3 + $0x78] sm:$0xf]
    %v1633 = vld [vmem:[%s3 + $0x7c] sm:$0xf]
    %v1634 = vld [vmem:[%s4] sm:$0x1]
    %v1636 = vperm.slane %v1634, 0
    %v1670 = vunpack.c.l.b16 %v1602
    %v1671 = vunpack.c.l.b16 %v1603
    %v1672 = vunpack.c.l.b16 %v1604
    %v1673 = vunpack.c.l.b16 %v1605
    %v1674 = vunpack.c.l.b16 %v1606
    %v1675 = vunpack.c.l.b16 %v1607
    %v1676 = vunpack.c.l.b16 %v1608
    %v1677 = vunpack.c.l.b16 %v1609
    %v1678 = vunpack.c.l.b16 %v1610
    %v1679 = vunpack.c.l.b16 %v1611
    %v1680 = vunpack.c.l.b16 %v1612
    %v1681 = vunpack.c.l.b16 %v1613
    %v1682 = vunpack.c.l.b16 %v1614
    %v1683 = vunpack.c.l.b16 %v1615
    %v1684 = vunpack.c.l.b16 %v1616
    %v1685 = vunpack.c.l.b16 %v1617
    %v1686 = vunpack.c.l.b16 %v1618
    %v1687 = vunpack.c.l.b16 %v1619
    %v1688 = vunpack.c.l.b16 %v1620
    %v1689 = vunpack.c.l.b16 %v1621
    %v1690 = vunpack.c.l.b16 %v1622
    %v1691 = vunpack.c.l.b16 %v1623
    %v1692 = vunpack.c.l.b16 %v1624
    %v1693 = vunpack.c.l.b16 %v1625
    %v1694 = vunpack.c.l.b16 %v1626
    %v1695 = vunpack.c.l.b16 %v1627
    %v1696 = vunpack.c.l.b16 %v1628
    %v1697 = vunpack.c.l.b16 %v1629
    %v1698 = vunpack.c.l.b16 %v1630
    %v1699 = vunpack.c.l.b16 %v1631
    %v1700 = vunpack.c.l.b16 %v1632
    %v1701 = vunpack.c.l.b16 %v1633
    %v1702 = vpack.c.b16 %v1671, %v1670
    %v1703 = vpack.c.b16 %v1673, %v1672
    %v1704 = vpack.c.b16 %v1675, %v1674
    %v1705 = vpack.c.b16 %v1677, %v1676
    %v1706 = vpack.c.b16 %v1679, %v1678
    %v1707 = vpack.c.b16 %v1681, %v1680
    %v1708 = vpack.c.b16 %v1683, %v1682
    %v1709 = vpack.c.b16 %v1685, %v1684
    %v1710 = vpack.c.b16 %v1687, %v1686
    %v1711 = vpack.c.b16 %v1689, %v1688
    %v1712 = vpack.c.b16 %v1691, %v1690
    %v1713 = vpack.c.b16 %v1693, %v1692
    %v1714 = vpack.c.b16 %v1695, %v1694
    %v1715 = vpack.c.b16 %v1697, %v1696
    %v1716 = vpack.c.b16 %v1699, %v1698
    %v1717 = vpack.c.b16 %v1701, %v1700
    %1734 = vmatpush.bf16.msra.mxu0 %v1709
    %1735 = vmatpush.bf16.msra.mxu0 %v1708
    %1736 = vmatpush.bf16.msra.mxu0 %v1707
    %1737 = vmatpush.bf16.msra.mxu0 %v1706
    %1738 = vmatpush.bf16.msra.mxu0 %v1705
    %1739 = vmatpush.bf16.msra.mxu0 %v1704
    %1740 = vmatpush.bf16.msra.mxu0 %v1703
    %1741 = vmatpush.bf16.msra.mxu0 %v1702
    %1742 = vmatmul.bf16.gmra.mxu0 %v1600
    %v1743 = vpop.f32.mrf.mxu0
    %v1744 = vadd.f32 %v1636, %v1743
    %v1745 = vpop.f32.mrf.mxu0
    %1746 = vdwg.mxu0
    %1747 = vmatpush.bf16.msra.mxu0 %v1717
    %1748 = vmatpush.bf16.msra.mxu0 %v1716
    %1749 = vmatpush.bf16.msra.mxu0 %v1715
    %1750 = vmatpush.bf16.msra.mxu0 %v1714
    %1751 = vmatpush.bf16.msra.mxu0 %v1713
    %1752 = vmatpush.bf16.msra.mxu0 %v1712
    %1753 = vmatpush.bf16.msra.mxu0 %v1711
    %1754 = vmatpush.bf16.msra.mxu0 %v1710
    %1755 = vmatmul.bf16.gmra.mxu0 %v1601
    %v1756 = vpop.f32.mrf.mxu0
    %v1757 = vadd.f32 %v1744, %v1756
    %v1758 = vpop.f32.mrf.mxu0
    %1759 = vdwg.mxu0
    %vm1760 = vcmask 41984
    %1761 = vst.msk [vmem:[#allocation2] sm:$0x3] %vm1760, %v1757
    // Predicated region
    $region22: #{dqn_forward.7} parent=1 // pred_check
      _
    $region23: #{dqn_forward.7} parent=1 // pred_check_branch
      %1763 = sbr.rel (0) target = $region25
    $region24: #{dqn_forward.7} parent=1 // pred_region
      %1765 = vsyncadd [#allocation3], 0
      %s1767 = sshll.u32 [#allocation2], 4
      %s1768 = int_to_ptr.vmem [resolvable:$true] %s1767
      %s1769 = sshll.u32 %s5, 4
      %s1770 = int_to_ptr.hbm [resolvable:$true] %s1769
      %1772 = dma.vmem_to_hbm [thread:$0]  %s1768, 32, %s1770, [#allocation3]
    $region25: #{dqn_forward.7} parent=1 // pred_fallthru
      _
    // Predicated region
    $region26: #{dqn_forward.7} parent=1 // pred_check
      _
    $region27: #{dqn_forward.7} parent=1 // pred_check_branch
      %1774 = sbr.rel (0) target = $region29
    $region28: #{dqn_forward.7} parent=1 // pred_region
      %1776 = dma.done [#allocation3], 32
    $region29: #{dqn_forward.7} parent=1 // pred_fallthru
      _
    %1777 = vsyncpa [#allocation3], 1

</llo_original>
